<compile_context>
chip_gen: v6e
topology: v6e:2x2x1
jax: 0.10.0
libtpu: 0.0.40
codegen_flags: <defaults>
</compile_context>

<pallas_src>
import jax
import jax.numpy as jnp
from jax import lax
from jax.experimental import pallas as pl
from jax.experimental.pallas import tpu as pltpu

LANE = 128        # TPU lane width
K1_PAD = 32       # conv1 im2col feature dim (25 real taps, zero padded)
C1_PAD = 32       # conv1 output-channel lanes (10 real)
H1_LANES = 16     # lanes of the h1 write-back (10 real channels)
K2_PAD = 256      # conv2 im2col feature dim (250 real, zero padded)
C2_PAD = 32       # conv2 output-channel lanes (20 real)
VMEM_LIMIT = 32 * 1024 * 1024


# ----------------------------- Pallas kernels ------------------------------

def conv1_pool_relu_kernel(p_ref, w_ref, b_ref, o_ref):
    """conv1 (4 per-pool-window im2col dots + running max) -> +bias -> relu.

    p_ref: (Bt, 576, 32) bf16 patches, rows = q*144 + p
           (q = 2x2 pool-window position, p = pooled position, row-major).
    w_ref: (32, 32)  bf16 conv1 weight (taps x out-channels, zero padded).
    b_ref: (1, 32)   f32 conv1 bias (zero padded).
    o_ref: (Bt, 144, 16) bf16 pooled/ReLU'd activation (10 real channels).
    """
    bt, rows, kd = p_ref.shape
    pos = rows // 4                                  # 144 pooled positions
    w = w_ref[...]
    m = jnp.dot(p_ref[:, 0:pos, :].reshape(bt * pos, kd), w,
                preferred_element_type=jnp.float32)
    for q in range(1, 4):
        yq = jnp.dot(p_ref[:, q * pos:(q + 1) * pos, :].reshape(bt * pos, kd),
                     w, preferred_element_type=jnp.float32)
        m = jnp.maximum(m, yq)                       # 2x2 max-pool
    h = jnp.maximum(m + b_ref[...], 0.0)             # (Bt*144, 32) f32
    nlan = o_ref.shape[2]
    o_ref[...] = h[:, :nlan].astype(o_ref.dtype).reshape(bt, pos, nlan)


def conv2_fc_kernel(p_ref, w2_ref, b2_ref, wf_ref, bf_ref, o_ref):
    """conv2 (im2col matmul) -> 2x2 maxpool -> +bias -> relu -> fc1 -> relu.

    p_ref:  (Bt, 64, 256)  bf16 conv2 patches, rows = q*16 + p.
    w2_ref: (256, 32)      bf16 conv2 weight (250 real rows, 20 real cols).
    b2_ref: (1, 32)        f32 conv2 bias (padded).
    wf_ref: (16, 32, 128)  bf16 fc1 weight; wf[p, c, co] = fc1.w[co, c*16 + p]
                           (matches PyTorch's NCHW .view(-1, 320) flatten).
    bf_ref: (1, 128)       f32 fc1 bias (padded).
    o_ref:  (Bt, 128)      f32 output (first 10 lanes valid).
    """
    bt, rows, kd = p_ref.shape
    pos = rows // 4                                  # 16 pooled positions
    y = jnp.dot(p_ref[...].reshape(bt * rows, kd), w2_ref[...],
                preferred_element_type=jnp.float32)
    y = y.reshape(bt, rows, y.shape[-1])
    m = jnp.maximum(jnp.maximum(y[:, 0:pos], y[:, pos:2 * pos]),
                    jnp.maximum(y[:, 2 * pos:3 * pos], y[:, 3 * pos:4 * pos]))
    a2 = jnp.maximum(m + b2_ref[...], 0.0).astype(jnp.bfloat16)  # (Bt, 16, 32)

    # fc1 as 16 accumulated dots; the flatten order is folded into wf.
    z = jnp.dot(a2[:, 0, :], wf_ref[0], preferred_element_type=jnp.float32)
    for p in range(1, pos):
        z = z + jnp.dot(a2[:, p, :], wf_ref[p],
                        preferred_element_type=jnp.float32)
    o_ref[...] = jnp.maximum(z + bf_ref[...], 0.0).astype(o_ref.dtype)


# ------------------------------- glue (JAX) --------------------------------

def _im2col_pool_rows(x_nhwc, k, f_pad):
    """k x k valid-conv im2col patches grouped by 2x2 max-pool window.

    Returns (B, 4*P, f_pad): P = pooled output positions (row-major), row
    index = q*P + p (q = pool-window position), feature index =
    c*k*k + kh*k + kw (PyTorch Conv2d weight order), zero-padded to f_pad.
    """
    B, H, W, C = x_nhwc.shape
    oh, ow = H - k + 1, W - k + 1
    ph, pw = oh // 2, ow // 2
    F = C * k * k
    slices = [x_nhwc[:, kh:kh + oh, kw:kw + ow, :]
              for kh in range(k) for kw in range(k)]
    pat = jnp.stack(slices, axis=-1)                  # (B, oh, ow, C, k*k)
    pat = pat.reshape(B, oh, ow, F)                   # feat = c*k*k + kh*k + kw
    g = pat.reshape(B, ph, 2, pw, 2, F)
    g = g.transpose(0, 2, 4, 1, 3, 5)                 # (B, 2, 2, ph, pw, F)
    g = g.reshape(B, 4 * ph * pw, F)                  # row = q*(ph*pw) + p
    if f_pad > F:
        g = jnp.pad(g, ((0, 0), (0, 0), (0, f_pad - F)))
    return g


def _pad2(a, rows, cols):
    return jnp.pad(a, ((0, rows - a.shape[0]), (0, cols - a.shape[1])))


def _prepare_params(params):
    """Compact, MXU-friendly (zero-padded) weight / bias layouts."""
    w1 = _pad2(params["w1"].reshape(10, 25).T, K1_PAD, C1_PAD)
    b1 = jnp.pad(params["b1"], (0, C1_PAD - 10)).reshape(1, C1_PAD)

    w2 = _pad2(params["w2"].reshape(20, 250).T, K2_PAD, C2_PAD)
    b2 = jnp.pad(params["b2"], (0, C2_PAD - 20)).reshape(1, C2_PAD)

    # fc1: PyTorch flatten index = c*16 + p  (p = pooled spatial, row-major).
    wf = jnp.transpose(params["wfc"].reshape(10, 20, 16), (2, 1, 0))  # [p,c,co]
    wf = jnp.pad(wf, ((0, 0), (0, C2_PAD - 20), (0, LANE - 10)))
    bf = jnp.pad(params["bfc"], (0, LANE - 10)).reshape(1, LANE)

    return dict(w1=w1.astype(jnp.bfloat16), b1=b1.astype(jnp.float32),
                w2=w2.astype(jnp.bfloat16), b2=b2.astype(jnp.float32),
                wf=wf.astype(jnp.bfloat16), bf=bf.astype(jnp.float32))


def _conv1_stage(p1, w1, b1, Bt):
    Bp, R, K = p1.shape                               # (Bp, 576, 32)
    P = R // 4
    return pl.pallas_call(
        conv1_pool_relu_kernel,
        out_shape=jax.ShapeDtypeStruct((Bp, P, H1_LANES), jnp.bfloat16),
        grid=(Bp // Bt,),
        in_specs=[
            pl.BlockSpec((Bt, R, K), lambda i: (i, 0, 0)),
            pl.BlockSpec((K, C1_PAD), lambda i: (0, 0)),
            pl.BlockSpec((1, C1_PAD), lambda i: (0, 0)),
        ],
        out_specs=pl.BlockSpec((Bt, P, H1_LANES), lambda i: (i, 0, 0)),
        compiler_params=pltpu.CompilerParams(
            dimension_semantics=("parallel",),
            vmem_limit_bytes=VMEM_LIMIT),
    )(p1, w1, b1)


def _conv2_fc_stage(p2, w2, b2, wf, bf, Bt):
    Bp, R, K = p2.shape                               # (Bp, 64, 256)
    return pl.pallas_call(
        conv2_fc_kernel,
        out_shape=jax.ShapeDtypeStruct((Bp, LANE), jnp.float32),
        grid=(Bp // Bt,),
        in_specs=[
            pl.BlockSpec((Bt, R, K), lambda i: (i, 0, 0)),
            pl.BlockSpec((K, C2_PAD), lambda i: (0, 0)),
            pl.BlockSpec((1, C2_PAD), lambda i: (0, 0)),
            pl.BlockSpec((16, C2_PAD, LANE), lambda i: (0, 0, 0)),
            pl.BlockSpec((1, LANE), lambda i: (0, 0)),
        ],
        out_specs=pl.BlockSpec((Bt, LANE), lambda i: (i, 0)),
        compiler_params=pltpu.CompilerParams(
            dimension_semantics=("parallel",),
            vmem_limit_bytes=VMEM_LIMIT),
    )(p2, w2, b2, wf, bf)


def net_forward(params, x_nchw):
    # x: (B, 1, 28, 28) float32, NCHW like PyTorch.
    B = x_nchw.shape[0]
    # Batch tile <= 32 (VMEM-safe on v5e/v6e/v7x); prefer >= 2 grid steps so
    # both v7x TensorCores get work on the 'parallel' axis.
    if B <= 16:
        Bt = 8
    elif B <= 32:
        Bt = 16
    else:
        Bt = 32
    Bp = ((B + Bt - 1) // Bt) * Bt
    x = x_nchw.astype(jnp.float32)
    if Bp != B:
        x = jnp.pad(x, ((0, Bp - B), (0, 0), (0, 0), (0, 0)))
    x = jnp.transpose(x, (0, 2, 3, 1))                       # NHWC (Bp,28,28,1)

    pp = _prepare_params(params)

    # stage 1: conv1 -> maxpool2 -> relu (fused; compact im2col built in XLA)
    p1 = _im2col_pool_rows(x, 5, K1_PAD).astype(jnp.bfloat16)     # (Bp,576,32)
    h1 = _conv1_stage(p1, pp["w1"], pp["b1"], Bt)                 # (Bp,144,16) bf16

    # TODO(synk): nn.Dropout2d is identity here (eval-mode semantics);
    # training-mode channel dropout is not implemented.

    # stage 2: conv2 -> maxpool2 -> relu -> NCHW flatten -> fc1 -> relu
    h1s = h1.reshape(Bp, 12, 12, H1_LANES)[..., :10]
    p2 = _im2col_pool_rows(h1s, 5, K2_PAD).astype(jnp.bfloat16)   # (Bp,64,256)
    out = _conv2_fc_stage(p2, pp["w2"], pp["b2"], pp["wf"], pp["bf"], Bt)

    return out[:B, :10]


# -------------------------- reference & test setup --------------------------

def net_reference(params, x):
    """Pure-JAX (XLA) f32 reference of the PyTorch forward pass (eval mode)."""
    dn = ("NCHW", "OIHW", "NCHW")
    y = lax.conv_general_dilated(x, params["w1"], (1, 1), "VALID",
                                 dimension_numbers=dn)
    y = y + params["b1"].reshape(1, -1, 1, 1)
    y = lax.reduce_window(y, -jnp.inf, lax.max, (1, 1, 2, 2), (1, 1, 2, 2),
                          "VALID")
    y = jnp.maximum(y, 0.0)
    y = lax.conv_general_dilated(y, params["w2"], (1, 1), "VALID",
                                 dimension_numbers=dn)
    y = y + params["b2"].reshape(1, -1, 1, 1)
    y = lax.reduce_window(y, -jnp.inf, lax.max, (1, 1, 2, 2), (1, 1, 2, 2),
                          "VALID")
    y = jnp.maximum(y, 0.0)
    y = y.reshape(y.shape[0], -1)                              # NCHW flatten
    y = y @ params["wfc"].T + params["bfc"]
    return jnp.maximum(y, 0.0)


def init_params(key):
    k1, k2, k3, k4, k5, k6 = jax.random.split(key, 6)
    return {
        "w1": 0.1 * jax.random.normal(k1, (10, 1, 5, 5), jnp.float32),
        "b1": 0.1 * jax.random.normal(k2, (10,), jnp.float32),
        "w2": 0.1 * jax.random.normal(k3, (20, 10, 5, 5), jnp.float32),
        "b2": 0.1 * jax.random.normal(k4, (20,), jnp.float32),
        "wfc": 0.1 * jax.random.normal(k5, (10, 320), jnp.float32),
        "bfc": 0.1 * jax.random.normal(k6, (10,), jnp.float32),
    }


if __name__ == "__main__":
    key = jax.random.PRNGKey(0)
    pkey, xkey = jax.random.split(key)
    params = init_params(pkey)
    # 28x28 input is required by the module (fc1 expects 320 = 20*4*4 features).
    x = jax.random.normal(xkey, (2, 1, 28, 28), jnp.float32)

    out = jax.jit(net_forward)(params, x)
    jax.block_until_ready(out)
    assert out.shape == (2, 10) and out.dtype == jnp.float32

    ref = net_reference(params, x)
    err = float(jnp.max(jnp.abs(out - ref)))
    assert err < 0.15, f"max abs error vs f32 reference too large: {err}"

    print("KERNEL_OK")
</pallas_src>

<mosaic_0001>
module attributes {stable_mosaic.version = 11 : i64} {
  func.func @conv1_pool_relu_kernel(%arg0: i32, %arg1: memref<8x576x32xbf16, #tpu.memory_space<vmem>>, %arg2: memref<32x32xbf16, #tpu.memory_space<vmem>>, %arg3: memref<1x32xf32, #tpu.memory_space<vmem>>, %arg4: memref<8x144x16xbf16, #tpu.memory_space<vmem>>) attributes {dimension_semantics = [#tpu.dimension_semantics<parallel>], iteration_bounds = array<i64: 1>, scalar_prefetch = 0 : i64, scratch_operands = 0 : i64, tpu.core_type = #tpu.core_type<tc>, window_params = [{transform_indices = @transform_0, window_bounds = array<i64: 8, 576, 32>}, {pipeline_mode = #tpu.pipeline_mode<synchronous>, transform_indices = @transform_1, window_bounds = array<i64: 32, 32>}, {pipeline_mode = #tpu.pipeline_mode<synchronous>, transform_indices = @transform_2, window_bounds = array<i64: 1, 32>}, {transform_indices = @transform_3, window_bounds = array<i64: 8, 144, 16>}]} {
    %c0 = arith.constant 0 : index
    %c0_0 = arith.constant 0 : index
    %0 = vector.load %arg2[%c0, %c0_0] : memref<32x32xbf16, #tpu.memory_space<vmem>>, vector<32x32xbf16>
    %c0_1 = arith.constant 0 : index
    %c0_2 = arith.constant 0 : index
    %c0_3 = arith.constant 0 : index
    %1 = vector.load %arg1[%c0_1, %c0_2, %c0_3] : memref<8x576x32xbf16, #tpu.memory_space<vmem>>, vector<8x144x32xbf16>
    %2 = vector.shape_cast %1 : vector<8x144x32xbf16> to vector<1152x32xbf16>
    %cst = arith.constant dense<0.000000e+00> : vector<1152x32xf32>
    %3 = tpu.matmul %2, %0, %cst {dimension_numbers = #tpu.dot_dimension_numbers<[1], [0], [0], [1], [0, 0, 1, 1], [], []>} : vector<1152x32xbf16>, vector<32x32xbf16>, vector<1152x32xf32> -> vector<1152x32xf32>
    %c0_4 = arith.constant 0 : index
    %c144 = arith.constant 144 : index
    %c0_5 = arith.constant 0 : index
    %4 = vector.load %arg1[%c0_4, %c144, %c0_5] : memref<8x576x32xbf16, #tpu.memory_space<vmem>>, vector<8x144x32xbf16>
    %5 = vector.shape_cast %4 : vector<8x144x32xbf16> to vector<1152x32xbf16>
    %cst_6 = arith.constant dense<0.000000e+00> : vector<1152x32xf32>
    %6 = tpu.matmul %5, %0, %cst_6 {dimension_numbers = #tpu.dot_dimension_numbers<[1], [0], [0], [1], [0, 0, 1, 1], [], []>} : vector<1152x32xbf16>, vector<32x32xbf16>, vector<1152x32xf32> -> vector<1152x32xf32>
    %7 = arith.maximumf %3, %6 : vector<1152x32xf32>
    %c0_7 = arith.constant 0 : index
    %c288 = arith.constant 288 : index
    %c0_8 = arith.constant 0 : index
    %8 = vector.load %arg1[%c0_7, %c288, %c0_8] : memref<8x576x32xbf16, #tpu.memory_space<vmem>>, vector<8x144x32xbf16>
    %9 = vector.shape_cast %8 : vector<8x144x32xbf16> to vector<1152x32xbf16>
    %cst_9 = arith.constant dense<0.000000e+00> : vector<1152x32xf32>
    %10 = tpu.matmul %9, %0, %cst_9 {dimension_numbers = #tpu.dot_dimension_numbers<[1], [0], [0], [1], [0, 0, 1, 1], [], []>} : vector<1152x32xbf16>, vector<32x32xbf16>, vector<1152x32xf32> -> vector<1152x32xf32>
    %11 = arith.maximumf %7, %10 : vector<1152x32xf32>
    %c0_10 = arith.constant 0 : index
    %c432 = arith.constant 432 : index
    %c0_11 = arith.constant 0 : index
    %12 = vector.load %arg1[%c0_10, %c432, %c0_11] : memref<8x576x32xbf16, #tpu.memory_space<vmem>>, vector<8x144x32xbf16>
    %13 = vector.shape_cast %12 : vector<8x144x32xbf16> to vector<1152x32xbf16>
    %cst_12 = arith.constant dense<0.000000e+00> : vector<1152x32xf32>
    %14 = tpu.matmul %13, %0, %cst_12 {dimension_numbers = #tpu.dot_dimension_numbers<[1], [0], [0], [1], [0, 0, 1, 1], [], []>} : vector<1152x32xbf16>, vector<32x32xbf16>, vector<1152x32xf32> -> vector<1152x32xf32>
    %15 = arith.maximumf %11, %14 : vector<1152x32xf32>
    %c0_13 = arith.constant 0 : index
    %c0_14 = arith.constant 0 : index
    %16 = vector.load %arg3[%c0_13, %c0_14] : memref<1x32xf32, #tpu.memory_space<vmem>>, vector<1x32xf32>
    %17 = vector.broadcast %16 : vector<1x32xf32> to vector<1152x32xf32>
    %18 = arith.addf %15, %17 : vector<1152x32xf32>
    %cst_15 = arith.constant 0.000000e+00 : f32
    %19 = vector.broadcast %cst_15 : f32 to vector<1152x32xf32>
    %20 = arith.maximumf %18, %19 : vector<1152x32xf32>
    %21 = vector.extract_strided_slice %20 {offsets = [0, 0], sizes = [1152, 16], strides = [1, 1]} : vector<1152x32xf32> to vector<1152x16xf32>
    %22 = arith.truncf %21 : vector<1152x16xf32> to vector<1152x16xbf16>
    %23 = vector.shape_cast %22 : vector<1152x16xbf16> to vector<8x144x16xbf16>
    %c0_16 = arith.constant 0 : index
    %c0_17 = arith.constant 0 : index
    %c0_18 = arith.constant 0 : index
    %24 = vector.load %arg4[%c0_16, %c0_17, %c0_18] : memref<8x144x16xbf16, #tpu.memory_space<vmem>>, vector<8x144x16xbf16>
    tpu.vector_store %arg4[%c0_16, %c0_17, %c0_18], %23 {strides = array<i32>} : memref<8x144x16xbf16, #tpu.memory_space<vmem>>, vector<8x144x16xbf16>,
    return
  }
  func.func @transform_0(%arg0: i32) -> (i32, i32, i32) {
    %c0_i32 = arith.constant 0 : i32
    %c0_i32_0 = arith.constant 0 : i32
    %c0_i32_1 = arith.constant 0 : i32
    return %arg0, %c0_i32, %c0_i32_0 : i32, i32, i32
  }
  func.func @transform_1(%arg0: i32) -> (i32, i32) {
    %c0_i32 = arith.constant 0 : i32
    %c0_i32_0 = arith.constant 0 : i32
    %c0_i32_1 = arith.constant 0 : i32
    return %c0_i32, %c0_i32_0 : i32, i32
  }
  func.func @transform_2(%arg0: i32) -> (i32, i32) {
    %c0_i32 = arith.constant 0 : i32
    %c0_i32_0 = arith.constant 0 : i32
    %c0_i32_1 = arith.constant 0 : i32
    return %c0_i32, %c0_i32_0 : i32, i32
  }
  func.func @transform_3(%arg0: i32) -> (i32, i32, i32) {
    %c0_i32 = arith.constant 0 : i32
    %c0_i32_0 = arith.constant 0 : i32
    %c0_i32_1 = arith.constant 0 : i32
    return %arg0, %c0_i32, %c0_i32_0 : i32, i32, i32
  }
}

module attributes {stable_mosaic.version = 11 : i64} {
  func.func @conv2_fc_kernel(%arg0: i32, %arg1: memref<8x64x256xbf16, #tpu.memory_space<vmem>>, %arg2: memref<256x32xbf16, #tpu.memory_space<vmem>>, %arg3: memref<1x32xf32, #tpu.memory_space<vmem>>, %arg4: memref<16x32x128xbf16, #tpu.memory_space<vmem>>, %arg5: memref<1x128xf32, #tpu.memory_space<vmem>>, %arg6: memref<8x128xf32, #tpu.memory_space<vmem>>) attributes {dimension_semantics = [#tpu.dimension_semantics<parallel>], iteration_bounds = array<i64: 1>, scalar_prefetch = 0 : i64, scratch_operands = 0 : i64, tpu.core_type = #tpu.core_type<tc>, window_params = [{transform_indices = @transform_0, window_bounds = array<i64: 8, 64, 256>}, {pipeline_mode = #tpu.pipeline_mode<synchronous>, transform_indices = @transform_1, window_bounds = array<i64: 256, 32>}, {pipeline_mode = #tpu.pipeline_mode<synchronous>, transform_indices = @transform_2, window_bounds = array<i64: 1, 32>}, {pipeline_mode = #tpu.pipeline_mode<synchronous>, transform_indices = @transform_3, window_bounds = array<i64: 16, 32, 128>}, {pipeline_mode = #tpu.pipeline_mode<synchronous>, transform_indices = @transform_4, window_bounds = array<i64: 1, 128>}, {transform_indices = @transform_5, window_bounds = array<i64: 8, 128>}]} {
    %c0 = arith.constant 0 : index
    %c0_0 = arith.constant 0 : index
    %c0_1 = arith.constant 0 : index
    %0 = vector.load %arg1[%c0, %c0_0, %c0_1] : memref<8x64x256xbf16, #tpu.memory_space<vmem>>, vector<8x64x256xbf16>
    %1 = vector.shape_cast %0 : vector<8x64x256xbf16> to vector<512x256xbf16>
    %c0_2 = arith.constant 0 : index
    %c0_3 = arith.constant 0 : index
    %2 = vector.load %arg2[%c0_2, %c0_3] : memref<256x32xbf16, #tpu.memory_space<vmem>>, vector<256x32xbf16>
    %cst = arith.constant dense<0.000000e+00> : vector<512x32xf32>
    %3 = tpu.matmul %1, %2, %cst {dimension_numbers = #tpu.dot_dimension_numbers<[1], [0], [0], [1], [0, 0, 1, 1], [], []>} : vector<512x256xbf16>, vector<256x32xbf16>, vector<512x32xf32> -> vector<512x32xf32>
    %4 = vector.shape_cast %3 : vector<512x32xf32> to vector<8x64x32xf32>
    %5 = vector.extract_strided_slice %4 {offsets = [0, 0, 0], sizes = [8, 16, 32], strides = [1, 1, 1]} : vector<8x64x32xf32> to vector<8x16x32xf32>
    %6 = vector.extract_strided_slice %4 {offsets = [0, 16, 0], sizes = [8, 16, 32], strides = [1, 1, 1]} : vector<8x64x32xf32> to vector<8x16x32xf32>
    %7 = arith.maximumf %5, %6 : vector<8x16x32xf32>
    %8 = vector.extract_strided_slice %4 {offsets = [0, 32, 0], sizes = [8, 16, 32], strides = [1, 1, 1]} : vector<8x64x32xf32> to vector<8x16x32xf32>
    %9 = vector.extract_strided_slice %4 {offsets = [0, 48, 0], sizes = [8, 16, 32], strides = [1, 1, 1]} : vector<8x64x32xf32> to vector<8x16x32xf32>
    %10 = arith.maximumf %8, %9 : vector<8x16x32xf32>
    %11 = arith.maximumf %7, %10 : vector<8x16x32xf32>
    %c0_4 = arith.constant 0 : index
    %c0_5 = arith.constant 0 : index
    %12 = vector.load %arg3[%c0_4, %c0_5] : memref<1x32xf32, #tpu.memory_space<vmem>>, vector<1x32xf32>
    %13 = vector.shape_cast %12 : vector<1x32xf32> to vector<1x1x32xf32>
    %14 = vector.broadcast %13 : vector<1x1x32xf32> to vector<8x16x32xf32>
    %15 = arith.addf %11, %14 : vector<8x16x32xf32>
    %cst_6 = arith.constant 0.000000e+00 : f32
    %16 = vector.broadcast %cst_6 : f32 to vector<8x16x32xf32>
    %17 = arith.maximumf %15, %16 : vector<8x16x32xf32>
    %18 = arith.truncf %17 : vector<8x16x32xf32> to vector<8x16x32xbf16>
    %19 = vector.extract_strided_slice %18 {offsets = [0, 0, 0], sizes = [8, 1, 32], strides = [1, 1, 1]} : vector<8x16x32xbf16> to vector<8x1x32xbf16>
    %20 = vector.shape_cast %19 : vector<8x1x32xbf16> to vector<8x32xbf16>
    %c0_7 = arith.constant 0 : index
    %c0_8 = arith.constant 0 : index
    %c0_9 = arith.constant 0 : index
    %21 = vector.load %arg4[%c0_7, %c0_8, %c0_9] : memref<16x32x128xbf16, #tpu.memory_space<vmem>>, vector<1x32x128xbf16>
    %22 = vector.shape_cast %21 : vector<1x32x128xbf16> to vector<32x128xbf16>
    %cst_10 = arith.constant dense<0.000000e+00> : vector<8x128xf32>
    %23 = tpu.matmul %20, %22, %cst_10 {dimension_numbers = #tpu.dot_dimension_numbers<[1], [0], [0], [1], [0, 0, 1, 1], [], []>} : vector<8x32xbf16>, vector<32x128xbf16>, vector<8x128xf32> -> vector<8x128xf32>
    %24 = vector.extract_strided_slice %18 {offsets = [0, 1, 0], sizes = [8, 1, 32], strides = [1, 1, 1]} : vector<8x16x32xbf16> to vector<8x1x32xbf16>
    %25 = vector.shape_cast %24 : vector<8x1x32xbf16> to vector<8x32xbf16>
    %c1 = arith.constant 1 : index
    %c0_11 = arith.constant 0 : index
    %c0_12 = arith.constant 0 : index
    %26 = vector.load %arg4[%c1, %c0_11, %c0_12] : memref<16x32x128xbf16, #tpu.memory_space<vmem>>, vector<1x32x128xbf16>
    %27 = vector.shape_cast %26 : vector<1x32x128xbf16> to vector<32x128xbf16>
    %cst_13 = arith.constant dense<0.000000e+00> : vector<8x128xf32>
    %28 = tpu.matmul %25, %27, %cst_13 {dimension_numbers = #tpu.dot_dimension_numbers<[1], [0], [0], [1], [0, 0, 1, 1], [], []>} : vector<8x32xbf16>, vector<32x128xbf16>, vector<8x128xf32> -> vector<8x128xf32>
    %29 = arith.addf %23, %28 : vector<8x128xf32>
    %30 = vector.extract_strided_slice %18 {offsets = [0, 2, 0], sizes = [8, 1, 32], strides = [1, 1, 1]} : vector<8x16x32xbf16> to vector<8x1x32xbf16>
    %31 = vector.shape_cast %30 : vector<8x1x32xbf16> to vector<8x32xbf16>
    %c2 = arith.constant 2 : index
    %c0_14 = arith.constant 0 : index
    %c0_15 = arith.constant 0 : index
    %32 = vector.load %arg4[%c2, %c0_14, %c0_15] : memref<16x32x128xbf16, #tpu.memory_space<vmem>>, vector<1x32x128xbf16>
    %33 = vector.shape_cast %32 : vector<1x32x128xbf16> to vector<32x128xbf16>
    %cst_16 = arith.constant dense<0.000000e+00> : vector<8x128xf32>
    %34 = tpu.matmul %31, %33, %cst_16 {dimension_numbers = #tpu.dot_dimension_numbers<[1], [0], [0], [1], [0, 0, 1, 1], [], []>} : vector<8x32xbf16>, vector<32x128xbf16>, vector<8x128xf32> -> vector<8x128xf32>
    %35 = arith.addf %29, %34 : vector<8x128xf32>
    %36 = vector.extract_strided_slice %18 {offsets = [0, 3, 0], sizes = [8, 1, 32], strides = [1, 1, 1]} : vector<8x16x32xbf16> to vector<8x1x32xbf16>
    %37 = vector.shape_cast %36 : vector<8x1x32xbf16> to vector<8x32xbf16>
    %c3 = arith.constant 3 : index
    %c0_17 = arith.constant 0 : index
    %c0_18 = arith.constant 0 : index
    %38 = vector.load %arg4[%c3, %c0_17, %c0_18] : memref<16x32x128xbf16, #tpu.memory_space<vmem>>, vector<1x32x128xbf16>
    %39 = vector.shape_cast %38 : vector<1x32x128xbf16> to vector<32x128xbf16>
    %cst_19 = arith.constant dense<0.000000e+00> : vector<8x128xf32>
    %40 = tpu.matmul %37, %39, %cst_19 {dimension_numbers = #tpu.dot_dimension_numbers<[1], [0], [0], [1], [0, 0, 1, 1], [], []>} : vector<8x32xbf16>, vector<32x128xbf16>, vector<8x128xf32> -> vector<8x128xf32>
    %41 = arith.addf %35, %40 : vector<8x128xf32>
    %42 = vector.extract_strided_slice %18 {offsets = [0, 4, 0], sizes = [8, 1, 32], strides = [1, 1, 1]} : vector<8x16x32xbf16> to vector<8x1x32xbf16>
    %43 = vector.shape_cast %42 : vector<8x1x32xbf16> to vector<8x32xbf16>
    %c4 = arith.constant 4 : index
    %c0_20 = arith.constant 0 : index
    %c0_21 = arith.constant 0 : index
    %44 = vector.load %arg4[%c4, %c0_20, %c0_21] : memref<16x32x128xbf16, #tpu.memory_space<vmem>>, vector<1x32x128xbf16>
    %45 = vector.shape_cast %44 : vector<1x32x128xbf16> to vector<32x128xbf16>
    %cst_22 = arith.constant dense<0.000000e+00> : vector<8x128xf32>
    %46 = tpu.matmul %43, %45, %cst_22 {dimension_numbers = #tpu.dot_dimension_numbers<[1], [0], [0], [1], [0, 0, 1, 1], [], []>} : vector<8x32xbf16>, vector<32x128xbf16>, vector<8x128xf32> -> vector<8x128xf32>
    %47 = arith.addf %41, %46 : vector<8x128xf32>
    %48 = vector.extract_strided_slice %18 {offsets = [0, 5, 0], sizes = [8, 1, 32], strides = [1, 1, 1]} : vector<8x16x32xbf16> to vector<8x1x32xbf16>
    %49 = vector.shape_cast %48 : vector<8x1x32xbf16> to vector<8x32xbf16>
    %c5 = arith.constant 5 : index
    %c0_23 = arith.constant 0 : index
    %c0_24 = arith.constant 0 : index
    %50 = vector.load %arg4[%c5, %c0_23, %c0_24] : memref<16x32x128xbf16, #tpu.memory_space<vmem>>, vector<1x32x128xbf16>
    %51 = vector.shape_cast %50 : vector<1x32x128xbf16> to vector<32x128xbf16>
    %cst_25 = arith.constant dense<0.000000e+00> : vector<8x128xf32>
    %52 = tpu.matmul %49, %51, %cst_25 {dimension_numbers = #tpu.dot_dimension_numbers<[1], [0], [0], [1], [0, 0, 1, 1], [], []>} : vector<8x32xbf16>, vector<32x128xbf16>, vector<8x128xf32> -> vector<8x128xf32>
    %53 = arith.addf %47, %52 : vector<8x128xf32>
    %54 = vector.extract_strided_slice %18 {offsets = [0, 6, 0], sizes = [8, 1, 32], strides = [1, 1, 1]} : vector<8x16x32xbf16> to vector<8x1x32xbf16>
    %55 = vector.shape_cast %54 : vector<8x1x32xbf16> to vector<8x32xbf16>
    %c6 = arith.constant 6 : index
    %c0_26 = arith.constant 0 : index
    %c0_27 = arith.constant 0 : index
    %56 = vector.load %arg4[%c6, %c0_26, %c0_27] : memref<16x32x128xbf16, #tpu.memory_space<vmem>>, vector<1x32x128xbf16>
    %57 = vector.shape_cast %56 : vector<1x32x128xbf16> to vector<32x128xbf16>
    %cst_28 = arith.constant dense<0.000000e+00> : vector<8x128xf32>
    %58 = tpu.matmul %55, %57, %cst_28 {dimension_numbers = #tpu.dot_dimension_numbers<[1], [0], [0], [1], [0, 0, 1, 1], [], []>} : vector<8x32xbf16>, vector<32x128xbf16>, vector<8x128xf32> -> vector<8x128xf32>
    %59 = arith.addf %53, %58 : vector<8x128xf32>
    %60 = vector.extract_strided_slice %18 {offsets = [0, 7, 0], sizes = [8, 1, 32], strides = [1, 1, 1]} : vector<8x16x32xbf16> to vector<8x1x32xbf16>
    %61 = vector.shape_cast %60 : vector<8x1x32xbf16> to vector<8x32xbf16>
    %c7 = arith.constant 7 : index
    %c0_29 = arith.constant 0 : index
    %c0_30 = arith.constant 0 : index
    %62 = vector.load %arg4[%c7, %c0_29, %c0_30] : memref<16x32x128xbf16, #tpu.memory_space<vmem>>, vector<1x32x128xbf16>
    %63 = vector.shape_cast %62 : vector<1x32x128xbf16> to vector<32x128xbf16>
    %cst_31 = arith.constant dense<0.000000e+00> : vector<8x128xf32>
    %64 = tpu.matmul %61, %63, %cst_31 {dimension_numbers = #tpu.dot_dimension_numbers<[1], [0], [0], [1], [0, 0, 1, 1], [], []>} : vector<8x32xbf16>, vector<32x128xbf16>, vector<8x128xf32> -> vector<8x128xf32>
    %65 = arith.addf %59, %64 : vector<8x128xf32>
    %66 = vector.extract_strided_slice %18 {offsets = [0, 8, 0], sizes = [8, 1, 32], strides = [1, 1, 1]} : vector<8x16x32xbf16> to vector<8x1x32xbf16>
    %67 = vector.shape_cast %66 : vector<8x1x32xbf16> to vector<8x32xbf16>
    %c8 = arith.constant 8 : index
    %c0_32 = arith.constant 0 : index
    %c0_33 = arith.constant 0 : index
    %68 = vector.load %arg4[%c8, %c0_32, %c0_33] : memref<16x32x128xbf16, #tpu.memory_space<vmem>>, vector<1x32x128xbf16>
    %69 = vector.shape_cast %68 : vector<1x32x128xbf16> to vector<32x128xbf16>
    %cst_34 = arith.constant dense<0.000000e+00> : vector<8x128xf32>
    %70 = tpu.matmul %67, %69, %cst_34 {dimension_numbers = #tpu.dot_dimension_numbers<[1], [0], [0], [1], [0, 0, 1, 1], [], []>} : vector<8x32xbf16>, vector<32x128xbf16>, vector<8x128xf32> -> vector<8x128xf32>
    %71 = arith.addf %65, %70 : vector<8x128xf32>
    %72 = vector.extract_strided_slice %18 {offsets = [0, 9, 0], sizes = [8, 1, 32], strides = [1, 1, 1]} : vector<8x16x32xbf16> to vector<8x1x32xbf16>
    %73 = vector.shape_cast %72 : vector<8x1x32xbf16> to vector<8x32xbf16>
    %c9 = arith.constant 9 : index
    %c0_35 = arith.constant 0 : index
    %c0_36 = arith.constant 0 : index
    %74 = vector.load %arg4[%c9, %c0_35, %c0_36] : memref<16x32x128xbf16, #tpu.memory_space<vmem>>, vector<1x32x128xbf16>
    %75 = vector.shape_cast %74 : vector<1x32x128xbf16> to vector<32x128xbf16>
    %cst_37 = arith.constant dense<0.000000e+00> : vector<8x128xf32>
    %76 = tpu.matmul %73, %75, %cst_37 {dimension_numbers = #tpu.dot_dimension_numbers<[1], [0], [0], [1], [0, 0, 1, 1], [], []>} : vector<8x32xbf16>, vector<32x128xbf16>, vector<8x128xf32> -> vector<8x128xf32>
    %77 = arith.addf %71, %76 : vector<8x128xf32>
    %78 = vector.extract_strided_slice %18 {offsets = [0, 10, 0], sizes = [8, 1, 32], strides = [1, 1, 1]} : vector<8x16x32xbf16> to vector<8x1x32xbf16>
    %79 = vector.shape_cast %78 : vector<8x1x32xbf16> to vector<8x32xbf16>
    %c10 = arith.constant 10 : index
    %c0_38 = arith.constant 0 : index
    %c0_39 = arith.constant 0 : index
    %80 = vector.load %arg4[%c10, %c0_38, %c0_39] : memref<16x32x128xbf16, #tpu.memory_space<vmem>>, vector<1x32x128xbf16>
    %81 = vector.shape_cast %80 : vector<1x32x128xbf16> to vector<32x128xbf16>
    %cst_40 = arith.constant dense<0.000000e+00> : vector<8x128xf32>
    %82 = tpu.matmul %79, %81, %cst_40 {dimension_numbers = #tpu.dot_dimension_numbers<[1], [0], [0], [1], [0, 0, 1, 1], [], []>} : vector<8x32xbf16>, vector<32x128xbf16>, vector<8x128xf32> -> vector<8x128xf32>
    %83 = arith.addf %77, %82 : vector<8x128xf32>
    %84 = vector.extract_strided_slice %18 {offsets = [0, 11, 0], sizes = [8, 1, 32], strides = [1, 1, 1]} : vector<8x16x32xbf16> to vector<8x1x32xbf16>
    %85 = vector.shape_cast %84 : vector<8x1x32xbf16> to vector<8x32xbf16>
    %c11 = arith.constant 11 : index
    %c0_41 = arith.constant 0 : index
    %c0_42 = arith.constant 0 : index
    %86 = vector.load %arg4[%c11, %c0_41, %c0_42] : memref<16x32x128xbf16, #tpu.memory_space<vmem>>, vector<1x32x128xbf16>
    %87 = vector.shape_cast %86 : vector<1x32x128xbf16> to vector<32x128xbf16>
    %cst_43 = arith.constant dense<0.000000e+00> : vector<8x128xf32>
    %88 = tpu.matmul %85, %87, %cst_43 {dimension_numbers = #tpu.dot_dimension_numbers<[1], [0], [0], [1], [0, 0, 1, 1], [], []>} : vector<8x32xbf16>, vector<32x128xbf16>, vector<8x128xf32> -> vector<8x128xf32>
    %89 = arith.addf %83, %88 : vector<8x128xf32>
    %90 = vector.extract_strided_slice %18 {offsets = [0, 12, 0], sizes = [8, 1, 32], strides = [1, 1, 1]} : vector<8x16x32xbf16> to vector<8x1x32xbf16>
    %91 = vector.shape_cast %90 : vector<8x1x32xbf16> to vector<8x32xbf16>
    %c12 = arith.constant 12 : index
    %c0_44 = arith.constant 0 : index
    %c0_45 = arith.constant 0 : index
    %92 = vector.load %arg4[%c12, %c0_44, %c0_45] : memref<16x32x128xbf16, #tpu.memory_space<vmem>>, vector<1x32x128xbf16>
    %93 = vector.shape_cast %92 : vector<1x32x128xbf16> to vector<32x128xbf16>
    %cst_46 = arith.constant dense<0.000000e+00> : vector<8x128xf32>
    %94 = tpu.matmul %91, %93, %cst_46 {dimension_numbers = #tpu.dot_dimension_numbers<[1], [0], [0], [1], [0, 0, 1, 1], [], []>} : vector<8x32xbf16>, vector<32x128xbf16>, vector<8x128xf32> -> vector<8x128xf32>
    %95 = arith.addf %89, %94 : vector<8x128xf32>
    %96 = vector.extract_strided_slice %18 {offsets = [0, 13, 0], sizes = [8, 1, 32], strides = [1, 1, 1]} : vector<8x16x32xbf16> to vector<8x1x32xbf16>
    %97 = vector.shape_cast %96 : vector<8x1x32xbf16> to vector<8x32xbf16>
    %c13 = arith.constant 13 : index
    %c0_47 = arith.constant 0 : index
    %c0_48 = arith.constant 0 : index
    %98 = vector.load %arg4[%c13, %c0_47, %c0_48] : memref<16x32x128xbf16, #tpu.memory_space<vmem>>, vector<1x32x128xbf16>
    %99 = vector.shape_cast %98 : vector<1x32x128xbf16> to vector<32x128xbf16>
    %cst_49 = arith.constant dense<0.000000e+00> : vector<8x128xf32>
    %100 = tpu.matmul %97, %99, %cst_49 {dimension_numbers = #tpu.dot_dimension_numbers<[1], [0], [0], [1], [0, 0, 1, 1], [], []>} : vector<8x32xbf16>, vector<32x128xbf16>, vector<8x128xf32> -> vector<8x128xf32>
    %101 = arith.addf %95, %100 : vector<8x128xf32>
    %102 = vector.extract_strided_slice %18 {offsets = [0, 14, 0], sizes = [8, 1, 32], strides = [1, 1, 1]} : vector<8x16x32xbf16> to vector<8x1x32xbf16>
    %103 = vector.shape_cast %102 : vector<8x1x32xbf16> to vector<8x32xbf16>
    %c14 = arith.constant 14 : index
    %c0_50 = arith.constant 0 : index
    %c0_51 = arith.constant 0 : index
    %104 = vector.load %arg4[%c14, %c0_50, %c0_51] : memref<16x32x128xbf16, #tpu.memory_space<vmem>>, vector<1x32x128xbf16>
    %105 = vector.shape_cast %104 : vector<1x32x128xbf16> to vector<32x128xbf16>
    %cst_52 = arith.constant dense<0.000000e+00> : vector<8x128xf32>
    %106 = tpu.matmul %103, %105, %cst_52 {dimension_numbers = #tpu.dot_dimension_numbers<[1], [0], [0], [1], [0, 0, 1, 1], [], []>} : vector<8x32xbf16>, vector<32x128xbf16>, vector<8x128xf32> -> vector<8x128xf32>
    %107 = arith.addf %101, %106 : vector<8x128xf32>
    %108 = vector.extract_strided_slice %18 {offsets = [0, 15, 0], sizes = [8, 1, 32], strides = [1, 1, 1]} : vector<8x16x32xbf16> to vector<8x1x32xbf16>
    %109 = vector.shape_cast %108 : vector<8x1x32xbf16> to vector<8x32xbf16>
    %c15 = arith.constant 15 : index
    %c0_53 = arith.constant 0 : index
    %c0_54 = arith.constant 0 : index
    %110 = vector.load %arg4[%c15, %c0_53, %c0_54] : memref<16x32x128xbf16, #tpu.memory_space<vmem>>, vector<1x32x128xbf16>
    %111 = vector.shape_cast %110 : vector<1x32x128xbf16> to vector<32x128xbf16>
    %cst_55 = arith.constant dense<0.000000e+00> : vector<8x128xf32>
    %112 = tpu.matmul %109, %111, %cst_55 {dimension_numbers = #tpu.dot_dimension_numbers<[1], [0], [0], [1], [0, 0, 1, 1], [], []>} : vector<8x32xbf16>, vector<32x128xbf16>, vector<8x128xf32> -> vector<8x128xf32>
    %113 = arith.addf %107, %112 : vector<8x128xf32>
    %c0_56 = arith.constant 0 : index
    %c0_57 = arith.constant 0 : index
    %114 = vector.load %arg5[%c0_56, %c0_57] : memref<1x128xf32, #tpu.memory_space<vmem>>, vector<1x128xf32>
    %115 = vector.broadcast %114 : vector<1x128xf32> to vector<8x128xf32>
    %116 = arith.addf %113, %115 : vector<8x128xf32>
    %cst_58 = arith.constant 0.000000e+00 : f32
    %117 = vector.broadcast %cst_58 : f32 to vector<8x128xf32>
    %118 = arith.maximumf %116, %117 : vector<8x128xf32>
    %c0_59 = arith.constant 0 : index
    %c0_60 = arith.constant 0 : index
    %119 = vector.load %arg6[%c0_59, %c0_60] : memref<8x128xf32, #tpu.memory_space<vmem>>, vector<8x128xf32>
    tpu.vector_store %arg6[%c0_59, %c0_60], %118 {strides = array<i32>} : memref<8x128xf32, #tpu.memory_space<vmem>>, vector<8x128xf32>,
    return
  }
  func.func @transform_0(%arg0: i32) -> (i32, i32, i32) {
    %c0_i32 = arith.constant 0 : i32
    %c0_i32_0 = arith.constant 0 : i32
    %c0_i32_1 = arith.constant 0 : i32
    return %arg0, %c0_i32, %c0_i32_0 : i32, i32, i32
  }
  func.func @transform_1(%arg0: i32) -> (i32, i32) {
    %c0_i32 = arith.constant 0 : i32
    %c0_i32_0 = arith.constant 0 : i32
    %c0_i32_1 = arith.constant 0 : i32
    return %c0_i32, %c0_i32_0 : i32, i32
  }
  func.func @transform_2(%arg0: i32) -> (i32, i32) {
    %c0_i32 = arith.constant 0 : i32
    %c0_i32_0 = arith.constant 0 : i32
    %c0_i32_1 = arith.constant 0 : i32
    return %c0_i32, %c0_i32_0 : i32, i32
  }
  func.func @transform_3(%arg0: i32) -> (i32, i32, i32) {
    %c0_i32 = arith.constant 0 : i32
    %c0_i32_0 = arith.constant 0 : i32
    %c0_i32_1 = arith.constant 0 : i32
    %c0_i32_2 = arith.constant 0 : i32
    return %c0_i32, %c0_i32_0, %c0_i32_1 : i32, i32, i32
  }
  func.func @transform_4(%arg0: i32) -> (i32, i32) {
    %c0_i32 = arith.constant 0 : i32
    %c0_i32_0 = arith.constant 0 : i32
    %c0_i32_1 = arith.constant 0 : i32
    return %c0_i32, %c0_i32_0 : i32, i32
  }
  func.func @transform_5(%arg0: i32) -> (i32, i32) {
    %c0_i32 = arith.constant 0 : i32
    %c0_i32_0 = arith.constant 0 : i32
    return %arg0, %c0_i32 : i32, i32
  }
}

</mosaic_0001>

<llo_original>
// kernel: net_forward.2
$region0: #{net_forward.2}
  #allocation0 [shape = 'u32[]', space=smem, size = 0x4, offset = 0x4, fixed_abs, tag = 'smem constant byte address 0x4 - core index']
  #allocation1 [shape = 'u32[144,128]{1,0:T(1,128)}', space=vmem, size = 0x12000, scoped, tag = 'internal scratch']
  %s0 = inlined_call_operand.vmem [shape: bf16[8,576,32], index: 0, kind: input, shape index: {}]
  %s1 = inlined_call_operand.vmem [shape: bf16[32,32], index: 1, kind: input, shape index: {}]
  %s2 = inlined_call_operand.vmem [shape: f32[1,32], index: 2, kind: input, shape index: {}]
  %s3 = inlined_call_operand.vmem [shape: bf16[8,144,16], index: 3, kind: output, shape index: {}]
  %s4 = sld [smem:[#allocation0]]
  $region22: #{net_forward.2} parent=0
    _
  %s6 = ssub.s32 1, %s4
  %s7 = scalar_select 0, %s6, %s4
  // Predicated region
  $region2: #{net_forward.2} parent=0 // pred_check
    _
  $region3: #{net_forward.2} parent=0 // pred_check_branch
    %9 = sbr.rel (0) target = $region5
  $region4: #{net_forward.2} parent=0 // pred_region
    _
  $region5: #{net_forward.2} parent=0 // pred_fallthru
    _
  // Predicated region
  $region6: #{net_forward.2} parent=0 // pred_check
    _
  $region7: #{net_forward.2} parent=0 // pred_check_branch
    %11 = sbr.rel (0) target = $region9
  $region8: #{net_forward.2} parent=0 // pred_region
    _
  $region9: #{net_forward.2} parent=0 // pred_fallthru
    _
  // Predicated region
  $region10: #{net_forward.2} parent=0 // pred_check
    _
  $region11: #{net_forward.2} parent=0 // pred_check_branch
    %13 = sbr.rel (0) target = $region13
  $region12: #{net_forward.2} parent=0 // pred_region
    _
  $region13: #{net_forward.2} parent=0 // pred_fallthru
    _
  %v15 = vld [vmem:[%s1] sm:$0xf]
  %v16 = vld [vmem:[%s1 + $0x4] sm:$0xf]
  %v17 = vld [vmem:[%s1 + $0x8] sm:$0xf]
  %v18 = vld [vmem:[%s1 + $0xc] sm:$0xf]
  %v19 = vld [vmem:[%s0] sm:$0xf]
  %v20 = vld [vmem:[%s0 + $0x4] sm:$0xf]
  %v21 = vld [vmem:[%s0 + $0x8] sm:$0xf]
  %v22 = vld [vmem:[%s0 + $0xc] sm:$0xf]
  %v23 = vld [vmem:[%s0 + $0x10] sm:$0xf]
  %v24 = vld [vmem:[%s0 + $0x14] sm:$0xf]
  %v25 = vld [vmem:[%s0 + $0x18] sm:$0xf]
  %v26 = vld [vmem:[%s0 + $0x1c] sm:$0xf]
  %v27 = vld [vmem:[%s0 + $0x20] sm:$0xf]
  %v28 = vld [vmem:[%s0 + $0x24] sm:$0xf]
  %v29 = vld [vmem:[%s0 + $0x28] sm:$0xf]
  %v30 = vld [vmem:[%s0 + $0x2c] sm:$0xf]
  %v31 = vld [vmem:[%s0 + $0x30] sm:$0xf]
  %v32 = vld [vmem:[%s0 + $0x34] sm:$0xf]
  %v33 = vld [vmem:[%s0 + $0x38] sm:$0xf]
  %v34 = vld [vmem:[%s0 + $0x3c] sm:$0xf]
  %v35 = vld [vmem:[%s0 + $0x40] sm:$0xf]
  %v36 = vld [vmem:[%s0 + $0x44] sm:$0xf]
  %v37 = vld [vmem:[%s0 + $0x120] sm:$0xf]
  %v38 = vld [vmem:[%s0 + $0x124] sm:$0xf]
  %v39 = vld [vmem:[%s0 + $0x128] sm:$0xf]
  %v40 = vld [vmem:[%s0 + $0x12c] sm:$0xf]
  %v41 = vld [vmem:[%s0 + $0x130] sm:$0xf]
  %v42 = vld [vmem:[%s0 + $0x134] sm:$0xf]
  %v43 = vld [vmem:[%s0 + $0x138] sm:$0xf]
  %v44 = vld [vmem:[%s0 + $0x13c] sm:$0xf]
  %v45 = vld [vmem:[%s0 + $0x140] sm:$0xf]
  %v46 = vld [vmem:[%s0 + $0x144] sm:$0xf]
  %v47 = vld [vmem:[%s0 + $0x148] sm:$0xf]
  %v48 = vld [vmem:[%s0 + $0x14c] sm:$0xf]
  %v49 = vld [vmem:[%s0 + $0x150] sm:$0xf]
  %v50 = vld [vmem:[%s0 + $0x154] sm:$0xf]
  %v51 = vld [vmem:[%s0 + $0x158] sm:$0xf]
  %v52 = vld [vmem:[%s0 + $0x15c] sm:$0xf]
  %v53 = vld [vmem:[%s0 + $0x160] sm:$0xf]
  %v54 = vld [vmem:[%s0 + $0x164] sm:$0xf]
  %v55 = vld [vmem:[%s0 + $0x240] sm:$0xf]
  %v56 = vld [vmem:[%s0 + $0x244] sm:$0xf]
  %v57 = vld [vmem:[%s0 + $0x248] sm:$0xf]
  %v58 = vld [vmem:[%s0 + $0x24c] sm:$0xf]
  %v59 = vld [vmem:[%s0 + $0x250] sm:$0xf]
  %v60 = vld [vmem:[%s0 + $0x254] sm:$0xf]
  %v61 = vld [vmem:[%s0 + $0x258] sm:$0xf]
  %v62 = vld [vmem:[%s0 + $0x25c] sm:$0xf]
  %v63 = vld [vmem:[%s0 + $0x260] sm:$0xf]
  %v64 = vld [vmem:[%s0 + $0x264] sm:$0xf]
  %v65 = vld [vmem:[%s0 + $0x268] sm:$0xf]
  %v66 = vld [vmem:[%s0 + $0x26c] sm:$0xf]
  %v67 = vld [vmem:[%s0 + $0x270] sm:$0xf]
  %v68 = vld [vmem:[%s0 + $0x274] sm:$0xf]
  %v69 = vld [vmem:[%s0 + $0x278] sm:$0xf]
  %v70 = vld [vmem:[%s0 + $0x27c] sm:$0xf]
  %v71 = vld [vmem:[%s0 + $0x280] sm:$0xf]
  %v72 = vld [vmem:[%s0 + $0x284] sm:$0xf]
  %v73 = vld [vmem:[%s0 + $0x360] sm:$0xf]
  %v74 = vld [vmem:[%s0 + $0x364] sm:$0xf]
  %v75 = vld [vmem:[%s0 + $0x368] sm:$0xf]
  %v76 = vld [vmem:[%s0 + $0x36c] sm:$0xf]
  %v77 = vld [vmem:[%s0 + $0x370] sm:$0xf]
  %v78 = vld [vmem:[%s0 + $0x374] sm:$0xf]
  %v79 = vld [vmem:[%s0 + $0x378] sm:$0xf]
  %v80 = vld [vmem:[%s0 + $0x37c] sm:$0xf]
  %v81 = vld [vmem:[%s0 + $0x380] sm:$0xf]
  %v82 = vld [vmem:[%s0 + $0x384] sm:$0xf]
  %v83 = vld [vmem:[%s0 + $0x388] sm:$0xf]
  %v84 = vld [vmem:[%s0 + $0x38c] sm:$0xf]
  %v85 = vld [vmem:[%s0 + $0x390] sm:$0xf]
  %v86 = vld [vmem:[%s0 + $0x394] sm:$0xf]
  %v87 = vld [vmem:[%s0 + $0x398] sm:$0xf]
  %v88 = vld [vmem:[%s0 + $0x39c] sm:$0xf]
  %v89 = vld [vmem:[%s0 + $0x3a0] sm:$0xf]
  %v90 = vld [vmem:[%s0 + $0x3a4] sm:$0xf]
  %v91 = vld [vmem:[%s0 + $0x480] sm:$0xf]
  %v92 = vld [vmem:[%s0 + $0x484] sm:$0xf]
  %v93 = vld [vmem:[%s0 + $0x488] sm:$0xf]
  %v94 = vld [vmem:[%s0 + $0x48c] sm:$0xf]
  %v95 = vld [vmem:[%s0 + $0x490] sm:$0xf]
  %v96 = vld [vmem:[%s0 + $0x494] sm:$0xf]
  %v97 = vld [vmem:[%s0 + $0x498] sm:$0xf]
  %v98 = vld [vmem:[%s0 + $0x49c] sm:$0xf]
  %v99 = vld [vmem:[%s0 + $0x4a0] sm:$0xf]
  %v100 = vld [vmem:[%s0 + $0x4a4] sm:$0xf]
  %v101 = vld [vmem:[%s0 + $0x4a8] sm:$0xf]
  %v102 = vld [vmem:[%s0 + $0x4ac] sm:$0xf]
  %v103 = vld [vmem:[%s0 + $0x4b0] sm:$0xf]
  %v104 = vld [vmem:[%s0 + $0x4b4] sm:$0xf]
  %v105 = vld [vmem:[%s0 + $0x4b8] sm:$0xf]
  %v106 = vld [vmem:[%s0 + $0x4bc] sm:$0xf]
  %v107 = vld [vmem:[%s0 + $0x4c0] sm:$0xf]
  %v108 = vld [vmem:[%s0 + $0x4c4] sm:$0xf]
  %v109 = vld [vmem:[%s0 + $0x5a0] sm:$0xf]
  %v110 = vld [vmem:[%s0 + $0x5a4] sm:$0xf]
  %v111 = vld [vmem:[%s0 + $0x5a8] sm:$0xf]
  %v112 = vld [vmem:[%s0 + $0x5ac] sm:$0xf]
  %v113 = vld [vmem:[%s0 + $0x5b0] sm:$0xf]
  %v114 = vld [vmem:[%s0 + $0x5b4] sm:$0xf]
  %v115 = vld [vmem:[%s0 + $0x5b8] sm:$0xf]
  %v116 = vld [vmem:[%s0 + $0x5bc] sm:$0xf]
  %v117 = vld [vmem:[%s0 + $0x5c0] sm:$0xf]
  %v118 = vld [vmem:[%s0 + $0x5c4] sm:$0xf]
  %v119 = vld [vmem:[%s0 + $0x5c8] sm:$0xf]
  %v120 = vld [vmem:[%s0 + $0x5cc] sm:$0xf]
  %v121 = vld [vmem:[%s0 + $0x5d0] sm:$0xf]
  %v122 = vld [vmem:[%s0 + $0x5d4] sm:$0xf]
  %v123 = vld [vmem:[%s0 + $0x5d8] sm:$0xf]
  %v124 = vld [vmem:[%s0 + $0x5dc] sm:$0xf]
  %v125 = vld [vmem:[%s0 + $0x5e0] sm:$0xf]
  %v126 = vld [vmem:[%s0 + $0x5e4] sm:$0xf]
  %v127 = vld [vmem:[%s0 + $0x6c0] sm:$0xf]
  %v128 = vld [vmem:[%s0 + $0x6c4] sm:$0xf]
  %v129 = vld [vmem:[%s0 + $0x6c8] sm:$0xf]
  %v130 = vld [vmem:[%s0 + $0x6cc] sm:$0xf]
  %v131 = vld [vmem:[%s0 + $0x6d0] sm:$0xf]
  %v132 = vld [vmem:[%s0 + $0x6d4] sm:$0xf]
  %v133 = vld [vmem:[%s0 + $0x6d8] sm:$0xf]
  %v134 = vld [vmem:[%s0 + $0x6dc] sm:$0xf]
  %v135 = vld [vmem:[%s0 + $0x6e0] sm:$0xf]
  %v136 = vld [vmem:[%s0 + $0x6e4] sm:$0xf]
  %v137 = vld [vmem:[%s0 + $0x6e8] sm:$0xf]
  %v138 = vld [vmem:[%s0 + $0x6ec] sm:$0xf]
  %v139 = vld [vmem:[%s0 + $0x6f0] sm:$0xf]
  %v140 = vld [vmem:[%s0 + $0x6f4] sm:$0xf]
  %v141 = vld [vmem:[%s0 + $0x6f8] sm:$0xf]
  %v142 = vld [vmem:[%s0 + $0x6fc] sm:$0xf]
  %v143 = vld [vmem:[%s0 + $0x700] sm:$0xf]
  %v144 = vld [vmem:[%s0 + $0x704] sm:$0xf]
  %v145 = vld [vmem:[%s0 + $0x7e0] sm:$0xf]
  %v146 = vld [vmem:[%s0 + $0x7e4] sm:$0xf]
  %v147 = vld [vmem:[%s0 + $0x7e8] sm:$0xf]
  %v148 = vld [vmem:[%s0 + $0x7ec] sm:$0xf]
  %v149 = vld [vmem:[%s0 + $0x7f0] sm:$0xf]
  %v150 = vld [vmem:[%s0 + $0x7f4] sm:$0xf]
  %v151 = vld [vmem:[%s0 + $0x7f8] sm:$0xf]
  %v152 = vld [vmem:[%s0 + $0x7fc] sm:$0xf]
  %v153 = vld [vmem:[%s0 + $0x800] sm:$0xf]
  %v154 = vld [vmem:[%s0 + $0x804] sm:$0xf]
  %v155 = vld [vmem:[%s0 + $0x808] sm:$0xf]
  %v156 = vld [vmem:[%s0 + $0x80c] sm:$0xf]
  %v157 = vld [vmem:[%s0 + $0x810] sm:$0xf]
  %v158 = vld [vmem:[%s0 + $0x814] sm:$0xf]
  %v159 = vld [vmem:[%s0 + $0x818] sm:$0xf]
  %v160 = vld [vmem:[%s0 + $0x81c] sm:$0xf]
  %v161 = vld [vmem:[%s0 + $0x820] sm:$0xf]
  %v162 = vld [vmem:[%s0 + $0x824] sm:$0xf]
  %v307 = vunpack.c.l.b16 %v19
  %v308 = vunpack.c.l.b16 %v20
  %v309 = vunpack.c.l.b16 %v21
  %v310 = vunpack.c.l.b16 %v22
  %v311 = vunpack.c.l.b16 %v23
  %v312 = vunpack.c.l.b16 %v24
  %v313 = vunpack.c.l.b16 %v25
  %v314 = vunpack.c.l.b16 %v26
  %v315 = vunpack.c.l.b16 %v27
  %v316 = vunpack.c.l.b16 %v28
  %v317 = vunpack.c.l.b16 %v29
  %v318 = vunpack.c.l.b16 %v30
  %v319 = vunpack.c.l.b16 %v31
  %v320 = vunpack.c.l.b16 %v32
  %v321 = vunpack.c.l.b16 %v33
  %v322 = vunpack.c.l.b16 %v34
  %v323 = vunpack.c.l.b16 %v35
  %v324 = vunpack.c.l.b16 %v36
  %v325 = vunpack.c.l.b16 %v37
  %v326 = vunpack.c.l.b16 %v38
  %v327 = vunpack.c.l.b16 %v39
  %v328 = vunpack.c.l.b16 %v40
  %v329 = vunpack.c.l.b16 %v41
  %v330 = vunpack.c.l.b16 %v42
  %v331 = vunpack.c.l.b16 %v43
  %v332 = vunpack.c.l.b16 %v44
  %v333 = vunpack.c.l.b16 %v45
  %v334 = vunpack.c.l.b16 %v46
  %v335 = vunpack.c.l.b16 %v47
  %v336 = vunpack.c.l.b16 %v48
  %v337 = vunpack.c.l.b16 %v49
  %v338 = vunpack.c.l.b16 %v50
  %v339 = vunpack.c.l.b16 %v51
  %v340 = vunpack.c.l.b16 %v52
  %v341 = vunpack.c.l.b16 %v53
  %v342 = vunpack.c.l.b16 %v54
  %v343 = vunpack.c.l.b16 %v55
  %v344 = vunpack.c.l.b16 %v56
  %v345 = vunpack.c.l.b16 %v57
  %v346 = vunpack.c.l.b16 %v58
  %v347 = vunpack.c.l.b16 %v59
  %v348 = vunpack.c.l.b16 %v60
  %v349 = vunpack.c.l.b16 %v61
  %v350 = vunpack.c.l.b16 %v62
  %v351 = vunpack.c.l.b16 %v63
  %v352 = vunpack.c.l.b16 %v64
  %v353 = vunpack.c.l.b16 %v65
  %v354 = vunpack.c.l.b16 %v66
  %v355 = vunpack.c.l.b16 %v67
  %v356 = vunpack.c.l.b16 %v68
  %v357 = vunpack.c.l.b16 %v69
  %v358 = vunpack.c.l.b16 %v70
  %v359 = vunpack.c.l.b16 %v71
  %v360 = vunpack.c.l.b16 %v72
  %v361 = vunpack.c.l.b16 %v73
  %v362 = vunpack.c.l.b16 %v74
  %v363 = vunpack.c.l.b16 %v75
  %v364 = vunpack.c.l.b16 %v76
  %v365 = vunpack.c.l.b16 %v77
  %v366 = vunpack.c.l.b16 %v78
  %v367 = vunpack.c.l.b16 %v79
  %v368 = vunpack.c.l.b16 %v80
  %v369 = vunpack.c.l.b16 %v81
  %v370 = vunpack.c.l.b16 %v82
  %v371 = vunpack.c.l.b16 %v83
  %v372 = vunpack.c.l.b16 %v84
  %v373 = vunpack.c.l.b16 %v85
  %v374 = vunpack.c.l.b16 %v86
  %v375 = vunpack.c.l.b16 %v87
  %v376 = vunpack.c.l.b16 %v88
  %v377 = vunpack.c.l.b16 %v89
  %v378 = vunpack.c.l.b16 %v90
  %v379 = vunpack.c.l.b16 %v91
  %v380 = vunpack.c.l.b16 %v92
  %v381 = vunpack.c.l.b16 %v93
  %v382 = vunpack.c.l.b16 %v94
  %v383 = vunpack.c.l.b16 %v95
  %v384 = vunpack.c.l.b16 %v96
  %v385 = vunpack.c.l.b16 %v97
  %v386 = vunpack.c.l.b16 %v98
  %v387 = vunpack.c.l.b16 %v99
  %v388 = vunpack.c.l.b16 %v100
  %v389 = vunpack.c.l.b16 %v101
  %v390 = vunpack.c.l.b16 %v102
  %v391 = vunpack.c.l.b16 %v103
  %v392 = vunpack.c.l.b16 %v104
  %v393 = vunpack.c.l.b16 %v105
  %v394 = vunpack.c.l.b16 %v106
  %v395 = vunpack.c.l.b16 %v107
  %v396 = vunpack.c.l.b16 %v108
  %v397 = vunpack.c.l.b16 %v109
  %v398 = vunpack.c.l.b16 %v110
  %v399 = vunpack.c.l.b16 %v111
  %v400 = vunpack.c.l.b16 %v112
  %v401 = vunpack.c.l.b16 %v113
  %v402 = vunpack.c.l.b16 %v114
  %v403 = vunpack.c.l.b16 %v115
  %v404 = vunpack.c.l.b16 %v116
  %v405 = vunpack.c.l.b16 %v117
  %v406 = vunpack.c.l.b16 %v118
  %v407 = vunpack.c.l.b16 %v119
  %v408 = vunpack.c.l.b16 %v120
  %v409 = vunpack.c.l.b16 %v121
  %v410 = vunpack.c.l.b16 %v122
  %v411 = vunpack.c.l.b16 %v123
  %v412 = vunpack.c.l.b16 %v124
  %v413 = vunpack.c.l.b16 %v125
  %v414 = vunpack.c.l.b16 %v126
  %v415 = vunpack.c.l.b16 %v127
  %v416 = vunpack.c.l.b16 %v128
  %v417 = vunpack.c.l.b16 %v129
  %v418 = vunpack.c.l.b16 %v130
  %v419 = vunpack.c.l.b16 %v131
  %v420 = vunpack.c.l.b16 %v132
  %v421 = vunpack.c.l.b16 %v133
  %v422 = vunpack.c.l.b16 %v134
  %v423 = vunpack.c.l.b16 %v135
  %v424 = vunpack.c.l.b16 %v136
  %v425 = vunpack.c.l.b16 %v137
  %v426 = vunpack.c.l.b16 %v138
  %v427 = vunpack.c.l.b16 %v139
  %v428 = vunpack.c.l.b16 %v140
  %v429 = vunpack.c.l.b16 %v141
  %v430 = vunpack.c.l.b16 %v142
  %v431 = vunpack.c.l.b16 %v143
  %v432 = vunpack.c.l.b16 %v144
  %v433 = vunpack.c.l.b16 %v145
  %v434 = vunpack.c.l.b16 %v146
  %v435 = vunpack.c.l.b16 %v147
  %v436 = vunpack.c.l.b16 %v148
  %v437 = vunpack.c.l.b16 %v149
  %v438 = vunpack.c.l.b16 %v150
  %v439 = vunpack.c.l.b16 %v151
  %v440 = vunpack.c.l.b16 %v152
  %v441 = vunpack.c.l.b16 %v153
  %v442 = vunpack.c.l.b16 %v154
  %v443 = vunpack.c.l.b16 %v155
  %v444 = vunpack.c.l.b16 %v156
  %v445 = vunpack.c.l.b16 %v157
  %v446 = vunpack.c.l.b16 %v158
  %v447 = vunpack.c.l.b16 %v159
  %v448 = vunpack.c.l.b16 %v160
  %v449 = vunpack.c.l.b16 %v161
  %v450 = vunpack.c.l.b16 %v162
  %v451 = vpack.c.b16 %v308, %v307
  %v452 = vpack.c.b16 %v310, %v309
  %v453 = vpack.c.b16 %v312, %v311
  %v454 = vpack.c.b16 %v314, %v313
  %v455 = vpack.c.b16 %v316, %v315
  %v456 = vpack.c.b16 %v318, %v317
  %v457 = vpack.c.b16 %v320, %v319
  %v458 = vpack.c.b16 %v322, %v321
  %v459 = vpack.c.b16 %v324, %v323
  %v460 = vpack.c.b16 %v326, %v325
  %v461 = vpack.c.b16 %v328, %v327
  %v462 = vpack.c.b16 %v330, %v329
  %v463 = vpack.c.b16 %v332, %v331
  %v464 = vpack.c.b16 %v334, %v333
  %v465 = vpack.c.b16 %v336, %v335
  %v466 = vpack.c.b16 %v338, %v337
  %v467 = vpack.c.b16 %v340, %v339
  %v468 = vpack.c.b16 %v342, %v341
  %v469 = vpack.c.b16 %v344, %v343
  %v470 = vpack.c.b16 %v346, %v345
  %v471 = vpack.c.b16 %v348, %v347
  %v472 = vpack.c.b16 %v350, %v349
  %v473 = vpack.c.b16 %v352, %v351
  %v474 = vpack.c.b16 %v354, %v353
  %v475 = vpack.c.b16 %v356, %v355
  %v476 = vpack.c.b16 %v358, %v357
  %v477 = vpack.c.b16 %v360, %v359
  %v478 = vpack.c.b16 %v362, %v361
  %v479 = vpack.c.b16 %v364, %v363
  %v480 = vpack.c.b16 %v366, %v365
  %v481 = vpack.c.b16 %v368, %v367
  %v482 = vpack.c.b16 %v370, %v369
  %v483 = vpack.c.b16 %v372, %v371
  %v484 = vpack.c.b16 %v374, %v373
  %v485 = vpack.c.b16 %v376, %v375
  %v486 = vpack.c.b16 %v378, %v377
  %v487 = vpack.c.b16 %v380, %v379
  %v488 = vpack.c.b16 %v382, %v381
  %v489 = vpack.c.b16 %v384, %v383
  %v490 = vpack.c.b16 %v386, %v385
  %v491 = vpack.c.b16 %v388, %v387
  %v492 = vpack.c.b16 %v390, %v389
  %v493 = vpack.c.b16 %v392, %v391
  %v494 = vpack.c.b16 %v394, %v393
  %v495 = vpack.c.b16 %v396, %v395
  %v496 = vpack.c.b16 %v398, %v397
  %v497 = vpack.c.b16 %v400, %v399
  %v498 = vpack.c.b16 %v402, %v401
  %v499 = vpack.c.b16 %v404, %v403
  %v500 = vpack.c.b16 %v406, %v405
  %v501 = vpack.c.b16 %v408, %v407
  %v502 = vpack.c.b16 %v410, %v409
  %v503 = vpack.c.b16 %v412, %v411
  %v504 = vpack.c.b16 %v414, %v413
  %v505 = vpack.c.b16 %v416, %v415
  %v506 = vpack.c.b16 %v418, %v417
  %v507 = vpack.c.b16 %v420, %v419
  %v508 = vpack.c.b16 %v422, %v421
  %v509 = vpack.c.b16 %v424, %v423
  %v510 = vpack.c.b16 %v426, %v425
  %v511 = vpack.c.b16 %v428, %v427
  %v512 = vpack.c.b16 %v430, %v429
  %v513 = vpack.c.b16 %v432, %v431
  %v514 = vpack.c.b16 %v434, %v433
  %v515 = vpack.c.b16 %v436, %v435
  %v516 = vpack.c.b16 %v438, %v437
  %v517 = vpack.c.b16 %v440, %v439
  %v518 = vpack.c.b16 %v442, %v441
  %v519 = vpack.c.b16 %v444, %v443
  %v520 = vpack.c.b16 %v446, %v445
  %v521 = vpack.c.b16 %v448, %v447
  %v522 = vpack.c.b16 %v450, %v449
  %v527 = vunpack.c.l.b16 %v15
  %v528 = vunpack.c.l.b16 %v16
  %v529 = vunpack.c.l.b16 %v17
  %v530 = vunpack.c.l.b16 %v18
  %v531 = vpack.c.b16 %v528, %v527
  %v532 = vpack.c.b16 %v530, %v529
  %vm535 = vcmask 261120
  %v537 = vsel %vm535, %v451, 0
  %v540 = vsel %vm535, %v452, 0
  %v543 = vsel %vm535, %v453, 0
  %v546 = vsel %vm535, %v454, 0
  %v549 = vsel %vm535, %v455, 0
  %v552 = vsel %vm535, %v456, 0
  %v555 = vsel %vm535, %v457, 0
  %v558 = vsel %vm535, %v458, 0
  %v561 = vsel %vm535, %v459, 0
  %v564 = vsel %vm535, %v460, 0
  %v567 = vsel %vm535, %v461, 0
  %v570 = vsel %vm535, %v462, 0
  %v573 = vsel %vm535, %v463, 0
  %v576 = vsel %vm535, %v464, 0
  %v579 = vsel %vm535, %v465, 0
  %v582 = vsel %vm535, %v466, 0
  %v585 = vsel %vm535, %v467, 0
  %v588 = vsel %vm535, %v468, 0
  %v591 = vsel %vm535, %v469, 0
  %v594 = vsel %vm535, %v470, 0
  %v597 = vsel %vm535, %v471, 0
  %v600 = vsel %vm535, %v472, 0
  %v603 = vsel %vm535, %v473, 0
  %v606 = vsel %vm535, %v474, 0
  %v609 = vsel %vm535, %v475, 0
  %v612 = vsel %vm535, %v476, 0
  %v615 = vsel %vm535, %v477, 0
  %v618 = vsel %vm535, %v478, 0
  %v621 = vsel %vm535, %v479, 0
  %v624 = vsel %vm535, %v480, 0
  %v627 = vsel %vm535, %v481, 0
  %v630 = vsel %vm535, %v482, 0
  %v633 = vsel %vm535, %v483, 0
  %v636 = vsel %vm535, %v484, 0
  %v639 = vsel %vm535, %v485, 0
  %v642 = vsel %vm535, %v486, 0
  %v645 = vsel %vm535, %v487, 0
  %v648 = vsel %vm535, %v488, 0
  %v651 = vsel %vm535, %v489, 0
  %v654 = vsel %vm535, %v490, 0
  %v657 = vsel %vm535, %v491, 0
  %v660 = vsel %vm535, %v492, 0
  %v663 = vsel %vm535, %v493, 0
  %v666 = vsel %vm535, %v494, 0
  %v669 = vsel %vm535, %v495, 0
  %v672 = vsel %vm535, %v496, 0
  %v675 = vsel %vm535, %v497, 0
  %v678 = vsel %vm535, %v498, 0
  %v681 = vsel %vm535, %v499, 0
  %v684 = vsel %vm535, %v500, 0
  %v687 = vsel %vm535, %v501, 0
  %v690 = vsel %vm535, %v502, 0
  %v693 = vsel %vm535, %v503, 0
  %v696 = vsel %vm535, %v504, 0
  %v699 = vsel %vm535, %v505, 0
  %v702 = vsel %vm535, %v506, 0
  %v705 = vsel %vm535, %v507, 0
  %v708 = vsel %vm535, %v508, 0
  %v711 = vsel %vm535, %v509, 0
  %v714 = vsel %vm535, %v510, 0
  %v717 = vsel %vm535, %v511, 0
  %v720 = vsel %vm535, %v512, 0
  %v723 = vsel %vm535, %v513, 0
  %v726 = vsel %vm535, %v514, 0
  %v729 = vsel %vm535, %v515, 0
  %v732 = vsel %vm535, %v516, 0
  %v735 = vsel %vm535, %v517, 0
  %v738 = vsel %vm535, %v518, 0
  %v741 = vsel %vm535, %v519, 0
  %v744 = vsel %vm535, %v520, 0
  %v747 = vsel %vm535, %v521, 0
  %v750 = vsel %vm535, %v522, 0
  %752 = vmatprep.subr.bf16.mxu0 0
  %753 = vmatpush1.bf16.msra.mxu0 0
  %754 = vmatprep.subr.bf16.mxu0 0
  %755 = vmatpush1.bf16.msra.mxu0 0
  %756 = vmatprep.subr.bf16.mxu0 0
  %757 = vmatpush1.bf16.msra.mxu0 0
  %758 = vmatprep.subr.bf16.mxu0 0
  %759 = vmatpush1.bf16.msra.mxu0 0
  %760 = vmatprep.subr.bf16.mxu0 0
  %761 = vmatpush1.bf16.msra.mxu0 0
  %762 = vmatprep.subr.bf16.mxu0 0
  %763 = vmatpush1.bf16.msra.mxu0 0
  %764 = vmatprep.subr.bf16.mxu0 0
  %765 = vmatpush1.bf16.msra.mxu0 %v532
  %766 = vmatprep.subr.bf16.mxu0 0
  %767 = vmatpush1.bf16.msra.mxu0 %v531
  %768 = vmatprep.subr.bf16.mxu0 0
  %769 = vmatpush2.bf16.msra.mxu0 0
  %770 = vmatprep.subr.bf16.mxu0 0
  %771 = vmatpush2.bf16.msra.mxu0 0
  %772 = vmatprep.subr.bf16.mxu0 0
  %773 = vmatpush2.bf16.msra.mxu0 0
  %774 = vmatprep.subr.bf16.mxu0 0
  %775 = vmatpush2.bf16.msra.mxu0 0
  %776 = vmatprep.subr.bf16.mxu0 0
  %777 = vmatpush2.bf16.msra.mxu0 0
  %778 = vmatprep.subr.bf16.mxu0 0
  %779 = vmatpush2.bf16.msra.mxu0 0
  %780 = vmatprep.subr.bf16.mxu0 0
  %781 = vmatpush2.bf16.msra.mxu0 0
  %782 = vmatprep.subr.bf16.mxu0 0
  %783 = vmatpush2.bf16.msra.mxu0 0
  %784 = vmatprep.mubr.bf16.mxu0 0
  %785 = vmatmul.mubr.bf16.gmra.mxu0 %v537
  %v786 = vpop.f32.mrf.mxu0
  %v787 = vadd.f32 0.0, %v786
  %v788 = vpop.f32.mrf.mxu0
  %v789 = vpop.f32.mrf.mxu0
  %v790 = vadd.f32 0.0, %v789
  %v791 = vpop.f32.mrf.mxu0
  %792 = vmatprep.mubr.bf16.mxu0 0
  %793 = vmatmul.mubr.bf16.gmra.mxu0 %v540
  %v794 = vpop.f32.mrf.mxu0
  %v795 = vadd.f32 0.0, %v794
  %v796 = vpop.f32.mrf.mxu0
  %v797 = vpop.f32.mrf.mxu0
  %v798 = vadd.f32 0.0, %v797
  %v799 = vpop.f32.mrf.mxu0
  %800 = vmatprep.mubr.bf16.mxu0 0
  %801 = vmatmul.mubr.bf16.gmra.mxu0 %v543
  %v802 = vpop.f32.mrf.mxu0
  %v803 = vadd.f32 0.0, %v802
  %v804 = vpop.f32.mrf.mxu0
  %v805 = vpop.f32.mrf.mxu0
  %v806 = vadd.f32 0.0, %v805
  %v807 = vpop.f32.mrf.mxu0
  %808 = vmatprep.mubr.bf16.mxu0 0
  %809 = vmatmul.mubr.bf16.gmra.mxu0 %v546
  %v810 = vpop.f32.mrf.mxu0
  %v811 = vadd.f32 0.0, %v810
  %v812 = vpop.f32.mrf.mxu0
  %v813 = vpop.f32.mrf.mxu0
  %v814 = vadd.f32 0.0, %v813
  %v815 = vpop.f32.mrf.mxu0
  %816 = vmatprep.mubr.bf16.mxu0 0
  %817 = vmatmul.mubr.bf16.gmra.mxu0 %v549
  %v818 = vpop.f32.mrf.mxu0
  %v819 = vadd.f32 0.0, %v818
  %v820 = vpop.f32.mrf.mxu0
  %v821 = vpop.f32.mrf.mxu0
  %v822 = vadd.f32 0.0, %v821
  %v823 = vpop.f32.mrf.mxu0
  %824 = vmatprep.mubr.bf16.mxu0 0
  %825 = vmatmul.mubr.bf16.gmra.mxu0 %v552
  %v826 = vpop.f32.mrf.mxu0
  %v827 = vadd.f32 0.0, %v826
  %v828 = vpop.f32.mrf.mxu0
  %v829 = vpop.f32.mrf.mxu0
  %v830 = vadd.f32 0.0, %v829
  %v831 = vpop.f32.mrf.mxu0
  %832 = vmatprep.mubr.bf16.mxu0 0
  %833 = vmatmul.mubr.bf16.gmra.mxu0 %v555
  %v834 = vpop.f32.mrf.mxu0
  %v835 = vadd.f32 0.0, %v834
  %v836 = vpop.f32.mrf.mxu0
  %v837 = vpop.f32.mrf.mxu0
  %v838 = vadd.f32 0.0, %v837
  %v839 = vpop.f32.mrf.mxu0
  %840 = vmatprep.mubr.bf16.mxu0 0
  %841 = vmatmul.mubr.bf16.gmra.mxu0 %v558
  %v842 = vpop.f32.mrf.mxu0
  %v843 = vadd.f32 0.0, %v842
  %v844 = vpop.f32.mrf.mxu0
  %v845 = vpop.f32.mrf.mxu0
  %v846 = vadd.f32 0.0, %v845
  %v847 = vpop.f32.mrf.mxu0
  %848 = vmatprep.mubr.bf16.mxu0 0
  %849 = vmatmul.mubr.bf16.gmra.mxu0 %v561
  %v850 = vpop.f32.mrf.mxu0
  %v851 = vadd.f32 0.0, %v850
  %v852 = vpop.f32.mrf.mxu0
  %v853 = vpop.f32.mrf.mxu0
  %v854 = vadd.f32 0.0, %v853
  %v855 = vpop.f32.mrf.mxu0
  %856 = vmatprep.mubr.bf16.mxu0 0
  %857 = vmatmul.mubr.bf16.gmra.mxu0 %v564
  %v858 = vpop.f32.mrf.mxu0
  %v859 = vadd.f32 0.0, %v858
  %v860 = vpop.f32.mrf.mxu0
  %v861 = vpop.f32.mrf.mxu0
  %v862 = vadd.f32 0.0, %v861
  %v863 = vpop.f32.mrf.mxu0
  %864 = vmatprep.mubr.bf16.mxu0 0
  %865 = vmatmul.mubr.bf16.gmra.mxu0 %v567
  %v866 = vpop.f32.mrf.mxu0
  %v867 = vadd.f32 0.0, %v866
  %v868 = vpop.f32.mrf.mxu0
  %v869 = vpop.f32.mrf.mxu0
  %v870 = vadd.f32 0.0, %v869
  %v871 = vpop.f32.mrf.mxu0
  %872 = vmatprep.mubr.bf16.mxu0 0
  %873 = vmatmul.mubr.bf16.gmra.mxu0 %v570
  %v874 = vpop.f32.mrf.mxu0
  %v875 = vadd.f32 0.0, %v874
  %v876 = vpop.f32.mrf.mxu0
  %v877 = vpop.f32.mrf.mxu0
  %v878 = vadd.f32 0.0, %v877
  %v879 = vpop.f32.mrf.mxu0
  %880 = vmatprep.mubr.bf16.mxu0 0
  %881 = vmatmul.mubr.bf16.gmra.mxu0 %v573
  %v882 = vpop.f32.mrf.mxu0
  %v883 = vadd.f32 0.0, %v882
  %v884 = vpop.f32.mrf.mxu0
  %v885 = vpop.f32.mrf.mxu0
  %v886 = vadd.f32 0.0, %v885
  %v887 = vpop.f32.mrf.mxu0
  %888 = vmatprep.mubr.bf16.mxu0 0
  %889 = vmatmul.mubr.bf16.gmra.mxu0 %v576
  %v890 = vpop.f32.mrf.mxu0
  %v891 = vadd.f32 0.0, %v890
  %v892 = vpop.f32.mrf.mxu0
  %v893 = vpop.f32.mrf.mxu0
  %v894 = vadd.f32 0.0, %v893
  %v895 = vpop.f32.mrf.mxu0
  %896 = vmatprep.mubr.bf16.mxu0 0
  %897 = vmatmul.mubr.bf16.gmra.mxu0 %v579
  %v898 = vpop.f32.mrf.mxu0
  %v899 = vadd.f32 0.0, %v898
  %v900 = vpop.f32.mrf.mxu0
  %v901 = vpop.f32.mrf.mxu0
  %v902 = vadd.f32 0.0, %v901
  %v903 = vpop.f32.mrf.mxu0
  %904 = vmatprep.mubr.bf16.mxu0 0
  %905 = vmatmul.mubr.bf16.gmra.mxu0 %v582
  %v906 = vpop.f32.mrf.mxu0
  %v907 = vadd.f32 0.0, %v906
  %v908 = vpop.f32.mrf.mxu0
  %v909 = vpop.f32.mrf.mxu0
  %v910 = vadd.f32 0.0, %v909
  %v911 = vpop.f32.mrf.mxu0
  %912 = vmatprep.mubr.bf16.mxu0 0
  %913 = vmatmul.mubr.bf16.gmra.mxu0 %v585
  %v914 = vpop.f32.mrf.mxu0
  %v915 = vadd.f32 0.0, %v914
  %v916 = vpop.f32.mrf.mxu0
  %v917 = vpop.f32.mrf.mxu0
  %v918 = vadd.f32 0.0, %v917
  %v919 = vpop.f32.mrf.mxu0
  %920 = vmatprep.mubr.bf16.mxu0 0
  %921 = vmatmul.mubr.bf16.gmra.mxu0 %v588
  %v922 = vpop.f32.mrf.mxu0
  %v923 = vadd.f32 0.0, %v922
  %v924 = vpop.f32.mrf.mxu0
  %v925 = vpop.f32.mrf.mxu0
  %v926 = vadd.f32 0.0, %v925
  %v927 = vpop.f32.mrf.mxu0
  %928 = vmatprep.mubr.bf16.mxu0 0
  %929 = vmatmul.mubr.bf16.gmra.mxu0 %v591
  %v930 = vpop.f32.mrf.mxu0
  %v931 = vadd.f32 0.0, %v930
  %v932 = vpop.f32.mrf.mxu0
  %v933 = vpop.f32.mrf.mxu0
  %v934 = vadd.f32 0.0, %v933
  %v935 = vpop.f32.mrf.mxu0
  %936 = vmatprep.mubr.bf16.mxu0 0
  %937 = vmatmul.mubr.bf16.gmra.mxu0 %v594
  %v938 = vpop.f32.mrf.mxu0
  %v939 = vadd.f32 0.0, %v938
  %v940 = vpop.f32.mrf.mxu0
  %v941 = vpop.f32.mrf.mxu0
  %v942 = vadd.f32 0.0, %v941
  %v943 = vpop.f32.mrf.mxu0
  %944 = vmatprep.mubr.bf16.mxu0 0
  %945 = vmatmul.mubr.bf16.gmra.mxu0 %v597
  %v946 = vpop.f32.mrf.mxu0
  %v947 = vadd.f32 0.0, %v946
  %v948 = vpop.f32.mrf.mxu0
  %v949 = vpop.f32.mrf.mxu0
  %v950 = vadd.f32 0.0, %v949
  %v951 = vpop.f32.mrf.mxu0
  %952 = vmatprep.mubr.bf16.mxu0 0
  %953 = vmatmul.mubr.bf16.gmra.mxu0 %v600
  %v954 = vpop.f32.mrf.mxu0
  %v955 = vadd.f32 0.0, %v954
  %v956 = vpop.f32.mrf.mxu0
  %v957 = vpop.f32.mrf.mxu0
  %v958 = vadd.f32 0.0, %v957
  %v959 = vpop.f32.mrf.mxu0
  %960 = vmatprep.mubr.bf16.mxu0 0
  %961 = vmatmul.mubr.bf16.gmra.mxu0 %v603
  %v962 = vpop.f32.mrf.mxu0
  %v963 = vadd.f32 0.0, %v962
  %v964 = vpop.f32.mrf.mxu0
  %v965 = vpop.f32.mrf.mxu0
  %v966 = vadd.f32 0.0, %v965
  %v967 = vpop.f32.mrf.mxu0
  %968 = vmatprep.mubr.bf16.mxu0 0
  %969 = vmatmul.mubr.bf16.gmra.mxu0 %v606
  %v970 = vpop.f32.mrf.mxu0
  %v971 = vadd.f32 0.0, %v970
  %v972 = vpop.f32.mrf.mxu0
  %v973 = vpop.f32.mrf.mxu0
  %v974 = vadd.f32 0.0, %v973
  %v975 = vpop.f32.mrf.mxu0
  %976 = vmatprep.mubr.bf16.mxu0 0
  %977 = vmatmul.mubr.bf16.gmra.mxu0 %v609
  %v978 = vpop.f32.mrf.mxu0
  %v979 = vadd.f32 0.0, %v978
  %v980 = vpop.f32.mrf.mxu0
  %v981 = vpop.f32.mrf.mxu0
  %v982 = vadd.f32 0.0, %v981
  %v983 = vpop.f32.mrf.mxu0
  %984 = vmatprep.mubr.bf16.mxu0 0
  %985 = vmatmul.mubr.bf16.gmra.mxu0 %v612
  %v986 = vpop.f32.mrf.mxu0
  %v987 = vadd.f32 0.0, %v986
  %v988 = vpop.f32.mrf.mxu0
  %v989 = vpop.f32.mrf.mxu0
  %v990 = vadd.f32 0.0, %v989
  %v991 = vpop.f32.mrf.mxu0
  %992 = vmatprep.mubr.bf16.mxu0 0
  %993 = vmatmul.mubr.bf16.gmra.mxu0 %v615
  %v994 = vpop.f32.mrf.mxu0
  %v995 = vadd.f32 0.0, %v994
  %v996 = vpop.f32.mrf.mxu0
  %v997 = vpop.f32.mrf.mxu0
  %v998 = vadd.f32 0.0, %v997
  %v999 = vpop.f32.mrf.mxu0
  %1000 = vmatprep.mubr.bf16.mxu0 0
  %1001 = vmatmul.mubr.bf16.gmra.mxu0 %v618
  %v1002 = vpop.f32.mrf.mxu0
  %v1003 = vadd.f32 0.0, %v1002
  %v1004 = vpop.f32.mrf.mxu0
  %v1005 = vpop.f32.mrf.mxu0
  %v1006 = vadd.f32 0.0, %v1005
  %v1007 = vpop.f32.mrf.mxu0
  %1008 = vmatprep.mubr.bf16.mxu0 0
  %1009 = vmatmul.mubr.bf16.gmra.mxu0 %v621
  %v1010 = vpop.f32.mrf.mxu0
  %v1011 = vadd.f32 0.0, %v1010
  %v1012 = vpop.f32.mrf.mxu0
  %v1013 = vpop.f32.mrf.mxu0
  %v1014 = vadd.f32 0.0, %v1013
  %v1015 = vpop.f32.mrf.mxu0
  %1016 = vmatprep.mubr.bf16.mxu0 0
  %1017 = vmatmul.mubr.bf16.gmra.mxu0 %v624
  %v1018 = vpop.f32.mrf.mxu0
  %v1019 = vadd.f32 0.0, %v1018
  %v1020 = vpop.f32.mrf.mxu0
  %v1021 = vpop.f32.mrf.mxu0
  %v1022 = vadd.f32 0.0, %v1021
  %v1023 = vpop.f32.mrf.mxu0
  %1024 = vmatprep.mubr.bf16.mxu0 0
  %1025 = vmatmul.mubr.bf16.gmra.mxu0 %v627
  %v1026 = vpop.f32.mrf.mxu0
  %v1027 = vadd.f32 0.0, %v1026
  %v1028 = vpop.f32.mrf.mxu0
  %v1029 = vpop.f32.mrf.mxu0
  %v1030 = vadd.f32 0.0, %v1029
  %v1031 = vpop.f32.mrf.mxu0
  %1032 = vmatprep.mubr.bf16.mxu0 0
  %1033 = vmatmul.mubr.bf16.gmra.mxu0 %v630
  %v1034 = vpop.f32.mrf.mxu0
  %v1035 = vadd.f32 0.0, %v1034
  %v1036 = vpop.f32.mrf.mxu0
  %v1037 = vpop.f32.mrf.mxu0
  %v1038 = vadd.f32 0.0, %v1037
  %v1039 = vpop.f32.mrf.mxu0
  %1040 = vmatprep.mubr.bf16.mxu0 0
  %1041 = vmatmul.mubr.bf16.gmra.mxu0 %v633
  %v1042 = vpop.f32.mrf.mxu0
  %v1043 = vadd.f32 0.0, %v1042
  %v1044 = vpop.f32.mrf.mxu0
  %v1045 = vpop.f32.mrf.mxu0
  %v1046 = vadd.f32 0.0, %v1045
  %v1047 = vpop.f32.mrf.mxu0
  %1048 = vmatprep.mubr.bf16.mxu0 0
  %1049 = vmatmul.mubr.bf16.gmra.mxu0 %v636
  %v1050 = vpop.f32.mrf.mxu0
  %v1051 = vadd.f32 0.0, %v1050
  %v1052 = vpop.f32.mrf.mxu0
  %v1053 = vpop.f32.mrf.mxu0
  %v1054 = vadd.f32 0.0, %v1053
  %v1055 = vpop.f32.mrf.mxu0
  %1056 = vmatprep.mubr.bf16.mxu0 0
  %1057 = vmatmul.mubr.bf16.gmra.mxu0 %v639
  %v1058 = vpop.f32.mrf.mxu0
  %v1059 = vadd.f32 0.0, %v1058
  %v1060 = vpop.f32.mrf.mxu0
  %v1061 = vpop.f32.mrf.mxu0
  %v1062 = vadd.f32 0.0, %v1061
  %v1063 = vpop.f32.mrf.mxu0
  %1064 = vmatprep.mubr.bf16.mxu0 0
  %1065 = vmatmul.mubr.bf16.gmra.mxu0 %v642
  %v1066 = vpop.f32.mrf.mxu0
  %v1067 = vadd.f32 0.0, %v1066
  %v1068 = vpop.f32.mrf.mxu0
  %v1069 = vpop.f32.mrf.mxu0
  %v1070 = vadd.f32 0.0, %v1069
  %v1071 = vpop.f32.mrf.mxu0
  %1072 = vmatprep.mubr.bf16.mxu0 0
  %1073 = vmatmul.mubr.bf16.gmra.mxu0 %v645
  %v1074 = vpop.f32.mrf.mxu0
  %v1075 = vadd.f32 0.0, %v1074
  %v1076 = vpop.f32.mrf.mxu0
  %v1077 = vpop.f32.mrf.mxu0
  %v1078 = vadd.f32 0.0, %v1077
  %v1079 = vpop.f32.mrf.mxu0
  %1080 = vmatprep.mubr.bf16.mxu0 0
  %1081 = vmatmul.mubr.bf16.gmra.mxu0 %v648
  %v1082 = vpop.f32.mrf.mxu0
  %v1083 = vadd.f32 0.0, %v1082
  %v1084 = vpop.f32.mrf.mxu0
  %v1085 = vpop.f32.mrf.mxu0
  %v1086 = vadd.f32 0.0, %v1085
  %v1087 = vpop.f32.mrf.mxu0
  %1088 = vmatprep.mubr.bf16.mxu0 0
  %1089 = vmatmul.mubr.bf16.gmra.mxu0 %v651
  %v1090 = vpop.f32.mrf.mxu0
  %v1091 = vadd.f32 0.0, %v1090
  %v1092 = vpop.f32.mrf.mxu0
  %v1093 = vpop.f32.mrf.mxu0
  %v1094 = vadd.f32 0.0, %v1093
  %v1095 = vpop.f32.mrf.mxu0
  %1096 = vmatprep.mubr.bf16.mxu0 0
  %1097 = vmatmul.mubr.bf16.gmra.mxu0 %v654
  %v1098 = vpop.f32.mrf.mxu0
  %v1099 = vadd.f32 0.0, %v1098
  %v1100 = vpop.f32.mrf.mxu0
  %v1101 = vpop.f32.mrf.mxu0
  %v1102 = vadd.f32 0.0, %v1101
  %v1103 = vpop.f32.mrf.mxu0
  %1104 = vmatprep.mubr.bf16.mxu0 0
  %1105 = vmatmul.mubr.bf16.gmra.mxu0 %v657
  %v1106 = vpop.f32.mrf.mxu0
  %v1107 = vadd.f32 0.0, %v1106
  %v1108 = vpop.f32.mrf.mxu0
  %v1109 = vpop.f32.mrf.mxu0
  %v1110 = vadd.f32 0.0, %v1109
  %v1111 = vpop.f32.mrf.mxu0
  %1112 = vmatprep.mubr.bf16.mxu0 0
  %1113 = vmatmul.mubr.bf16.gmra.mxu0 %v660
  %v1114 = vpop.f32.mrf.mxu0
  %v1115 = vadd.f32 0.0, %v1114
  %v1116 = vpop.f32.mrf.mxu0
  %v1117 = vpop.f32.mrf.mxu0
  %v1118 = vadd.f32 0.0, %v1117
  %v1119 = vpop.f32.mrf.mxu0
  %1120 = vmatprep.mubr.bf16.mxu0 0
  %1121 = vmatmul.mubr.bf16.gmra.mxu0 %v663
  %v1122 = vpop.f32.mrf.mxu0
  %v1123 = vadd.f32 0.0, %v1122
  %v1124 = vpop.f32.mrf.mxu0
  %v1125 = vpop.f32.mrf.mxu0
  %v1126 = vadd.f32 0.0, %v1125
  %v1127 = vpop.f32.mrf.mxu0
  %1128 = vmatprep.mubr.bf16.mxu0 0
  %1129 = vmatmul.mubr.bf16.gmra.mxu0 %v666
  %v1130 = vpop.f32.mrf.mxu0
  %v1131 = vadd.f32 0.0, %v1130
  %v1132 = vpop.f32.mrf.mxu0
  %v1133 = vpop.f32.mrf.mxu0
  %v1134 = vadd.f32 0.0, %v1133
  %v1135 = vpop.f32.mrf.mxu0
  %1136 = vmatprep.mubr.bf16.mxu0 0
  %1137 = vmatmul.mubr.bf16.gmra.mxu0 %v669
  %v1138 = vpop.f32.mrf.mxu0
  %v1139 = vadd.f32 0.0, %v1138
  %v1140 = vpop.f32.mrf.mxu0
  %v1141 = vpop.f32.mrf.mxu0
  %v1142 = vadd.f32 0.0, %v1141
  %v1143 = vpop.f32.mrf.mxu0
  %1144 = vmatprep.mubr.bf16.mxu0 0
  %1145 = vmatmul.mubr.bf16.gmra.mxu0 %v672
  %v1146 = vpop.f32.mrf.mxu0
  %v1147 = vadd.f32 0.0, %v1146
  %v1148 = vpop.f32.mrf.mxu0
  %v1149 = vpop.f32.mrf.mxu0
  %v1150 = vadd.f32 0.0, %v1149
  %v1151 = vpop.f32.mrf.mxu0
  %1152 = vmatprep.mubr.bf16.mxu0 0
  %1153 = vmatmul.mubr.bf16.gmra.mxu0 %v675
  %v1154 = vpop.f32.mrf.mxu0
  %v1155 = vadd.f32 0.0, %v1154
  %v1156 = vpop.f32.mrf.mxu0
  %v1157 = vpop.f32.mrf.mxu0
  %v1158 = vadd.f32 0.0, %v1157
  %v1159 = vpop.f32.mrf.mxu0
  %1160 = vmatprep.mubr.bf16.mxu0 0
  %1161 = vmatmul.mubr.bf16.gmra.mxu0 %v678
  %v1162 = vpop.f32.mrf.mxu0
  %v1163 = vadd.f32 0.0, %v1162
  %v1164 = vpop.f32.mrf.mxu0
  %v1165 = vpop.f32.mrf.mxu0
  %v1166 = vadd.f32 0.0, %v1165
  %v1167 = vpop.f32.mrf.mxu0
  %1168 = vmatprep.mubr.bf16.mxu0 0
  %1169 = vmatmul.mubr.bf16.gmra.mxu0 %v681
  %v1170 = vpop.f32.mrf.mxu0
  %v1171 = vadd.f32 0.0, %v1170
  %v1172 = vpop.f32.mrf.mxu0
  %v1173 = vpop.f32.mrf.mxu0
  %v1174 = vadd.f32 0.0, %v1173
  %v1175 = vpop.f32.mrf.mxu0
  %1176 = vmatprep.mubr.bf16.mxu0 0
  %1177 = vmatmul.mubr.bf16.gmra.mxu0 %v684
  %v1178 = vpop.f32.mrf.mxu0
  %v1179 = vadd.f32 0.0, %v1178
  %v1180 = vpop.f32.mrf.mxu0
  %v1181 = vpop.f32.mrf.mxu0
  %v1182 = vadd.f32 0.0, %v1181
  %v1183 = vpop.f32.mrf.mxu0
  %1184 = vmatprep.mubr.bf16.mxu0 0
  %1185 = vmatmul.mubr.bf16.gmra.mxu0 %v687
  %v1186 = vpop.f32.mrf.mxu0
  %v1187 = vadd.f32 0.0, %v1186
  %v1188 = vpop.f32.mrf.mxu0
  %v1189 = vpop.f32.mrf.mxu0
  %v1190 = vadd.f32 0.0, %v1189
  %v1191 = vpop.f32.mrf.mxu0
  %1192 = vmatprep.mubr.bf16.mxu0 0
  %1193 = vmatmul.mubr.bf16.gmra.mxu0 %v690
  %v1194 = vpop.f32.mrf.mxu0
  %v1195 = vadd.f32 0.0, %v1194
  %v1196 = vpop.f32.mrf.mxu0
  %v1197 = vpop.f32.mrf.mxu0
  %v1198 = vadd.f32 0.0, %v1197
  %v1199 = vpop.f32.mrf.mxu0
  %1200 = vmatprep.mubr.bf16.mxu0 0
  %1201 = vmatmul.mubr.bf16.gmra.mxu0 %v693
  %v1202 = vpop.f32.mrf.mxu0
  %v1203 = vadd.f32 0.0, %v1202
  %v1204 = vpop.f32.mrf.mxu0
  %v1205 = vpop.f32.mrf.mxu0
  %v1206 = vadd.f32 0.0, %v1205
  %v1207 = vpop.f32.mrf.mxu0
  %1208 = vmatprep.mubr.bf16.mxu0 0
  %1209 = vmatmul.mubr.bf16.gmra.mxu0 %v696
  %v1210 = vpop.f32.mrf.mxu0
  %v1211 = vadd.f32 0.0, %v1210
  %v1212 = vpop.f32.mrf.mxu0
  %v1213 = vpop.f32.mrf.mxu0
  %v1214 = vadd.f32 0.0, %v1213
  %v1215 = vpop.f32.mrf.mxu0
  %1216 = vmatprep.mubr.bf16.mxu0 0
  %1217 = vmatmul.mubr.bf16.gmra.mxu0 %v699
  %v1218 = vpop.f32.mrf.mxu0
  %v1219 = vadd.f32 0.0, %v1218
  %v1220 = vpop.f32.mrf.mxu0
  %v1221 = vpop.f32.mrf.mxu0
  %v1222 = vadd.f32 0.0, %v1221
  %v1223 = vpop.f32.mrf.mxu0
  %1224 = vmatprep.mubr.bf16.mxu0 0
  %1225 = vmatmul.mubr.bf16.gmra.mxu0 %v702
  %v1226 = vpop.f32.mrf.mxu0
  %v1227 = vadd.f32 0.0, %v1226
  %v1228 = vpop.f32.mrf.mxu0
  %v1229 = vpop.f32.mrf.mxu0
  %v1230 = vadd.f32 0.0, %v1229
  %v1231 = vpop.f32.mrf.mxu0
  %1232 = vmatprep.mubr.bf16.mxu0 0
  %1233 = vmatmul.mubr.bf16.gmra.mxu0 %v705
  %v1234 = vpop.f32.mrf.mxu0
  %v1235 = vadd.f32 0.0, %v1234
  %v1236 = vpop.f32.mrf.mxu0
  %v1237 = vpop.f32.mrf.mxu0
  %v1238 = vadd.f32 0.0, %v1237
  %v1239 = vpop.f32.mrf.mxu0
  %1240 = vmatprep.mubr.bf16.mxu0 0
  %1241 = vmatmul.mubr.bf16.gmra.mxu0 %v708
  %v1242 = vpop.f32.mrf.mxu0
  %v1243 = vadd.f32 0.0, %v1242
  %v1244 = vpop.f32.mrf.mxu0
  %v1245 = vpop.f32.mrf.mxu0
  %v1246 = vadd.f32 0.0, %v1245
  %v1247 = vpop.f32.mrf.mxu0
  %1248 = vmatprep.mubr.bf16.mxu0 0
  %1249 = vmatmul.mubr.bf16.gmra.mxu0 %v711
  %v1250 = vpop.f32.mrf.mxu0
  %v1251 = vadd.f32 0.0, %v1250
  %v1252 = vpop.f32.mrf.mxu0
  %v1253 = vpop.f32.mrf.mxu0
  %v1254 = vadd.f32 0.0, %v1253
  %v1255 = vpop.f32.mrf.mxu0
  %1256 = vmatprep.mubr.bf16.mxu0 0
  %1257 = vmatmul.mubr.bf16.gmra.mxu0 %v714
  %v1258 = vpop.f32.mrf.mxu0
  %v1259 = vadd.f32 0.0, %v1258
  %v1260 = vpop.f32.mrf.mxu0
  %v1261 = vpop.f32.mrf.mxu0
  %v1262 = vadd.f32 0.0, %v1261
  %v1263 = vpop.f32.mrf.mxu0
  %1264 = vmatprep.mubr.bf16.mxu0 0
  %1265 = vmatmul.mubr.bf16.gmra.mxu0 %v717
  %v1266 = vpop.f32.mrf.mxu0
  %v1267 = vadd.f32 0.0, %v1266
  %v1268 = vpop.f32.mrf.mxu0
  %v1269 = vpop.f32.mrf.mxu0
  %v1270 = vadd.f32 0.0, %v1269
  %v1271 = vpop.f32.mrf.mxu0
  %1272 = vmatprep.mubr.bf16.mxu0 0
  %1273 = vmatmul.mubr.bf16.gmra.mxu0 %v720
  %v1274 = vpop.f32.mrf.mxu0
  %v1275 = vadd.f32 0.0, %v1274
  %v1276 = vpop.f32.mrf.mxu0
  %v1277 = vpop.f32.mrf.mxu0
  %v1278 = vadd.f32 0.0, %v1277
  %v1279 = vpop.f32.mrf.mxu0
  %1280 = vmatprep.mubr.bf16.mxu0 0
  %1281 = vmatmul.mubr.bf16.gmra.mxu0 %v723
  %v1282 = vpop.f32.mrf.mxu0
  %v1283 = vadd.f32 0.0, %v1282
  %v1284 = vpop.f32.mrf.mxu0
  %v1285 = vpop.f32.mrf.mxu0
  %v1286 = vadd.f32 0.0, %v1285
  %v1287 = vpop.f32.mrf.mxu0
  %1288 = vmatprep.mubr.bf16.mxu0 0
  %1289 = vmatmul.mubr.bf16.gmra.mxu0 %v726
  %v1290 = vpop.f32.mrf.mxu0
  %v1291 = vadd.f32 0.0, %v1290
  %v1292 = vpop.f32.mrf.mxu0
  %v1293 = vpop.f32.mrf.mxu0
  %v1294 = vadd.f32 0.0, %v1293
  %v1295 = vpop.f32.mrf.mxu0
  %1296 = vmatprep.mubr.bf16.mxu0 0
  %1297 = vmatmul.mubr.bf16.gmra.mxu0 %v729
  %v1298 = vpop.f32.mrf.mxu0
  %v1299 = vadd.f32 0.0, %v1298
  %v1300 = vpop.f32.mrf.mxu0
  %v1301 = vpop.f32.mrf.mxu0
  %v1302 = vadd.f32 0.0, %v1301
  %v1303 = vpop.f32.mrf.mxu0
  %1304 = vmatprep.mubr.bf16.mxu0 0
  %1305 = vmatmul.mubr.bf16.gmra.mxu0 %v732
  %v1306 = vpop.f32.mrf.mxu0
  %v1307 = vadd.f32 0.0, %v1306
  %v1308 = vpop.f32.mrf.mxu0
  %v1309 = vpop.f32.mrf.mxu0
  %v1310 = vadd.f32 0.0, %v1309
  %v1311 = vpop.f32.mrf.mxu0
  %1312 = vmatprep.mubr.bf16.mxu0 0
  %1313 = vmatmul.mubr.bf16.gmra.mxu0 %v735
  %v1314 = vpop.f32.mrf.mxu0
  %v1315 = vadd.f32 0.0, %v1314
  %v1316 = vpop.f32.mrf.mxu0
  %v1317 = vpop.f32.mrf.mxu0
  %v1318 = vadd.f32 0.0, %v1317
  %v1319 = vpop.f32.mrf.mxu0
  %1320 = vmatprep.mubr.bf16.mxu0 0
  %1321 = vmatmul.mubr.bf16.gmra.mxu0 %v738
  %v1322 = vpop.f32.mrf.mxu0
  %v1323 = vadd.f32 0.0, %v1322
  %v1324 = vpop.f32.mrf.mxu0
  %v1325 = vpop.f32.mrf.mxu0
  %v1326 = vadd.f32 0.0, %v1325
  %v1327 = vpop.f32.mrf.mxu0
  %1328 = vmatprep.mubr.bf16.mxu0 0
  %1329 = vmatmul.mubr.bf16.gmra.mxu0 %v741
  %v1330 = vpop.f32.mrf.mxu0
  %v1331 = vadd.f32 0.0, %v1330
  %v1332 = vpop.f32.mrf.mxu0
  %v1333 = vpop.f32.mrf.mxu0
  %v1334 = vadd.f32 0.0, %v1333
  %v1335 = vpop.f32.mrf.mxu0
  %1336 = vmatprep.mubr.bf16.mxu0 0
  %1337 = vmatmul.mubr.bf16.gmra.mxu0 %v744
  %v1338 = vpop.f32.mrf.mxu0
  %v1339 = vadd.f32 0.0, %v1338
  %v1340 = vpop.f32.mrf.mxu0
  %v1341 = vpop.f32.mrf.mxu0
  %v1342 = vadd.f32 0.0, %v1341
  %v1343 = vpop.f32.mrf.mxu0
  %1344 = vmatprep.mubr.bf16.mxu0 0
  %1345 = vmatmul.mubr.bf16.gmra.mxu0 %v747
  %v1346 = vpop.f32.mrf.mxu0
  %v1347 = vadd.f32 0.0, %v1346
  %v1348 = vpop.f32.mrf.mxu0
  %v1349 = vpop.f32.mrf.mxu0
  %v1350 = vadd.f32 0.0, %v1349
  %v1351 = vpop.f32.mrf.mxu0
  %1352 = vmatprep.mubr.bf16.mxu0 0
  %1353 = vmatmul.mubr.bf16.gmra.mxu0 %v750
  %v1354 = vpop.f32.mrf.mxu0
  %v1355 = vadd.f32 0.0, %v1354
  %v1356 = vpop.f32.mrf.mxu0
  %v1357 = vpop.f32.mrf.mxu0
  %v1358 = vadd.f32 0.0, %v1357
  %v1359 = vpop.f32.mrf.mxu0
  %1360 = vdwg.mxu0
  %v1361 = vld [vmem:[%s0 + $0x48] sm:$0xf]
  %v1362 = vld [vmem:[%s0 + $0x4c] sm:$0xf]
  %v1363 = vld [vmem:[%s0 + $0x50] sm:$0xf]
  %v1364 = vld [vmem:[%s0 + $0x54] sm:$0xf]
  %v1365 = vld [vmem:[%s0 + $0x58] sm:$0xf]
  %v1366 = vld [vmem:[%s0 + $0x5c] sm:$0xf]
  %v1367 = vld [vmem:[%s0 + $0x60] sm:$0xf]
  %v1368 = vld [vmem:[%s0 + $0x64] sm:$0xf]
  %v1369 = vld [vmem:[%s0 + $0x68] sm:$0xf]
  %v1370 = vld [vmem:[%s0 + $0x6c] sm:$0xf]
  %v1371 = vld [vmem:[%s0 + $0x70] sm:$0xf]
  %v1372 = vld [vmem:[%s0 + $0x74] sm:$0xf]
  %v1373 = vld [vmem:[%s0 + $0x78] sm:$0xf]
  %v1374 = vld [vmem:[%s0 + $0x7c] sm:$0xf]
  %v1375 = vld [vmem:[%s0 + $0x80] sm:$0xf]
  %v1376 = vld [vmem:[%s0 + $0x84] sm:$0xf]
  %v1377 = vld [vmem:[%s0 + $0x88] sm:$0xf]
  %v1378 = vld [vmem:[%s0 + $0x8c] sm:$0xf]
  %v1379 = vld [vmem:[%s0 + $0x168] sm:$0xf]
  %v1380 = vld [vmem:[%s0 + $0x16c] sm:$0xf]
  %v1381 = vld [vmem:[%s0 + $0x170] sm:$0xf]
  %v1382 = vld [vmem:[%s0 + $0x174] sm:$0xf]
  %v1383 = vld [vmem:[%s0 + $0x178] sm:$0xf]
  %v1384 = vld [vmem:[%s0 + $0x17c] sm:$0xf]
  %v1385 = vld [vmem:[%s0 + $0x180] sm:$0xf]
  %v1386 = vld [vmem:[%s0 + $0x184] sm:$0xf]
  %v1387 = vld [vmem:[%s0 + $0x188] sm:$0xf]
  %v1388 = vld [vmem:[%s0 + $0x18c] sm:$0xf]
  %v1389 = vld [vmem:[%s0 + $0x190] sm:$0xf]
  %v1390 = vld [vmem:[%s0 + $0x194] sm:$0xf]
  %v1391 = vld [vmem:[%s0 + $0x198] sm:$0xf]
  %v1392 = vld [vmem:[%s0 + $0x19c] sm:$0xf]
  %v1393 = vld [vmem:[%s0 + $0x1a0] sm:$0xf]
  %v1394 = vld [vmem:[%s0 + $0x1a4] sm:$0xf]
  %v1395 = vld [vmem:[%s0 + $0x1a8] sm:$0xf]
  %v1396 = vld [vmem:[%s0 + $0x1ac] sm:$0xf]
  %v1397 = vld [vmem:[%s0 + $0x288] sm:$0xf]
  %v1398 = vld [vmem:[%s0 + $0x28c] sm:$0xf]
  %v1399 = vld [vmem:[%s0 + $0x290] sm:$0xf]
  %v1400 = vld [vmem:[%s0 + $0x294] sm:$0xf]
  %v1401 = vld [vmem:[%s0 + $0x298] sm:$0xf]
  %v1402 = vld [vmem:[%s0 + $0x29c] sm:$0xf]
  %v1403 = vld [vmem:[%s0 + $0x2a0] sm:$0xf]
  %v1404 = vld [vmem:[%s0 + $0x2a4] sm:$0xf]
  %v1405 = vld [vmem:[%s0 + $0x2a8] sm:$0xf]
  %v1406 = vld [vmem:[%s0 + $0x2ac] sm:$0xf]
  %v1407 = vld [vmem:[%s0 + $0x2b0] sm:$0xf]
  %v1408 = vld [vmem:[%s0 + $0x2b4] sm:$0xf]
  %v1409 = vld [vmem:[%s0 + $0x2b8] sm:$0xf]
  %v1410 = vld [vmem:[%s0 + $0x2bc] sm:$0xf]
  %v1411 = vld [vmem:[%s0 + $0x2c0] sm:$0xf]
  %v1412 = vld [vmem:[%s0 + $0x2c4] sm:$0xf]
  %v1413 = vld [vmem:[%s0 + $0x2c8] sm:$0xf]
  %v1414 = vld [vmem:[%s0 + $0x2cc] sm:$0xf]
  %v1415 = vld [vmem:[%s0 + $0x3a8] sm:$0xf]
  %v1416 = vld [vmem:[%s0 + $0x3ac] sm:$0xf]
  %v1417 = vld [vmem:[%s0 + $0x3b0] sm:$0xf]
  %v1418 = vld [vmem:[%s0 + $0x3b4] sm:$0xf]
  %v1419 = vld [vmem:[%s0 + $0x3b8] sm:$0xf]
  %v1420 = vld [vmem:[%s0 + $0x3bc] sm:$0xf]
  %v1421 = vld [vmem:[%s0 + $0x3c0] sm:$0xf]
  %v1422 = vld [vmem:[%s0 + $0x3c4] sm:$0xf]
  %v1423 = vld [vmem:[%s0 + $0x3c8] sm:$0xf]
  %v1424 = vld [vmem:[%s0 + $0x3cc] sm:$0xf]
  %v1425 = vld [vmem:[%s0 + $0x3d0] sm:$0xf]
  %v1426 = vld [vmem:[%s0 + $0x3d4] sm:$0xf]
  %v1427 = vld [vmem:[%s0 + $0x3d8] sm:$0xf]
  %v1428 = vld [vmem:[%s0 + $0x3dc] sm:$0xf]
  %v1429 = vld [vmem:[%s0 + $0x3e0] sm:$0xf]
  %v1430 = vld [vmem:[%s0 + $0x3e4] sm:$0xf]
  %v1431 = vld [vmem:[%s0 + $0x3e8] sm:$0xf]
  %v1432 = vld [vmem:[%s0 + $0x3ec] sm:$0xf]
  %v1433 = vld [vmem:[%s0 + $0x4c8] sm:$0xf]
  %v1434 = vld [vmem:[%s0 + $0x4cc] sm:$0xf]
  %v1435 = vld [vmem:[%s0 + $0x4d0] sm:$0xf]
  %v1436 = vld [vmem:[%s0 + $0x4d4] sm:$0xf]
  %v1437 = vld [vmem:[%s0 + $0x4d8] sm:$0xf]
  %v1438 = vld [vmem:[%s0 + $0x4dc] sm:$0xf]
  %v1439 = vld [vmem:[%s0 + $0x4e0] sm:$0xf]
  %v1440 = vld [vmem:[%s0 + $0x4e4] sm:$0xf]
  %v1441 = vld [vmem:[%s0 + $0x4e8] sm:$0xf]
  %v1442 = vld [vmem:[%s0 + $0x4ec] sm:$0xf]
  %v1443 = vld [vmem:[%s0 + $0x4f0] sm:$0xf]
  %v1444 = vld [vmem:[%s0 + $0x4f4] sm:$0xf]
  %v1445 = vld [vmem:[%s0 + $0x4f8] sm:$0xf]
  %v1446 = vld [vmem:[%s0 + $0x4fc] sm:$0xf]
  %v1447 = vld [vmem:[%s0 + $0x500] sm:$0xf]
  %v1448 = vld [vmem:[%s0 + $0x504] sm:$0xf]
  %v1449 = vld [vmem:[%s0 + $0x508] sm:$0xf]
  %v1450 = vld [vmem:[%s0 + $0x50c] sm:$0xf]
  %v1451 = vld [vmem:[%s0 + $0x5e8] sm:$0xf]
  %v1452 = vld [vmem:[%s0 + $0x5ec] sm:$0xf]
  %v1453 = vld [vmem:[%s0 + $0x5f0] sm:$0xf]
  %v1454 = vld [vmem:[%s0 + $0x5f4] sm:$0xf]
  %v1455 = vld [vmem:[%s0 + $0x5f8] sm:$0xf]
  %v1456 = vld [vmem:[%s0 + $0x5fc] sm:$0xf]
  %v1457 = vld [vmem:[%s0 + $0x600] sm:$0xf]
  %v1458 = vld [vmem:[%s0 + $0x604] sm:$0xf]
  %v1459 = vld [vmem:[%s0 + $0x608] sm:$0xf]
  %v1460 = vld [vmem:[%s0 + $0x60c] sm:$0xf]
  %v1461 = vld [vmem:[%s0 + $0x610] sm:$0xf]
  %v1462 = vld [vmem:[%s0 + $0x614] sm:$0xf]
  %v1463 = vld [vmem:[%s0 + $0x618] sm:$0xf]
  %v1464 = vld [vmem:[%s0 + $0x61c] sm:$0xf]
  %v1465 = vld [vmem:[%s0 + $0x620] sm:$0xf]
  %v1466 = vld [vmem:[%s0 + $0x624] sm:$0xf]
  %v1467 = vld [vmem:[%s0 + $0x628] sm:$0xf]
  %v1468 = vld [vmem:[%s0 + $0x62c] sm:$0xf]
  %v1469 = vld [vmem:[%s0 + $0x708] sm:$0xf]
  %v1470 = vld [vmem:[%s0 + $0x70c] sm:$0xf]
  %v1471 = vld [vmem:[%s0 + $0x710] sm:$0xf]
  %v1472 = vld [vmem:[%s0 + $0x714] sm:$0xf]
  %v1473 = vld [vmem:[%s0 + $0x718] sm:$0xf]
  %v1474 = vld [vmem:[%s0 + $0x71c] sm:$0xf]
  %v1475 = vld [vmem:[%s0 + $0x720] sm:$0xf]
  %v1476 = vld [vmem:[%s0 + $0x724] sm:$0xf]
  %v1477 = vld [vmem:[%s0 + $0x728] sm:$0xf]
  %v1478 = vld [vmem:[%s0 + $0x72c] sm:$0xf]
  %v1479 = vld [vmem:[%s0 + $0x730] sm:$0xf]
  %v1480 = vld [vmem:[%s0 + $0x734] sm:$0xf]
  %v1481 = vld [vmem:[%s0 + $0x738] sm:$0xf]
  %v1482 = vld [vmem:[%s0 + $0x73c] sm:$0xf]
  %v1483 = vld [vmem:[%s0 + $0x740] sm:$0xf]
  %v1484 = vld [vmem:[%s0 + $0x744] sm:$0xf]
  %v1485 = vld [vmem:[%s0 + $0x748] sm:$0xf]
  %v1486 = vld [vmem:[%s0 + $0x74c] sm:$0xf]
  %v1487 = vld [vmem:[%s0 + $0x828] sm:$0xf]
  %v1488 = vld [vmem:[%s0 + $0x82c] sm:$0xf]
  %v1489 = vld [vmem:[%s0 + $0x830] sm:$0xf]
  %v1490 = vld [vmem:[%s0 + $0x834] sm:$0xf]
  %v1491 = vld [vmem:[%s0 + $0x838] sm:$0xf]
  %v1492 = vld [vmem:[%s0 + $0x83c] sm:$0xf]
  %v1493 = vld [vmem:[%s0 + $0x840] sm:$0xf]
  %v1494 = vld [vmem:[%s0 + $0x844] sm:$0xf]
  %v1495 = vld [vmem:[%s0 + $0x848] sm:$0xf]
  %v1496 = vld [vmem:[%s0 + $0x84c] sm:$0xf]
  %v1497 = vld [vmem:[%s0 + $0x850] sm:$0xf]
  %v1498 = vld [vmem:[%s0 + $0x854] sm:$0xf]
  %v1499 = vld [vmem:[%s0 + $0x858] sm:$0xf]
  %v1500 = vld [vmem:[%s0 + $0x85c] sm:$0xf]
  %v1501 = vld [vmem:[%s0 + $0x860] sm:$0xf]
  %v1502 = vld [vmem:[%s0 + $0x864] sm:$0xf]
  %v1503 = vld [vmem:[%s0 + $0x868] sm:$0xf]
  %v1504 = vld [vmem:[%s0 + $0x86c] sm:$0xf]
  %v1649 = vunpack.c.l.b16 %v1361
  %v1650 = vunpack.c.l.b16 %v1362
  %v1651 = vunpack.c.l.b16 %v1363
  %v1652 = vunpack.c.l.b16 %v1364
  %v1653 = vunpack.c.l.b16 %v1365
  %v1654 = vunpack.c.l.b16 %v1366
  %v1655 = vunpack.c.l.b16 %v1367
  %v1656 = vunpack.c.l.b16 %v1368
  %v1657 = vunpack.c.l.b16 %v1369
  %v1658 = vunpack.c.l.b16 %v1370
  %v1659 = vunpack.c.l.b16 %v1371
  %v1660 = vunpack.c.l.b16 %v1372
  %v1661 = vunpack.c.l.b16 %v1373
  %v1662 = vunpack.c.l.b16 %v1374
  %v1663 = vunpack.c.l.b16 %v1375
  %v1664 = vunpack.c.l.b16 %v1376
  %v1665 = vunpack.c.l.b16 %v1377
  %v1666 = vunpack.c.l.b16 %v1378
  %v1667 = vunpack.c.l.b16 %v1379
  %v1668 = vunpack.c.l.b16 %v1380
  %v1669 = vunpack.c.l.b16 %v1381
  %v1670 = vunpack.c.l.b16 %v1382
  %v1671 = vunpack.c.l.b16 %v1383
  %v1672 = vunpack.c.l.b16 %v1384
  %v1673 = vunpack.c.l.b16 %v1385
  %v1674 = vunpack.c.l.b16 %v1386
  %v1675 = vunpack.c.l.b16 %v1387
  %v1676 = vunpack.c.l.b16 %v1388
  %v1677 = vunpack.c.l.b16 %v1389
  %v1678 = vunpack.c.l.b16 %v1390
  %v1679 = vunpack.c.l.b16 %v1391
  %v1680 = vunpack.c.l.b16 %v1392
  %v1681 = vunpack.c.l.b16 %v1393
  %v1682 = vunpack.c.l.b16 %v1394
  %v1683 = vunpack.c.l.b16 %v1395
  %v1684 = vunpack.c.l.b16 %v1396
  %v1685 = vunpack.c.l.b16 %v1397
  %v1686 = vunpack.c.l.b16 %v1398
  %v1687 = vunpack.c.l.b16 %v1399
  %v1688 = vunpack.c.l.b16 %v1400
  %v1689 = vunpack.c.l.b16 %v1401
  %v1690 = vunpack.c.l.b16 %v1402
  %v1691 = vunpack.c.l.b16 %v1403
  %v1692 = vunpack.c.l.b16 %v1404
  %v1693 = vunpack.c.l.b16 %v1405
  %v1694 = vunpack.c.l.b16 %v1406
  %v1695 = vunpack.c.l.b16 %v1407
  %v1696 = vunpack.c.l.b16 %v1408
  %v1697 = vunpack.c.l.b16 %v1409
  %v1698 = vunpack.c.l.b16 %v1410
  %v1699 = vunpack.c.l.b16 %v1411
  %v1700 = vunpack.c.l.b16 %v1412
  %v1701 = vunpack.c.l.b16 %v1413
  %v1702 = vunpack.c.l.b16 %v1414
  %v1703 = vunpack.c.l.b16 %v1415
  %v1704 = vunpack.c.l.b16 %v1416
  %v1705 = vunpack.c.l.b16 %v1417
  %v1706 = vunpack.c.l.b16 %v1418
  %v1707 = vunpack.c.l.b16 %v1419
  %v1708 = vunpack.c.l.b16 %v1420
  %v1709 = vunpack.c.l.b16 %v1421
  %v1710 = vunpack.c.l.b16 %v1422
  %v1711 = vunpack.c.l.b16 %v1423
  %v1712 = vunpack.c.l.b16 %v1424
  %v1713 = vunpack.c.l.b16 %v1425
  %v1714 = vunpack.c.l.b16 %v1426
  %v1715 = vunpack.c.l.b16 %v1427
  %v1716 = vunpack.c.l.b16 %v1428
  %v1717 = vunpack.c.l.b16 %v1429
  %v1718 = vunpack.c.l.b16 %v1430
  %v1719 = vunpack.c.l.b16 %v1431
  %v1720 = vunpack.c.l.b16 %v1432
  %v1721 = vunpack.c.l.b16 %v1433
  %v1722 = vunpack.c.l.b16 %v1434
  %v1723 = vunpack.c.l.b16 %v1435
  %v1724 = vunpack.c.l.b16 %v1436
  %v1725 = vunpack.c.l.b16 %v1437
  %v1726 = vunpack.c.l.b16 %v1438
  %v1727 = vunpack.c.l.b16 %v1439
  %v1728 = vunpack.c.l.b16 %v1440
  %v1729 = vunpack.c.l.b16 %v1441
  %v1730 = vunpack.c.l.b16 %v1442
  %v1731 = vunpack.c.l.b16 %v1443
  %v1732 = vunpack.c.l.b16 %v1444
  %v1733 = vunpack.c.l.b16 %v1445
  %v1734 = vunpack.c.l.b16 %v1446
  %v1735 = vunpack.c.l.b16 %v1447
  %v1736 = vunpack.c.l.b16 %v1448
  %v1737 = vunpack.c.l.b16 %v1449
  %v1738 = vunpack.c.l.b16 %v1450
  %v1739 = vunpack.c.l.b16 %v1451
  %v1740 = vunpack.c.l.b16 %v1452
  %v1741 = vunpack.c.l.b16 %v1453
  %v1742 = vunpack.c.l.b16 %v1454
  %v1743 = vunpack.c.l.b16 %v1455
  %v1744 = vunpack.c.l.b16 %v1456
  %v1745 = vunpack.c.l.b16 %v1457
  %v1746 = vunpack.c.l.b16 %v1458
  %v1747 = vunpack.c.l.b16 %v1459
  %v1748 = vunpack.c.l.b16 %v1460
  %v1749 = vunpack.c.l.b16 %v1461
  %v1750 = vunpack.c.l.b16 %v1462
  %v1751 = vunpack.c.l.b16 %v1463
  %v1752 = vunpack.c.l.b16 %v1464
  %v1753 = vunpack.c.l.b16 %v1465
  %v1754 = vunpack.c.l.b16 %v1466
  %v1755 = vunpack.c.l.b16 %v1467
  %v1756 = vunpack.c.l.b16 %v1468
  %v1757 = vunpack.c.l.b16 %v1469
  %v1758 = vunpack.c.l.b16 %v1470
  %v1759 = vunpack.c.l.b16 %v1471
  %v1760 = vunpack.c.l.b16 %v1472
  %v1761 = vunpack.c.l.b16 %v1473
  %v1762 = vunpack.c.l.b16 %v1474
  %v1763 = vunpack.c.l.b16 %v1475
  %v1764 = vunpack.c.l.b16 %v1476
  %v1765 = vunpack.c.l.b16 %v1477
  %v1766 = vunpack.c.l.b16 %v1478
  %v1767 = vunpack.c.l.b16 %v1479
  %v1768 = vunpack.c.l.b16 %v1480
  %v1769 = vunpack.c.l.b16 %v1481
  %v1770 = vunpack.c.l.b16 %v1482
  %v1771 = vunpack.c.l.b16 %v1483
  %v1772 = vunpack.c.l.b16 %v1484
  %v1773 = vunpack.c.l.b16 %v1485
  %v1774 = vunpack.c.l.b16 %v1486
  %v1775 = vunpack.c.l.b16 %v1487
  %v1776 = vunpack.c.l.b16 %v1488
  %v1777 = vunpack.c.l.b16 %v1489
  %v1778 = vunpack.c.l.b16 %v1490
  %v1779 = vunpack.c.l.b16 %v1491
  %v1780 = vunpack.c.l.b16 %v1492
  %v1781 = vunpack.c.l.b16 %v1493
  %v1782 = vunpack.c.l.b16 %v1494
  %v1783 = vunpack.c.l.b16 %v1495
  %v1784 = vunpack.c.l.b16 %v1496
  %v1785 = vunpack.c.l.b16 %v1497
  %v1786 = vunpack.c.l.b16 %v1498
  %v1787 = vunpack.c.l.b16 %v1499
  %v1788 = vunpack.c.l.b16 %v1500
  %v1789 = vunpack.c.l.b16 %v1501
  %v1790 = vunpack.c.l.b16 %v1502
  %v1791 = vunpack.c.l.b16 %v1503
  %v1792 = vunpack.c.l.b16 %v1504
  %v1793 = vpack.c.b16 %v1650, %v1649
  %v1794 = vpack.c.b16 %v1652, %v1651
  %v1795 = vpack.c.b16 %v1654, %v1653
  %v1796 = vpack.c.b16 %v1656, %v1655
  %v1797 = vpack.c.b16 %v1658, %v1657
  %v1798 = vpack.c.b16 %v1660, %v1659
  %v1799 = vpack.c.b16 %v1662, %v1661
  %v1800 = vpack.c.b16 %v1664, %v1663
  %v1801 = vpack.c.b16 %v1666, %v1665
  %v1802 = vpack.c.b16 %v1668, %v1667
  %v1803 = vpack.c.b16 %v1670, %v1669
  %v1804 = vpack.c.b16 %v1672, %v1671
  %v1805 = vpack.c.b16 %v1674, %v1673
  %v1806 = vpack.c.b16 %v1676, %v1675
  %v1807 = vpack.c.b16 %v1678, %v1677
  %v1808 = vpack.c.b16 %v1680, %v1679
  %v1809 = vpack.c.b16 %v1682, %v1681
  %v1810 = vpack.c.b16 %v1684, %v1683
  %v1811 = vpack.c.b16 %v1686, %v1685
  %v1812 = vpack.c.b16 %v1688, %v1687
  %v1813 = vpack.c.b16 %v1690, %v1689
  %v1814 = vpack.c.b16 %v1692, %v1691
  %v1815 = vpack.c.b16 %v1694, %v1693
  %v1816 = vpack.c.b16 %v1696, %v1695
  %v1817 = vpack.c.b16 %v1698, %v1697
  %v1818 = vpack.c.b16 %v1700, %v1699
  %v1819 = vpack.c.b16 %v1702, %v1701
  %v1820 = vpack.c.b16 %v1704, %v1703
  %v1821 = vpack.c.b16 %v1706, %v1705
  %v1822 = vpack.c.b16 %v1708, %v1707
  %v1823 = vpack.c.b16 %v1710, %v1709
  %v1824 = vpack.c.b16 %v1712, %v1711
  %v1825 = vpack.c.b16 %v1714, %v1713
  %v1826 = vpack.c.b16 %v1716, %v1715
  %v1827 = vpack.c.b16 %v1718, %v1717
  %v1828 = vpack.c.b16 %v1720, %v1719
  %v1829 = vpack.c.b16 %v1722, %v1721
  %v1830 = vpack.c.b16 %v1724, %v1723
  %v1831 = vpack.c.b16 %v1726, %v1725
  %v1832 = vpack.c.b16 %v1728, %v1727
  %v1833 = vpack.c.b16 %v1730, %v1729
  %v1834 = vpack.c.b16 %v1732, %v1731
  %v1835 = vpack.c.b16 %v1734, %v1733
  %v1836 = vpack.c.b16 %v1736, %v1735
  %v1837 = vpack.c.b16 %v1738, %v1737
  %v1838 = vpack.c.b16 %v1740, %v1739
  %v1839 = vpack.c.b16 %v1742, %v1741
  %v1840 = vpack.c.b16 %v1744, %v1743
  %v1841 = vpack.c.b16 %v1746, %v1745
  %v1842 = vpack.c.b16 %v1748, %v1747
  %v1843 = vpack.c.b16 %v1750, %v1749
  %v1844 = vpack.c.b16 %v1752, %v1751
  %v1845 = vpack.c.b16 %v1754, %v1753
  %v1846 = vpack.c.b16 %v1756, %v1755
  %v1847 = vpack.c.b16 %v1758, %v1757
  %v1848 = vpack.c.b16 %v1760, %v1759
  %v1849 = vpack.c.b16 %v1762, %v1761
  %v1850 = vpack.c.b16 %v1764, %v1763
  %v1851 = vpack.c.b16 %v1766, %v1765
  %v1852 = vpack.c.b16 %v1768, %v1767
  %v1853 = vpack.c.b16 %v1770, %v1769
  %v1854 = vpack.c.b16 %v1772, %v1771
  %v1855 = vpack.c.b16 %v1774, %v1773
  %v1856 = vpack.c.b16 %v1776, %v1775
  %v1857 = vpack.c.b16 %v1778, %v1777
  %v1858 = vpack.c.b16 %v1780, %v1779
  %v1859 = vpack.c.b16 %v1782, %v1781
  %v1860 = vpack.c.b16 %v1784, %v1783
  %v1861 = vpack.c.b16 %v1786, %v1785
  %v1862 = vpack.c.b16 %v1788, %v1787
  %v1863 = vpack.c.b16 %v1790, %v1789
  %v1864 = vpack.c.b16 %v1792, %v1791
  %v1866 = vsel %vm535, %v1793, 0
  %v1869 = vsel %vm535, %v1794, 0
  %v1872 = vsel %vm535, %v1795, 0
  %v1875 = vsel %vm535, %v1796, 0
  %v1878 = vsel %vm535, %v1797, 0
  %v1881 = vsel %vm535, %v1798, 0
  %v1884 = vsel %vm535, %v1799, 0
  %v1887 = vsel %vm535, %v1800, 0
  %v1890 = vsel %vm535, %v1801, 0
  %v1893 = vsel %vm535, %v1802, 0
  %v1896 = vsel %vm535, %v1803, 0
  %v1899 = vsel %vm535, %v1804, 0
  %v1902 = vsel %vm535, %v1805, 0
  %v1905 = vsel %vm535, %v1806, 0
  %v1908 = vsel %vm535, %v1807, 0
  %v1911 = vsel %vm535, %v1808, 0
  %v1914 = vsel %vm535, %v1809, 0
  %v1917 = vsel %vm535, %v1810, 0
  %v1920 = vsel %vm535, %v1811, 0
  %v1923 = vsel %vm535, %v1812, 0
  %v1926 = vsel %vm535, %v1813, 0
  %v1929 = vsel %vm535, %v1814, 0
  %v1932 = vsel %vm535, %v1815, 0
  %v1935 = vsel %vm535, %v1816, 0
  %v1938 = vsel %vm535, %v1817, 0
  %v1941 = vsel %vm535, %v1818, 0
  %v1944 = vsel %vm535, %v1819, 0
  %v1947 = vsel %vm535, %v1820, 0
  %v1950 = vsel %vm535, %v1821, 0
  %v1953 = vsel %vm535, %v1822, 0
  %v1956 = vsel %vm535, %v1823, 0
  %v1959 = vsel %vm535, %v1824, 0
  %v1962 = vsel %vm535, %v1825, 0
  %v1965 = vsel %vm535, %v1826, 0
  %v1968 = vsel %vm535, %v1827, 0
  %v1971 = vsel %vm535, %v1828, 0
  %v1974 = vsel %vm535, %v1829, 0
  %v1977 = vsel %vm535, %v1830, 0
  %v1980 = vsel %vm535, %v1831, 0
  %v1983 = vsel %vm535, %v1832, 0
  %v1986 = vsel %vm535, %v1833, 0
  %v1989 = vsel %vm535, %v1834, 0
  %v1992 = vsel %vm535, %v1835, 0
  %v1995 = vsel %vm535, %v1836, 0
  %v1998 = vsel %vm535, %v1837, 0
  %v2001 = vsel %vm535, %v1838, 0
  %v2004 = vsel %vm535, %v1839, 0
  %v2007 = vsel %vm535, %v1840, 0
  %v2010 = vsel %vm535, %v1841, 0
  %v2013 = vsel %vm535, %v1842, 0
  %v2016 = vsel %vm535, %v1843, 0
  %v2019 = vsel %vm535, %v1844, 0
  %v2022 = vsel %vm535, %v1845, 0
  %v2025 = vsel %vm535, %v1846, 0
  %v2028 = vsel %vm535, %v1847, 0
  %v2031 = vsel %vm535, %v1848, 0
  %v2034 = vsel %vm535, %v1849, 0
  %v2037 = vsel %vm535, %v1850, 0
  %v2040 = vsel %vm535, %v1851, 0
  %v2043 = vsel %vm535, %v1852, 0
  %v2046 = vsel %vm535, %v1853, 0
  %v2049 = vsel %vm535, %v1854, 0
  %v2052 = vsel %vm535, %v1855, 0
  %v2055 = vsel %vm535, %v1856, 0
  %v2058 = vsel %vm535, %v1857, 0
  %v2061 = vsel %vm535, %v1858, 0
  %v2064 = vsel %vm535, %v1859, 0
  %v2067 = vsel %vm535, %v1860, 0
  %v2070 = vsel %vm535, %v1861, 0
  %v2073 = vsel %vm535, %v1862, 0
  %v2076 = vsel %vm535, %v1863, 0
  %v2079 = vsel %vm535, %v1864, 0
  %2081 = vmatprep.subr.bf16.mxu0 0
  %2082 = vmatpush1.bf16.msra.mxu0 0
  %2083 = vmatprep.subr.bf16.mxu0 0
  %2084 = vmatpush1.bf16.msra.mxu0 0
  %2085 = vmatprep.subr.bf16.mxu0 0
  %2086 = vmatpush1.bf16.msra.mxu0 0
  %2087 = vmatprep.subr.bf16.mxu0 0
  %2088 = vmatpush1.bf16.msra.mxu0 0
  %2089 = vmatprep.subr.bf16.mxu0 0
  %2090 = vmatpush1.bf16.msra.mxu0 0
  %2091 = vmatprep.subr.bf16.mxu0 0
  %2092 = vmatpush1.bf16.msra.mxu0 0
  %2093 = vmatprep.subr.bf16.mxu0 0
  %2094 = vmatpush1.bf16.msra.mxu0 %v532
  %2095 = vmatprep.subr.bf16.mxu0 0
  %2096 = vmatpush1.bf16.msra.mxu0 %v531
  %2097 = vmatprep.subr.bf16.mxu0 0
  %2098 = vmatpush2.bf16.msra.mxu0 0
  %2099 = vmatprep.subr.bf16.mxu0 0
  %2100 = vmatpush2.bf16.msra.mxu0 0
  %2101 = vmatprep.subr.bf16.mxu0 0
  %2102 = vmatpush2.bf16.msra.mxu0 0
  %2103 = vmatprep.subr.bf16.mxu0 0
  %2104 = vmatpush2.bf16.msra.mxu0 0
  %2105 = vmatprep.subr.bf16.mxu0 0
  %2106 = vmatpush2.bf16.msra.mxu0 0
  %2107 = vmatprep.subr.bf16.mxu0 0
  %2108 = vmatpush2.bf16.msra.mxu0 0
  %2109 = vmatprep.subr.bf16.mxu0 0
  %2110 = vmatpush2.bf16.msra.mxu0 0
  %2111 = vmatprep.subr.bf16.mxu0 0
  %2112 = vmatpush2.bf16.msra.mxu0 0
  %2113 = vmatprep.mubr.bf16.mxu0 0
  %2114 = vmatmul.mubr.bf16.gmra.mxu0 %v1866
  %v2115 = vpop.f32.mrf.mxu0
  %v2116 = vadd.f32 0.0, %v2115
  %v2117 = vpop.f32.mrf.mxu0
  %v2118 = vpop.f32.mrf.mxu0
  %v2119 = vadd.f32 0.0, %v2118
  %v2120 = vpop.f32.mrf.mxu0
  %2121 = vmatprep.mubr.bf16.mxu0 0
  %2122 = vmatmul.mubr.bf16.gmra.mxu0 %v1869
  %v2123 = vpop.f32.mrf.mxu0
  %v2124 = vadd.f32 0.0, %v2123
  %v2125 = vpop.f32.mrf.mxu0
  %v2126 = vpop.f32.mrf.mxu0
  %v2127 = vadd.f32 0.0, %v2126
  %v2128 = vpop.f32.mrf.mxu0
  %2129 = vmatprep.mubr.bf16.mxu0 0
  %2130 = vmatmul.mubr.bf16.gmra.mxu0 %v1872
  %v2131 = vpop.f32.mrf.mxu0
  %v2132 = vadd.f32 0.0, %v2131
  %v2133 = vpop.f32.mrf.mxu0
  %v2134 = vpop.f32.mrf.mxu0
  %v2135 = vadd.f32 0.0, %v2134
  %v2136 = vpop.f32.mrf.mxu0
  %2137 = vmatprep.mubr.bf16.mxu0 0
  %2138 = vmatmul.mubr.bf16.gmra.mxu0 %v1875
  %v2139 = vpop.f32.mrf.mxu0
  %v2140 = vadd.f32 0.0, %v2139
  %v2141 = vpop.f32.mrf.mxu0
  %v2142 = vpop.f32.mrf.mxu0
  %v2143 = vadd.f32 0.0, %v2142
  %v2144 = vpop.f32.mrf.mxu0
  %2145 = vmatprep.mubr.bf16.mxu0 0
  %2146 = vmatmul.mubr.bf16.gmra.mxu0 %v1878
  %v2147 = vpop.f32.mrf.mxu0
  %v2148 = vadd.f32 0.0, %v2147
  %v2149 = vpop.f32.mrf.mxu0
  %v2150 = vpop.f32.mrf.mxu0
  %v2151 = vadd.f32 0.0, %v2150
  %v2152 = vpop.f32.mrf.mxu0
  %2153 = vmatprep.mubr.bf16.mxu0 0
  %2154 = vmatmul.mubr.bf16.gmra.mxu0 %v1881
  %v2155 = vpop.f32.mrf.mxu0
  %v2156 = vadd.f32 0.0, %v2155
  %v2157 = vpop.f32.mrf.mxu0
  %v2158 = vpop.f32.mrf.mxu0
  %v2159 = vadd.f32 0.0, %v2158
  %v2160 = vpop.f32.mrf.mxu0
  %2161 = vmatprep.mubr.bf16.mxu0 0
  %2162 = vmatmul.mubr.bf16.gmra.mxu0 %v1884
  %v2163 = vpop.f32.mrf.mxu0
  %v2164 = vadd.f32 0.0, %v2163
  %v2165 = vpop.f32.mrf.mxu0
  %v2166 = vpop.f32.mrf.mxu0
  %v2167 = vadd.f32 0.0, %v2166
  %v2168 = vpop.f32.mrf.mxu0
  %2169 = vmatprep.mubr.bf16.mxu0 0
  %2170 = vmatmul.mubr.bf16.gmra.mxu0 %v1887
  %v2171 = vpop.f32.mrf.mxu0
  %v2172 = vadd.f32 0.0, %v2171
  %v2173 = vpop.f32.mrf.mxu0
  %v2174 = vpop.f32.mrf.mxu0
  %v2175 = vadd.f32 0.0, %v2174
  %v2176 = vpop.f32.mrf.mxu0
  %2177 = vmatprep.mubr.bf16.mxu0 0
  %2178 = vmatmul.mubr.bf16.gmra.mxu0 %v1890
  %v2179 = vpop.f32.mrf.mxu0
  %v2180 = vadd.f32 0.0, %v2179
  %v2181 = vpop.f32.mrf.mxu0
  %v2182 = vpop.f32.mrf.mxu0
  %v2183 = vadd.f32 0.0, %v2182
  %v2184 = vpop.f32.mrf.mxu0
  %2185 = vmatprep.mubr.bf16.mxu0 0
  %2186 = vmatmul.mubr.bf16.gmra.mxu0 %v1893
  %v2187 = vpop.f32.mrf.mxu0
  %v2188 = vadd.f32 0.0, %v2187
  %v2189 = vpop.f32.mrf.mxu0
  %v2190 = vpop.f32.mrf.mxu0
  %v2191 = vadd.f32 0.0, %v2190
  %v2192 = vpop.f32.mrf.mxu0
  %2193 = vmatprep.mubr.bf16.mxu0 0
  %2194 = vmatmul.mubr.bf16.gmra.mxu0 %v1896
  %v2195 = vpop.f32.mrf.mxu0
  %v2196 = vadd.f32 0.0, %v2195
  %v2197 = vpop.f32.mrf.mxu0
  %v2198 = vpop.f32.mrf.mxu0
  %v2199 = vadd.f32 0.0, %v2198
  %v2200 = vpop.f32.mrf.mxu0
  %2201 = vmatprep.mubr.bf16.mxu0 0
  %2202 = vmatmul.mubr.bf16.gmra.mxu0 %v1899
  %v2203 = vpop.f32.mrf.mxu0
  %v2204 = vadd.f32 0.0, %v2203
  %v2205 = vpop.f32.mrf.mxu0
  %v2206 = vpop.f32.mrf.mxu0
  %v2207 = vadd.f32 0.0, %v2206
  %v2208 = vpop.f32.mrf.mxu0
  %2209 = vmatprep.mubr.bf16.mxu0 0
  %2210 = vmatmul.mubr.bf16.gmra.mxu0 %v1902
  %v2211 = vpop.f32.mrf.mxu0
  %v2212 = vadd.f32 0.0, %v2211
  %v2213 = vpop.f32.mrf.mxu0
  %v2214 = vpop.f32.mrf.mxu0
  %v2215 = vadd.f32 0.0, %v2214
  %v2216 = vpop.f32.mrf.mxu0
  %2217 = vmatprep.mubr.bf16.mxu0 0
  %2218 = vmatmul.mubr.bf16.gmra.mxu0 %v1905
  %v2219 = vpop.f32.mrf.mxu0
  %v2220 = vadd.f32 0.0, %v2219
  %v2221 = vpop.f32.mrf.mxu0
  %v2222 = vpop.f32.mrf.mxu0
  %v2223 = vadd.f32 0.0, %v2222
  %v2224 = vpop.f32.mrf.mxu0
  %2225 = vmatprep.mubr.bf16.mxu0 0
  %2226 = vmatmul.mubr.bf16.gmra.mxu0 %v1908
  %v2227 = vpop.f32.mrf.mxu0
  %v2228 = vadd.f32 0.0, %v2227
  %v2229 = vpop.f32.mrf.mxu0
  %v2230 = vpop.f32.mrf.mxu0
  %v2231 = vadd.f32 0.0, %v2230
  %v2232 = vpop.f32.mrf.mxu0
  %2233 = vmatprep.mubr.bf16.mxu0 0
  %2234 = vmatmul.mubr.bf16.gmra.mxu0 %v1911
  %v2235 = vpop.f32.mrf.mxu0
  %v2236 = vadd.f32 0.0, %v2235
  %v2237 = vpop.f32.mrf.mxu0
  %v2238 = vpop.f32.mrf.mxu0
  %v2239 = vadd.f32 0.0, %v2238
  %v2240 = vpop.f32.mrf.mxu0
  %2241 = vmatprep.mubr.bf16.mxu0 0
  %2242 = vmatmul.mubr.bf16.gmra.mxu0 %v1914
  %v2243 = vpop.f32.mrf.mxu0
  %v2244 = vadd.f32 0.0, %v2243
  %v2245 = vpop.f32.mrf.mxu0
  %v2246 = vpop.f32.mrf.mxu0
  %v2247 = vadd.f32 0.0, %v2246
  %v2248 = vpop.f32.mrf.mxu0
  %2249 = vmatprep.mubr.bf16.mxu0 0
  %2250 = vmatmul.mubr.bf16.gmra.mxu0 %v1917
  %v2251 = vpop.f32.mrf.mxu0
  %v2252 = vadd.f32 0.0, %v2251
  %v2253 = vpop.f32.mrf.mxu0
  %v2254 = vpop.f32.mrf.mxu0
  %v2255 = vadd.f32 0.0, %v2254
  %v2256 = vpop.f32.mrf.mxu0
  %2257 = vmatprep.mubr.bf16.mxu0 0
  %2258 = vmatmul.mubr.bf16.gmra.mxu0 %v1920
  %v2259 = vpop.f32.mrf.mxu0
  %v2260 = vadd.f32 0.0, %v2259
  %v2261 = vpop.f32.mrf.mxu0
  %v2262 = vpop.f32.mrf.mxu0
  %v2263 = vadd.f32 0.0, %v2262
  %v2264 = vpop.f32.mrf.mxu0
  %2265 = vmatprep.mubr.bf16.mxu0 0
  %2266 = vmatmul.mubr.bf16.gmra.mxu0 %v1923
  %v2267 = vpop.f32.mrf.mxu0
  %v2268 = vadd.f32 0.0, %v2267
  %v2269 = vpop.f32.mrf.mxu0
  %v2270 = vpop.f32.mrf.mxu0
  %v2271 = vadd.f32 0.0, %v2270
  %v2272 = vpop.f32.mrf.mxu0
  %2273 = vmatprep.mubr.bf16.mxu0 0
  %2274 = vmatmul.mubr.bf16.gmra.mxu0 %v1926
  %v2275 = vpop.f32.mrf.mxu0
  %v2276 = vadd.f32 0.0, %v2275
  %v2277 = vpop.f32.mrf.mxu0
  %v2278 = vpop.f32.mrf.mxu0
  %v2279 = vadd.f32 0.0, %v2278
  %v2280 = vpop.f32.mrf.mxu0
  %2281 = vmatprep.mubr.bf16.mxu0 0
  %2282 = vmatmul.mubr.bf16.gmra.mxu0 %v1929
  %v2283 = vpop.f32.mrf.mxu0
  %v2284 = vadd.f32 0.0, %v2283
  %v2285 = vpop.f32.mrf.mxu0
  %v2286 = vpop.f32.mrf.mxu0
  %v2287 = vadd.f32 0.0, %v2286
  %v2288 = vpop.f32.mrf.mxu0
  %2289 = vmatprep.mubr.bf16.mxu0 0
  %2290 = vmatmul.mubr.bf16.gmra.mxu0 %v1932
  %v2291 = vpop.f32.mrf.mxu0
  %v2292 = vadd.f32 0.0, %v2291
  %v2293 = vpop.f32.mrf.mxu0
  %v2294 = vpop.f32.mrf.mxu0
  %v2295 = vadd.f32 0.0, %v2294
  %v2296 = vpop.f32.mrf.mxu0
  %2297 = vmatprep.mubr.bf16.mxu0 0
  %2298 = vmatmul.mubr.bf16.gmra.mxu0 %v1935
  %v2299 = vpop.f32.mrf.mxu0
  %v2300 = vadd.f32 0.0, %v2299
  %v2301 = vpop.f32.mrf.mxu0
  %v2302 = vpop.f32.mrf.mxu0
  %v2303 = vadd.f32 0.0, %v2302
  %v2304 = vpop.f32.mrf.mxu0
  %2305 = vmatprep.mubr.bf16.mxu0 0
  %2306 = vmatmul.mubr.bf16.gmra.mxu0 %v1938
  %v2307 = vpop.f32.mrf.mxu0
  %v2308 = vadd.f32 0.0, %v2307
  %v2309 = vpop.f32.mrf.mxu0
  %v2310 = vpop.f32.mrf.mxu0
  %v2311 = vadd.f32 0.0, %v2310
  %v2312 = vpop.f32.mrf.mxu0
  %2313 = vmatprep.mubr.bf16.mxu0 0
  %2314 = vmatmul.mubr.bf16.gmra.mxu0 %v1941
  %v2315 = vpop.f32.mrf.mxu0
  %v2316 = vadd.f32 0.0, %v2315
  %v2317 = vpop.f32.mrf.mxu0
  %v2318 = vpop.f32.mrf.mxu0
  %v2319 = vadd.f32 0.0, %v2318
  %v2320 = vpop.f32.mrf.mxu0
  %2321 = vmatprep.mubr.bf16.mxu0 0
  %2322 = vmatmul.mubr.bf16.gmra.mxu0 %v1944
  %v2323 = vpop.f32.mrf.mxu0
  %v2324 = vadd.f32 0.0, %v2323
  %v2325 = vpop.f32.mrf.mxu0
  %v2326 = vpop.f32.mrf.mxu0
  %v2327 = vadd.f32 0.0, %v2326
  %v2328 = vpop.f32.mrf.mxu0
  %2329 = vmatprep.mubr.bf16.mxu0 0
  %2330 = vmatmul.mubr.bf16.gmra.mxu0 %v1947
  %v2331 = vpop.f32.mrf.mxu0
  %v2332 = vadd.f32 0.0, %v2331
  %v2333 = vpop.f32.mrf.mxu0
  %v2334 = vpop.f32.mrf.mxu0
  %v2335 = vadd.f32 0.0, %v2334
  %v2336 = vpop.f32.mrf.mxu0
  %2337 = vmatprep.mubr.bf16.mxu0 0
  %2338 = vmatmul.mubr.bf16.gmra.mxu0 %v1950
  %v2339 = vpop.f32.mrf.mxu0
  %v2340 = vadd.f32 0.0, %v2339
  %v2341 = vpop.f32.mrf.mxu0
  %v2342 = vpop.f32.mrf.mxu0
  %v2343 = vadd.f32 0.0, %v2342
  %v2344 = vpop.f32.mrf.mxu0
  %2345 = vmatprep.mubr.bf16.mxu0 0
  %2346 = vmatmul.mubr.bf16.gmra.mxu0 %v1953
  %v2347 = vpop.f32.mrf.mxu0
  %v2348 = vadd.f32 0.0, %v2347
  %v2349 = vpop.f32.mrf.mxu0
  %v2350 = vpop.f32.mrf.mxu0
  %v2351 = vadd.f32 0.0, %v2350
  %v2352 = vpop.f32.mrf.mxu0
  %2353 = vmatprep.mubr.bf16.mxu0 0
  %2354 = vmatmul.mubr.bf16.gmra.mxu0 %v1956
  %v2355 = vpop.f32.mrf.mxu0
  %v2356 = vadd.f32 0.0, %v2355
  %v2357 = vpop.f32.mrf.mxu0
  %v2358 = vpop.f32.mrf.mxu0
  %v2359 = vadd.f32 0.0, %v2358
  %v2360 = vpop.f32.mrf.mxu0
  %2361 = vmatprep.mubr.bf16.mxu0 0
  %2362 = vmatmul.mubr.bf16.gmra.mxu0 %v1959
  %v2363 = vpop.f32.mrf.mxu0
  %v2364 = vadd.f32 0.0, %v2363
  %v2365 = vpop.f32.mrf.mxu0
  %v2366 = vpop.f32.mrf.mxu0
  %v2367 = vadd.f32 0.0, %v2366
  %v2368 = vpop.f32.mrf.mxu0
  %2369 = vmatprep.mubr.bf16.mxu0 0
  %2370 = vmatmul.mubr.bf16.gmra.mxu0 %v1962
  %v2371 = vpop.f32.mrf.mxu0
  %v2372 = vadd.f32 0.0, %v2371
  %v2373 = vpop.f32.mrf.mxu0
  %v2374 = vpop.f32.mrf.mxu0
  %v2375 = vadd.f32 0.0, %v2374
  %v2376 = vpop.f32.mrf.mxu0
  %2377 = vmatprep.mubr.bf16.mxu0 0
  %2378 = vmatmul.mubr.bf16.gmra.mxu0 %v1965
  %v2379 = vpop.f32.mrf.mxu0
  %v2380 = vadd.f32 0.0, %v2379
  %v2381 = vpop.f32.mrf.mxu0
  %v2382 = vpop.f32.mrf.mxu0
  %v2383 = vadd.f32 0.0, %v2382
  %v2384 = vpop.f32.mrf.mxu0
  %2385 = vmatprep.mubr.bf16.mxu0 0
  %2386 = vmatmul.mubr.bf16.gmra.mxu0 %v1968
  %v2387 = vpop.f32.mrf.mxu0
  %v2388 = vadd.f32 0.0, %v2387
  %v2389 = vpop.f32.mrf.mxu0
  %v2390 = vpop.f32.mrf.mxu0
  %v2391 = vadd.f32 0.0, %v2390
  %v2392 = vpop.f32.mrf.mxu0
  %2393 = vmatprep.mubr.bf16.mxu0 0
  %2394 = vmatmul.mubr.bf16.gmra.mxu0 %v1971
  %v2395 = vpop.f32.mrf.mxu0
  %v2396 = vadd.f32 0.0, %v2395
  %v2397 = vpop.f32.mrf.mxu0
  %v2398 = vpop.f32.mrf.mxu0
  %v2399 = vadd.f32 0.0, %v2398
  %v2400 = vpop.f32.mrf.mxu0
  %2401 = vmatprep.mubr.bf16.mxu0 0
  %2402 = vmatmul.mubr.bf16.gmra.mxu0 %v1974
  %v2403 = vpop.f32.mrf.mxu0
  %v2404 = vadd.f32 0.0, %v2403
  %v2405 = vpop.f32.mrf.mxu0
  %v2406 = vpop.f32.mrf.mxu0
  %v2407 = vadd.f32 0.0, %v2406
  %v2408 = vpop.f32.mrf.mxu0
  %2409 = vmatprep.mubr.bf16.mxu0 0
  %2410 = vmatmul.mubr.bf16.gmra.mxu0 %v1977
  %v2411 = vpop.f32.mrf.mxu0
  %v2412 = vadd.f32 0.0, %v2411
  %v2413 = vpop.f32.mrf.mxu0
  %v2414 = vpop.f32.mrf.mxu0
  %v2415 = vadd.f32 0.0, %v2414
  %v2416 = vpop.f32.mrf.mxu0
  %2417 = vmatprep.mubr.bf16.mxu0 0
  %2418 = vmatmul.mubr.bf16.gmra.mxu0 %v1980
  %v2419 = vpop.f32.mrf.mxu0
  %v2420 = vadd.f32 0.0, %v2419
  %v2421 = vpop.f32.mrf.mxu0
  %v2422 = vpop.f32.mrf.mxu0
  %v2423 = vadd.f32 0.0, %v2422
  %v2424 = vpop.f32.mrf.mxu0
  %2425 = vmatprep.mubr.bf16.mxu0 0
  %2426 = vmatmul.mubr.bf16.gmra.mxu0 %v1983
  %v2427 = vpop.f32.mrf.mxu0
  %v2428 = vadd.f32 0.0, %v2427
  %v2429 = vpop.f32.mrf.mxu0
  %v2430 = vpop.f32.mrf.mxu0
  %v2431 = vadd.f32 0.0, %v2430
  %v2432 = vpop.f32.mrf.mxu0
  %2433 = vmatprep.mubr.bf16.mxu0 0
  %2434 = vmatmul.mubr.bf16.gmra.mxu0 %v1986
  %v2435 = vpop.f32.mrf.mxu0
  %v2436 = vadd.f32 0.0, %v2435
  %v2437 = vpop.f32.mrf.mxu0
  %v2438 = vpop.f32.mrf.mxu0
  %v2439 = vadd.f32 0.0, %v2438
  %v2440 = vpop.f32.mrf.mxu0
  %2441 = vmatprep.mubr.bf16.mxu0 0
  %2442 = vmatmul.mubr.bf16.gmra.mxu0 %v1989
  %v2443 = vpop.f32.mrf.mxu0
  %v2444 = vadd.f32 0.0, %v2443
  %v2445 = vpop.f32.mrf.mxu0
  %v2446 = vpop.f32.mrf.mxu0
  %v2447 = vadd.f32 0.0, %v2446
  %v2448 = vpop.f32.mrf.mxu0
  %2449 = vmatprep.mubr.bf16.mxu0 0
  %2450 = vmatmul.mubr.bf16.gmra.mxu0 %v1992
  %v2451 = vpop.f32.mrf.mxu0
  %v2452 = vadd.f32 0.0, %v2451
  %v2453 = vpop.f32.mrf.mxu0
  %v2454 = vpop.f32.mrf.mxu0
  %v2455 = vadd.f32 0.0, %v2454
  %v2456 = vpop.f32.mrf.mxu0
  %2457 = vmatprep.mubr.bf16.mxu0 0
  %2458 = vmatmul.mubr.bf16.gmra.mxu0 %v1995
  %v2459 = vpop.f32.mrf.mxu0
  %v2460 = vadd.f32 0.0, %v2459
  %v2461 = vpop.f32.mrf.mxu0
  %v2462 = vpop.f32.mrf.mxu0
  %v2463 = vadd.f32 0.0, %v2462
  %v2464 = vpop.f32.mrf.mxu0
  %2465 = vmatprep.mubr.bf16.mxu0 0
  %2466 = vmatmul.mubr.bf16.gmra.mxu0 %v1998
  %v2467 = vpop.f32.mrf.mxu0
  %v2468 = vadd.f32 0.0, %v2467
  %v2469 = vpop.f32.mrf.mxu0
  %v2470 = vpop.f32.mrf.mxu0
  %v2471 = vadd.f32 0.0, %v2470
  %v2472 = vpop.f32.mrf.mxu0
  %2473 = vmatprep.mubr.bf16.mxu0 0
  %2474 = vmatmul.mubr.bf16.gmra.mxu0 %v2001
  %v2475 = vpop.f32.mrf.mxu0
  %v2476 = vadd.f32 0.0, %v2475
  %v2477 = vpop.f32.mrf.mxu0
  %v2478 = vpop.f32.mrf.mxu0
  %v2479 = vadd.f32 0.0, %v2478
  %v2480 = vpop.f32.mrf.mxu0
  %2481 = vmatprep.mubr.bf16.mxu0 0
  %2482 = vmatmul.mubr.bf16.gmra.mxu0 %v2004
  %v2483 = vpop.f32.mrf.mxu0
  %v2484 = vadd.f32 0.0, %v2483
  %v2485 = vpop.f32.mrf.mxu0
  %v2486 = vpop.f32.mrf.mxu0
  %v2487 = vadd.f32 0.0, %v2486
  %v2488 = vpop.f32.mrf.mxu0
  %2489 = vmatprep.mubr.bf16.mxu0 0
  %2490 = vmatmul.mubr.bf16.gmra.mxu0 %v2007
  %v2491 = vpop.f32.mrf.mxu0
  %v2492 = vadd.f32 0.0, %v2491
  %v2493 = vpop.f32.mrf.mxu0
  %v2494 = vpop.f32.mrf.mxu0
  %v2495 = vadd.f32 0.0, %v2494
  %v2496 = vpop.f32.mrf.mxu0
  %2497 = vmatprep.mubr.bf16.mxu0 0
  %2498 = vmatmul.mubr.bf16.gmra.mxu0 %v2010
  %v2499 = vpop.f32.mrf.mxu0
  %v2500 = vadd.f32 0.0, %v2499
  %v2501 = vpop.f32.mrf.mxu0
  %v2502 = vpop.f32.mrf.mxu0
  %v2503 = vadd.f32 0.0, %v2502
  %v2504 = vpop.f32.mrf.mxu0
  %2505 = vmatprep.mubr.bf16.mxu0 0
  %2506 = vmatmul.mubr.bf16.gmra.mxu0 %v2013
  %v2507 = vpop.f32.mrf.mxu0
  %v2508 = vadd.f32 0.0, %v2507
  %v2509 = vpop.f32.mrf.mxu0
  %v2510 = vpop.f32.mrf.mxu0
  %v2511 = vadd.f32 0.0, %v2510
  %v2512 = vpop.f32.mrf.mxu0
  %2513 = vmatprep.mubr.bf16.mxu0 0
  %2514 = vmatmul.mubr.bf16.gmra.mxu0 %v2016
  %v2515 = vpop.f32.mrf.mxu0
  %v2516 = vadd.f32 0.0, %v2515
  %v2517 = vpop.f32.mrf.mxu0
  %v2518 = vpop.f32.mrf.mxu0
  %v2519 = vadd.f32 0.0, %v2518
  %v2520 = vpop.f32.mrf.mxu0
  %2521 = vmatprep.mubr.bf16.mxu0 0
  %2522 = vmatmul.mubr.bf16.gmra.mxu0 %v2019
  %v2523 = vpop.f32.mrf.mxu0
  %v2524 = vadd.f32 0.0, %v2523
  %v2525 = vpop.f32.mrf.mxu0
  %v2526 = vpop.f32.mrf.mxu0
  %v2527 = vadd.f32 0.0, %v2526
  %v2528 = vpop.f32.mrf.mxu0
  %2529 = vmatprep.mubr.bf16.mxu0 0
  %2530 = vmatmul.mubr.bf16.gmra.mxu0 %v2022
  %v2531 = vpop.f32.mrf.mxu0
  %v2532 = vadd.f32 0.0, %v2531
  %v2533 = vpop.f32.mrf.mxu0
  %v2534 = vpop.f32.mrf.mxu0
  %v2535 = vadd.f32 0.0, %v2534
  %v2536 = vpop.f32.mrf.mxu0
  %2537 = vmatprep.mubr.bf16.mxu0 0
  %2538 = vmatmul.mubr.bf16.gmra.mxu0 %v2025
  %v2539 = vpop.f32.mrf.mxu0
  %v2540 = vadd.f32 0.0, %v2539
  %v2541 = vpop.f32.mrf.mxu0
  %v2542 = vpop.f32.mrf.mxu0
  %v2543 = vadd.f32 0.0, %v2542
  %v2544 = vpop.f32.mrf.mxu0
  %2545 = vmatprep.mubr.bf16.mxu0 0
  %2546 = vmatmul.mubr.bf16.gmra.mxu0 %v2028
  %v2547 = vpop.f32.mrf.mxu0
  %v2548 = vadd.f32 0.0, %v2547
  %v2549 = vpop.f32.mrf.mxu0
  %v2550 = vpop.f32.mrf.mxu0
  %v2551 = vadd.f32 0.0, %v2550
  %v2552 = vpop.f32.mrf.mxu0
  %2553 = vmatprep.mubr.bf16.mxu0 0
  %2554 = vmatmul.mubr.bf16.gmra.mxu0 %v2031
  %v2555 = vpop.f32.mrf.mxu0
  %v2556 = vadd.f32 0.0, %v2555
  %v2557 = vpop.f32.mrf.mxu0
  %v2558 = vpop.f32.mrf.mxu0
  %v2559 = vadd.f32 0.0, %v2558
  %v2560 = vpop.f32.mrf.mxu0
  %2561 = vmatprep.mubr.bf16.mxu0 0
  %2562 = vmatmul.mubr.bf16.gmra.mxu0 %v2034
  %v2563 = vpop.f32.mrf.mxu0
  %v2564 = vadd.f32 0.0, %v2563
  %v2565 = vpop.f32.mrf.mxu0
  %v2566 = vpop.f32.mrf.mxu0
  %v2567 = vadd.f32 0.0, %v2566
  %v2568 = vpop.f32.mrf.mxu0
  %2569 = vmatprep.mubr.bf16.mxu0 0
  %2570 = vmatmul.mubr.bf16.gmra.mxu0 %v2037
  %v2571 = vpop.f32.mrf.mxu0
  %v2572 = vadd.f32 0.0, %v2571
  %v2573 = vpop.f32.mrf.mxu0
  %v2574 = vpop.f32.mrf.mxu0
  %v2575 = vadd.f32 0.0, %v2574
  %v2576 = vpop.f32.mrf.mxu0
  %2577 = vmatprep.mubr.bf16.mxu0 0
  %2578 = vmatmul.mubr.bf16.gmra.mxu0 %v2040
  %v2579 = vpop.f32.mrf.mxu0
  %v2580 = vadd.f32 0.0, %v2579
  %v2581 = vpop.f32.mrf.mxu0
  %v2582 = vpop.f32.mrf.mxu0
  %v2583 = vadd.f32 0.0, %v2582
  %v2584 = vpop.f32.mrf.mxu0
  %2585 = vmatprep.mubr.bf16.mxu0 0
  %2586 = vmatmul.mubr.bf16.gmra.mxu0 %v2043
  %v2587 = vpop.f32.mrf.mxu0
  %v2588 = vadd.f32 0.0, %v2587
  %v2589 = vpop.f32.mrf.mxu0
  %v2590 = vpop.f32.mrf.mxu0
  %v2591 = vadd.f32 0.0, %v2590
  %v2592 = vpop.f32.mrf.mxu0
  %2593 = vmatprep.mubr.bf16.mxu0 0
  %2594 = vmatmul.mubr.bf16.gmra.mxu0 %v2046
  %v2595 = vpop.f32.mrf.mxu0
  %v2596 = vadd.f32 0.0, %v2595
  %v2597 = vpop.f32.mrf.mxu0
  %v2598 = vpop.f32.mrf.mxu0
  %v2599 = vadd.f32 0.0, %v2598
  %v2600 = vpop.f32.mrf.mxu0
  %2601 = vmatprep.mubr.bf16.mxu0 0
  %2602 = vmatmul.mubr.bf16.gmra.mxu0 %v2049
  %v2603 = vpop.f32.mrf.mxu0
  %v2604 = vadd.f32 0.0, %v2603
  %v2605 = vpop.f32.mrf.mxu0
  %v2606 = vpop.f32.mrf.mxu0
  %v2607 = vadd.f32 0.0, %v2606
  %v2608 = vpop.f32.mrf.mxu0
  %2609 = vmatprep.mubr.bf16.mxu0 0
  %2610 = vmatmul.mubr.bf16.gmra.mxu0 %v2052
  %v2611 = vpop.f32.mrf.mxu0
  %v2612 = vadd.f32 0.0, %v2611
  %v2613 = vpop.f32.mrf.mxu0
  %v2614 = vpop.f32.mrf.mxu0
  %v2615 = vadd.f32 0.0, %v2614
  %v2616 = vpop.f32.mrf.mxu0
  %2617 = vmatprep.mubr.bf16.mxu0 0
  %2618 = vmatmul.mubr.bf16.gmra.mxu0 %v2055
  %v2619 = vpop.f32.mrf.mxu0
  %v2620 = vadd.f32 0.0, %v2619
  %v2621 = vpop.f32.mrf.mxu0
  %v2622 = vpop.f32.mrf.mxu0
  %v2623 = vadd.f32 0.0, %v2622
  %v2624 = vpop.f32.mrf.mxu0
  %2625 = vmatprep.mubr.bf16.mxu0 0
  %2626 = vmatmul.mubr.bf16.gmra.mxu0 %v2058
  %v2627 = vpop.f32.mrf.mxu0
  %v2628 = vadd.f32 0.0, %v2627
  %v2629 = vpop.f32.mrf.mxu0
  %v2630 = vpop.f32.mrf.mxu0
  %v2631 = vadd.f32 0.0, %v2630
  %v2632 = vpop.f32.mrf.mxu0
  %2633 = vmatprep.mubr.bf16.mxu0 0
  %2634 = vmatmul.mubr.bf16.gmra.mxu0 %v2061
  %v2635 = vpop.f32.mrf.mxu0
  %v2636 = vadd.f32 0.0, %v2635
  %v2637 = vpop.f32.mrf.mxu0
  %v2638 = vpop.f32.mrf.mxu0
  %v2639 = vadd.f32 0.0, %v2638
  %v2640 = vpop.f32.mrf.mxu0
  %2641 = vmatprep.mubr.bf16.mxu0 0
  %2642 = vmatmul.mubr.bf16.gmra.mxu0 %v2064
  %v2643 = vpop.f32.mrf.mxu0
  %v2644 = vadd.f32 0.0, %v2643
  %v2645 = vpop.f32.mrf.mxu0
  %v2646 = vpop.f32.mrf.mxu0
  %v2647 = vadd.f32 0.0, %v2646
  %v2648 = vpop.f32.mrf.mxu0
  %2649 = vmatprep.mubr.bf16.mxu0 0
  %2650 = vmatmul.mubr.bf16.gmra.mxu0 %v2067
  %v2651 = vpop.f32.mrf.mxu0
  %v2652 = vadd.f32 0.0, %v2651
  %v2653 = vpop.f32.mrf.mxu0
  %v2654 = vpop.f32.mrf.mxu0
  %v2655 = vadd.f32 0.0, %v2654
  %v2656 = vpop.f32.mrf.mxu0
  %2657 = vmatprep.mubr.bf16.mxu0 0
  %2658 = vmatmul.mubr.bf16.gmra.mxu0 %v2070
  %v2659 = vpop.f32.mrf.mxu0
  %v2660 = vadd.f32 0.0, %v2659
  %v2661 = vpop.f32.mrf.mxu0
  %v2662 = vpop.f32.mrf.mxu0
  %v2663 = vadd.f32 0.0, %v2662
  %v2664 = vpop.f32.mrf.mxu0
  %2665 = vmatprep.mubr.bf16.mxu0 0
  %2666 = vmatmul.mubr.bf16.gmra.mxu0 %v2073
  %v2667 = vpop.f32.mrf.mxu0
  %v2668 = vadd.f32 0.0, %v2667
  %v2669 = vpop.f32.mrf.mxu0
  %v2670 = vpop.f32.mrf.mxu0
  %v2671 = vadd.f32 0.0, %v2670
  %v2672 = vpop.f32.mrf.mxu0
  %2673 = vmatprep.mubr.bf16.mxu0 0
  %2674 = vmatmul.mubr.bf16.gmra.mxu0 %v2076
  %v2675 = vpop.f32.mrf.mxu0
  %v2676 = vadd.f32 0.0, %v2675
  %v2677 = vpop.f32.mrf.mxu0
  %v2678 = vpop.f32.mrf.mxu0
  %v2679 = vadd.f32 0.0, %v2678
  %v2680 = vpop.f32.mrf.mxu0
  %2681 = vmatprep.mubr.bf16.mxu0 0
  %2682 = vmatmul.mubr.bf16.gmra.mxu0 %v2079
  %v2683 = vpop.f32.mrf.mxu0
  %v2684 = vadd.f32 0.0, %v2683
  %v2685 = vpop.f32.mrf.mxu0
  %v2686 = vpop.f32.mrf.mxu0
  %v2687 = vadd.f32 0.0, %v2686
  %v2688 = vpop.f32.mrf.mxu0
  %2689 = vdwg.mxu0
  %v2690 = vmax.f32 %v787, %v2116
  %v2691 = vmax.f32 %v790, %v2119
  %v2692 = vmax.f32 %v795, %v2124
  %v2693 = vmax.f32 %v798, %v2127
  %v2694 = vmax.f32 %v803, %v2132
  %v2695 = vmax.f32 %v806, %v2135
  %v2696 = vmax.f32 %v811, %v2140
  %v2697 = vmax.f32 %v814, %v2143
  %v2698 = vmax.f32 %v819, %v2148
  %v2699 = vmax.f32 %v822, %v2151
  %v2700 = vmax.f32 %v827, %v2156
  %v2701 = vmax.f32 %v830, %v2159
  %v2702 = vmax.f32 %v835, %v2164
  %v2703 = vmax.f32 %v838, %v2167
  %v2704 = vmax.f32 %v843, %v2172
  %v2705 = vmax.f32 %v846, %v2175
  %v2706 = vmax.f32 %v851, %v2180
  %v2707 = vmax.f32 %v854, %v2183
  %v2708 = vmax.f32 %v859, %v2188
  %v2709 = vmax.f32 %v862, %v2191
  %v2710 = vmax.f32 %v867, %v2196
  %v2711 = vmax.f32 %v870, %v2199
  %v2712 = vmax.f32 %v875, %v2204
  %v2713 = vmax.f32 %v878, %v2207
  %v2714 = vmax.f32 %v883, %v2212
  %v2715 = vmax.f32 %v886, %v2215
  %v2716 = vmax.f32 %v891, %v2220
  %v2717 = vmax.f32 %v894, %v2223
  %v2718 = vmax.f32 %v899, %v2228
  %v2719 = vmax.f32 %v902, %v2231
  %v2720 = vmax.f32 %v907, %v2236
  %v2721 = vmax.f32 %v910, %v2239
  %v2722 = vmax.f32 %v915, %v2244
  %v2723 = vmax.f32 %v918, %v2247
  %v2724 = vmax.f32 %v923, %v2252
  %v2725 = vmax.f32 %v926, %v2255
  %v2726 = vmax.f32 %v931, %v2260
  %v2727 = vmax.f32 %v934, %v2263
  %v2728 = vmax.f32 %v939, %v2268
  %v2729 = vmax.f32 %v942, %v2271
  %v2730 = vmax.f32 %v947, %v2276
  %v2731 = vmax.f32 %v950, %v2279
  %v2732 = vmax.f32 %v955, %v2284
  %v2733 = vmax.f32 %v958, %v2287
  %v2734 = vmax.f32 %v963, %v2292
  %v2735 = vmax.f32 %v966, %v2295
  %v2736 = vmax.f32 %v971, %v2300
  %v2737 = vmax.f32 %v974, %v2303
  %v2738 = vmax.f32 %v979, %v2308
  %v2739 = vmax.f32 %v982, %v2311
  %v2740 = vmax.f32 %v987, %v2316
  %v2741 = vmax.f32 %v990, %v2319
  %v2742 = vmax.f32 %v995, %v2324
  %v2743 = vmax.f32 %v998, %v2327
  %v2744 = vmax.f32 %v1003, %v2332
  %v2745 = vmax.f32 %v1006, %v2335
  %v2746 = vmax.f32 %v1011, %v2340
  %v2747 = vmax.f32 %v1014, %v2343
  %v2748 = vmax.f32 %v1019, %v2348
  %v2749 = vmax.f32 %v1022, %v2351
  %v2750 = vmax.f32 %v1027, %v2356
  %v2751 = vmax.f32 %v1030, %v2359
  %v2752 = vmax.f32 %v1035, %v2364
  %v2753 = vmax.f32 %v1038, %v2367
  %v2754 = vmax.f32 %v1043, %v2372
  %v2755 = vmax.f32 %v1046, %v2375
  %v2756 = vmax.f32 %v1051, %v2380
  %v2757 = vmax.f32 %v1054, %v2383
  %v2758 = vmax.f32 %v1059, %v2388
  %v2759 = vmax.f32 %v1062, %v2391
  %v2760 = vmax.f32 %v1067, %v2396
  %v2761 = vmax.f32 %v1070, %v2399
  %v2762 = vmax.f32 %v1075, %v2404
  %v2763 = vmax.f32 %v1078, %v2407
  %v2764 = vmax.f32 %v1083, %v2412
  %v2765 = vmax.f32 %v1086, %v2415
  %v2766 = vmax.f32 %v1091, %v2420
  %v2767 = vmax.f32 %v1094, %v2423
  %v2768 = vmax.f32 %v1099, %v2428
  %v2769 = vmax.f32 %v1102, %v2431
  %v2770 = vmax.f32 %v1107, %v2436
  %v2771 = vmax.f32 %v1110, %v2439
  %v2772 = vmax.f32 %v1115, %v2444
  %v2773 = vmax.f32 %v1118, %v2447
  %v2774 = vmax.f32 %v1123, %v2452
  %v2775 = vmax.f32 %v1126, %v2455
  %v2776 = vmax.f32 %v1131, %v2460
  %v2777 = vmax.f32 %v1134, %v2463
  %v2778 = vmax.f32 %v1139, %v2468
  %v2779 = vmax.f32 %v1142, %v2471
  %v2780 = vmax.f32 %v1147, %v2476
  %v2781 = vmax.f32 %v1150, %v2479
  %v2782 = vmax.f32 %v1155, %v2484
  %v2783 = vmax.f32 %v1158, %v2487
  %v2784 = vmax.f32 %v1163, %v2492
  %v2785 = vmax.f32 %v1166, %v2495
  %v2786 = vmax.f32 %v1171, %v2500
  %v2787 = vmax.f32 %v1174, %v2503
  %v2788 = vmax.f32 %v1179, %v2508
  %v2789 = vmax.f32 %v1182, %v2511
  %v2790 = vmax.f32 %v1187, %v2516
  %v2791 = vmax.f32 %v1190, %v2519
  %v2792 = vmax.f32 %v1195, %v2524
  %v2793 = vmax.f32 %v1198, %v2527
  %v2794 = vmax.f32 %v1203, %v2532
  %v2795 = vmax.f32 %v1206, %v2535
  %v2796 = vmax.f32 %v1211, %v2540
  %v2797 = vmax.f32 %v1214, %v2543
  %v2798 = vmax.f32 %v1219, %v2548
  %v2799 = vmax.f32 %v1222, %v2551
  %v2800 = vmax.f32 %v1227, %v2556
  %v2801 = vmax.f32 %v1230, %v2559
  %v2802 = vmax.f32 %v1235, %v2564
  %v2803 = vmax.f32 %v1238, %v2567
  %v2804 = vmax.f32 %v1243, %v2572
  %v2805 = vmax.f32 %v1246, %v2575
  %v2806 = vmax.f32 %v1251, %v2580
  %v2807 = vmax.f32 %v1254, %v2583
  %v2808 = vmax.f32 %v1259, %v2588
  %v2809 = vmax.f32 %v1262, %v2591
  %v2810 = vmax.f32 %v1267, %v2596
  %v2811 = vmax.f32 %v1270, %v2599
  %v2812 = vmax.f32 %v1275, %v2604
  %v2813 = vmax.f32 %v1278, %v2607
  %v2814 = vmax.f32 %v1283, %v2612
  %v2815 = vmax.f32 %v1286, %v2615
  %v2816 = vmax.f32 %v1291, %v2620
  %v2817 = vmax.f32 %v1294, %v2623
  %v2818 = vmax.f32 %v1299, %v2628
  %v2819 = vmax.f32 %v1302, %v2631
  %v2820 = vmax.f32 %v1307, %v2636
  %v2821 = vmax.f32 %v1310, %v2639
  %v2822 = vmax.f32 %v1315, %v2644
  %v2823 = vmax.f32 %v1318, %v2647
  %v2824 = vmax.f32 %v1323, %v2652
  %v2825 = vmax.f32 %v1326, %v2655
  %v2826 = vmax.f32 %v1331, %v2660
  %v2827 = vmax.f32 %v1334, %v2663
  %v2828 = vmax.f32 %v1339, %v2668
  %v2829 = vmax.f32 %v1342, %v2671
  %v2830 = vmax.f32 %v1347, %v2676
  %v2831 = vmax.f32 %v1350, %v2679
  %v2832 = vmax.f32 %v1355, %v2684
  %v2833 = vmax.f32 %v1358, %v2687
  %v2834 = vld [vmem:[%s0 + $0x90] sm:$0xf]
  %v2835 = vld [vmem:[%s0 + $0x94] sm:$0xf]
  %v2836 = vld [vmem:[%s0 + $0x98] sm:$0xf]
  %v2837 = vld [vmem:[%s0 + $0x9c] sm:$0xf]
  %v2838 = vld [vmem:[%s0 + $0xa0] sm:$0xf]
  %v2839 = vld [vmem:[%s0 + $0xa4] sm:$0xf]
  %v2840 = vld [vmem:[%s0 + $0xa8] sm:$0xf]
  %v2841 = vld [vmem:[%s0 + $0xac] sm:$0xf]
  %v2842 = vld [vmem:[%s0 + $0xb0] sm:$0xf]
  %v2843 = vld [vmem:[%s0 + $0xb4] sm:$0xf]
  %v2844 = vld [vmem:[%s0 + $0xb8] sm:$0xf]
  %v2845 = vld [vmem:[%s0 + $0xbc] sm:$0xf]
  %v2846 = vld [vmem:[%s0 + $0xc0] sm:$0xf]
  %v2847 = vld [vmem:[%s0 + $0xc4] sm:$0xf]
  %v2848 = vld [vmem:[%s0 + $0xc8] sm:$0xf]
  %v2849 = vld [vmem:[%s0 + $0xcc] sm:$0xf]
  %v2850 = vld [vmem:[%s0 + $0xd0] sm:$0xf]
  %v2851 = vld [vmem:[%s0 + $0xd4] sm:$0xf]
  %v2852 = vld [vmem:[%s0 + $0x1b0] sm:$0xf]
  %v2853 = vld [vmem:[%s0 + $0x1b4] sm:$0xf]
  %v2854 = vld [vmem:[%s0 + $0x1b8] sm:$0xf]
  %v2855 = vld [vmem:[%s0 + $0x1bc] sm:$0xf]
  %v2856 = vld [vmem:[%s0 + $0x1c0] sm:$0xf]
  %v2857 = vld [vmem:[%s0 + $0x1c4] sm:$0xf]
  %v2858 = vld [vmem:[%s0 + $0x1c8] sm:$0xf]
  %v2859 = vld [vmem:[%s0 + $0x1cc] sm:$0xf]
  %v2860 = vld [vmem:[%s0 + $0x1d0] sm:$0xf]
  %v2861 = vld [vmem:[%s0 + $0x1d4] sm:$0xf]
  %v2862 = vld [vmem:[%s0 + $0x1d8] sm:$0xf]
  %v2863 = vld [vmem:[%s0 + $0x1dc] sm:$0xf]
  %v2864 = vld [vmem:[%s0 + $0x1e0] sm:$0xf]
  %v2865 = vld [vmem:[%s0 + $0x1e4] sm:$0xf]
  %v2866 = vld [vmem:[%s0 + $0x1e8] sm:$0xf]
  %v2867 = vld [vmem:[%s0 + $0x1ec] sm:$0xf]
  %v2868 = vld [vmem:[%s0 + $0x1f0] sm:$0xf]
  %v2869 = vld [vmem:[%s0 + $0x1f4] sm:$0xf]
  %v2870 = vld [vmem:[%s0 + $0x2d0] sm:$0xf]
  %v2871 = vld [vmem:[%s0 + $0x2d4] sm:$0xf]
  %v2872 = vld [vmem:[%s0 + $0x2d8] sm:$0xf]
  %v2873 = vld [vmem:[%s0 + $0x2dc] sm:$0xf]
  %v2874 = vld [vmem:[%s0 + $0x2e0] sm:$0xf]
  %v2875 = vld [vmem:[%s0 + $0x2e4] sm:$0xf]
  %v2876 = vld [vmem:[%s0 + $0x2e8] sm:$0xf]
  %v2877 = vld [vmem:[%s0 + $0x2ec] sm:$0xf]
  %v2878 = vld [vmem:[%s0 + $0x2f0] sm:$0xf]
  %v2879 = vld [vmem:[%s0 + $0x2f4] sm:$0xf]
  %v2880 = vld [vmem:[%s0 + $0x2f8] sm:$0xf]
  %v2881 = vld [vmem:[%s0 + $0x2fc] sm:$0xf]
  %v2882 = vld [vmem:[%s0 + $0x300] sm:$0xf]
  %v2883 = vld [vmem:[%s0 + $0x304] sm:$0xf]
  %v2884 = vld [vmem:[%s0 + $0x308] sm:$0xf]
  %v2885 = vld [vmem:[%s0 + $0x30c] sm:$0xf]
  %v2886 = vld [vmem:[%s0 + $0x310] sm:$0xf]
  %v2887 = vld [vmem:[%s0 + $0x314] sm:$0xf]
  %v2888 = vld [vmem:[%s0 + $0x3f0] sm:$0xf]
  %v2889 = vld [vmem:[%s0 + $0x3f4] sm:$0xf]
  %v2890 = vld [vmem:[%s0 + $0x3f8] sm:$0xf]
  %v2891 = vld [vmem:[%s0 + $0x3fc] sm:$0xf]
  %v2892 = vld [vmem:[%s0 + $0x400] sm:$0xf]
  %v2893 = vld [vmem:[%s0 + $0x404] sm:$0xf]
  %v2894 = vld [vmem:[%s0 + $0x408] sm:$0xf]
  %v2895 = vld [vmem:[%s0 + $0x40c] sm:$0xf]
  %v2896 = vld [vmem:[%s0 + $0x410] sm:$0xf]
  %v2897 = vld [vmem:[%s0 + $0x414] sm:$0xf]
  %v2898 = vld [vmem:[%s0 + $0x418] sm:$0xf]
  %v2899 = vld [vmem:[%s0 + $0x41c] sm:$0xf]
  %v2900 = vld [vmem:[%s0 + $0x420] sm:$0xf]
  %v2901 = vld [vmem:[%s0 + $0x424] sm:$0xf]
  %v2902 = vld [vmem:[%s0 + $0x428] sm:$0xf]
  %v2903 = vld [vmem:[%s0 + $0x42c] sm:$0xf]
  %v2904 = vld [vmem:[%s0 + $0x430] sm:$0xf]
  %v2905 = vld [vmem:[%s0 + $0x434] sm:$0xf]
  %v2906 = vld [vmem:[%s0 + $0x510] sm:$0xf]
  %v2907 = vld [vmem:[%s0 + $0x514] sm:$0xf]
  %v2908 = vld [vmem:[%s0 + $0x518] sm:$0xf]
  %v2909 = vld [vmem:[%s0 + $0x51c] sm:$0xf]
  %v2910 = vld [vmem:[%s0 + $0x520] sm:$0xf]
  %v2911 = vld [vmem:[%s0 + $0x524] sm:$0xf]
  %v2912 = vld [vmem:[%s0 + $0x528] sm:$0xf]
  %v2913 = vld [vmem:[%s0 + $0x52c] sm:$0xf]
  %v2914 = vld [vmem:[%s0 + $0x530] sm:$0xf]
  %v2915 = vld [vmem:[%s0 + $0x534] sm:$0xf]
  %v2916 = vld [vmem:[%s0 + $0x538] sm:$0xf]
  %v2917 = vld [vmem:[%s0 + $0x53c] sm:$0xf]
  %v2918 = vld [vmem:[%s0 + $0x540] sm:$0xf]
  %v2919 = vld [vmem:[%s0 + $0x544] sm:$0xf]
  %v2920 = vld [vmem:[%s0 + $0x548] sm:$0xf]
  %v2921 = vld [vmem:[%s0 + $0x54c] sm:$0xf]
  %v2922 = vld [vmem:[%s0 + $0x550] sm:$0xf]
  %v2923 = vld [vmem:[%s0 + $0x554] sm:$0xf]
  %v2924 = vld [vmem:[%s0 + $0x630] sm:$0xf]
  %v2925 = vld [vmem:[%s0 + $0x634] sm:$0xf]
  %v2926 = vld [vmem:[%s0 + $0x638] sm:$0xf]
  %v2927 = vld [vmem:[%s0 + $0x63c] sm:$0xf]
  %v2928 = vld [vmem:[%s0 + $0x640] sm:$0xf]
  %v2929 = vld [vmem:[%s0 + $0x644] sm:$0xf]
  %v2930 = vld [vmem:[%s0 + $0x648] sm:$0xf]
  %v2931 = vld [vmem:[%s0 + $0x64c] sm:$0xf]
  %v2932 = vld [vmem:[%s0 + $0x650] sm:$0xf]
  %v2933 = vld [vmem:[%s0 + $0x654] sm:$0xf]
  %v2934 = vld [vmem:[%s0 + $0x658] sm:$0xf]
  %v2935 = vld [vmem:[%s0 + $0x65c] sm:$0xf]
  %v2936 = vld [vmem:[%s0 + $0x660] sm:$0xf]
  %v2937 = vld [vmem:[%s0 + $0x664] sm:$0xf]
  %v2938 = vld [vmem:[%s0 + $0x668] sm:$0xf]
  %v2939 = vld [vmem:[%s0 + $0x66c] sm:$0xf]
  %v2940 = vld [vmem:[%s0 + $0x670] sm:$0xf]
  %v2941 = vld [vmem:[%s0 + $0x674] sm:$0xf]
  %v2942 = vld [vmem:[%s0 + $0x750] sm:$0xf]
  %v2943 = vld [vmem:[%s0 + $0x754] sm:$0xf]
  %v2944 = vld [vmem:[%s0 + $0x758] sm:$0xf]
  %v2945 = vld [vmem:[%s0 + $0x75c] sm:$0xf]
  %v2946 = vld [vmem:[%s0 + $0x760] sm:$0xf]
  %v2947 = vld [vmem:[%s0 + $0x764] sm:$0xf]
  %v2948 = vld [vmem:[%s0 + $0x768] sm:$0xf]
  %v2949 = vld [vmem:[%s0 + $0x76c] sm:$0xf]
  %v2950 = vld [vmem:[%s0 + $0x770] sm:$0xf]
  %v2951 = vld [vmem:[%s0 + $0x774] sm:$0xf]
  %v2952 = vld [vmem:[%s0 + $0x778] sm:$0xf]
  %v2953 = vld [vmem:[%s0 + $0x77c] sm:$0xf]
  %v2954 = vld [vmem:[%s0 + $0x780] sm:$0xf]
  %v2955 = vld [vmem:[%s0 + $0x784] sm:$0xf]
  %v2956 = vld [vmem:[%s0 + $0x788] sm:$0xf]
  %v2957 = vld [vmem:[%s0 + $0x78c] sm:$0xf]
  %v2958 = vld [vmem:[%s0 + $0x790] sm:$0xf]
  %v2959 = vld [vmem:[%s0 + $0x794] sm:$0xf]
  %v2960 = vld [vmem:[%s0 + $0x870] sm:$0xf]
  %v2961 = vld [vmem:[%s0 + $0x874] sm:$0xf]
  %v2962 = vld [vmem:[%s0 + $0x878] sm:$0xf]
  %v2963 = vld [vmem:[%s0 + $0x87c] sm:$0xf]
  %v2964 = vld [vmem:[%s0 + $0x880] sm:$0xf]
  %v2965 = vld [vmem:[%s0 + $0x884] sm:$0xf]
  %v2966 = vld [vmem:[%s0 + $0x888] sm:$0xf]
  %v2967 = vld [vmem:[%s0 + $0x88c] sm:$0xf]
  %v2968 = vld [vmem:[%s0 + $0x890] sm:$0xf]
  %v2969 = vld [vmem:[%s0 + $0x894] sm:$0xf]
  %v2970 = vld [vmem:[%s0 + $0x898] sm:$0xf]
  %v2971 = vld [vmem:[%s0 + $0x89c] sm:$0xf]
  %v2972 = vld [vmem:[%s0 + $0x8a0] sm:$0xf]
  %v2973 = vld [vmem:[%s0 + $0x8a4] sm:$0xf]
  %v2974 = vld [vmem:[%s0 + $0x8a8] sm:$0xf]
  %v2975 = vld [vmem:[%s0 + $0x8ac] sm:$0xf]
  %v2976 = vld [vmem:[%s0 + $0x8b0] sm:$0xf]
  %v2977 = vld [vmem:[%s0 + $0x8b4] sm:$0xf]
  %v3122 = vunpack.c.l.b16 %v2834
  %v3123 = vunpack.c.l.b16 %v2835
  %v3124 = vunpack.c.l.b16 %v2836
  %v3125 = vunpack.c.l.b16 %v2837
  %v3126 = vunpack.c.l.b16 %v2838
  %v3127 = vunpack.c.l.b16 %v2839
  %v3128 = vunpack.c.l.b16 %v2840
  %v3129 = vunpack.c.l.b16 %v2841
  %v3130 = vunpack.c.l.b16 %v2842
  %v3131 = vunpack.c.l.b16 %v2843
  %v3132 = vunpack.c.l.b16 %v2844
  %v3133 = vunpack.c.l.b16 %v2845
  %v3134 = vunpack.c.l.b16 %v2846
  %v3135 = vunpack.c.l.b16 %v2847
  %v3136 = vunpack.c.l.b16 %v2848
  %v3137 = vunpack.c.l.b16 %v2849
  %v3138 = vunpack.c.l.b16 %v2850
  %v3139 = vunpack.c.l.b16 %v2851
  %v3140 = vunpack.c.l.b16 %v2852
  %v3141 = vunpack.c.l.b16 %v2853
  %v3142 = vunpack.c.l.b16 %v2854
  %v3143 = vunpack.c.l.b16 %v2855
  %v3144 = vunpack.c.l.b16 %v2856
  %v3145 = vunpack.c.l.b16 %v2857
  %v3146 = vunpack.c.l.b16 %v2858
  %v3147 = vunpack.c.l.b16 %v2859
  %v3148 = vunpack.c.l.b16 %v2860
  %v3149 = vunpack.c.l.b16 %v2861
  %v3150 = vunpack.c.l.b16 %v2862
  %v3151 = vunpack.c.l.b16 %v2863
  %v3152 = vunpack.c.l.b16 %v2864
  %v3153 = vunpack.c.l.b16 %v2865
  %v3154 = vunpack.c.l.b16 %v2866
  %v3155 = vunpack.c.l.b16 %v2867
  %v3156 = vunpack.c.l.b16 %v2868
  %v3157 = vunpack.c.l.b16 %v2869
  %v3158 = vunpack.c.l.b16 %v2870
  %v3159 = vunpack.c.l.b16 %v2871
  %v3160 = vunpack.c.l.b16 %v2872
  %v3161 = vunpack.c.l.b16 %v2873
  %v3162 = vunpack.c.l.b16 %v2874
  %v3163 = vunpack.c.l.b16 %v2875
  %v3164 = vunpack.c.l.b16 %v2876
  %v3165 = vunpack.c.l.b16 %v2877
  %v3166 = vunpack.c.l.b16 %v2878
  %v3167 = vunpack.c.l.b16 %v2879
  %v3168 = vunpack.c.l.b16 %v2880
  %v3169 = vunpack.c.l.b16 %v2881
  %v3170 = vunpack.c.l.b16 %v2882
  %v3171 = vunpack.c.l.b16 %v2883
  %v3172 = vunpack.c.l.b16 %v2884
  %v3173 = vunpack.c.l.b16 %v2885
  %v3174 = vunpack.c.l.b16 %v2886
  %v3175 = vunpack.c.l.b16 %v2887
  %v3176 = vunpack.c.l.b16 %v2888
  %v3177 = vunpack.c.l.b16 %v2889
  %v3178 = vunpack.c.l.b16 %v2890
  %v3179 = vunpack.c.l.b16 %v2891
  %v3180 = vunpack.c.l.b16 %v2892
  %v3181 = vunpack.c.l.b16 %v2893
  %v3182 = vunpack.c.l.b16 %v2894
  %v3183 = vunpack.c.l.b16 %v2895
  %v3184 = vunpack.c.l.b16 %v2896
  %v3185 = vunpack.c.l.b16 %v2897
  %v3186 = vunpack.c.l.b16 %v2898
  %v3187 = vunpack.c.l.b16 %v2899
  %v3188 = vunpack.c.l.b16 %v2900
  %v3189 = vunpack.c.l.b16 %v2901
  %v3190 = vunpack.c.l.b16 %v2902
  %v3191 = vunpack.c.l.b16 %v2903
  %v3192 = vunpack.c.l.b16 %v2904
  %v3193 = vunpack.c.l.b16 %v2905
  %v3194 = vunpack.c.l.b16 %v2906
  %v3195 = vunpack.c.l.b16 %v2907
  %v3196 = vunpack.c.l.b16 %v2908
  %v3197 = vunpack.c.l.b16 %v2909
  %v3198 = vunpack.c.l.b16 %v2910
  %v3199 = vunpack.c.l.b16 %v2911
  %v3200 = vunpack.c.l.b16 %v2912
  %v3201 = vunpack.c.l.b16 %v2913
  %v3202 = vunpack.c.l.b16 %v2914
  %v3203 = vunpack.c.l.b16 %v2915
  %v3204 = vunpack.c.l.b16 %v2916
  %v3205 = vunpack.c.l.b16 %v2917
  %v3206 = vunpack.c.l.b16 %v2918
  %v3207 = vunpack.c.l.b16 %v2919
  %v3208 = vunpack.c.l.b16 %v2920
  %v3209 = vunpack.c.l.b16 %v2921
  %v3210 = vunpack.c.l.b16 %v2922
  %v3211 = vunpack.c.l.b16 %v2923
  %v3212 = vunpack.c.l.b16 %v2924
  %v3213 = vunpack.c.l.b16 %v2925
  %v3214 = vunpack.c.l.b16 %v2926
  %v3215 = vunpack.c.l.b16 %v2927
  %v3216 = vunpack.c.l.b16 %v2928
  %v3217 = vunpack.c.l.b16 %v2929
  %v3218 = vunpack.c.l.b16 %v2930
  %v3219 = vunpack.c.l.b16 %v2931
  %v3220 = vunpack.c.l.b16 %v2932
  %v3221 = vunpack.c.l.b16 %v2933
  %v3222 = vunpack.c.l.b16 %v2934
  %v3223 = vunpack.c.l.b16 %v2935
  %v3224 = vunpack.c.l.b16 %v2936
  %v3225 = vunpack.c.l.b16 %v2937
  %v3226 = vunpack.c.l.b16 %v2938
  %v3227 = vunpack.c.l.b16 %v2939
  %v3228 = vunpack.c.l.b16 %v2940
  %v3229 = vunpack.c.l.b16 %v2941
  %v3230 = vunpack.c.l.b16 %v2942
  %v3231 = vunpack.c.l.b16 %v2943
  %v3232 = vunpack.c.l.b16 %v2944
  %v3233 = vunpack.c.l.b16 %v2945
  %v3234 = vunpack.c.l.b16 %v2946
  %v3235 = vunpack.c.l.b16 %v2947
  %v3236 = vunpack.c.l.b16 %v2948
  %v3237 = vunpack.c.l.b16 %v2949
  %v3238 = vunpack.c.l.b16 %v2950
  %v3239 = vunpack.c.l.b16 %v2951
  %v3240 = vunpack.c.l.b16 %v2952
  %v3241 = vunpack.c.l.b16 %v2953
  %v3242 = vunpack.c.l.b16 %v2954
  %v3243 = vunpack.c.l.b16 %v2955
  %v3244 = vunpack.c.l.b16 %v2956
  %v3245 = vunpack.c.l.b16 %v2957
  %v3246 = vunpack.c.l.b16 %v2958
  %v3247 = vunpack.c.l.b16 %v2959
  %v3248 = vunpack.c.l.b16 %v2960
  %v3249 = vunpack.c.l.b16 %v2961
  %v3250 = vunpack.c.l.b16 %v2962
  %v3251 = vunpack.c.l.b16 %v2963
  %v3252 = vunpack.c.l.b16 %v2964
  %v3253 = vunpack.c.l.b16 %v2965
  %v3254 = vunpack.c.l.b16 %v2966
  %v3255 = vunpack.c.l.b16 %v2967
  %v3256 = vunpack.c.l.b16 %v2968
  %v3257 = vunpack.c.l.b16 %v2969
  %v3258 = vunpack.c.l.b16 %v2970
  %v3259 = vunpack.c.l.b16 %v2971
  %v3260 = vunpack.c.l.b16 %v2972
  %v3261 = vunpack.c.l.b16 %v2973
  %v3262 = vunpack.c.l.b16 %v2974
  %v3263 = vunpack.c.l.b16 %v2975
  %v3264 = vunpack.c.l.b16 %v2976
  %v3265 = vunpack.c.l.b16 %v2977
  %v3266 = vpack.c.b16 %v3123, %v3122
  %v3267 = vpack.c.b16 %v3125, %v3124
  %v3268 = vpack.c.b16 %v3127, %v3126
  %v3269 = vpack.c.b16 %v3129, %v3128
  %v3270 = vpack.c.b16 %v3131, %v3130
  %v3271 = vpack.c.b16 %v3133, %v3132
  %v3272 = vpack.c.b16 %v3135, %v3134
  %v3273 = vpack.c.b16 %v3137, %v3136
  %v3274 = vpack.c.b16 %v3139, %v3138
  %v3275 = vpack.c.b16 %v3141, %v3140
  %v3276 = vpack.c.b16 %v3143, %v3142
  %v3277 = vpack.c.b16 %v3145, %v3144
  %v3278 = vpack.c.b16 %v3147, %v3146
  %v3279 = vpack.c.b16 %v3149, %v3148
  %v3280 = vpack.c.b16 %v3151, %v3150
  %v3281 = vpack.c.b16 %v3153, %v3152
  %v3282 = vpack.c.b16 %v3155, %v3154
  %v3283 = vpack.c.b16 %v3157, %v3156
  %v3284 = vpack.c.b16 %v3159, %v3158
  %v3285 = vpack.c.b16 %v3161, %v3160
  %v3286 = vpack.c.b16 %v3163, %v3162
  %v3287 = vpack.c.b16 %v3165, %v3164
  %v3288 = vpack.c.b16 %v3167, %v3166
  %v3289 = vpack.c.b16 %v3169, %v3168
  %v3290 = vpack.c.b16 %v3171, %v3170
  %v3291 = vpack.c.b16 %v3173, %v3172
  %v3292 = vpack.c.b16 %v3175, %v3174
  %v3293 = vpack.c.b16 %v3177, %v3176
  %v3294 = vpack.c.b16 %v3179, %v3178
  %v3295 = vpack.c.b16 %v3181, %v3180
  %v3296 = vpack.c.b16 %v3183, %v3182
  %v3297 = vpack.c.b16 %v3185, %v3184
  %v3298 = vpack.c.b16 %v3187, %v3186
  %v3299 = vpack.c.b16 %v3189, %v3188
  %v3300 = vpack.c.b16 %v3191, %v3190
  %v3301 = vpack.c.b16 %v3193, %v3192
  %v3302 = vpack.c.b16 %v3195, %v3194
  %v3303 = vpack.c.b16 %v3197, %v3196
  %v3304 = vpack.c.b16 %v3199, %v3198
  %v3305 = vpack.c.b16 %v3201, %v3200
  %v3306 = vpack.c.b16 %v3203, %v3202
  %v3307 = vpack.c.b16 %v3205, %v3204
  %v3308 = vpack.c.b16 %v3207, %v3206
  %v3309 = vpack.c.b16 %v3209, %v3208
  %v3310 = vpack.c.b16 %v3211, %v3210
  %v3311 = vpack.c.b16 %v3213, %v3212
  %v3312 = vpack.c.b16 %v3215, %v3214
  %v3313 = vpack.c.b16 %v3217, %v3216
  %v3314 = vpack.c.b16 %v3219, %v3218
  %v3315 = vpack.c.b16 %v3221, %v3220
  %v3316 = vpack.c.b16 %v3223, %v3222
  %v3317 = vpack.c.b16 %v3225, %v3224
  %v3318 = vpack.c.b16 %v3227, %v3226
  %v3319 = vpack.c.b16 %v3229, %v3228
  %v3320 = vpack.c.b16 %v3231, %v3230
  %v3321 = vpack.c.b16 %v3233, %v3232
  %v3322 = vpack.c.b16 %v3235, %v3234
  %v3323 = vpack.c.b16 %v3237, %v3236
  %v3324 = vpack.c.b16 %v3239, %v3238
  %v3325 = vpack.c.b16 %v3241, %v3240
  %v3326 = vpack.c.b16 %v3243, %v3242
  %v3327 = vpack.c.b16 %v3245, %v3244
  %v3328 = vpack.c.b16 %v3247, %v3246
  %v3329 = vpack.c.b16 %v3249, %v3248
  %v3330 = vpack.c.b16 %v3251, %v3250
  %v3331 = vpack.c.b16 %v3253, %v3252
  %v3332 = vpack.c.b16 %v3255, %v3254
  %v3333 = vpack.c.b16 %v3257, %v3256
  %v3334 = vpack.c.b16 %v3259, %v3258
  %v3335 = vpack.c.b16 %v3261, %v3260
  %v3336 = vpack.c.b16 %v3263, %v3262
  %v3337 = vpack.c.b16 %v3265, %v3264
  %v3339 = vsel %vm535, %v3266, 0
  %v3342 = vsel %vm535, %v3267, 0
  %v3345 = vsel %vm535, %v3268, 0
  %v3348 = vsel %vm535, %v3269, 0
  %v3351 = vsel %vm535, %v3270, 0
  %v3354 = vsel %vm535, %v3271, 0
  %v3357 = vsel %vm535, %v3272, 0
  %v3360 = vsel %vm535, %v3273, 0
  %v3363 = vsel %vm535, %v3274, 0
  %v3366 = vsel %vm535, %v3275, 0
  %v3369 = vsel %vm535, %v3276, 0
  %v3372 = vsel %vm535, %v3277, 0
  %v3375 = vsel %vm535, %v3278, 0
  %v3378 = vsel %vm535, %v3279, 0
  %v3381 = vsel %vm535, %v3280, 0
  %v3384 = vsel %vm535, %v3281, 0
  %v3387 = vsel %vm535, %v3282, 0
  %v3390 = vsel %vm535, %v3283, 0
  %v3393 = vsel %vm535, %v3284, 0
  %v3396 = vsel %vm535, %v3285, 0
  %v3399 = vsel %vm535, %v3286, 0
  %v3402 = vsel %vm535, %v3287, 0
  %v3405 = vsel %vm535, %v3288, 0
  %v3408 = vsel %vm535, %v3289, 0
  %v3411 = vsel %vm535, %v3290, 0
  %v3414 = vsel %vm535, %v3291, 0
  %v3417 = vsel %vm535, %v3292, 0
  %v3420 = vsel %vm535, %v3293, 0
  %v3423 = vsel %vm535, %v3294, 0
  %v3426 = vsel %vm535, %v3295, 0
  %v3429 = vsel %vm535, %v3296, 0
  %v3432 = vsel %vm535, %v3297, 0
  %v3435 = vsel %vm535, %v3298, 0
  %v3438 = vsel %vm535, %v3299, 0
  %v3441 = vsel %vm535, %v3300, 0
  %v3444 = vsel %vm535, %v3301, 0
  %v3447 = vsel %vm535, %v3302, 0
  %v3450 = vsel %vm535, %v3303, 0
  %v3453 = vsel %vm535, %v3304, 0
  %v3456 = vsel %vm535, %v3305, 0
  %v3459 = vsel %vm535, %v3306, 0
  %v3462 = vsel %vm535, %v3307, 0
  %v3465 = vsel %vm535, %v3308, 0
  %v3468 = vsel %vm535, %v3309, 0
  %v3471 = vsel %vm535, %v3310, 0
  %v3474 = vsel %vm535, %v3311, 0
  %v3477 = vsel %vm535, %v3312, 0
  %v3480 = vsel %vm535, %v3313, 0
  %v3483 = vsel %vm535, %v3314, 0
  %v3486 = vsel %vm535, %v3315, 0
  %v3489 = vsel %vm535, %v3316, 0
  %v3492 = vsel %vm535, %v3317, 0
  %v3495 = vsel %vm535, %v3318, 0
  %v3498 = vsel %vm535, %v3319, 0
  %v3501 = vsel %vm535, %v3320, 0
  %v3504 = vsel %vm535, %v3321, 0
  %v3507 = vsel %vm535, %v3322, 0
  %v3510 = vsel %vm535, %v3323, 0
  %v3513 = vsel %vm535, %v3324, 0
  %v3516 = vsel %vm535, %v3325, 0
  %v3519 = vsel %vm535, %v3326, 0
  %v3522 = vsel %vm535, %v3327, 0
  %v3525 = vsel %vm535, %v3328, 0
  %v3528 = vsel %vm535, %v3329, 0
  %v3531 = vsel %vm535, %v3330, 0
  %v3534 = vsel %vm535, %v3331, 0
  %v3537 = vsel %vm535, %v3332, 0
  %v3540 = vsel %vm535, %v3333, 0
  %v3543 = vsel %vm535, %v3334, 0
  %v3546 = vsel %vm535, %v3335, 0
  %v3549 = vsel %vm535, %v3336, 0
  %v3552 = vsel %vm535, %v3337, 0
  %3554 = vmatprep.subr.bf16.mxu0 0
  %3555 = vmatpush1.bf16.msra.mxu0 0
  %3556 = vmatprep.subr.bf16.mxu0 0
  %3557 = vmatpush1.bf16.msra.mxu0 0
  %3558 = vmatprep.subr.bf16.mxu0 0
  %3559 = vmatpush1.bf16.msra.mxu0 0
  %3560 = vmatprep.subr.bf16.mxu0 0
  %3561 = vmatpush1.bf16.msra.mxu0 0
  %3562 = vmatprep.subr.bf16.mxu0 0
  %3563 = vmatpush1.bf16.msra.mxu0 0
  %3564 = vmatprep.subr.bf16.mxu0 0
  %3565 = vmatpush1.bf16.msra.mxu0 0
  %3566 = vmatprep.subr.bf16.mxu0 0
  %3567 = vmatpush1.bf16.msra.mxu0 %v532
  %3568 = vmatprep.subr.bf16.mxu0 0
  %3569 = vmatpush1.bf16.msra.mxu0 %v531
  %3570 = vmatprep.subr.bf16.mxu0 0
  %3571 = vmatpush2.bf16.msra.mxu0 0
  %3572 = vmatprep.subr.bf16.mxu0 0
  %3573 = vmatpush2.bf16.msra.mxu0 0
  %3574 = vmatprep.subr.bf16.mxu0 0
  %3575 = vmatpush2.bf16.msra.mxu0 0
  %3576 = vmatprep.subr.bf16.mxu0 0
  %3577 = vmatpush2.bf16.msra.mxu0 0
  %3578 = vmatprep.subr.bf16.mxu0 0
  %3579 = vmatpush2.bf16.msra.mxu0 0
  %3580 = vmatprep.subr.bf16.mxu0 0
  %3581 = vmatpush2.bf16.msra.mxu0 0
  %3582 = vmatprep.subr.bf16.mxu0 0
  %3583 = vmatpush2.bf16.msra.mxu0 0
  %3584 = vmatprep.subr.bf16.mxu0 0
  %3585 = vmatpush2.bf16.msra.mxu0 0
  %3586 = vmatprep.mubr.bf16.mxu0 0
  %3587 = vmatmul.mubr.bf16.gmra.mxu0 %v3339
  %v3588 = vpop.f32.mrf.mxu0
  %v3589 = vadd.f32 0.0, %v3588
  %v3590 = vpop.f32.mrf.mxu0
  %v3591 = vpop.f32.mrf.mxu0
  %v3592 = vadd.f32 0.0, %v3591
  %v3593 = vpop.f32.mrf.mxu0
  %3594 = vmatprep.mubr.bf16.mxu0 0
  %3595 = vmatmul.mubr.bf16.gmra.mxu0 %v3342
  %v3596 = vpop.f32.mrf.mxu0
  %v3597 = vadd.f32 0.0, %v3596
  %v3598 = vpop.f32.mrf.mxu0
  %v3599 = vpop.f32.mrf.mxu0
  %v3600 = vadd.f32 0.0, %v3599
  %v3601 = vpop.f32.mrf.mxu0
  %3602 = vmatprep.mubr.bf16.mxu0 0
  %3603 = vmatmul.mubr.bf16.gmra.mxu0 %v3345
  %v3604 = vpop.f32.mrf.mxu0
  %v3605 = vadd.f32 0.0, %v3604
  %v3606 = vpop.f32.mrf.mxu0
  %v3607 = vpop.f32.mrf.mxu0
  %v3608 = vadd.f32 0.0, %v3607
  %v3609 = vpop.f32.mrf.mxu0
  %3610 = vmatprep.mubr.bf16.mxu0 0
  %3611 = vmatmul.mubr.bf16.gmra.mxu0 %v3348
  %v3612 = vpop.f32.mrf.mxu0
  %v3613 = vadd.f32 0.0, %v3612
  %v3614 = vpop.f32.mrf.mxu0
  %v3615 = vpop.f32.mrf.mxu0
  %v3616 = vadd.f32 0.0, %v3615
  %v3617 = vpop.f32.mrf.mxu0
  %3618 = vmatprep.mubr.bf16.mxu0 0
  %3619 = vmatmul.mubr.bf16.gmra.mxu0 %v3351
  %v3620 = vpop.f32.mrf.mxu0
  %v3621 = vadd.f32 0.0, %v3620
  %v3622 = vpop.f32.mrf.mxu0
  %v3623 = vpop.f32.mrf.mxu0
  %v3624 = vadd.f32 0.0, %v3623
  %v3625 = vpop.f32.mrf.mxu0
  %3626 = vmatprep.mubr.bf16.mxu0 0
  %3627 = vmatmul.mubr.bf16.gmra.mxu0 %v3354
  %v3628 = vpop.f32.mrf.mxu0
  %v3629 = vadd.f32 0.0, %v3628
  %v3630 = vpop.f32.mrf.mxu0
  %v3631 = vpop.f32.mrf.mxu0
  %v3632 = vadd.f32 0.0, %v3631
  %v3633 = vpop.f32.mrf.mxu0
  %3634 = vmatprep.mubr.bf16.mxu0 0
  %3635 = vmatmul.mubr.bf16.gmra.mxu0 %v3357
  %v3636 = vpop.f32.mrf.mxu0
  %v3637 = vadd.f32 0.0, %v3636
  %v3638 = vpop.f32.mrf.mxu0
  %v3639 = vpop.f32.mrf.mxu0
  %v3640 = vadd.f32 0.0, %v3639
  %v3641 = vpop.f32.mrf.mxu0
  %3642 = vmatprep.mubr.bf16.mxu0 0
  %3643 = vmatmul.mubr.bf16.gmra.mxu0 %v3360
  %v3644 = vpop.f32.mrf.mxu0
  %v3645 = vadd.f32 0.0, %v3644
  %v3646 = vpop.f32.mrf.mxu0
  %v3647 = vpop.f32.mrf.mxu0
  %v3648 = vadd.f32 0.0, %v3647
  %v3649 = vpop.f32.mrf.mxu0
  %3650 = vmatprep.mubr.bf16.mxu0 0
  %3651 = vmatmul.mubr.bf16.gmra.mxu0 %v3363
  %v3652 = vpop.f32.mrf.mxu0
  %v3653 = vadd.f32 0.0, %v3652
  %v3654 = vpop.f32.mrf.mxu0
  %v3655 = vpop.f32.mrf.mxu0
  %v3656 = vadd.f32 0.0, %v3655
  %v3657 = vpop.f32.mrf.mxu0
  %3658 = vmatprep.mubr.bf16.mxu0 0
  %3659 = vmatmul.mubr.bf16.gmra.mxu0 %v3366
  %v3660 = vpop.f32.mrf.mxu0
  %v3661 = vadd.f32 0.0, %v3660
  %v3662 = vpop.f32.mrf.mxu0
  %v3663 = vpop.f32.mrf.mxu0
  %v3664 = vadd.f32 0.0, %v3663
  %v3665 = vpop.f32.mrf.mxu0
  %3666 = vmatprep.mubr.bf16.mxu0 0
  %3667 = vmatmul.mubr.bf16.gmra.mxu0 %v3369
  %v3668 = vpop.f32.mrf.mxu0
  %v3669 = vadd.f32 0.0, %v3668
  %v3670 = vpop.f32.mrf.mxu0
  %v3671 = vpop.f32.mrf.mxu0
  %v3672 = vadd.f32 0.0, %v3671
  %v3673 = vpop.f32.mrf.mxu0
  %3674 = vmatprep.mubr.bf16.mxu0 0
  %3675 = vmatmul.mubr.bf16.gmra.mxu0 %v3372
  %v3676 = vpop.f32.mrf.mxu0
  %v3677 = vadd.f32 0.0, %v3676
  %v3678 = vpop.f32.mrf.mxu0
  %v3679 = vpop.f32.mrf.mxu0
  %v3680 = vadd.f32 0.0, %v3679
  %v3681 = vpop.f32.mrf.mxu0
  %3682 = vmatprep.mubr.bf16.mxu0 0
  %3683 = vmatmul.mubr.bf16.gmra.mxu0 %v3375
  %v3684 = vpop.f32.mrf.mxu0
  %v3685 = vadd.f32 0.0, %v3684
  %v3686 = vpop.f32.mrf.mxu0
  %v3687 = vpop.f32.mrf.mxu0
  %v3688 = vadd.f32 0.0, %v3687
  %v3689 = vpop.f32.mrf.mxu0
  %3690 = vmatprep.mubr.bf16.mxu0 0
  %3691 = vmatmul.mubr.bf16.gmra.mxu0 %v3378
  %v3692 = vpop.f32.mrf.mxu0
  %v3693 = vadd.f32 0.0, %v3692
  %v3694 = vpop.f32.mrf.mxu0
  %v3695 = vpop.f32.mrf.mxu0
  %v3696 = vadd.f32 0.0, %v3695
  %v3697 = vpop.f32.mrf.mxu0
  %3698 = vmatprep.mubr.bf16.mxu0 0
  %3699 = vmatmul.mubr.bf16.gmra.mxu0 %v3381
  %v3700 = vpop.f32.mrf.mxu0
  %v3701 = vadd.f32 0.0, %v3700
  %v3702 = vpop.f32.mrf.mxu0
  %v3703 = vpop.f32.mrf.mxu0
  %v3704 = vadd.f32 0.0, %v3703
  %v3705 = vpop.f32.mrf.mxu0
  %3706 = vmatprep.mubr.bf16.mxu0 0
  %3707 = vmatmul.mubr.bf16.gmra.mxu0 %v3384
  %v3708 = vpop.f32.mrf.mxu0
  %v3709 = vadd.f32 0.0, %v3708
  %v3710 = vpop.f32.mrf.mxu0
  %v3711 = vpop.f32.mrf.mxu0
  %v3712 = vadd.f32 0.0, %v3711
  %v3713 = vpop.f32.mrf.mxu0
  %3714 = vmatprep.mubr.bf16.mxu0 0
  %3715 = vmatmul.mubr.bf16.gmra.mxu0 %v3387
  %v3716 = vpop.f32.mrf.mxu0
  %v3717 = vadd.f32 0.0, %v3716
  %v3718 = vpop.f32.mrf.mxu0
  %v3719 = vpop.f32.mrf.mxu0
  %v3720 = vadd.f32 0.0, %v3719
  %v3721 = vpop.f32.mrf.mxu0
  %3722 = vmatprep.mubr.bf16.mxu0 0
  %3723 = vmatmul.mubr.bf16.gmra.mxu0 %v3390
  %v3724 = vpop.f32.mrf.mxu0
  %v3725 = vadd.f32 0.0, %v3724
  %v3726 = vpop.f32.mrf.mxu0
  %v3727 = vpop.f32.mrf.mxu0
  %v3728 = vadd.f32 0.0, %v3727
  %v3729 = vpop.f32.mrf.mxu0
  %3730 = vmatprep.mubr.bf16.mxu0 0
  %3731 = vmatmul.mubr.bf16.gmra.mxu0 %v3393
  %v3732 = vpop.f32.mrf.mxu0
  %v3733 = vadd.f32 0.0, %v3732
  %v3734 = vpop.f32.mrf.mxu0
  %v3735 = vpop.f32.mrf.mxu0
  %v3736 = vadd.f32 0.0, %v3735
  %v3737 = vpop.f32.mrf.mxu0
  %3738 = vmatprep.mubr.bf16.mxu0 0
  %3739 = vmatmul.mubr.bf16.gmra.mxu0 %v3396
  %v3740 = vpop.f32.mrf.mxu0
  %v3741 = vadd.f32 0.0, %v3740
  %v3742 = vpop.f32.mrf.mxu0
  %v3743 = vpop.f32.mrf.mxu0
  %v3744 = vadd.f32 0.0, %v3743
  %v3745 = vpop.f32.mrf.mxu0
  %3746 = vmatprep.mubr.bf16.mxu0 0
  %3747 = vmatmul.mubr.bf16.gmra.mxu0 %v3399
  %v3748 = vpop.f32.mrf.mxu0
  %v3749 = vadd.f32 0.0, %v3748
  %v3750 = vpop.f32.mrf.mxu0
  %v3751 = vpop.f32.mrf.mxu0
  %v3752 = vadd.f32 0.0, %v3751
  %v3753 = vpop.f32.mrf.mxu0
  %3754 = vmatprep.mubr.bf16.mxu0 0
  %3755 = vmatmul.mubr.bf16.gmra.mxu0 %v3402
  %v3756 = vpop.f32.mrf.mxu0
  %v3757 = vadd.f32 0.0, %v3756
  %v3758 = vpop.f32.mrf.mxu0
  %v3759 = vpop.f32.mrf.mxu0
  %v3760 = vadd.f32 0.0, %v3759
  %v3761 = vpop.f32.mrf.mxu0
  %3762 = vmatprep.mubr.bf16.mxu0 0
  %3763 = vmatmul.mubr.bf16.gmra.mxu0 %v3405
  %v3764 = vpop.f32.mrf.mxu0
  %v3765 = vadd.f32 0.0, %v3764
  %v3766 = vpop.f32.mrf.mxu0
  %v3767 = vpop.f32.mrf.mxu0
  %v3768 = vadd.f32 0.0, %v3767
  %v3769 = vpop.f32.mrf.mxu0
  %3770 = vmatprep.mubr.bf16.mxu0 0
  %3771 = vmatmul.mubr.bf16.gmra.mxu0 %v3408
  %v3772 = vpop.f32.mrf.mxu0
  %v3773 = vadd.f32 0.0, %v3772
  %v3774 = vpop.f32.mrf.mxu0
  %v3775 = vpop.f32.mrf.mxu0
  %v3776 = vadd.f32 0.0, %v3775
  %v3777 = vpop.f32.mrf.mxu0
  %3778 = vmatprep.mubr.bf16.mxu0 0
  %3779 = vmatmul.mubr.bf16.gmra.mxu0 %v3411
  %v3780 = vpop.f32.mrf.mxu0
  %v3781 = vadd.f32 0.0, %v3780
  %v3782 = vpop.f32.mrf.mxu0
  %v3783 = vpop.f32.mrf.mxu0
  %v3784 = vadd.f32 0.0, %v3783
  %v3785 = vpop.f32.mrf.mxu0
  %3786 = vmatprep.mubr.bf16.mxu0 0
  %3787 = vmatmul.mubr.bf16.gmra.mxu0 %v3414
  %v3788 = vpop.f32.mrf.mxu0
  %v3789 = vadd.f32 0.0, %v3788
  %v3790 = vpop.f32.mrf.mxu0
  %v3791 = vpop.f32.mrf.mxu0
  %v3792 = vadd.f32 0.0, %v3791
  %v3793 = vpop.f32.mrf.mxu0
  %3794 = vmatprep.mubr.bf16.mxu0 0
  %3795 = vmatmul.mubr.bf16.gmra.mxu0 %v3417
  %v3796 = vpop.f32.mrf.mxu0
  %v3797 = vadd.f32 0.0, %v3796
  %v3798 = vpop.f32.mrf.mxu0
  %v3799 = vpop.f32.mrf.mxu0
  %v3800 = vadd.f32 0.0, %v3799
  %v3801 = vpop.f32.mrf.mxu0
  %3802 = vmatprep.mubr.bf16.mxu0 0
  %3803 = vmatmul.mubr.bf16.gmra.mxu0 %v3420
  %v3804 = vpop.f32.mrf.mxu0
  %v3805 = vadd.f32 0.0, %v3804
  %v3806 = vpop.f32.mrf.mxu0
  %v3807 = vpop.f32.mrf.mxu0
  %v3808 = vadd.f32 0.0, %v3807
  %v3809 = vpop.f32.mrf.mxu0
  %3810 = vmatprep.mubr.bf16.mxu0 0
  %3811 = vmatmul.mubr.bf16.gmra.mxu0 %v3423
  %v3812 = vpop.f32.mrf.mxu0
  %v3813 = vadd.f32 0.0, %v3812
  %v3814 = vpop.f32.mrf.mxu0
  %v3815 = vpop.f32.mrf.mxu0
  %v3816 = vadd.f32 0.0, %v3815
  %v3817 = vpop.f32.mrf.mxu0
  %3818 = vmatprep.mubr.bf16.mxu0 0
  %3819 = vmatmul.mubr.bf16.gmra.mxu0 %v3426
  %v3820 = vpop.f32.mrf.mxu0
  %v3821 = vadd.f32 0.0, %v3820
  %v3822 = vpop.f32.mrf.mxu0
  %v3823 = vpop.f32.mrf.mxu0
  %v3824 = vadd.f32 0.0, %v3823
  %v3825 = vpop.f32.mrf.mxu0
  %3826 = vmatprep.mubr.bf16.mxu0 0
  %3827 = vmatmul.mubr.bf16.gmra.mxu0 %v3429
  %v3828 = vpop.f32.mrf.mxu0
  %v3829 = vadd.f32 0.0, %v3828
  %v3830 = vpop.f32.mrf.mxu0
  %v3831 = vpop.f32.mrf.mxu0
  %v3832 = vadd.f32 0.0, %v3831
  %v3833 = vpop.f32.mrf.mxu0
  %3834 = vmatprep.mubr.bf16.mxu0 0
  %3835 = vmatmul.mubr.bf16.gmra.mxu0 %v3432
  %v3836 = vpop.f32.mrf.mxu0
  %v3837 = vadd.f32 0.0, %v3836
  %v3838 = vpop.f32.mrf.mxu0
  %v3839 = vpop.f32.mrf.mxu0
  %v3840 = vadd.f32 0.0, %v3839
  %v3841 = vpop.f32.mrf.mxu0
  %3842 = vmatprep.mubr.bf16.mxu0 0
  %3843 = vmatmul.mubr.bf16.gmra.mxu0 %v3435
  %v3844 = vpop.f32.mrf.mxu0
  %v3845 = vadd.f32 0.0, %v3844
  %v3846 = vpop.f32.mrf.mxu0
  %v3847 = vpop.f32.mrf.mxu0
  %v3848 = vadd.f32 0.0, %v3847
  %v3849 = vpop.f32.mrf.mxu0
  %3850 = vmatprep.mubr.bf16.mxu0 0
  %3851 = vmatmul.mubr.bf16.gmra.mxu0 %v3438
  %v3852 = vpop.f32.mrf.mxu0
  %v3853 = vadd.f32 0.0, %v3852
  %v3854 = vpop.f32.mrf.mxu0
  %v3855 = vpop.f32.mrf.mxu0
  %v3856 = vadd.f32 0.0, %v3855
  %v3857 = vpop.f32.mrf.mxu0
  %3858 = vmatprep.mubr.bf16.mxu0 0
  %3859 = vmatmul.mubr.bf16.gmra.mxu0 %v3441
  %v3860 = vpop.f32.mrf.mxu0
  %v3861 = vadd.f32 0.0, %v3860
  %v3862 = vpop.f32.mrf.mxu0
  %v3863 = vpop.f32.mrf.mxu0
  %v3864 = vadd.f32 0.0, %v3863
  %v3865 = vpop.f32.mrf.mxu0
  %3866 = vmatprep.mubr.bf16.mxu0 0
  %3867 = vmatmul.mubr.bf16.gmra.mxu0 %v3444
  %v3868 = vpop.f32.mrf.mxu0
  %v3869 = vadd.f32 0.0, %v3868
  %v3870 = vpop.f32.mrf.mxu0
  %v3871 = vpop.f32.mrf.mxu0
  %v3872 = vadd.f32 0.0, %v3871
  %v3873 = vpop.f32.mrf.mxu0
  %3874 = vmatprep.mubr.bf16.mxu0 0
  %3875 = vmatmul.mubr.bf16.gmra.mxu0 %v3447
  %v3876 = vpop.f32.mrf.mxu0
  %v3877 = vadd.f32 0.0, %v3876
  %v3878 = vpop.f32.mrf.mxu0
  %v3879 = vpop.f32.mrf.mxu0
  %v3880 = vadd.f32 0.0, %v3879
  %v3881 = vpop.f32.mrf.mxu0
  %3882 = vmatprep.mubr.bf16.mxu0 0
  %3883 = vmatmul.mubr.bf16.gmra.mxu0 %v3450
  %v3884 = vpop.f32.mrf.mxu0
  %v3885 = vadd.f32 0.0, %v3884
  %v3886 = vpop.f32.mrf.mxu0
  %v3887 = vpop.f32.mrf.mxu0
  %v3888 = vadd.f32 0.0, %v3887
  %v3889 = vpop.f32.mrf.mxu0
  %3890 = vmatprep.mubr.bf16.mxu0 0
  %3891 = vmatmul.mubr.bf16.gmra.mxu0 %v3453
  %v3892 = vpop.f32.mrf.mxu0
  %v3893 = vadd.f32 0.0, %v3892
  %v3894 = vpop.f32.mrf.mxu0
  %v3895 = vpop.f32.mrf.mxu0
  %v3896 = vadd.f32 0.0, %v3895
  %v3897 = vpop.f32.mrf.mxu0
  %3898 = vmatprep.mubr.bf16.mxu0 0
  %3899 = vmatmul.mubr.bf16.gmra.mxu0 %v3456
  %v3900 = vpop.f32.mrf.mxu0
  %v3901 = vadd.f32 0.0, %v3900
  %v3902 = vpop.f32.mrf.mxu0
  %v3903 = vpop.f32.mrf.mxu0
  %v3904 = vadd.f32 0.0, %v3903
  %v3905 = vpop.f32.mrf.mxu0
  %3906 = vmatprep.mubr.bf16.mxu0 0
  %3907 = vmatmul.mubr.bf16.gmra.mxu0 %v3459
  %v3908 = vpop.f32.mrf.mxu0
  %v3909 = vadd.f32 0.0, %v3908
  %v3910 = vpop.f32.mrf.mxu0
  %v3911 = vpop.f32.mrf.mxu0
  %v3912 = vadd.f32 0.0, %v3911
  %v3913 = vpop.f32.mrf.mxu0
  %3914 = vmatprep.mubr.bf16.mxu0 0
  %3915 = vmatmul.mubr.bf16.gmra.mxu0 %v3462
  %v3916 = vpop.f32.mrf.mxu0
  %v3917 = vadd.f32 0.0, %v3916
  %v3918 = vpop.f32.mrf.mxu0
  %v3919 = vpop.f32.mrf.mxu0
  %v3920 = vadd.f32 0.0, %v3919
  %v3921 = vpop.f32.mrf.mxu0
  %3922 = vmatprep.mubr.bf16.mxu0 0
  %3923 = vmatmul.mubr.bf16.gmra.mxu0 %v3465
  %v3924 = vpop.f32.mrf.mxu0
  %v3925 = vadd.f32 0.0, %v3924
  %v3926 = vpop.f32.mrf.mxu0
  %v3927 = vpop.f32.mrf.mxu0
  %v3928 = vadd.f32 0.0, %v3927
  %v3929 = vpop.f32.mrf.mxu0
  %3930 = vmatprep.mubr.bf16.mxu0 0
  %3931 = vmatmul.mubr.bf16.gmra.mxu0 %v3468
  %v3932 = vpop.f32.mrf.mxu0
  %v3933 = vadd.f32 0.0, %v3932
  %v3934 = vpop.f32.mrf.mxu0
  %v3935 = vpop.f32.mrf.mxu0
  %v3936 = vadd.f32 0.0, %v3935
  %v3937 = vpop.f32.mrf.mxu0
  %3938 = vmatprep.mubr.bf16.mxu0 0
  %3939 = vmatmul.mubr.bf16.gmra.mxu0 %v3471
  %v3940 = vpop.f32.mrf.mxu0
  %v3941 = vadd.f32 0.0, %v3940
  %v3942 = vpop.f32.mrf.mxu0
  %v3943 = vpop.f32.mrf.mxu0
  %v3944 = vadd.f32 0.0, %v3943
  %v3945 = vpop.f32.mrf.mxu0
  %3946 = vmatprep.mubr.bf16.mxu0 0
  %3947 = vmatmul.mubr.bf16.gmra.mxu0 %v3474
  %v3948 = vpop.f32.mrf.mxu0
  %v3949 = vadd.f32 0.0, %v3948
  %v3950 = vpop.f32.mrf.mxu0
  %v3951 = vpop.f32.mrf.mxu0
  %v3952 = vadd.f32 0.0, %v3951
  %v3953 = vpop.f32.mrf.mxu0
  %3954 = vmatprep.mubr.bf16.mxu0 0
  %3955 = vmatmul.mubr.bf16.gmra.mxu0 %v3477
  %v3956 = vpop.f32.mrf.mxu0
  %v3957 = vadd.f32 0.0, %v3956
  %v3958 = vpop.f32.mrf.mxu0
  %v3959 = vpop.f32.mrf.mxu0
  %v3960 = vadd.f32 0.0, %v3959
  %v3961 = vpop.f32.mrf.mxu0
  %3962 = vmatprep.mubr.bf16.mxu0 0
  %3963 = vmatmul.mubr.bf16.gmra.mxu0 %v3480
  %v3964 = vpop.f32.mrf.mxu0
  %v3965 = vadd.f32 0.0, %v3964
  %v3966 = vpop.f32.mrf.mxu0
  %v3967 = vpop.f32.mrf.mxu0
  %v3968 = vadd.f32 0.0, %v3967
  %v3969 = vpop.f32.mrf.mxu0
  %3970 = vmatprep.mubr.bf16.mxu0 0
  %3971 = vmatmul.mubr.bf16.gmra.mxu0 %v3483
  %v3972 = vpop.f32.mrf.mxu0
  %v3973 = vadd.f32 0.0, %v3972
  %v3974 = vpop.f32.mrf.mxu0
  %v3975 = vpop.f32.mrf.mxu0
  %v3976 = vadd.f32 0.0, %v3975
  %v3977 = vpop.f32.mrf.mxu0
  %3978 = vmatprep.mubr.bf16.mxu0 0
  %3979 = vmatmul.mubr.bf16.gmra.mxu0 %v3486
  %v3980 = vpop.f32.mrf.mxu0
  %v3981 = vadd.f32 0.0, %v3980
  %v3982 = vpop.f32.mrf.mxu0
  %v3983 = vpop.f32.mrf.mxu0
  %v3984 = vadd.f32 0.0, %v3983
  %v3985 = vpop.f32.mrf.mxu0
  %3986 = vmatprep.mubr.bf16.mxu0 0
  %3987 = vmatmul.mubr.bf16.gmra.mxu0 %v3489
  %v3988 = vpop.f32.mrf.mxu0
  %v3989 = vadd.f32 0.0, %v3988
  %v3990 = vpop.f32.mrf.mxu0
  %v3991 = vpop.f32.mrf.mxu0
  %v3992 = vadd.f32 0.0, %v3991
  %v3993 = vpop.f32.mrf.mxu0
  %3994 = vmatprep.mubr.bf16.mxu0 0
  %3995 = vmatmul.mubr.bf16.gmra.mxu0 %v3492
  %v3996 = vpop.f32.mrf.mxu0
  %v3997 = vadd.f32 0.0, %v3996
  %v3998 = vpop.f32.mrf.mxu0
  %v3999 = vpop.f32.mrf.mxu0
  %v4000 = vadd.f32 0.0, %v3999
  %v4001 = vpop.f32.mrf.mxu0
  %4002 = vmatprep.mubr.bf16.mxu0 0
  %4003 = vmatmul.mubr.bf16.gmra.mxu0 %v3495
  %v4004 = vpop.f32.mrf.mxu0
  %v4005 = vadd.f32 0.0, %v4004
  %v4006 = vpop.f32.mrf.mxu0
  %v4007 = vpop.f32.mrf.mxu0
  %v4008 = vadd.f32 0.0, %v4007
  %v4009 = vpop.f32.mrf.mxu0
  %4010 = vmatprep.mubr.bf16.mxu0 0
  %4011 = vmatmul.mubr.bf16.gmra.mxu0 %v3498
  %v4012 = vpop.f32.mrf.mxu0
  %v4013 = vadd.f32 0.0, %v4012
  %v4014 = vpop.f32.mrf.mxu0
  %v4015 = vpop.f32.mrf.mxu0
  %v4016 = vadd.f32 0.0, %v4015
  %v4017 = vpop.f32.mrf.mxu0
  %4018 = vmatprep.mubr.bf16.mxu0 0
  %4019 = vmatmul.mubr.bf16.gmra.mxu0 %v3501
  %v4020 = vpop.f32.mrf.mxu0
  %v4021 = vadd.f32 0.0, %v4020
  %v4022 = vpop.f32.mrf.mxu0
  %v4023 = vpop.f32.mrf.mxu0
  %v4024 = vadd.f32 0.0, %v4023
  %v4025 = vpop.f32.mrf.mxu0
  %4026 = vmatprep.mubr.bf16.mxu0 0
  %4027 = vmatmul.mubr.bf16.gmra.mxu0 %v3504
  %v4028 = vpop.f32.mrf.mxu0
  %v4029 = vadd.f32 0.0, %v4028
  %v4030 = vpop.f32.mrf.mxu0
  %v4031 = vpop.f32.mrf.mxu0
  %v4032 = vadd.f32 0.0, %v4031
  %v4033 = vpop.f32.mrf.mxu0
  %4034 = vmatprep.mubr.bf16.mxu0 0
  %4035 = vmatmul.mubr.bf16.gmra.mxu0 %v3507
  %v4036 = vpop.f32.mrf.mxu0
  %v4037 = vadd.f32 0.0, %v4036
  %v4038 = vpop.f32.mrf.mxu0
  %v4039 = vpop.f32.mrf.mxu0
  %v4040 = vadd.f32 0.0, %v4039
  %v4041 = vpop.f32.mrf.mxu0
  %4042 = vmatprep.mubr.bf16.mxu0 0
  %4043 = vmatmul.mubr.bf16.gmra.mxu0 %v3510
  %v4044 = vpop.f32.mrf.mxu0
  %v4045 = vadd.f32 0.0, %v4044
  %v4046 = vpop.f32.mrf.mxu0
  %v4047 = vpop.f32.mrf.mxu0
  %v4048 = vadd.f32 0.0, %v4047
  %v4049 = vpop.f32.mrf.mxu0
  %4050 = vmatprep.mubr.bf16.mxu0 0
  %4051 = vmatmul.mubr.bf16.gmra.mxu0 %v3513
  %v4052 = vpop.f32.mrf.mxu0
  %v4053 = vadd.f32 0.0, %v4052
  %v4054 = vpop.f32.mrf.mxu0
  %v4055 = vpop.f32.mrf.mxu0
  %v4056 = vadd.f32 0.0, %v4055
  %v4057 = vpop.f32.mrf.mxu0
  %4058 = vmatprep.mubr.bf16.mxu0 0
  %4059 = vmatmul.mubr.bf16.gmra.mxu0 %v3516
  %v4060 = vpop.f32.mrf.mxu0
  %v4061 = vadd.f32 0.0, %v4060
  %v4062 = vpop.f32.mrf.mxu0
  %v4063 = vpop.f32.mrf.mxu0
  %v4064 = vadd.f32 0.0, %v4063
  %v4065 = vpop.f32.mrf.mxu0
  %4066 = vmatprep.mubr.bf16.mxu0 0
  %4067 = vmatmul.mubr.bf16.gmra.mxu0 %v3519
  %v4068 = vpop.f32.mrf.mxu0
  %v4069 = vadd.f32 0.0, %v4068
  %v4070 = vpop.f32.mrf.mxu0
  %v4071 = vpop.f32.mrf.mxu0
  %v4072 = vadd.f32 0.0, %v4071
  %v4073 = vpop.f32.mrf.mxu0
  %4074 = vmatprep.mubr.bf16.mxu0 0
  %4075 = vmatmul.mubr.bf16.gmra.mxu0 %v3522
  %v4076 = vpop.f32.mrf.mxu0
  %v4077 = vadd.f32 0.0, %v4076
  %v4078 = vpop.f32.mrf.mxu0
  %v4079 = vpop.f32.mrf.mxu0
  %v4080 = vadd.f32 0.0, %v4079
  %v4081 = vpop.f32.mrf.mxu0
  %4082 = vmatprep.mubr.bf16.mxu0 0
  %4083 = vmatmul.mubr.bf16.gmra.mxu0 %v3525
  %v4084 = vpop.f32.mrf.mxu0
  %v4085 = vadd.f32 0.0, %v4084
  %v4086 = vpop.f32.mrf.mxu0
  %v4087 = vpop.f32.mrf.mxu0
  %v4088 = vadd.f32 0.0, %v4087
  %v4089 = vpop.f32.mrf.mxu0
  %4090 = vmatprep.mubr.bf16.mxu0 0
  %4091 = vmatmul.mubr.bf16.gmra.mxu0 %v3528
  %v4092 = vpop.f32.mrf.mxu0
  %v4093 = vadd.f32 0.0, %v4092
  %v4094 = vpop.f32.mrf.mxu0
  %v4095 = vpop.f32.mrf.mxu0
  %v4096 = vadd.f32 0.0, %v4095
  %v4097 = vpop.f32.mrf.mxu0
  %4098 = vmatprep.mubr.bf16.mxu0 0
  %4099 = vmatmul.mubr.bf16.gmra.mxu0 %v3531
  %v4100 = vpop.f32.mrf.mxu0
  %v4101 = vadd.f32 0.0, %v4100
  %v4102 = vpop.f32.mrf.mxu0
  %v4103 = vpop.f32.mrf.mxu0
  %v4104 = vadd.f32 0.0, %v4103
  %v4105 = vpop.f32.mrf.mxu0
  %4106 = vmatprep.mubr.bf16.mxu0 0
  %4107 = vmatmul.mubr.bf16.gmra.mxu0 %v3534
  %v4108 = vpop.f32.mrf.mxu0
  %v4109 = vadd.f32 0.0, %v4108
  %v4110 = vpop.f32.mrf.mxu0
  %v4111 = vpop.f32.mrf.mxu0
  %v4112 = vadd.f32 0.0, %v4111
  %v4113 = vpop.f32.mrf.mxu0
  %4114 = vmatprep.mubr.bf16.mxu0 0
  %4115 = vmatmul.mubr.bf16.gmra.mxu0 %v3537
  %v4116 = vpop.f32.mrf.mxu0
  %v4117 = vadd.f32 0.0, %v4116
  %v4118 = vpop.f32.mrf.mxu0
  %v4119 = vpop.f32.mrf.mxu0
  %v4120 = vadd.f32 0.0, %v4119
  %v4121 = vpop.f32.mrf.mxu0
  %4122 = vmatprep.mubr.bf16.mxu0 0
  %4123 = vmatmul.mubr.bf16.gmra.mxu0 %v3540
  %v4124 = vpop.f32.mrf.mxu0
  %v4125 = vadd.f32 0.0, %v4124
  %v4126 = vpop.f32.mrf.mxu0
  %v4127 = vpop.f32.mrf.mxu0
  %v4128 = vadd.f32 0.0, %v4127
  %v4129 = vpop.f32.mrf.mxu0
  %4130 = vmatprep.mubr.bf16.mxu0 0
  %4131 = vmatmul.mubr.bf16.gmra.mxu0 %v3543
  %v4132 = vpop.f32.mrf.mxu0
  %v4133 = vadd.f32 0.0, %v4132
  %v4134 = vpop.f32.mrf.mxu0
  %v4135 = vpop.f32.mrf.mxu0
  %v4136 = vadd.f32 0.0, %v4135
  %v4137 = vpop.f32.mrf.mxu0
  %4138 = vmatprep.mubr.bf16.mxu0 0
  %4139 = vmatmul.mubr.bf16.gmra.mxu0 %v3546
  %v4140 = vpop.f32.mrf.mxu0
  %v4141 = vadd.f32 0.0, %v4140
  %v4142 = vpop.f32.mrf.mxu0
  %v4143 = vpop.f32.mrf.mxu0
  %v4144 = vadd.f32 0.0, %v4143
  %v4145 = vpop.f32.mrf.mxu0
  %4146 = vmatprep.mubr.bf16.mxu0 0
  %4147 = vmatmul.mubr.bf16.gmra.mxu0 %v3549
  %v4148 = vpop.f32.mrf.mxu0
  %v4149 = vadd.f32 0.0, %v4148
  %v4150 = vpop.f32.mrf.mxu0
  %v4151 = vpop.f32.mrf.mxu0
  %v4152 = vadd.f32 0.0, %v4151
  %v4153 = vpop.f32.mrf.mxu0
  %4154 = vmatprep.mubr.bf16.mxu0 0
  %4155 = vmatmul.mubr.bf16.gmra.mxu0 %v3552
  %v4156 = vpop.f32.mrf.mxu0
  %v4157 = vadd.f32 0.0, %v4156
  %v4158 = vpop.f32.mrf.mxu0
  %v4159 = vpop.f32.mrf.mxu0
  %v4160 = vadd.f32 0.0, %v4159
  %v4161 = vpop.f32.mrf.mxu0
  %4162 = vdwg.mxu0
  %v4163 = vmax.f32 %v2690, %v3589
  %v4164 = vmax.f32 %v2691, %v3592
  %v4165 = vmax.f32 %v2692, %v3597
  %v4166 = vmax.f32 %v2693, %v3600
  %v4167 = vmax.f32 %v2694, %v3605
  %v4168 = vmax.f32 %v2695, %v3608
  %v4169 = vmax.f32 %v2696, %v3613
  %v4170 = vmax.f32 %v2697, %v3616
  %v4171 = vmax.f32 %v2698, %v3621
  %v4172 = vmax.f32 %v2699, %v3624
  %v4173 = vmax.f32 %v2700, %v3629
  %v4174 = vmax.f32 %v2701, %v3632
  %v4175 = vmax.f32 %v2702, %v3637
  %v4176 = vmax.f32 %v2703, %v3640
  %v4177 = vmax.f32 %v2704, %v3645
  %v4178 = vmax.f32 %v2705, %v3648
  %v4179 = vmax.f32 %v2706, %v3653
  %v4180 = vmax.f32 %v2707, %v3656
  %v4181 = vmax.f32 %v2708, %v3661
  %v4182 = vmax.f32 %v2709, %v3664
  %v4183 = vmax.f32 %v2710, %v3669
  %v4184 = vmax.f32 %v2711, %v3672
  %v4185 = vmax.f32 %v2712, %v3677
  %v4186 = vmax.f32 %v2713, %v3680
  %v4187 = vmax.f32 %v2714, %v3685
  %v4188 = vmax.f32 %v2715, %v3688
  %v4189 = vmax.f32 %v2716, %v3693
  %v4190 = vmax.f32 %v2717, %v3696
  %v4191 = vmax.f32 %v2718, %v3701
  %v4192 = vmax.f32 %v2719, %v3704
  %v4193 = vmax.f32 %v2720, %v3709
  %v4194 = vmax.f32 %v2721, %v3712
  %v4195 = vmax.f32 %v2722, %v3717
  %v4196 = vmax.f32 %v2723, %v3720
  %v4197 = vmax.f32 %v2724, %v3725
  %v4198 = vmax.f32 %v2725, %v3728
  %v4199 = vmax.f32 %v2726, %v3733
  %v4200 = vmax.f32 %v2727, %v3736
  %v4201 = vmax.f32 %v2728, %v3741
  %v4202 = vmax.f32 %v2729, %v3744
  %v4203 = vmax.f32 %v2730, %v3749
  %v4204 = vmax.f32 %v2731, %v3752
  %v4205 = vmax.f32 %v2732, %v3757
  %v4206 = vmax.f32 %v2733, %v3760
  %v4207 = vmax.f32 %v2734, %v3765
  %v4208 = vmax.f32 %v2735, %v3768
  %v4209 = vmax.f32 %v2736, %v3773
  %v4210 = vmax.f32 %v2737, %v3776
  %v4211 = vmax.f32 %v2738, %v3781
  %v4212 = vmax.f32 %v2739, %v3784
  %v4213 = vmax.f32 %v2740, %v3789
  %v4214 = vmax.f32 %v2741, %v3792
  %v4215 = vmax.f32 %v2742, %v3797
  %v4216 = vmax.f32 %v2743, %v3800
  %v4217 = vmax.f32 %v2744, %v3805
  %v4218 = vmax.f32 %v2745, %v3808
  %v4219 = vmax.f32 %v2746, %v3813
  %v4220 = vmax.f32 %v2747, %v3816
  %v4221 = vmax.f32 %v2748, %v3821
  %v4222 = vmax.f32 %v2749, %v3824
  %v4223 = vmax.f32 %v2750, %v3829
  %v4224 = vmax.f32 %v2751, %v3832
  %v4225 = vmax.f32 %v2752, %v3837
  %v4226 = vmax.f32 %v2753, %v3840
  %v4227 = vmax.f32 %v2754, %v3845
  %v4228 = vmax.f32 %v2755, %v3848
  %v4229 = vmax.f32 %v2756, %v3853
  %v4230 = vmax.f32 %v2757, %v3856
  %v4231 = vmax.f32 %v2758, %v3861
  %v4232 = vmax.f32 %v2759, %v3864
  %v4233 = vmax.f32 %v2760, %v3869
  %v4234 = vmax.f32 %v2761, %v3872
  %v4235 = vmax.f32 %v2762, %v3877
  %v4236 = vmax.f32 %v2763, %v3880
  %v4237 = vmax.f32 %v2764, %v3885
  %v4238 = vmax.f32 %v2765, %v3888
  %v4239 = vmax.f32 %v2766, %v3893
  %v4240 = vmax.f32 %v2767, %v3896
  %v4241 = vmax.f32 %v2768, %v3901
  %v4242 = vmax.f32 %v2769, %v3904
  %v4243 = vmax.f32 %v2770, %v3909
  %v4244 = vmax.f32 %v2771, %v3912
  %v4245 = vmax.f32 %v2772, %v3917
  %v4246 = vmax.f32 %v2773, %v3920
  %v4247 = vmax.f32 %v2774, %v3925
  %v4248 = vmax.f32 %v2775, %v3928
  %v4249 = vmax.f32 %v2776, %v3933
  %v4250 = vmax.f32 %v2777, %v3936
  %v4251 = vmax.f32 %v2778, %v3941
  %v4252 = vmax.f32 %v2779, %v3944
  %v4253 = vmax.f32 %v2780, %v3949
  %v4254 = vmax.f32 %v2781, %v3952
  %v4255 = vmax.f32 %v2782, %v3957
  %v4256 = vmax.f32 %v2783, %v3960
  %v4257 = vmax.f32 %v2784, %v3965
  %v4258 = vmax.f32 %v2785, %v3968
  %v4259 = vmax.f32 %v2786, %v3973
  %v4260 = vmax.f32 %v2787, %v3976
  %v4261 = vmax.f32 %v2788, %v3981
  %v4262 = vmax.f32 %v2789, %v3984
  %v4263 = vmax.f32 %v2790, %v3989
  %v4264 = vmax.f32 %v2791, %v3992
  %v4265 = vmax.f32 %v2792, %v3997
  %v4266 = vmax.f32 %v2793, %v4000
  %v4267 = vmax.f32 %v2794, %v4005
  %v4268 = vmax.f32 %v2795, %v4008
  %v4269 = vmax.f32 %v2796, %v4013
  %v4270 = vmax.f32 %v2797, %v4016
  %v4271 = vmax.f32 %v2798, %v4021
  %v4272 = vmax.f32 %v2799, %v4024
  %v4273 = vmax.f32 %v2800, %v4029
  %v4274 = vmax.f32 %v2801, %v4032
  %v4275 = vmax.f32 %v2802, %v4037
  %v4276 = vmax.f32 %v2803, %v4040
  %v4277 = vmax.f32 %v2804, %v4045
  %v4278 = vmax.f32 %v2805, %v4048
  %v4279 = vmax.f32 %v2806, %v4053
  %v4280 = vmax.f32 %v2807, %v4056
  %v4281 = vmax.f32 %v2808, %v4061
  %v4282 = vmax.f32 %v2809, %v4064
  %v4283 = vmax.f32 %v2810, %v4069
  %v4284 = vmax.f32 %v2811, %v4072
  %v4285 = vmax.f32 %v2812, %v4077
  %v4286 = vmax.f32 %v2813, %v4080
  %v4287 = vmax.f32 %v2814, %v4085
  %v4288 = vmax.f32 %v2815, %v4088
  %v4289 = vmax.f32 %v2816, %v4093
  %v4290 = vmax.f32 %v2817, %v4096
  %v4291 = vmax.f32 %v2818, %v4101
  %v4292 = vmax.f32 %v2819, %v4104
  %v4293 = vmax.f32 %v2820, %v4109
  %v4294 = vmax.f32 %v2821, %v4112
  %v4295 = vmax.f32 %v2822, %v4117
  %v4296 = vmax.f32 %v2823, %v4120
  %v4297 = vmax.f32 %v2824, %v4125
  %v4298 = vmax.f32 %v2825, %v4128
  %v4299 = vmax.f32 %v2826, %v4133
  %v4300 = vmax.f32 %v2827, %v4136
  %v4301 = vmax.f32 %v2828, %v4141
  %v4302 = vmax.f32 %v2829, %v4144
  %v4303 = vmax.f32 %v2830, %v4149
  %v4304 = vmax.f32 %v2831, %v4152
  %v4305 = vmax.f32 %v2832, %v4157
  %v4306 = vmax.f32 %v2833, %v4160
  %v4307 = vld [vmem:[%s0 + $0xd8] sm:$0xf]
  %v4308 = vld [vmem:[%s0 + $0xdc] sm:$0xf]
  %v4309 = vld [vmem:[%s0 + $0xe0] sm:$0xf]
  %v4310 = vld [vmem:[%s0 + $0xe4] sm:$0xf]
  %v4311 = vld [vmem:[%s0 + $0xe8] sm:$0xf]
  %v4312 = vld [vmem:[%s0 + $0xec] sm:$0xf]
  %v4313 = vld [vmem:[%s0 + $0xf0] sm:$0xf]
  %v4314 = vld [vmem:[%s0 + $0xf4] sm:$0xf]
  %v4315 = vld [vmem:[%s0 + $0xf8] sm:$0xf]
  %v4316 = vld [vmem:[%s0 + $0xfc] sm:$0xf]
  %v4317 = vld [vmem:[%s0 + $0x100] sm:$0xf]
  %v4318 = vld [vmem:[%s0 + $0x104] sm:$0xf]
  %v4319 = vld [vmem:[%s0 + $0x108] sm:$0xf]
  %v4320 = vld [vmem:[%s0 + $0x10c] sm:$0xf]
  %v4321 = vld [vmem:[%s0 + $0x110] sm:$0xf]
  %v4322 = vld [vmem:[%s0 + $0x114] sm:$0xf]
  %v4323 = vld [vmem:[%s0 + $0x118] sm:$0xf]
  %v4324 = vld [vmem:[%s0 + $0x11c] sm:$0xf]
  %v4325 = vld [vmem:[%s0 + $0x1f8] sm:$0xf]
  %v4326 = vld [vmem:[%s0 + $0x1fc] sm:$0xf]
  %v4327 = vld [vmem:[%s0 + $0x200] sm:$0xf]
  %v4328 = vld [vmem:[%s0 + $0x204] sm:$0xf]
  %v4329 = vld [vmem:[%s0 + $0x208] sm:$0xf]
  %v4330 = vld [vmem:[%s0 + $0x20c] sm:$0xf]
  %v4331 = vld [vmem:[%s0 + $0x210] sm:$0xf]
  %v4332 = vld [vmem:[%s0 + $0x214] sm:$0xf]
  %v4333 = vld [vmem:[%s0 + $0x218] sm:$0xf]
  %v4334 = vld [vmem:[%s0 + $0x21c] sm:$0xf]
  %v4335 = vld [vmem:[%s0 + $0x220] sm:$0xf]
  %v4336 = vld [vmem:[%s0 + $0x224] sm:$0xf]
  %v4337 = vld [vmem:[%s0 + $0x228] sm:$0xf]
  %v4338 = vld [vmem:[%s0 + $0x22c] sm:$0xf]
  %v4339 = vld [vmem:[%s0 + $0x230] sm:$0xf]
  %v4340 = vld [vmem:[%s0 + $0x234] sm:$0xf]
  %v4341 = vld [vmem:[%s0 + $0x238] sm:$0xf]
  %v4342 = vld [vmem:[%s0 + $0x23c] sm:$0xf]
  %v4343 = vld [vmem:[%s0 + $0x318] sm:$0xf]
  %v4344 = vld [vmem:[%s0 + $0x31c] sm:$0xf]
  %v4345 = vld [vmem:[%s0 + $0x320] sm:$0xf]
  %v4346 = vld [vmem:[%s0 + $0x324] sm:$0xf]
  %v4347 = vld [vmem:[%s0 + $0x328] sm:$0xf]
  %v4348 = vld [vmem:[%s0 + $0x32c] sm:$0xf]
  %v4349 = vld [vmem:[%s0 + $0x330] sm:$0xf]
  %v4350 = vld [vmem:[%s0 + $0x334] sm:$0xf]
  %v4351 = vld [vmem:[%s0 + $0x338] sm:$0xf]
  %v4352 = vld [vmem:[%s0 + $0x33c] sm:$0xf]
  %v4353 = vld [vmem:[%s0 + $0x340] sm:$0xf]
  %v4354 = vld [vmem:[%s0 + $0x344] sm:$0xf]
  %v4355 = vld [vmem:[%s0 + $0x348] sm:$0xf]
  %v4356 = vld [vmem:[%s0 + $0x34c] sm:$0xf]
  %v4357 = vld [vmem:[%s0 + $0x350] sm:$0xf]
  %v4358 = vld [vmem:[%s0 + $0x354] sm:$0xf]
  %v4359 = vld [vmem:[%s0 + $0x358] sm:$0xf]
  %v4360 = vld [vmem:[%s0 + $0x35c] sm:$0xf]
  %v4361 = vld [vmem:[%s0 + $0x438] sm:$0xf]
  %v4362 = vld [vmem:[%s0 + $0x43c] sm:$0xf]
  %v4363 = vld [vmem:[%s0 + $0x440] sm:$0xf]
  %v4364 = vld [vmem:[%s0 + $0x444] sm:$0xf]
  %v4365 = vld [vmem:[%s0 + $0x448] sm:$0xf]
  %v4366 = vld [vmem:[%s0 + $0x44c] sm:$0xf]
  %v4367 = vld [vmem:[%s0 + $0x450] sm:$0xf]
  %v4368 = vld [vmem:[%s0 + $0x454] sm:$0xf]
  %v4369 = vld [vmem:[%s0 + $0x458] sm:$0xf]
  %v4370 = vld [vmem:[%s0 + $0x45c] sm:$0xf]
  %v4371 = vld [vmem:[%s0 + $0x460] sm:$0xf]
  %v4372 = vld [vmem:[%s0 + $0x464] sm:$0xf]
  %v4373 = vld [vmem:[%s0 + $0x468] sm:$0xf]
  %v4374 = vld [vmem:[%s0 + $0x46c] sm:$0xf]
  %v4375 = vld [vmem:[%s0 + $0x470] sm:$0xf]
  %v4376 = vld [vmem:[%s0 + $0x474] sm:$0xf]
  %v4377 = vld [vmem:[%s0 + $0x478] sm:$0xf]
  %v4378 = vld [vmem:[%s0 + $0x47c] sm:$0xf]
  %v4379 = vld [vmem:[%s0 + $0x558] sm:$0xf]
  %v4380 = vld [vmem:[%s0 + $0x55c] sm:$0xf]
  %v4381 = vld [vmem:[%s0 + $0x560] sm:$0xf]
  %v4382 = vld [vmem:[%s0 + $0x564] sm:$0xf]
  %v4383 = vld [vmem:[%s0 + $0x568] sm:$0xf]
  %v4384 = vld [vmem:[%s0 + $0x56c] sm:$0xf]
  %v4385 = vld [vmem:[%s0 + $0x570] sm:$0xf]
  %v4386 = vld [vmem:[%s0 + $0x574] sm:$0xf]
  %v4387 = vld [vmem:[%s0 + $0x578] sm:$0xf]
  %v4388 = vld [vmem:[%s0 + $0x57c] sm:$0xf]
  %v4389 = vld [vmem:[%s0 + $0x580] sm:$0xf]
  %v4390 = vld [vmem:[%s0 + $0x584] sm:$0xf]
  %v4391 = vld [vmem:[%s0 + $0x588] sm:$0xf]
  %v4392 = vld [vmem:[%s0 + $0x58c] sm:$0xf]
  %v4393 = vld [vmem:[%s0 + $0x590] sm:$0xf]
  %v4394 = vld [vmem:[%s0 + $0x594] sm:$0xf]
  %v4395 = vld [vmem:[%s0 + $0x598] sm:$0xf]
  %v4396 = vld [vmem:[%s0 + $0x59c] sm:$0xf]
  %v4397 = vld [vmem:[%s0 + $0x678] sm:$0xf]
  %v4398 = vld [vmem:[%s0 + $0x67c] sm:$0xf]
  %v4399 = vld [vmem:[%s0 + $0x680] sm:$0xf]
  %v4400 = vld [vmem:[%s0 + $0x684] sm:$0xf]
  %v4401 = vld [vmem:[%s0 + $0x688] sm:$0xf]
  %v4402 = vld [vmem:[%s0 + $0x68c] sm:$0xf]
  %v4403 = vld [vmem:[%s0 + $0x690] sm:$0xf]
  %v4404 = vld [vmem:[%s0 + $0x694] sm:$0xf]
  %v4405 = vld [vmem:[%s0 + $0x698] sm:$0xf]
  %v4406 = vld [vmem:[%s0 + $0x69c] sm:$0xf]
  %v4407 = vld [vmem:[%s0 + $0x6a0] sm:$0xf]
  %v4408 = vld [vmem:[%s0 + $0x6a4] sm:$0xf]
  %v4409 = vld [vmem:[%s0 + $0x6a8] sm:$0xf]
  %v4410 = vld [vmem:[%s0 + $0x6ac] sm:$0xf]
  %v4411 = vld [vmem:[%s0 + $0x6b0] sm:$0xf]
  %v4412 = vld [vmem:[%s0 + $0x6b4] sm:$0xf]
  %v4413 = vld [vmem:[%s0 + $0x6b8] sm:$0xf]
  %v4414 = vld [vmem:[%s0 + $0x6bc] sm:$0xf]
  %v4415 = vld [vmem:[%s0 + $0x798] sm:$0xf]
  %v4416 = vld [vmem:[%s0 + $0x79c] sm:$0xf]
  %v4417 = vld [vmem:[%s0 + $0x7a0] sm:$0xf]
  %v4418 = vld [vmem:[%s0 + $0x7a4] sm:$0xf]
  %v4419 = vld [vmem:[%s0 + $0x7a8] sm:$0xf]
  %v4420 = vld [vmem:[%s0 + $0x7ac] sm:$0xf]
  %v4421 = vld [vmem:[%s0 + $0x7b0] sm:$0xf]
  %v4422 = vld [vmem:[%s0 + $0x7b4] sm:$0xf]
  %v4423 = vld [vmem:[%s0 + $0x7b8] sm:$0xf]
  %v4424 = vld [vmem:[%s0 + $0x7bc] sm:$0xf]
  %v4425 = vld [vmem:[%s0 + $0x7c0] sm:$0xf]
  %v4426 = vld [vmem:[%s0 + $0x7c4] sm:$0xf]
  %v4427 = vld [vmem:[%s0 + $0x7c8] sm:$0xf]
  %v4428 = vld [vmem:[%s0 + $0x7cc] sm:$0xf]
  %v4429 = vld [vmem:[%s0 + $0x7d0] sm:$0xf]
  %v4430 = vld [vmem:[%s0 + $0x7d4] sm:$0xf]
  %v4431 = vld [vmem:[%s0 + $0x7d8] sm:$0xf]
  %v4432 = vld [vmem:[%s0 + $0x7dc] sm:$0xf]
  %v4433 = vld [vmem:[%s0 + $0x8b8] sm:$0xf]
  %v4434 = vld [vmem:[%s0 + $0x8bc] sm:$0xf]
  %v4435 = vld [vmem:[%s0 + $0x8c0] sm:$0xf]
  %v4436 = vld [vmem:[%s0 + $0x8c4] sm:$0xf]
  %v4437 = vld [vmem:[%s0 + $0x8c8] sm:$0xf]
  %v4438 = vld [vmem:[%s0 + $0x8cc] sm:$0xf]
  %v4439 = vld [vmem:[%s0 + $0x8d0] sm:$0xf]
  %v4440 = vld [vmem:[%s0 + $0x8d4] sm:$0xf]
  %v4441 = vld [vmem:[%s0 + $0x8d8] sm:$0xf]
  %v4442 = vld [vmem:[%s0 + $0x8dc] sm:$0xf]
  %v4443 = vld [vmem:[%s0 + $0x8e0] sm:$0xf]
  %v4444 = vld [vmem:[%s0 + $0x8e4] sm:$0xf]
  %v4445 = vld [vmem:[%s0 + $0x8e8] sm:$0xf]
  %v4446 = vld [vmem:[%s0 + $0x8ec] sm:$0xf]
  %v4447 = vld [vmem:[%s0 + $0x8f0] sm:$0xf]
  %v4448 = vld [vmem:[%s0 + $0x8f4] sm:$0xf]
  %v4449 = vld [vmem:[%s0 + $0x8f8] sm:$0xf]
  %v4450 = vld [vmem:[%s0 + $0x8fc] sm:$0xf]
  %v4595 = vunpack.c.l.b16 %v4307
  %v4596 = vunpack.c.l.b16 %v4308
  %v4597 = vunpack.c.l.b16 %v4309
  %v4598 = vunpack.c.l.b16 %v4310
  %v4599 = vunpack.c.l.b16 %v4311
  %v4600 = vunpack.c.l.b16 %v4312
  %v4601 = vunpack.c.l.b16 %v4313
  %v4602 = vunpack.c.l.b16 %v4314
  %v4603 = vunpack.c.l.b16 %v4315
  %v4604 = vunpack.c.l.b16 %v4316
  %v4605 = vunpack.c.l.b16 %v4317
  %v4606 = vunpack.c.l.b16 %v4318
  %v4607 = vunpack.c.l.b16 %v4319
  %v4608 = vunpack.c.l.b16 %v4320
  %v4609 = vunpack.c.l.b16 %v4321
  %v4610 = vunpack.c.l.b16 %v4322
  %v4611 = vunpack.c.l.b16 %v4323
  %v4612 = vunpack.c.l.b16 %v4324
  %v4613 = vunpack.c.l.b16 %v4325
  %v4614 = vunpack.c.l.b16 %v4326
  %v4615 = vunpack.c.l.b16 %v4327
  %v4616 = vunpack.c.l.b16 %v4328
  %v4617 = vunpack.c.l.b16 %v4329
  %v4618 = vunpack.c.l.b16 %v4330
  %v4619 = vunpack.c.l.b16 %v4331
  %v4620 = vunpack.c.l.b16 %v4332
  %v4621 = vunpack.c.l.b16 %v4333
  %v4622 = vunpack.c.l.b16 %v4334
  %v4623 = vunpack.c.l.b16 %v4335
  %v4624 = vunpack.c.l.b16 %v4336
  %v4625 = vunpack.c.l.b16 %v4337
  %v4626 = vunpack.c.l.b16 %v4338
  %v4627 = vunpack.c.l.b16 %v4339
  %v4628 = vunpack.c.l.b16 %v4340
  %v4629 = vunpack.c.l.b16 %v4341
  %v4630 = vunpack.c.l.b16 %v4342
  %v4631 = vunpack.c.l.b16 %v4343
  %v4632 = vunpack.c.l.b16 %v4344
  %v4633 = vunpack.c.l.b16 %v4345
  %v4634 = vunpack.c.l.b16 %v4346
  %v4635 = vunpack.c.l.b16 %v4347
  %v4636 = vunpack.c.l.b16 %v4348
  %v4637 = vunpack.c.l.b16 %v4349
  %v4638 = vunpack.c.l.b16 %v4350
  %v4639 = vunpack.c.l.b16 %v4351
  %v4640 = vunpack.c.l.b16 %v4352
  %v4641 = vunpack.c.l.b16 %v4353
  %v4642 = vunpack.c.l.b16 %v4354
  %v4643 = vunpack.c.l.b16 %v4355
  %v4644 = vunpack.c.l.b16 %v4356
  %v4645 = vunpack.c.l.b16 %v4357
  %v4646 = vunpack.c.l.b16 %v4358
  %v4647 = vunpack.c.l.b16 %v4359
  %v4648 = vunpack.c.l.b16 %v4360
  %v4649 = vunpack.c.l.b16 %v4361
  %v4650 = vunpack.c.l.b16 %v4362
  %v4651 = vunpack.c.l.b16 %v4363
  %v4652 = vunpack.c.l.b16 %v4364
  %v4653 = vunpack.c.l.b16 %v4365
  %v4654 = vunpack.c.l.b16 %v4366
  %v4655 = vunpack.c.l.b16 %v4367
  %v4656 = vunpack.c.l.b16 %v4368
  %v4657 = vunpack.c.l.b16 %v4369
  %v4658 = vunpack.c.l.b16 %v4370
  %v4659 = vunpack.c.l.b16 %v4371
  %v4660 = vunpack.c.l.b16 %v4372
  %v4661 = vunpack.c.l.b16 %v4373
  %v4662 = vunpack.c.l.b16 %v4374
  %v4663 = vunpack.c.l.b16 %v4375
  %v4664 = vunpack.c.l.b16 %v4376
  %v4665 = vunpack.c.l.b16 %v4377
  %v4666 = vunpack.c.l.b16 %v4378
  %v4667 = vunpack.c.l.b16 %v4379
  %v4668 = vunpack.c.l.b16 %v4380
  %v4669 = vunpack.c.l.b16 %v4381
  %v4670 = vunpack.c.l.b16 %v4382
  %v4671 = vunpack.c.l.b16 %v4383
  %v4672 = vunpack.c.l.b16 %v4384
  %v4673 = vunpack.c.l.b16 %v4385
  %v4674 = vunpack.c.l.b16 %v4386
  %v4675 = vunpack.c.l.b16 %v4387
  %v4676 = vunpack.c.l.b16 %v4388
  %v4677 = vunpack.c.l.b16 %v4389
  %v4678 = vunpack.c.l.b16 %v4390
  %v4679 = vunpack.c.l.b16 %v4391
  %v4680 = vunpack.c.l.b16 %v4392
  %v4681 = vunpack.c.l.b16 %v4393
  %v4682 = vunpack.c.l.b16 %v4394
  %v4683 = vunpack.c.l.b16 %v4395
  %v4684 = vunpack.c.l.b16 %v4396
  %v4685 = vunpack.c.l.b16 %v4397
  %v4686 = vunpack.c.l.b16 %v4398
  %v4687 = vunpack.c.l.b16 %v4399
  %v4688 = vunpack.c.l.b16 %v4400
  %v4689 = vunpack.c.l.b16 %v4401
  %v4690 = vunpack.c.l.b16 %v4402
  %v4691 = vunpack.c.l.b16 %v4403
  %v4692 = vunpack.c.l.b16 %v4404
  %v4693 = vunpack.c.l.b16 %v4405
  %v4694 = vunpack.c.l.b16 %v4406
  %v4695 = vunpack.c.l.b16 %v4407
  %v4696 = vunpack.c.l.b16 %v4408
  %v4697 = vunpack.c.l.b16 %v4409
  %v4698 = vunpack.c.l.b16 %v4410
  %v4699 = vunpack.c.l.b16 %v4411
  %v4700 = vunpack.c.l.b16 %v4412
  %v4701 = vunpack.c.l.b16 %v4413
  %v4702 = vunpack.c.l.b16 %v4414
  %v4703 = vunpack.c.l.b16 %v4415
  %v4704 = vunpack.c.l.b16 %v4416
  %v4705 = vunpack.c.l.b16 %v4417
  %v4706 = vunpack.c.l.b16 %v4418
  %v4707 = vunpack.c.l.b16 %v4419
  %v4708 = vunpack.c.l.b16 %v4420
  %v4709 = vunpack.c.l.b16 %v4421
  %v4710 = vunpack.c.l.b16 %v4422
  %v4711 = vunpack.c.l.b16 %v4423
  %v4712 = vunpack.c.l.b16 %v4424
  %v4713 = vunpack.c.l.b16 %v4425
  %v4714 = vunpack.c.l.b16 %v4426
  %v4715 = vunpack.c.l.b16 %v4427
  %v4716 = vunpack.c.l.b16 %v4428
  %v4717 = vunpack.c.l.b16 %v4429
  %v4718 = vunpack.c.l.b16 %v4430
  %v4719 = vunpack.c.l.b16 %v4431
  %v4720 = vunpack.c.l.b16 %v4432
  %v4721 = vunpack.c.l.b16 %v4433
  %v4722 = vunpack.c.l.b16 %v4434
  %v4723 = vunpack.c.l.b16 %v4435
  %v4724 = vunpack.c.l.b16 %v4436
  %v4725 = vunpack.c.l.b16 %v4437
  %v4726 = vunpack.c.l.b16 %v4438
  %v4727 = vunpack.c.l.b16 %v4439
  %v4728 = vunpack.c.l.b16 %v4440
  %v4729 = vunpack.c.l.b16 %v4441
  %v4730 = vunpack.c.l.b16 %v4442
  %v4731 = vunpack.c.l.b16 %v4443
  %v4732 = vunpack.c.l.b16 %v4444
  %v4733 = vunpack.c.l.b16 %v4445
  %v4734 = vunpack.c.l.b16 %v4446
  %v4735 = vunpack.c.l.b16 %v4447
  %v4736 = vunpack.c.l.b16 %v4448
  %v4737 = vunpack.c.l.b16 %v4449
  %v4738 = vunpack.c.l.b16 %v4450
  %v4739 = vpack.c.b16 %v4596, %v4595
  %v4740 = vpack.c.b16 %v4598, %v4597
  %v4741 = vpack.c.b16 %v4600, %v4599
  %v4742 = vpack.c.b16 %v4602, %v4601
  %v4743 = vpack.c.b16 %v4604, %v4603
  %v4744 = vpack.c.b16 %v4606, %v4605
  %v4745 = vpack.c.b16 %v4608, %v4607
  %v4746 = vpack.c.b16 %v4610, %v4609
  %v4747 = vpack.c.b16 %v4612, %v4611
  %v4748 = vpack.c.b16 %v4614, %v4613
  %v4749 = vpack.c.b16 %v4616, %v4615
  %v4750 = vpack.c.b16 %v4618, %v4617
  %v4751 = vpack.c.b16 %v4620, %v4619
  %v4752 = vpack.c.b16 %v4622, %v4621
  %v4753 = vpack.c.b16 %v4624, %v4623
  %v4754 = vpack.c.b16 %v4626, %v4625
  %v4755 = vpack.c.b16 %v4628, %v4627
  %v4756 = vpack.c.b16 %v4630, %v4629
  %v4757 = vpack.c.b16 %v4632, %v4631
  %v4758 = vpack.c.b16 %v4634, %v4633
  %v4759 = vpack.c.b16 %v4636, %v4635
  %v4760 = vpack.c.b16 %v4638, %v4637
  %v4761 = vpack.c.b16 %v4640, %v4639
  %v4762 = vpack.c.b16 %v4642, %v4641
  %v4763 = vpack.c.b16 %v4644, %v4643
  %v4764 = vpack.c.b16 %v4646, %v4645
  %v4765 = vpack.c.b16 %v4648, %v4647
  %v4766 = vpack.c.b16 %v4650, %v4649
  %v4767 = vpack.c.b16 %v4652, %v4651
  %v4768 = vpack.c.b16 %v4654, %v4653
  %v4769 = vpack.c.b16 %v4656, %v4655
  %v4770 = vpack.c.b16 %v4658, %v4657
  %v4771 = vpack.c.b16 %v4660, %v4659
  %v4772 = vpack.c.b16 %v4662, %v4661
  %v4773 = vpack.c.b16 %v4664, %v4663
  %v4774 = vpack.c.b16 %v4666, %v4665
  %v4775 = vpack.c.b16 %v4668, %v4667
  %v4776 = vpack.c.b16 %v4670, %v4669
  %v4777 = vpack.c.b16 %v4672, %v4671
  %v4778 = vpack.c.b16 %v4674, %v4673
  %v4779 = vpack.c.b16 %v4676, %v4675
  %v4780 = vpack.c.b16 %v4678, %v4677
  %v4781 = vpack.c.b16 %v4680, %v4679
  %v4782 = vpack.c.b16 %v4682, %v4681
  %v4783 = vpack.c.b16 %v4684, %v4683
  %v4784 = vpack.c.b16 %v4686, %v4685
  %v4785 = vpack.c.b16 %v4688, %v4687
  %v4786 = vpack.c.b16 %v4690, %v4689
  %v4787 = vpack.c.b16 %v4692, %v4691
  %v4788 = vpack.c.b16 %v4694, %v4693
  %v4789 = vpack.c.b16 %v4696, %v4695
  %v4790 = vpack.c.b16 %v4698, %v4697
  %v4791 = vpack.c.b16 %v4700, %v4699
  %v4792 = vpack.c.b16 %v4702, %v4701
  %v4793 = vpack.c.b16 %v4704, %v4703
  %v4794 = vpack.c.b16 %v4706, %v4705
  %v4795 = vpack.c.b16 %v4708, %v4707
  %v4796 = vpack.c.b16 %v4710, %v4709
  %v4797 = vpack.c.b16 %v4712, %v4711
  %v4798 = vpack.c.b16 %v4714, %v4713
  %v4799 = vpack.c.b16 %v4716, %v4715
  %v4800 = vpack.c.b16 %v4718, %v4717
  %v4801 = vpack.c.b16 %v4720, %v4719
  %v4802 = vpack.c.b16 %v4722, %v4721
  %v4803 = vpack.c.b16 %v4724, %v4723
  %v4804 = vpack.c.b16 %v4726, %v4725
  %v4805 = vpack.c.b16 %v4728, %v4727
  %v4806 = vpack.c.b16 %v4730, %v4729
  %v4807 = vpack.c.b16 %v4732, %v4731
  %v4808 = vpack.c.b16 %v4734, %v4733
  %v4809 = vpack.c.b16 %v4736, %v4735
  %v4810 = vpack.c.b16 %v4738, %v4737
  %v4812 = vsel %vm535, %v4739, 0
  %v4815 = vsel %vm535, %v4740, 0
  %v4818 = vsel %vm535, %v4741, 0
  %v4821 = vsel %vm535, %v4742, 0
  %v4824 = vsel %vm535, %v4743, 0
  %v4827 = vsel %vm535, %v4744, 0
  %v4830 = vsel %vm535, %v4745, 0
  %v4833 = vsel %vm535, %v4746, 0
  %v4836 = vsel %vm535, %v4747, 0
  %v4839 = vsel %vm535, %v4748, 0
  %v4842 = vsel %vm535, %v4749, 0
  %v4845 = vsel %vm535, %v4750, 0
  %v4848 = vsel %vm535, %v4751, 0
  %v4851 = vsel %vm535, %v4752, 0
  %v4854 = vsel %vm535, %v4753, 0
  %v4857 = vsel %vm535, %v4754, 0
  %v4860 = vsel %vm535, %v4755, 0
  %v4863 = vsel %vm535, %v4756, 0
  %v4866 = vsel %vm535, %v4757, 0
  %v4869 = vsel %vm535, %v4758, 0
  %v4872 = vsel %vm535, %v4759, 0
  %v4875 = vsel %vm535, %v4760, 0
  %v4878 = vsel %vm535, %v4761, 0
  %v4881 = vsel %vm535, %v4762, 0
  %v4884 = vsel %vm535, %v4763, 0
  %v4887 = vsel %vm535, %v4764, 0
  %v4890 = vsel %vm535, %v4765, 0
  %v4893 = vsel %vm535, %v4766, 0
  %v4896 = vsel %vm535, %v4767, 0
  %v4899 = vsel %vm535, %v4768, 0
  %v4902 = vsel %vm535, %v4769, 0
  %v4905 = vsel %vm535, %v4770, 0
  %v4908 = vsel %vm535, %v4771, 0
  %v4911 = vsel %vm535, %v4772, 0
  %v4914 = vsel %vm535, %v4773, 0
  %v4917 = vsel %vm535, %v4774, 0
  %v4920 = vsel %vm535, %v4775, 0
  %v4923 = vsel %vm535, %v4776, 0
  %v4926 = vsel %vm535, %v4777, 0
  %v4929 = vsel %vm535, %v4778, 0
  %v4932 = vsel %vm535, %v4779, 0
  %v4935 = vsel %vm535, %v4780, 0
  %v4938 = vsel %vm535, %v4781, 0
  %v4941 = vsel %vm535, %v4782, 0
  %v4944 = vsel %vm535, %v4783, 0
  %v4947 = vsel %vm535, %v4784, 0
  %v4950 = vsel %vm535, %v4785, 0
  %v4953 = vsel %vm535, %v4786, 0
  %v4956 = vsel %vm535, %v4787, 0
  %v4959 = vsel %vm535, %v4788, 0
  %v4962 = vsel %vm535, %v4789, 0
  %v4965 = vsel %vm535, %v4790, 0
  %v4968 = vsel %vm535, %v4791, 0
  %v4971 = vsel %vm535, %v4792, 0
  %v4974 = vsel %vm535, %v4793, 0
  %v4977 = vsel %vm535, %v4794, 0
  %v4980 = vsel %vm535, %v4795, 0
  %v4983 = vsel %vm535, %v4796, 0
  %v4986 = vsel %vm535, %v4797, 0
  %v4989 = vsel %vm535, %v4798, 0
  %v4992 = vsel %vm535, %v4799, 0
  %v4995 = vsel %vm535, %v4800, 0
  %v4998 = vsel %vm535, %v4801, 0
  %v5001 = vsel %vm535, %v4802, 0
  %v5004 = vsel %vm535, %v4803, 0
  %v5007 = vsel %vm535, %v4804, 0
  %v5010 = vsel %vm535, %v4805, 0
  %v5013 = vsel %vm535, %v4806, 0
  %v5016 = vsel %vm535, %v4807, 0
  %v5019 = vsel %vm535, %v4808, 0
  %v5022 = vsel %vm535, %v4809, 0
  %v5025 = vsel %vm535, %v4810, 0
  %5027 = vmatprep.subr.bf16.mxu0 0
  %5028 = vmatpush1.bf16.msra.mxu0 0
  %5029 = vmatprep.subr.bf16.mxu0 0
  %5030 = vmatpush1.bf16.msra.mxu0 0
  %5031 = vmatprep.subr.bf16.mxu0 0
  %5032 = vmatpush1.bf16.msra.mxu0 0
  %5033 = vmatprep.subr.bf16.mxu0 0
  %5034 = vmatpush1.bf16.msra.mxu0 0
  %5035 = vmatprep.subr.bf16.mxu0 0
  %5036 = vmatpush1.bf16.msra.mxu0 0
  %5037 = vmatprep.subr.bf16.mxu0 0
  %5038 = vmatpush1.bf16.msra.mxu0 0
  %5039 = vmatprep.subr.bf16.mxu0 0
  %5040 = vmatpush1.bf16.msra.mxu0 %v532
  %5041 = vmatprep.subr.bf16.mxu0 0
  %5042 = vmatpush1.bf16.msra.mxu0 %v531
  %5043 = vmatprep.subr.bf16.mxu0 0
  %5044 = vmatpush2.bf16.msra.mxu0 0
  %5045 = vmatprep.subr.bf16.mxu0 0
  %5046 = vmatpush2.bf16.msra.mxu0 0
  %5047 = vmatprep.subr.bf16.mxu0 0
  %5048 = vmatpush2.bf16.msra.mxu0 0
  %5049 = vmatprep.subr.bf16.mxu0 0
  %5050 = vmatpush2.bf16.msra.mxu0 0
  %5051 = vmatprep.subr.bf16.mxu0 0
  %5052 = vmatpush2.bf16.msra.mxu0 0
  %5053 = vmatprep.subr.bf16.mxu0 0
  %5054 = vmatpush2.bf16.msra.mxu0 0
  %5055 = vmatprep.subr.bf16.mxu0 0
  %5056 = vmatpush2.bf16.msra.mxu0 0
  %5057 = vmatprep.subr.bf16.mxu0 0
  %5058 = vmatpush2.bf16.msra.mxu0 0
  %5059 = vmatprep.mubr.bf16.mxu0 0
  %5060 = vmatmul.mubr.bf16.gmra.mxu0 %v4812
  %v5061 = vpop.f32.mrf.mxu0
  %v5062 = vadd.f32 0.0, %v5061
  %v5063 = vpop.f32.mrf.mxu0
  %v5064 = vpop.f32.mrf.mxu0
  %v5065 = vadd.f32 0.0, %v5064
  %v5066 = vpop.f32.mrf.mxu0
  %5067 = vmatprep.mubr.bf16.mxu0 0
  %5068 = vmatmul.mubr.bf16.gmra.mxu0 %v4815
  %v5069 = vpop.f32.mrf.mxu0
  %v5070 = vadd.f32 0.0, %v5069
  %v5071 = vpop.f32.mrf.mxu0
  %v5072 = vpop.f32.mrf.mxu0
  %v5073 = vadd.f32 0.0, %v5072
  %v5074 = vpop.f32.mrf.mxu0
  %5075 = vmatprep.mubr.bf16.mxu0 0
  %5076 = vmatmul.mubr.bf16.gmra.mxu0 %v4818
  %v5077 = vpop.f32.mrf.mxu0
  %v5078 = vadd.f32 0.0, %v5077
  %v5079 = vpop.f32.mrf.mxu0
  %v5080 = vpop.f32.mrf.mxu0
  %v5081 = vadd.f32 0.0, %v5080
  %v5082 = vpop.f32.mrf.mxu0
  %5083 = vmatprep.mubr.bf16.mxu0 0
  %5084 = vmatmul.mubr.bf16.gmra.mxu0 %v4821
  %v5085 = vpop.f32.mrf.mxu0
  %v5086 = vadd.f32 0.0, %v5085
  %v5087 = vpop.f32.mrf.mxu0
  %v5088 = vpop.f32.mrf.mxu0
  %v5089 = vadd.f32 0.0, %v5088
  %v5090 = vpop.f32.mrf.mxu0
  %5091 = vmatprep.mubr.bf16.mxu0 0
  %5092 = vmatmul.mubr.bf16.gmra.mxu0 %v4824
  %v5093 = vpop.f32.mrf.mxu0
  %v5094 = vadd.f32 0.0, %v5093
  %v5095 = vpop.f32.mrf.mxu0
  %v5096 = vpop.f32.mrf.mxu0
  %v5097 = vadd.f32 0.0, %v5096
  %v5098 = vpop.f32.mrf.mxu0
  %5099 = vmatprep.mubr.bf16.mxu0 0
  %5100 = vmatmul.mubr.bf16.gmra.mxu0 %v4827
  %v5101 = vpop.f32.mrf.mxu0
  %v5102 = vadd.f32 0.0, %v5101
  %v5103 = vpop.f32.mrf.mxu0
  %v5104 = vpop.f32.mrf.mxu0
  %v5105 = vadd.f32 0.0, %v5104
  %v5106 = vpop.f32.mrf.mxu0
  %5107 = vmatprep.mubr.bf16.mxu0 0
  %5108 = vmatmul.mubr.bf16.gmra.mxu0 %v4830
  %v5109 = vpop.f32.mrf.mxu0
  %v5110 = vadd.f32 0.0, %v5109
  %v5111 = vpop.f32.mrf.mxu0
  %v5112 = vpop.f32.mrf.mxu0
  %v5113 = vadd.f32 0.0, %v5112
  %v5114 = vpop.f32.mrf.mxu0
  %5115 = vmatprep.mubr.bf16.mxu0 0
  %5116 = vmatmul.mubr.bf16.gmra.mxu0 %v4833
  %v5117 = vpop.f32.mrf.mxu0
  %v5118 = vadd.f32 0.0, %v5117
  %v5119 = vpop.f32.mrf.mxu0
  %v5120 = vpop.f32.mrf.mxu0
  %v5121 = vadd.f32 0.0, %v5120
  %v5122 = vpop.f32.mrf.mxu0
  %5123 = vmatprep.mubr.bf16.mxu0 0
  %5124 = vmatmul.mubr.bf16.gmra.mxu0 %v4836
  %v5125 = vpop.f32.mrf.mxu0
  %v5126 = vadd.f32 0.0, %v5125
  %v5127 = vpop.f32.mrf.mxu0
  %v5128 = vpop.f32.mrf.mxu0
  %v5129 = vadd.f32 0.0, %v5128
  %v5130 = vpop.f32.mrf.mxu0
  %5131 = vmatprep.mubr.bf16.mxu0 0
  %5132 = vmatmul.mubr.bf16.gmra.mxu0 %v4839
  %v5133 = vpop.f32.mrf.mxu0
  %v5134 = vadd.f32 0.0, %v5133
  %v5135 = vpop.f32.mrf.mxu0
  %v5136 = vpop.f32.mrf.mxu0
  %v5137 = vadd.f32 0.0, %v5136
  %v5138 = vpop.f32.mrf.mxu0
  %5139 = vmatprep.mubr.bf16.mxu0 0
  %5140 = vmatmul.mubr.bf16.gmra.mxu0 %v4842
  %v5141 = vpop.f32.mrf.mxu0
  %v5142 = vadd.f32 0.0, %v5141
  %v5143 = vpop.f32.mrf.mxu0
  %v5144 = vpop.f32.mrf.mxu0
  %v5145 = vadd.f32 0.0, %v5144
  %v5146 = vpop.f32.mrf.mxu0
  %5147 = vmatprep.mubr.bf16.mxu0 0
  %5148 = vmatmul.mubr.bf16.gmra.mxu0 %v4845
  %v5149 = vpop.f32.mrf.mxu0
  %v5150 = vadd.f32 0.0, %v5149
  %v5151 = vpop.f32.mrf.mxu0
  %v5152 = vpop.f32.mrf.mxu0
  %v5153 = vadd.f32 0.0, %v5152
  %v5154 = vpop.f32.mrf.mxu0
  %5155 = vmatprep.mubr.bf16.mxu0 0
  %5156 = vmatmul.mubr.bf16.gmra.mxu0 %v4848
  %v5157 = vpop.f32.mrf.mxu0
  %v5158 = vadd.f32 0.0, %v5157
  %v5159 = vpop.f32.mrf.mxu0
  %v5160 = vpop.f32.mrf.mxu0
  %v5161 = vadd.f32 0.0, %v5160
  %v5162 = vpop.f32.mrf.mxu0
  %5163 = vmatprep.mubr.bf16.mxu0 0
  %5164 = vmatmul.mubr.bf16.gmra.mxu0 %v4851
  %v5165 = vpop.f32.mrf.mxu0
  %v5166 = vadd.f32 0.0, %v5165
  %v5167 = vpop.f32.mrf.mxu0
  %v5168 = vpop.f32.mrf.mxu0
  %v5169 = vadd.f32 0.0, %v5168
  %v5170 = vpop.f32.mrf.mxu0
  %5171 = vmatprep.mubr.bf16.mxu0 0
  %5172 = vmatmul.mubr.bf16.gmra.mxu0 %v4854
  %v5173 = vpop.f32.mrf.mxu0
  %v5174 = vadd.f32 0.0, %v5173
  %v5175 = vpop.f32.mrf.mxu0
  %v5176 = vpop.f32.mrf.mxu0
  %v5177 = vadd.f32 0.0, %v5176
  %v5178 = vpop.f32.mrf.mxu0
  %5179 = vmatprep.mubr.bf16.mxu0 0
  %5180 = vmatmul.mubr.bf16.gmra.mxu0 %v4857
  %v5181 = vpop.f32.mrf.mxu0
  %v5182 = vadd.f32 0.0, %v5181
  %v5183 = vpop.f32.mrf.mxu0
  %v5184 = vpop.f32.mrf.mxu0
  %v5185 = vadd.f32 0.0, %v5184
  %v5186 = vpop.f32.mrf.mxu0
  %5187 = vmatprep.mubr.bf16.mxu0 0
  %5188 = vmatmul.mubr.bf16.gmra.mxu0 %v4860
  %v5189 = vpop.f32.mrf.mxu0
  %v5190 = vadd.f32 0.0, %v5189
  %v5191 = vpop.f32.mrf.mxu0
  %v5192 = vpop.f32.mrf.mxu0
  %v5193 = vadd.f32 0.0, %v5192
  %v5194 = vpop.f32.mrf.mxu0
  %5195 = vmatprep.mubr.bf16.mxu0 0
  %5196 = vmatmul.mubr.bf16.gmra.mxu0 %v4863
  %v5197 = vpop.f32.mrf.mxu0
  %v5198 = vadd.f32 0.0, %v5197
  %v5199 = vpop.f32.mrf.mxu0
  %v5200 = vpop.f32.mrf.mxu0
  %v5201 = vadd.f32 0.0, %v5200
  %v5202 = vpop.f32.mrf.mxu0
  %5203 = vmatprep.mubr.bf16.mxu0 0
  %5204 = vmatmul.mubr.bf16.gmra.mxu0 %v4866
  %v5205 = vpop.f32.mrf.mxu0
  %v5206 = vadd.f32 0.0, %v5205
  %v5207 = vpop.f32.mrf.mxu0
  %v5208 = vpop.f32.mrf.mxu0
  %v5209 = vadd.f32 0.0, %v5208
  %v5210 = vpop.f32.mrf.mxu0
  %5211 = vmatprep.mubr.bf16.mxu0 0
  %5212 = vmatmul.mubr.bf16.gmra.mxu0 %v4869
  %v5213 = vpop.f32.mrf.mxu0
  %v5214 = vadd.f32 0.0, %v5213
  %v5215 = vpop.f32.mrf.mxu0
  %v5216 = vpop.f32.mrf.mxu0
  %v5217 = vadd.f32 0.0, %v5216
  %v5218 = vpop.f32.mrf.mxu0
  %5219 = vmatprep.mubr.bf16.mxu0 0
  %5220 = vmatmul.mubr.bf16.gmra.mxu0 %v4872
  %v5221 = vpop.f32.mrf.mxu0
  %v5222 = vadd.f32 0.0, %v5221
  %v5223 = vpop.f32.mrf.mxu0
  %v5224 = vpop.f32.mrf.mxu0
  %v5225 = vadd.f32 0.0, %v5224
  %v5226 = vpop.f32.mrf.mxu0
  %5227 = vmatprep.mubr.bf16.mxu0 0
  %5228 = vmatmul.mubr.bf16.gmra.mxu0 %v4875
  %v5229 = vpop.f32.mrf.mxu0
  %v5230 = vadd.f32 0.0, %v5229
  %v5231 = vpop.f32.mrf.mxu0
  %v5232 = vpop.f32.mrf.mxu0
  %v5233 = vadd.f32 0.0, %v5232
  %v5234 = vpop.f32.mrf.mxu0
  %5235 = vmatprep.mubr.bf16.mxu0 0
  %5236 = vmatmul.mubr.bf16.gmra.mxu0 %v4878
  %v5237 = vpop.f32.mrf.mxu0
  %v5238 = vadd.f32 0.0, %v5237
  %v5239 = vpop.f32.mrf.mxu0
  %v5240 = vpop.f32.mrf.mxu0
  %v5241 = vadd.f32 0.0, %v5240
  %v5242 = vpop.f32.mrf.mxu0
  %5243 = vmatprep.mubr.bf16.mxu0 0
  %5244 = vmatmul.mubr.bf16.gmra.mxu0 %v4881
  %v5245 = vpop.f32.mrf.mxu0
  %v5246 = vadd.f32 0.0, %v5245
  %v5247 = vpop.f32.mrf.mxu0
  %v5248 = vpop.f32.mrf.mxu0
  %v5249 = vadd.f32 0.0, %v5248
  %v5250 = vpop.f32.mrf.mxu0
  %5251 = vmatprep.mubr.bf16.mxu0 0
  %5252 = vmatmul.mubr.bf16.gmra.mxu0 %v4884
  %v5253 = vpop.f32.mrf.mxu0
  %v5254 = vadd.f32 0.0, %v5253
  %v5255 = vpop.f32.mrf.mxu0
  %v5256 = vpop.f32.mrf.mxu0
  %v5257 = vadd.f32 0.0, %v5256
  %v5258 = vpop.f32.mrf.mxu0
  %5259 = vmatprep.mubr.bf16.mxu0 0
  %5260 = vmatmul.mubr.bf16.gmra.mxu0 %v4887
  %v5261 = vpop.f32.mrf.mxu0
  %v5262 = vadd.f32 0.0, %v5261
  %v5263 = vpop.f32.mrf.mxu0
  %v5264 = vpop.f32.mrf.mxu0
  %v5265 = vadd.f32 0.0, %v5264
  %v5266 = vpop.f32.mrf.mxu0
  %5267 = vmatprep.mubr.bf16.mxu0 0
  %5268 = vmatmul.mubr.bf16.gmra.mxu0 %v4890
  %v5269 = vpop.f32.mrf.mxu0
  %v5270 = vadd.f32 0.0, %v5269
  %v5271 = vpop.f32.mrf.mxu0
  %v5272 = vpop.f32.mrf.mxu0
  %v5273 = vadd.f32 0.0, %v5272
  %v5274 = vpop.f32.mrf.mxu0
  %5275 = vmatprep.mubr.bf16.mxu0 0
  %5276 = vmatmul.mubr.bf16.gmra.mxu0 %v4893
  %v5277 = vpop.f32.mrf.mxu0
  %v5278 = vadd.f32 0.0, %v5277
  %v5279 = vpop.f32.mrf.mxu0
  %v5280 = vpop.f32.mrf.mxu0
  %v5281 = vadd.f32 0.0, %v5280
  %v5282 = vpop.f32.mrf.mxu0
  %5283 = vmatprep.mubr.bf16.mxu0 0
  %5284 = vmatmul.mubr.bf16.gmra.mxu0 %v4896
  %v5285 = vpop.f32.mrf.mxu0
  %v5286 = vadd.f32 0.0, %v5285
  %v5287 = vpop.f32.mrf.mxu0
  %v5288 = vpop.f32.mrf.mxu0
  %v5289 = vadd.f32 0.0, %v5288
  %v5290 = vpop.f32.mrf.mxu0
  %5291 = vmatprep.mubr.bf16.mxu0 0
  %5292 = vmatmul.mubr.bf16.gmra.mxu0 %v4899
  %v5293 = vpop.f32.mrf.mxu0
  %v5294 = vadd.f32 0.0, %v5293
  %v5295 = vpop.f32.mrf.mxu0
  %v5296 = vpop.f32.mrf.mxu0
  %v5297 = vadd.f32 0.0, %v5296
  %v5298 = vpop.f32.mrf.mxu0
  %5299 = vmatprep.mubr.bf16.mxu0 0
  %5300 = vmatmul.mubr.bf16.gmra.mxu0 %v4902
  %v5301 = vpop.f32.mrf.mxu0
  %v5302 = vadd.f32 0.0, %v5301
  %v5303 = vpop.f32.mrf.mxu0
  %v5304 = vpop.f32.mrf.mxu0
  %v5305 = vadd.f32 0.0, %v5304
  %v5306 = vpop.f32.mrf.mxu0
  %5307 = vmatprep.mubr.bf16.mxu0 0
  %5308 = vmatmul.mubr.bf16.gmra.mxu0 %v4905
  %v5309 = vpop.f32.mrf.mxu0
  %v5310 = vadd.f32 0.0, %v5309
  %v5311 = vpop.f32.mrf.mxu0
  %v5312 = vpop.f32.mrf.mxu0
  %v5313 = vadd.f32 0.0, %v5312
  %v5314 = vpop.f32.mrf.mxu0
  %5315 = vmatprep.mubr.bf16.mxu0 0
  %5316 = vmatmul.mubr.bf16.gmra.mxu0 %v4908
  %v5317 = vpop.f32.mrf.mxu0
  %v5318 = vadd.f32 0.0, %v5317
  %v5319 = vpop.f32.mrf.mxu0
  %v5320 = vpop.f32.mrf.mxu0
  %v5321 = vadd.f32 0.0, %v5320
  %v5322 = vpop.f32.mrf.mxu0
  %5323 = vmatprep.mubr.bf16.mxu0 0
  %5324 = vmatmul.mubr.bf16.gmra.mxu0 %v4911
  %v5325 = vpop.f32.mrf.mxu0
  %v5326 = vadd.f32 0.0, %v5325
  %v5327 = vpop.f32.mrf.mxu0
  %v5328 = vpop.f32.mrf.mxu0
  %v5329 = vadd.f32 0.0, %v5328
  %v5330 = vpop.f32.mrf.mxu0
  %5331 = vmatprep.mubr.bf16.mxu0 0
  %5332 = vmatmul.mubr.bf16.gmra.mxu0 %v4914
  %v5333 = vpop.f32.mrf.mxu0
  %v5334 = vadd.f32 0.0, %v5333
  %v5335 = vpop.f32.mrf.mxu0
  %v5336 = vpop.f32.mrf.mxu0
  %v5337 = vadd.f32 0.0, %v5336
  %v5338 = vpop.f32.mrf.mxu0
  %5339 = vmatprep.mubr.bf16.mxu0 0
  %5340 = vmatmul.mubr.bf16.gmra.mxu0 %v4917
  %v5341 = vpop.f32.mrf.mxu0
  %v5342 = vadd.f32 0.0, %v5341
  %v5343 = vpop.f32.mrf.mxu0
  %v5344 = vpop.f32.mrf.mxu0
  %v5345 = vadd.f32 0.0, %v5344
  %v5346 = vpop.f32.mrf.mxu0
  %5347 = vmatprep.mubr.bf16.mxu0 0
  %5348 = vmatmul.mubr.bf16.gmra.mxu0 %v4920
  %v5349 = vpop.f32.mrf.mxu0
  %v5350 = vadd.f32 0.0, %v5349
  %v5351 = vpop.f32.mrf.mxu0
  %v5352 = vpop.f32.mrf.mxu0
  %v5353 = vadd.f32 0.0, %v5352
  %v5354 = vpop.f32.mrf.mxu0
  %5355 = vmatprep.mubr.bf16.mxu0 0
  %5356 = vmatmul.mubr.bf16.gmra.mxu0 %v4923
  %v5357 = vpop.f32.mrf.mxu0
  %v5358 = vadd.f32 0.0, %v5357
  %v5359 = vpop.f32.mrf.mxu0
  %v5360 = vpop.f32.mrf.mxu0
  %v5361 = vadd.f32 0.0, %v5360
  %v5362 = vpop.f32.mrf.mxu0
  %5363 = vmatprep.mubr.bf16.mxu0 0
  %5364 = vmatmul.mubr.bf16.gmra.mxu0 %v4926
  %v5365 = vpop.f32.mrf.mxu0
  %v5366 = vadd.f32 0.0, %v5365
  %v5367 = vpop.f32.mrf.mxu0
  %v5368 = vpop.f32.mrf.mxu0
  %v5369 = vadd.f32 0.0, %v5368
  %v5370 = vpop.f32.mrf.mxu0
  %5371 = vmatprep.mubr.bf16.mxu0 0
  %5372 = vmatmul.mubr.bf16.gmra.mxu0 %v4929
  %v5373 = vpop.f32.mrf.mxu0
  %v5374 = vadd.f32 0.0, %v5373
  %v5375 = vpop.f32.mrf.mxu0
  %v5376 = vpop.f32.mrf.mxu0
  %v5377 = vadd.f32 0.0, %v5376
  %v5378 = vpop.f32.mrf.mxu0
  %5379 = vmatprep.mubr.bf16.mxu0 0
  %5380 = vmatmul.mubr.bf16.gmra.mxu0 %v4932
  %v5381 = vpop.f32.mrf.mxu0
  %v5382 = vadd.f32 0.0, %v5381
  %v5383 = vpop.f32.mrf.mxu0
  %v5384 = vpop.f32.mrf.mxu0
  %v5385 = vadd.f32 0.0, %v5384
  %v5386 = vpop.f32.mrf.mxu0
  %5387 = vmatprep.mubr.bf16.mxu0 0
  %5388 = vmatmul.mubr.bf16.gmra.mxu0 %v4935
  %v5389 = vpop.f32.mrf.mxu0
  %v5390 = vadd.f32 0.0, %v5389
  %v5391 = vpop.f32.mrf.mxu0
  %v5392 = vpop.f32.mrf.mxu0
  %v5393 = vadd.f32 0.0, %v5392
  %v5394 = vpop.f32.mrf.mxu0
  %5395 = vmatprep.mubr.bf16.mxu0 0
  %5396 = vmatmul.mubr.bf16.gmra.mxu0 %v4938
  %v5397 = vpop.f32.mrf.mxu0
  %v5398 = vadd.f32 0.0, %v5397
  %v5399 = vpop.f32.mrf.mxu0
  %v5400 = vpop.f32.mrf.mxu0
  %v5401 = vadd.f32 0.0, %v5400
  %v5402 = vpop.f32.mrf.mxu0
  %5403 = vmatprep.mubr.bf16.mxu0 0
  %5404 = vmatmul.mubr.bf16.gmra.mxu0 %v4941
  %v5405 = vpop.f32.mrf.mxu0
  %v5406 = vadd.f32 0.0, %v5405
  %v5407 = vpop.f32.mrf.mxu0
  %v5408 = vpop.f32.mrf.mxu0
  %v5409 = vadd.f32 0.0, %v5408
  %v5410 = vpop.f32.mrf.mxu0
  %5411 = vmatprep.mubr.bf16.mxu0 0
  %5412 = vmatmul.mubr.bf16.gmra.mxu0 %v4944
  %v5413 = vpop.f32.mrf.mxu0
  %v5414 = vadd.f32 0.0, %v5413
  %v5415 = vpop.f32.mrf.mxu0
  %v5416 = vpop.f32.mrf.mxu0
  %v5417 = vadd.f32 0.0, %v5416
  %v5418 = vpop.f32.mrf.mxu0
  %5419 = vmatprep.mubr.bf16.mxu0 0
  %5420 = vmatmul.mubr.bf16.gmra.mxu0 %v4947
  %v5421 = vpop.f32.mrf.mxu0
  %v5422 = vadd.f32 0.0, %v5421
  %v5423 = vpop.f32.mrf.mxu0
  %v5424 = vpop.f32.mrf.mxu0
  %v5425 = vadd.f32 0.0, %v5424
  %v5426 = vpop.f32.mrf.mxu0
  %5427 = vmatprep.mubr.bf16.mxu0 0
  %5428 = vmatmul.mubr.bf16.gmra.mxu0 %v4950
  %v5429 = vpop.f32.mrf.mxu0
  %v5430 = vadd.f32 0.0, %v5429
  %v5431 = vpop.f32.mrf.mxu0
  %v5432 = vpop.f32.mrf.mxu0
  %v5433 = vadd.f32 0.0, %v5432
  %v5434 = vpop.f32.mrf.mxu0
  %5435 = vmatprep.mubr.bf16.mxu0 0
  %5436 = vmatmul.mubr.bf16.gmra.mxu0 %v4953
  %v5437 = vpop.f32.mrf.mxu0
  %v5438 = vadd.f32 0.0, %v5437
  %v5439 = vpop.f32.mrf.mxu0
  %v5440 = vpop.f32.mrf.mxu0
  %v5441 = vadd.f32 0.0, %v5440
  %v5442 = vpop.f32.mrf.mxu0
  %5443 = vmatprep.mubr.bf16.mxu0 0
  %5444 = vmatmul.mubr.bf16.gmra.mxu0 %v4956
  %v5445 = vpop.f32.mrf.mxu0
  %v5446 = vadd.f32 0.0, %v5445
  %v5447 = vpop.f32.mrf.mxu0
  %v5448 = vpop.f32.mrf.mxu0
  %v5449 = vadd.f32 0.0, %v5448
  %v5450 = vpop.f32.mrf.mxu0
  %5451 = vmatprep.mubr.bf16.mxu0 0
  %5452 = vmatmul.mubr.bf16.gmra.mxu0 %v4959
  %v5453 = vpop.f32.mrf.mxu0
  %v5454 = vadd.f32 0.0, %v5453
  %v5455 = vpop.f32.mrf.mxu0
  %v5456 = vpop.f32.mrf.mxu0
  %v5457 = vadd.f32 0.0, %v5456
  %v5458 = vpop.f32.mrf.mxu0
  %5459 = vmatprep.mubr.bf16.mxu0 0
  %5460 = vmatmul.mubr.bf16.gmra.mxu0 %v4962
  %v5461 = vpop.f32.mrf.mxu0
  %v5462 = vadd.f32 0.0, %v5461
  %v5463 = vpop.f32.mrf.mxu0
  %v5464 = vpop.f32.mrf.mxu0
  %v5465 = vadd.f32 0.0, %v5464
  %v5466 = vpop.f32.mrf.mxu0
  %5467 = vmatprep.mubr.bf16.mxu0 0
  %5468 = vmatmul.mubr.bf16.gmra.mxu0 %v4965
  %v5469 = vpop.f32.mrf.mxu0
  %v5470 = vadd.f32 0.0, %v5469
  %v5471 = vpop.f32.mrf.mxu0
  %v5472 = vpop.f32.mrf.mxu0
  %v5473 = vadd.f32 0.0, %v5472
  %v5474 = vpop.f32.mrf.mxu0
  %5475 = vmatprep.mubr.bf16.mxu0 0
  %5476 = vmatmul.mubr.bf16.gmra.mxu0 %v4968
  %v5477 = vpop.f32.mrf.mxu0
  %v5478 = vadd.f32 0.0, %v5477
  %v5479 = vpop.f32.mrf.mxu0
  %v5480 = vpop.f32.mrf.mxu0
  %v5481 = vadd.f32 0.0, %v5480
  %v5482 = vpop.f32.mrf.mxu0
  %5483 = vmatprep.mubr.bf16.mxu0 0
  %5484 = vmatmul.mubr.bf16.gmra.mxu0 %v4971
  %v5485 = vpop.f32.mrf.mxu0
  %v5486 = vadd.f32 0.0, %v5485
  %v5487 = vpop.f32.mrf.mxu0
  %v5488 = vpop.f32.mrf.mxu0
  %v5489 = vadd.f32 0.0, %v5488
  %v5490 = vpop.f32.mrf.mxu0
  %5491 = vmatprep.mubr.bf16.mxu0 0
  %5492 = vmatmul.mubr.bf16.gmra.mxu0 %v4974
  %v5493 = vpop.f32.mrf.mxu0
  %v5494 = vadd.f32 0.0, %v5493
  %v5495 = vpop.f32.mrf.mxu0
  %v5496 = vpop.f32.mrf.mxu0
  %v5497 = vadd.f32 0.0, %v5496
  %v5498 = vpop.f32.mrf.mxu0
  %5499 = vmatprep.mubr.bf16.mxu0 0
  %5500 = vmatmul.mubr.bf16.gmra.mxu0 %v4977
  %v5501 = vpop.f32.mrf.mxu0
  %v5502 = vadd.f32 0.0, %v5501
  %v5503 = vpop.f32.mrf.mxu0
  %v5504 = vpop.f32.mrf.mxu0
  %v5505 = vadd.f32 0.0, %v5504
  %v5506 = vpop.f32.mrf.mxu0
  %5507 = vmatprep.mubr.bf16.mxu0 0
  %5508 = vmatmul.mubr.bf16.gmra.mxu0 %v4980
  %v5509 = vpop.f32.mrf.mxu0
  %v5510 = vadd.f32 0.0, %v5509
  %v5511 = vpop.f32.mrf.mxu0
  %v5512 = vpop.f32.mrf.mxu0
  %v5513 = vadd.f32 0.0, %v5512
  %v5514 = vpop.f32.mrf.mxu0
  %5515 = vmatprep.mubr.bf16.mxu0 0
  %5516 = vmatmul.mubr.bf16.gmra.mxu0 %v4983
  %v5517 = vpop.f32.mrf.mxu0
  %v5518 = vadd.f32 0.0, %v5517
  %v5519 = vpop.f32.mrf.mxu0
  %v5520 = vpop.f32.mrf.mxu0
  %v5521 = vadd.f32 0.0, %v5520
  %v5522 = vpop.f32.mrf.mxu0
  %5523 = vmatprep.mubr.bf16.mxu0 0
  %5524 = vmatmul.mubr.bf16.gmra.mxu0 %v4986
  %v5525 = vpop.f32.mrf.mxu0
  %v5526 = vadd.f32 0.0, %v5525
  %v5527 = vpop.f32.mrf.mxu0
  %v5528 = vpop.f32.mrf.mxu0
  %v5529 = vadd.f32 0.0, %v5528
  %v5530 = vpop.f32.mrf.mxu0
  %5531 = vmatprep.mubr.bf16.mxu0 0
  %5532 = vmatmul.mubr.bf16.gmra.mxu0 %v4989
  %v5533 = vpop.f32.mrf.mxu0
  %v5534 = vadd.f32 0.0, %v5533
  %v5535 = vpop.f32.mrf.mxu0
  %v5536 = vpop.f32.mrf.mxu0
  %v5537 = vadd.f32 0.0, %v5536
  %v5538 = vpop.f32.mrf.mxu0
  %5539 = vmatprep.mubr.bf16.mxu0 0
  %5540 = vmatmul.mubr.bf16.gmra.mxu0 %v4992
  %v5541 = vpop.f32.mrf.mxu0
  %v5542 = vadd.f32 0.0, %v5541
  %v5543 = vpop.f32.mrf.mxu0
  %v5544 = vpop.f32.mrf.mxu0
  %v5545 = vadd.f32 0.0, %v5544
  %v5546 = vpop.f32.mrf.mxu0
  %5547 = vmatprep.mubr.bf16.mxu0 0
  %5548 = vmatmul.mubr.bf16.gmra.mxu0 %v4995
  %v5549 = vpop.f32.mrf.mxu0
  %v5550 = vadd.f32 0.0, %v5549
  %v5551 = vpop.f32.mrf.mxu0
  %v5552 = vpop.f32.mrf.mxu0
  %v5553 = vadd.f32 0.0, %v5552
  %v5554 = vpop.f32.mrf.mxu0
  %5555 = vmatprep.mubr.bf16.mxu0 0
  %5556 = vmatmul.mubr.bf16.gmra.mxu0 %v4998
  %v5557 = vpop.f32.mrf.mxu0
  %v5558 = vadd.f32 0.0, %v5557
  %v5559 = vpop.f32.mrf.mxu0
  %v5560 = vpop.f32.mrf.mxu0
  %v5561 = vadd.f32 0.0, %v5560
  %v5562 = vpop.f32.mrf.mxu0
  %5563 = vmatprep.mubr.bf16.mxu0 0
  %5564 = vmatmul.mubr.bf16.gmra.mxu0 %v5001
  %v5565 = vpop.f32.mrf.mxu0
  %v5566 = vadd.f32 0.0, %v5565
  %v5567 = vpop.f32.mrf.mxu0
  %v5568 = vpop.f32.mrf.mxu0
  %v5569 = vadd.f32 0.0, %v5568
  %v5570 = vpop.f32.mrf.mxu0
  %5571 = vmatprep.mubr.bf16.mxu0 0
  %5572 = vmatmul.mubr.bf16.gmra.mxu0 %v5004
  %v5573 = vpop.f32.mrf.mxu0
  %v5574 = vadd.f32 0.0, %v5573
  %v5575 = vpop.f32.mrf.mxu0
  %v5576 = vpop.f32.mrf.mxu0
  %v5577 = vadd.f32 0.0, %v5576
  %v5578 = vpop.f32.mrf.mxu0
  %5579 = vmatprep.mubr.bf16.mxu0 0
  %5580 = vmatmul.mubr.bf16.gmra.mxu0 %v5007
  %v5581 = vpop.f32.mrf.mxu0
  %v5582 = vadd.f32 0.0, %v5581
  %v5583 = vpop.f32.mrf.mxu0
  %v5584 = vpop.f32.mrf.mxu0
  %v5585 = vadd.f32 0.0, %v5584
  %v5586 = vpop.f32.mrf.mxu0
  %5587 = vmatprep.mubr.bf16.mxu0 0
  %5588 = vmatmul.mubr.bf16.gmra.mxu0 %v5010
  %v5589 = vpop.f32.mrf.mxu0
  %v5590 = vadd.f32 0.0, %v5589
  %v5591 = vpop.f32.mrf.mxu0
  %v5592 = vpop.f32.mrf.mxu0
  %v5593 = vadd.f32 0.0, %v5592
  %v5594 = vpop.f32.mrf.mxu0
  %5595 = vmatprep.mubr.bf16.mxu0 0
  %5596 = vmatmul.mubr.bf16.gmra.mxu0 %v5013
  %v5597 = vpop.f32.mrf.mxu0
  %v5598 = vadd.f32 0.0, %v5597
  %v5599 = vpop.f32.mrf.mxu0
  %v5600 = vpop.f32.mrf.mxu0
  %v5601 = vadd.f32 0.0, %v5600
  %v5602 = vpop.f32.mrf.mxu0
  %5603 = vmatprep.mubr.bf16.mxu0 0
  %5604 = vmatmul.mubr.bf16.gmra.mxu0 %v5016
  %v5605 = vpop.f32.mrf.mxu0
  %v5606 = vadd.f32 0.0, %v5605
  %v5607 = vpop.f32.mrf.mxu0
  %v5608 = vpop.f32.mrf.mxu0
  %v5609 = vadd.f32 0.0, %v5608
  %v5610 = vpop.f32.mrf.mxu0
  %5611 = vmatprep.mubr.bf16.mxu0 0
  %5612 = vmatmul.mubr.bf16.gmra.mxu0 %v5019
  %v5613 = vpop.f32.mrf.mxu0
  %v5614 = vadd.f32 0.0, %v5613
  %v5615 = vpop.f32.mrf.mxu0
  %v5616 = vpop.f32.mrf.mxu0
  %v5617 = vadd.f32 0.0, %v5616
  %v5618 = vpop.f32.mrf.mxu0
  %5619 = vmatprep.mubr.bf16.mxu0 0
  %5620 = vmatmul.mubr.bf16.gmra.mxu0 %v5022
  %v5621 = vpop.f32.mrf.mxu0
  %v5622 = vadd.f32 0.0, %v5621
  %v5623 = vpop.f32.mrf.mxu0
  %v5624 = vpop.f32.mrf.mxu0
  %v5625 = vadd.f32 0.0, %v5624
  %v5626 = vpop.f32.mrf.mxu0
  %5627 = vmatprep.mubr.bf16.mxu0 0
  %5628 = vmatmul.mubr.bf16.gmra.mxu0 %v5025
  %v5629 = vpop.f32.mrf.mxu0
  %v5630 = vadd.f32 0.0, %v5629
  %v5631 = vpop.f32.mrf.mxu0
  %v5632 = vpop.f32.mrf.mxu0
  %v5633 = vadd.f32 0.0, %v5632
  %v5634 = vpop.f32.mrf.mxu0
  %5635 = vdwg.mxu0
  %v5636 = vmax.f32 %v4163, %v5062
  %v5637 = vmax.f32 %v4164, %v5065
  %v5638 = vmax.f32 %v4165, %v5070
  %v5639 = vmax.f32 %v4166, %v5073
  %v5640 = vmax.f32 %v4167, %v5078
  %v5641 = vmax.f32 %v4168, %v5081
  %v5642 = vmax.f32 %v4169, %v5086
  %v5643 = vmax.f32 %v4170, %v5089
  %v5644 = vmax.f32 %v4171, %v5094
  %v5645 = vmax.f32 %v4172, %v5097
  %v5646 = vmax.f32 %v4173, %v5102
  %v5647 = vmax.f32 %v4174, %v5105
  %v5648 = vmax.f32 %v4175, %v5110
  %v5649 = vmax.f32 %v4176, %v5113
  %v5650 = vmax.f32 %v4177, %v5118
  %v5651 = vmax.f32 %v4178, %v5121
  %v5652 = vmax.f32 %v4179, %v5126
  %v5653 = vmax.f32 %v4180, %v5129
  %v5654 = vmax.f32 %v4181, %v5134
  %v5655 = vmax.f32 %v4182, %v5137
  %v5656 = vmax.f32 %v4183, %v5142
  %v5657 = vmax.f32 %v4184, %v5145
  %v5658 = vmax.f32 %v4185, %v5150
  %v5659 = vmax.f32 %v4186, %v5153
  %v5660 = vmax.f32 %v4187, %v5158
  %v5661 = vmax.f32 %v4188, %v5161
  %v5662 = vmax.f32 %v4189, %v5166
  %v5663 = vmax.f32 %v4190, %v5169
  %v5664 = vmax.f32 %v4191, %v5174
  %v5665 = vmax.f32 %v4192, %v5177
  %v5666 = vmax.f32 %v4193, %v5182
  %v5667 = vmax.f32 %v4194, %v5185
  %v5668 = vmax.f32 %v4195, %v5190
  %v5669 = vmax.f32 %v4196, %v5193
  %v5670 = vmax.f32 %v4197, %v5198
  %v5671 = vmax.f32 %v4198, %v5201
  %v5672 = vmax.f32 %v4199, %v5206
  %v5673 = vmax.f32 %v4200, %v5209
  %v5674 = vmax.f32 %v4201, %v5214
  %v5675 = vmax.f32 %v4202, %v5217
  %v5676 = vmax.f32 %v4203, %v5222
  %v5677 = vmax.f32 %v4204, %v5225
  %v5678 = vmax.f32 %v4205, %v5230
  %v5679 = vmax.f32 %v4206, %v5233
  %v5680 = vmax.f32 %v4207, %v5238
  %v5681 = vmax.f32 %v4208, %v5241
  %v5682 = vmax.f32 %v4209, %v5246
  %v5683 = vmax.f32 %v4210, %v5249
  %v5684 = vmax.f32 %v4211, %v5254
  %v5685 = vmax.f32 %v4212, %v5257
  %v5686 = vmax.f32 %v4213, %v5262
  %v5687 = vmax.f32 %v4214, %v5265
  %v5688 = vmax.f32 %v4215, %v5270
  %v5689 = vmax.f32 %v4216, %v5273
  %v5690 = vmax.f32 %v4217, %v5278
  %v5691 = vmax.f32 %v4218, %v5281
  %v5692 = vmax.f32 %v4219, %v5286
  %v5693 = vmax.f32 %v4220, %v5289
  %v5694 = vmax.f32 %v4221, %v5294
  %v5695 = vmax.f32 %v4222, %v5297
  %v5696 = vmax.f32 %v4223, %v5302
  %v5697 = vmax.f32 %v4224, %v5305
  %v5698 = vmax.f32 %v4225, %v5310
  %v5699 = vmax.f32 %v4226, %v5313
  %v5700 = vmax.f32 %v4227, %v5318
  %v5701 = vmax.f32 %v4228, %v5321
  %v5702 = vmax.f32 %v4229, %v5326
  %v5703 = vmax.f32 %v4230, %v5329
  %v5704 = vmax.f32 %v4231, %v5334
  %v5705 = vmax.f32 %v4232, %v5337
  %v5706 = vmax.f32 %v4233, %v5342
  %v5707 = vmax.f32 %v4234, %v5345
  %v5708 = vmax.f32 %v4235, %v5350
  %v5709 = vmax.f32 %v4236, %v5353
  %v5710 = vmax.f32 %v4237, %v5358
  %v5711 = vmax.f32 %v4238, %v5361
  %v5712 = vmax.f32 %v4239, %v5366
  %v5713 = vmax.f32 %v4240, %v5369
  %v5714 = vmax.f32 %v4241, %v5374
  %v5715 = vmax.f32 %v4242, %v5377
  %v5716 = vmax.f32 %v4243, %v5382
  %v5717 = vmax.f32 %v4244, %v5385
  %v5718 = vmax.f32 %v4245, %v5390
  %v5719 = vmax.f32 %v4246, %v5393
  %v5720 = vmax.f32 %v4247, %v5398
  %v5721 = vmax.f32 %v4248, %v5401
  %v5722 = vmax.f32 %v4249, %v5406
  %v5723 = vmax.f32 %v4250, %v5409
  %v5724 = vmax.f32 %v4251, %v5414
  %v5725 = vmax.f32 %v4252, %v5417
  %v5726 = vmax.f32 %v4253, %v5422
  %v5727 = vmax.f32 %v4254, %v5425
  %v5728 = vmax.f32 %v4255, %v5430
  %v5729 = vmax.f32 %v4256, %v5433
  %v5730 = vmax.f32 %v4257, %v5438
  %v5731 = vmax.f32 %v4258, %v5441
  %v5732 = vmax.f32 %v4259, %v5446
  %v5733 = vmax.f32 %v4260, %v5449
  %v5734 = vmax.f32 %v4261, %v5454
  %v5735 = vmax.f32 %v4262, %v5457
  %v5736 = vmax.f32 %v4263, %v5462
  %v5737 = vmax.f32 %v4264, %v5465
  %v5738 = vmax.f32 %v4265, %v5470
  %v5739 = vmax.f32 %v4266, %v5473
  %v5740 = vmax.f32 %v4267, %v5478
  %v5741 = vmax.f32 %v4268, %v5481
  %v5742 = vmax.f32 %v4269, %v5486
  %v5743 = vmax.f32 %v4270, %v5489
  %v5744 = vmax.f32 %v4271, %v5494
  %v5745 = vmax.f32 %v4272, %v5497
  %v5746 = vmax.f32 %v4273, %v5502
  %v5747 = vmax.f32 %v4274, %v5505
  %v5748 = vmax.f32 %v4275, %v5510
  %v5749 = vmax.f32 %v4276, %v5513
  %v5750 = vmax.f32 %v4277, %v5518
  %v5751 = vmax.f32 %v4278, %v5521
  %v5752 = vmax.f32 %v4279, %v5526
  %v5753 = vmax.f32 %v4280, %v5529
  %v5754 = vmax.f32 %v4281, %v5534
  %v5755 = vmax.f32 %v4282, %v5537
  %v5756 = vmax.f32 %v4283, %v5542
  %v5757 = vmax.f32 %v4284, %v5545
  %v5758 = vmax.f32 %v4285, %v5550
  %v5759 = vmax.f32 %v4286, %v5553
  %v5760 = vmax.f32 %v4287, %v5558
  %v5761 = vmax.f32 %v4288, %v5561
  %v5762 = vmax.f32 %v4289, %v5566
  %v5763 = vmax.f32 %v4290, %v5569
  %v5764 = vmax.f32 %v4291, %v5574
  %v5765 = vmax.f32 %v4292, %v5577
  %v5766 = vmax.f32 %v4293, %v5582
  %v5767 = vmax.f32 %v4294, %v5585
  %v5768 = vmax.f32 %v4295, %v5590
  %v5769 = vmax.f32 %v4296, %v5593
  %v5770 = vmax.f32 %v4297, %v5598
  %v5771 = vmax.f32 %v4298, %v5601
  %v5772 = vmax.f32 %v4299, %v5606
  %v5773 = vmax.f32 %v4300, %v5609
  %v5774 = vmax.f32 %v4301, %v5614
  %v5775 = vmax.f32 %v4302, %v5617
  %v5776 = vmax.f32 %v4303, %v5622
  %v5777 = vmax.f32 %v4304, %v5625
  %v5778 = vmax.f32 %v4305, %v5630
  %v5779 = vmax.f32 %v4306, %v5633
  %v5780 = vld [vmem:[%s2] sm:$0x1]
  %v5782 = vlaneseq
  %v5783 = vshrl.u32 %v5782, 7
  %v5784 = vsub.s32 0, %v5783
  %v5785 = vrot.slane %v5780, %v5784
  %v5787 = vadd.f32 %v5636, %v5785
  %v5788 = vadd.f32 %v5637, %v5785
  %v5789 = vadd.f32 %v5638, %v5785
  %v5790 = vadd.f32 %v5639, %v5785
  %v5791 = vadd.f32 %v5640, %v5785
  %v5792 = vadd.f32 %v5641, %v5785
  %v5793 = vadd.f32 %v5642, %v5785
  %v5794 = vadd.f32 %v5643, %v5785
  %v5795 = vadd.f32 %v5644, %v5785
  %v5796 = vadd.f32 %v5645, %v5785
  %v5797 = vadd.f32 %v5646, %v5785
  %v5798 = vadd.f32 %v5647, %v5785
  %v5799 = vadd.f32 %v5648, %v5785
  %v5800 = vadd.f32 %v5649, %v5785
  %v5801 = vadd.f32 %v5650, %v5785
  %v5802 = vadd.f32 %v5651, %v5785
  %v5803 = vadd.f32 %v5652, %v5785
  %v5804 = vadd.f32 %v5653, %v5785
  %v5805 = vadd.f32 %v5654, %v5785
  %v5806 = vadd.f32 %v5655, %v5785
  %v5807 = vadd.f32 %v5656, %v5785
  %v5808 = vadd.f32 %v5657, %v5785
  %v5809 = vadd.f32 %v5658, %v5785
  %v5810 = vadd.f32 %v5659, %v5785
  %v5811 = vadd.f32 %v5660, %v5785
  %v5812 = vadd.f32 %v5661, %v5785
  %v5813 = vadd.f32 %v5662, %v5785
  %v5814 = vadd.f32 %v5663, %v5785
  %v5815 = vadd.f32 %v5664, %v5785
  %v5816 = vadd.f32 %v5665, %v5785
  %v5817 = vadd.f32 %v5666, %v5785
  %v5818 = vadd.f32 %v5667, %v5785
  %v5819 = vadd.f32 %v5668, %v5785
  %v5820 = vadd.f32 %v5669, %v5785
  %v5821 = vadd.f32 %v5670, %v5785
  %v5822 = vadd.f32 %v5671, %v5785
  %v5823 = vadd.f32 %v5672, %v5785
  %v5824 = vadd.f32 %v5673, %v5785
  %v5825 = vadd.f32 %v5674, %v5785
  %v5826 = vadd.f32 %v5675, %v5785
  %v5827 = vadd.f32 %v5676, %v5785
  %v5828 = vadd.f32 %v5677, %v5785
  %v5829 = vadd.f32 %v5678, %v5785
  %v5830 = vadd.f32 %v5679, %v5785
  %v5831 = vadd.f32 %v5680, %v5785
  %v5832 = vadd.f32 %v5681, %v5785
  %v5833 = vadd.f32 %v5682, %v5785
  %v5834 = vadd.f32 %v5683, %v5785
  %v5835 = vadd.f32 %v5684, %v5785
  %v5836 = vadd.f32 %v5685, %v5785
  %v5837 = vadd.f32 %v5686, %v5785
  %v5838 = vadd.f32 %v5687, %v5785
  %v5839 = vadd.f32 %v5688, %v5785
  %v5840 = vadd.f32 %v5689, %v5785
  %v5841 = vadd.f32 %v5690, %v5785
  %v5842 = vadd.f32 %v5691, %v5785
  %v5843 = vadd.f32 %v5692, %v5785
  %v5844 = vadd.f32 %v5693, %v5785
  %v5845 = vadd.f32 %v5694, %v5785
  %v5846 = vadd.f32 %v5695, %v5785
  %v5847 = vadd.f32 %v5696, %v5785
  %v5848 = vadd.f32 %v5697, %v5785
  %v5849 = vadd.f32 %v5698, %v5785
  %v5850 = vadd.f32 %v5699, %v5785
  %v5851 = vadd.f32 %v5700, %v5785
  %v5852 = vadd.f32 %v5701, %v5785
  %v5853 = vadd.f32 %v5702, %v5785
  %v5854 = vadd.f32 %v5703, %v5785
  %v5855 = vadd.f32 %v5704, %v5785
  %v5856 = vadd.f32 %v5705, %v5785
  %v5857 = vadd.f32 %v5706, %v5785
  %v5858 = vadd.f32 %v5707, %v5785
  %v5859 = vadd.f32 %v5708, %v5785
  %v5860 = vadd.f32 %v5709, %v5785
  %v5861 = vadd.f32 %v5710, %v5785
  %v5862 = vadd.f32 %v5711, %v5785
  %v5863 = vadd.f32 %v5712, %v5785
  %v5864 = vadd.f32 %v5713, %v5785
  %v5865 = vadd.f32 %v5714, %v5785
  %v5866 = vadd.f32 %v5715, %v5785
  %v5867 = vadd.f32 %v5716, %v5785
  %v5868 = vadd.f32 %v5717, %v5785
  %v5869 = vadd.f32 %v5718, %v5785
  %v5870 = vadd.f32 %v5719, %v5785
  %v5871 = vadd.f32 %v5720, %v5785
  %v5872 = vadd.f32 %v5721, %v5785
  %v5873 = vadd.f32 %v5722, %v5785
  %v5874 = vadd.f32 %v5723, %v5785
  %v5875 = vadd.f32 %v5724, %v5785
  %v5876 = vadd.f32 %v5725, %v5785
  %v5877 = vadd.f32 %v5726, %v5785
  %v5878 = vadd.f32 %v5727, %v5785
  %v5879 = vadd.f32 %v5728, %v5785
  %v5880 = vadd.f32 %v5729, %v5785
  %v5881 = vadd.f32 %v5730, %v5785
  %v5882 = vadd.f32 %v5731, %v5785
  %v5883 = vadd.f32 %v5732, %v5785
  %v5884 = vadd.f32 %v5733, %v5785
  %v5885 = vadd.f32 %v5734, %v5785
  %v5886 = vadd.f32 %v5735, %v5785
  %v5887 = vadd.f32 %v5736, %v5785
  %v5888 = vadd.f32 %v5737, %v5785
  %v5889 = vadd.f32 %v5738, %v5785
  %v5890 = vadd.f32 %v5739, %v5785
  %v5891 = vadd.f32 %v5740, %v5785
  %v5892 = vadd.f32 %v5741, %v5785
  %v5893 = vadd.f32 %v5742, %v5785
  %v5894 = vadd.f32 %v5743, %v5785
  %v5895 = vadd.f32 %v5744, %v5785
  %v5896 = vadd.f32 %v5745, %v5785
  %v5897 = vadd.f32 %v5746, %v5785
  %v5898 = vadd.f32 %v5747, %v5785
  %v5899 = vadd.f32 %v5748, %v5785
  %v5900 = vadd.f32 %v5749, %v5785
  %v5901 = vadd.f32 %v5750, %v5785
  %v5902 = vadd.f32 %v5751, %v5785
  %v5903 = vadd.f32 %v5752, %v5785
  %v5904 = vadd.f32 %v5753, %v5785
  %v5905 = vadd.f32 %v5754, %v5785
  %v5906 = vadd.f32 %v5755, %v5785
  %v5907 = vadd.f32 %v5756, %v5785
  %v5908 = vadd.f32 %v5757, %v5785
  %v5909 = vadd.f32 %v5758, %v5785
  %v5910 = vadd.f32 %v5759, %v5785
  %v5911 = vadd.f32 %v5760, %v5785
  %v5912 = vadd.f32 %v5761, %v5785
  %v5913 = vadd.f32 %v5762, %v5785
  %v5914 = vadd.f32 %v5763, %v5785
  %v5915 = vadd.f32 %v5764, %v5785
  %v5916 = vadd.f32 %v5765, %v5785
  %v5917 = vadd.f32 %v5766, %v5785
  %v5918 = vadd.f32 %v5767, %v5785
  %v5919 = vadd.f32 %v5768, %v5785
  %v5920 = vadd.f32 %v5769, %v5785
  %v5921 = vadd.f32 %v5770, %v5785
  %v5922 = vadd.f32 %v5771, %v5785
  %v5923 = vadd.f32 %v5772, %v5785
  %v5924 = vadd.f32 %v5773, %v5785
  %v5925 = vadd.f32 %v5774, %v5785
  %v5926 = vadd.f32 %v5775, %v5785
  %v5927 = vadd.f32 %v5776, %v5785
  %v5928 = vadd.f32 %v5777, %v5785
  %v5929 = vadd.f32 %v5778, %v5785
  %v5930 = vadd.f32 %v5779, %v5785
  %v5931 = vmax.f32 %v5787, 0.0
  %v5932 = vmax.f32 %v5788, 0.0
  %v5933 = vmax.f32 %v5789, 0.0
  %v5934 = vmax.f32 %v5790, 0.0
  %v5935 = vmax.f32 %v5791, 0.0
  %v5936 = vmax.f32 %v5792, 0.0
  %v5937 = vmax.f32 %v5793, 0.0
  %v5938 = vmax.f32 %v5794, 0.0
  %v5939 = vmax.f32 %v5795, 0.0
  %v5940 = vmax.f32 %v5796, 0.0
  %v5941 = vmax.f32 %v5797, 0.0
  %v5942 = vmax.f32 %v5798, 0.0
  %v5943 = vmax.f32 %v5799, 0.0
  %v5944 = vmax.f32 %v5800, 0.0
  %v5945 = vmax.f32 %v5801, 0.0
  %v5946 = vmax.f32 %v5802, 0.0
  %v5947 = vmax.f32 %v5803, 0.0
  %v5948 = vmax.f32 %v5804, 0.0
  %v5949 = vmax.f32 %v5805, 0.0
  %v5950 = vmax.f32 %v5806, 0.0
  %v5951 = vmax.f32 %v5807, 0.0
  %v5952 = vmax.f32 %v5808, 0.0
  %v5953 = vmax.f32 %v5809, 0.0
  %v5954 = vmax.f32 %v5810, 0.0
  %v5955 = vmax.f32 %v5811, 0.0
  %v5956 = vmax.f32 %v5812, 0.0
  %v5957 = vmax.f32 %v5813, 0.0
  %v5958 = vmax.f32 %v5814, 0.0
  %v5959 = vmax.f32 %v5815, 0.0
  %v5960 = vmax.f32 %v5816, 0.0
  %v5961 = vmax.f32 %v5817, 0.0
  %v5962 = vmax.f32 %v5818, 0.0
  %v5963 = vmax.f32 %v5819, 0.0
  %v5964 = vmax.f32 %v5820, 0.0
  %v5965 = vmax.f32 %v5821, 0.0
  %v5966 = vmax.f32 %v5822, 0.0
  %v5967 = vmax.f32 %v5823, 0.0
  %v5968 = vmax.f32 %v5824, 0.0
  %v5969 = vmax.f32 %v5825, 0.0
  %v5970 = vmax.f32 %v5826, 0.0
  %v5971 = vmax.f32 %v5827, 0.0
  %v5972 = vmax.f32 %v5828, 0.0
  %v5973 = vmax.f32 %v5829, 0.0
  %v5974 = vmax.f32 %v5830, 0.0
  %v5975 = vmax.f32 %v5831, 0.0
  %v5976 = vmax.f32 %v5832, 0.0
  %v5977 = vmax.f32 %v5833, 0.0
  %v5978 = vmax.f32 %v5834, 0.0
  %v5979 = vmax.f32 %v5835, 0.0
  %v5980 = vmax.f32 %v5836, 0.0
  %v5981 = vmax.f32 %v5837, 0.0
  %v5982 = vmax.f32 %v5838, 0.0
  %v5983 = vmax.f32 %v5839, 0.0
  %v5984 = vmax.f32 %v5840, 0.0
  %v5985 = vmax.f32 %v5841, 0.0
  %v5986 = vmax.f32 %v5842, 0.0
  %v5987 = vmax.f32 %v5843, 0.0
  %v5988 = vmax.f32 %v5844, 0.0
  %v5989 = vmax.f32 %v5845, 0.0
  %v5990 = vmax.f32 %v5846, 0.0
  %v5991 = vmax.f32 %v5847, 0.0
  %v5992 = vmax.f32 %v5848, 0.0
  %v5993 = vmax.f32 %v5849, 0.0
  %v5994 = vmax.f32 %v5850, 0.0
  %v5995 = vmax.f32 %v5851, 0.0
  %v5996 = vmax.f32 %v5852, 0.0
  %v5997 = vmax.f32 %v5853, 0.0
  %v5998 = vmax.f32 %v5854, 0.0
  %v5999 = vmax.f32 %v5855, 0.0
  %v6000 = vmax.f32 %v5856, 0.0
  %v6001 = vmax.f32 %v5857, 0.0
  %v6002 = vmax.f32 %v5858, 0.0
  %v6003 = vmax.f32 %v5859, 0.0
  %v6004 = vmax.f32 %v5860, 0.0
  %v6005 = vmax.f32 %v5861, 0.0
  %v6006 = vmax.f32 %v5862, 0.0
  %v6007 = vmax.f32 %v5863, 0.0
  %v6008 = vmax.f32 %v5864, 0.0
  %v6009 = vmax.f32 %v5865, 0.0
  %v6010 = vmax.f32 %v5866, 0.0
  %v6011 = vmax.f32 %v5867, 0.0
  %v6012 = vmax.f32 %v5868, 0.0
  %v6013 = vmax.f32 %v5869, 0.0
  %v6014 = vmax.f32 %v5870, 0.0
  %v6015 = vmax.f32 %v5871, 0.0
  %v6016 = vmax.f32 %v5872, 0.0
  %v6017 = vmax.f32 %v5873, 0.0
  %v6018 = vmax.f32 %v5874, 0.0
  %v6019 = vmax.f32 %v5875, 0.0
  %v6020 = vmax.f32 %v5876, 0.0
  %v6021 = vmax.f32 %v5877, 0.0
  %v6022 = vmax.f32 %v5878, 0.0
  %v6023 = vmax.f32 %v5879, 0.0
  %v6024 = vmax.f32 %v5880, 0.0
  %v6025 = vmax.f32 %v5881, 0.0
  %v6026 = vmax.f32 %v5882, 0.0
  %v6027 = vmax.f32 %v5883, 0.0
  %v6028 = vmax.f32 %v5884, 0.0
  %v6029 = vmax.f32 %v5885, 0.0
  %v6030 = vmax.f32 %v5886, 0.0
  %v6031 = vmax.f32 %v5887, 0.0
  %v6032 = vmax.f32 %v5888, 0.0
  %v6033 = vmax.f32 %v5889, 0.0
  %v6034 = vmax.f32 %v5890, 0.0
  %v6035 = vmax.f32 %v5891, 0.0
  %v6036 = vmax.f32 %v5892, 0.0
  %v6037 = vmax.f32 %v5893, 0.0
  %v6038 = vmax.f32 %v5894, 0.0
  %v6039 = vmax.f32 %v5895, 0.0
  %v6040 = vmax.f32 %v5896, 0.0
  %v6041 = vmax.f32 %v5897, 0.0
  %v6042 = vmax.f32 %v5898, 0.0
  %v6043 = vmax.f32 %v5899, 0.0
  %v6044 = vmax.f32 %v5900, 0.0
  %v6045 = vmax.f32 %v5901, 0.0
  %v6046 = vmax.f32 %v5902, 0.0
  %v6047 = vmax.f32 %v5903, 0.0
  %v6048 = vmax.f32 %v5904, 0.0
  %v6049 = vmax.f32 %v5905, 0.0
  %v6050 = vmax.f32 %v5906, 0.0
  %v6051 = vmax.f32 %v5907, 0.0
  %v6052 = vmax.f32 %v5908, 0.0
  %v6053 = vmax.f32 %v5909, 0.0
  %v6054 = vmax.f32 %v5910, 0.0
  %v6055 = vmax.f32 %v5911, 0.0
  %v6056 = vmax.f32 %v5912, 0.0
  %v6057 = vmax.f32 %v5913, 0.0
  %v6058 = vmax.f32 %v5914, 0.0
  %v6059 = vmax.f32 %v5915, 0.0
  %v6060 = vmax.f32 %v5916, 0.0
  %v6061 = vmax.f32 %v5917, 0.0
  %v6062 = vmax.f32 %v5918, 0.0
  %v6063 = vmax.f32 %v5919, 0.0
  %v6064 = vmax.f32 %v5920, 0.0
  %v6065 = vmax.f32 %v5921, 0.0
  %v6066 = vmax.f32 %v5922, 0.0
  %v6067 = vmax.f32 %v5923, 0.0
  %v6068 = vmax.f32 %v5924, 0.0
  %v6069 = vmax.f32 %v5925, 0.0
  %v6070 = vmax.f32 %v5926, 0.0
  %v6071 = vmax.f32 %v5927, 0.0
  %v6072 = vmax.f32 %v5928, 0.0
  %v6073 = vmax.f32 %v5929, 0.0
  %v6074 = vmax.f32 %v5930, 0.0
  %v6075 = vpack.c.bf16 %v5932, %v5931
  %v6076 = vpack.c.bf16 %v5934, %v5933
  %v6077 = vpack.c.bf16 %v5936, %v5935
  %v6078 = vpack.c.bf16 %v5938, %v5937
  %v6079 = vpack.c.bf16 %v5940, %v5939
  %v6080 = vpack.c.bf16 %v5942, %v5941
  %v6081 = vpack.c.bf16 %v5944, %v5943
  %v6082 = vpack.c.bf16 %v5946, %v5945
  %v6083 = vpack.c.bf16 %v5948, %v5947
  %v6084 = vpack.c.bf16 %v5950, %v5949
  %v6085 = vpack.c.bf16 %v5952, %v5951
  %v6086 = vpack.c.bf16 %v5954, %v5953
  %v6087 = vpack.c.bf16 %v5956, %v5955
  %v6088 = vpack.c.bf16 %v5958, %v5957
  %v6089 = vpack.c.bf16 %v5960, %v5959
  %v6090 = vpack.c.bf16 %v5962, %v5961
  %v6091 = vpack.c.bf16 %v5964, %v5963
  %v6092 = vpack.c.bf16 %v5966, %v5965
  %v6093 = vpack.c.bf16 %v5968, %v5967
  %v6094 = vpack.c.bf16 %v5970, %v5969
  %v6095 = vpack.c.bf16 %v5972, %v5971
  %v6096 = vpack.c.bf16 %v5974, %v5973
  %v6097 = vpack.c.bf16 %v5976, %v5975
  %v6098 = vpack.c.bf16 %v5978, %v5977
  %v6099 = vpack.c.bf16 %v5980, %v5979
  %v6100 = vpack.c.bf16 %v5982, %v5981
  %v6101 = vpack.c.bf16 %v5984, %v5983
  %v6102 = vpack.c.bf16 %v5986, %v5985
  %v6103 = vpack.c.bf16 %v5988, %v5987
  %v6104 = vpack.c.bf16 %v5990, %v5989
  %v6105 = vpack.c.bf16 %v5992, %v5991
  %v6106 = vpack.c.bf16 %v5994, %v5993
  %v6107 = vpack.c.bf16 %v5996, %v5995
  %v6108 = vpack.c.bf16 %v5998, %v5997
  %v6109 = vpack.c.bf16 %v6000, %v5999
  %v6110 = vpack.c.bf16 %v6002, %v6001
  %v6111 = vpack.c.bf16 %v6004, %v6003
  %v6112 = vpack.c.bf16 %v6006, %v6005
  %v6113 = vpack.c.bf16 %v6008, %v6007
  %v6114 = vpack.c.bf16 %v6010, %v6009
  %v6115 = vpack.c.bf16 %v6012, %v6011
  %v6116 = vpack.c.bf16 %v6014, %v6013
  %v6117 = vpack.c.bf16 %v6016, %v6015
  %v6118 = vpack.c.bf16 %v6018, %v6017
  %v6119 = vpack.c.bf16 %v6020, %v6019
  %v6120 = vpack.c.bf16 %v6022, %v6021
  %v6121 = vpack.c.bf16 %v6024, %v6023
  %v6122 = vpack.c.bf16 %v6026, %v6025
  %v6123 = vpack.c.bf16 %v6028, %v6027
  %v6124 = vpack.c.bf16 %v6030, %v6029
  %v6125 = vpack.c.bf16 %v6032, %v6031
  %v6126 = vpack.c.bf16 %v6034, %v6033
  %v6127 = vpack.c.bf16 %v6036, %v6035
  %v6128 = vpack.c.bf16 %v6038, %v6037
  %v6129 = vpack.c.bf16 %v6040, %v6039
  %v6130 = vpack.c.bf16 %v6042, %v6041
  %v6131 = vpack.c.bf16 %v6044, %v6043
  %v6132 = vpack.c.bf16 %v6046, %v6045
  %v6133 = vpack.c.bf16 %v6048, %v6047
  %v6134 = vpack.c.bf16 %v6050, %v6049
  %v6135 = vpack.c.bf16 %v6052, %v6051
  %v6136 = vpack.c.bf16 %v6054, %v6053
  %v6137 = vpack.c.bf16 %v6056, %v6055
  %v6138 = vpack.c.bf16 %v6058, %v6057
  %v6139 = vpack.c.bf16 %v6060, %v6059
  %v6140 = vpack.c.bf16 %v6062, %v6061
  %v6141 = vpack.c.bf16 %v6064, %v6063
  %v6142 = vpack.c.bf16 %v6066, %v6065
  %v6143 = vpack.c.bf16 %v6068, %v6067
  %v6144 = vpack.c.bf16 %v6070, %v6069
  %v6145 = vpack.c.bf16 %v6072, %v6071
  %v6146 = vpack.c.bf16 %v6074, %v6073
  %v6219 = vunpack.c.l.b16 %v6075
  %v6220 = vunpack.c.h.b16 %v6075
  %v6221 = vunpack.c.l.b16 %v6076
  %v6222 = vunpack.c.h.b16 %v6076
  %v6223 = vunpack.c.l.b16 %v6077
  %v6224 = vunpack.c.h.b16 %v6077
  %v6225 = vunpack.c.l.b16 %v6078
  %v6226 = vunpack.c.h.b16 %v6078
  %v6227 = vunpack.c.l.b16 %v6079
  %v6228 = vunpack.c.h.b16 %v6079
  %v6229 = vunpack.c.l.b16 %v6080
  %v6230 = vunpack.c.h.b16 %v6080
  %v6231 = vunpack.c.l.b16 %v6081
  %v6232 = vunpack.c.h.b16 %v6081
  %v6233 = vunpack.c.l.b16 %v6082
  %v6234 = vunpack.c.h.b16 %v6082
  %v6235 = vunpack.c.l.b16 %v6083
  %v6236 = vunpack.c.h.b16 %v6083
  %v6237 = vunpack.c.l.b16 %v6084
  %v6238 = vunpack.c.h.b16 %v6084
  %v6239 = vunpack.c.l.b16 %v6085
  %v6240 = vunpack.c.h.b16 %v6085
  %v6241 = vunpack.c.l.b16 %v6086
  %v6242 = vunpack.c.h.b16 %v6086
  %v6243 = vunpack.c.l.b16 %v6087
  %v6244 = vunpack.c.h.b16 %v6087
  %v6245 = vunpack.c.l.b16 %v6088
  %v6246 = vunpack.c.h.b16 %v6088
  %v6247 = vunpack.c.l.b16 %v6089
  %v6248 = vunpack.c.h.b16 %v6089
  %v6249 = vunpack.c.l.b16 %v6090
  %v6250 = vunpack.c.h.b16 %v6090
  %v6251 = vunpack.c.l.b16 %v6091
  %v6252 = vunpack.c.h.b16 %v6091
  %v6253 = vunpack.c.l.b16 %v6092
  %v6254 = vunpack.c.h.b16 %v6092
  %v6255 = vunpack.c.l.b16 %v6093
  %v6256 = vunpack.c.h.b16 %v6093
  %v6257 = vunpack.c.l.b16 %v6094
  %v6258 = vunpack.c.h.b16 %v6094
  %v6259 = vunpack.c.l.b16 %v6095
  %v6260 = vunpack.c.h.b16 %v6095
  %v6261 = vunpack.c.l.b16 %v6096
  %v6262 = vunpack.c.h.b16 %v6096
  %v6263 = vunpack.c.l.b16 %v6097
  %v6264 = vunpack.c.h.b16 %v6097
  %v6265 = vunpack.c.l.b16 %v6098
  %v6266 = vunpack.c.h.b16 %v6098
  %v6267 = vunpack.c.l.b16 %v6099
  %v6268 = vunpack.c.h.b16 %v6099
  %v6269 = vunpack.c.l.b16 %v6100
  %v6270 = vunpack.c.h.b16 %v6100
  %v6271 = vunpack.c.l.b16 %v6101
  %v6272 = vunpack.c.h.b16 %v6101
  %v6273 = vunpack.c.l.b16 %v6102
  %v6274 = vunpack.c.h.b16 %v6102
  %v6275 = vunpack.c.l.b16 %v6103
  %v6276 = vunpack.c.h.b16 %v6103
  %v6277 = vunpack.c.l.b16 %v6104
  %v6278 = vunpack.c.h.b16 %v6104
  %v6279 = vunpack.c.l.b16 %v6105
  %v6280 = vunpack.c.h.b16 %v6105
  %v6281 = vunpack.c.l.b16 %v6106
  %v6282 = vunpack.c.h.b16 %v6106
  %v6283 = vunpack.c.l.b16 %v6107
  %v6284 = vunpack.c.h.b16 %v6107
  %v6285 = vunpack.c.l.b16 %v6108
  %v6286 = vunpack.c.h.b16 %v6108
  %v6287 = vunpack.c.l.b16 %v6109
  %v6288 = vunpack.c.h.b16 %v6109
  %v6289 = vunpack.c.l.b16 %v6110
  %v6290 = vunpack.c.h.b16 %v6110
  %v6291 = vunpack.c.l.b16 %v6111
  %v6292 = vunpack.c.h.b16 %v6111
  %v6293 = vunpack.c.l.b16 %v6112
  %v6294 = vunpack.c.h.b16 %v6112
  %v6295 = vunpack.c.l.b16 %v6113
  %v6296 = vunpack.c.h.b16 %v6113
  %v6297 = vunpack.c.l.b16 %v6114
  %v6298 = vunpack.c.h.b16 %v6114
  %v6299 = vunpack.c.l.b16 %v6115
  %v6300 = vunpack.c.h.b16 %v6115
  %v6301 = vunpack.c.l.b16 %v6116
  %v6302 = vunpack.c.h.b16 %v6116
  %v6303 = vunpack.c.l.b16 %v6117
  %v6304 = vunpack.c.h.b16 %v6117
  %v6305 = vunpack.c.l.b16 %v6118
  %v6306 = vunpack.c.h.b16 %v6118
  %v6307 = vunpack.c.l.b16 %v6119
  %v6308 = vunpack.c.h.b16 %v6119
  %v6309 = vunpack.c.l.b16 %v6120
  %v6310 = vunpack.c.h.b16 %v6120
  %v6311 = vunpack.c.l.b16 %v6121
  %v6312 = vunpack.c.h.b16 %v6121
  %v6313 = vunpack.c.l.b16 %v6122
  %v6314 = vunpack.c.h.b16 %v6122
  %v6315 = vunpack.c.l.b16 %v6123
  %v6316 = vunpack.c.h.b16 %v6123
  %v6317 = vunpack.c.l.b16 %v6124
  %v6318 = vunpack.c.h.b16 %v6124
  %v6319 = vunpack.c.l.b16 %v6125
  %v6320 = vunpack.c.h.b16 %v6125
  %v6321 = vunpack.c.l.b16 %v6126
  %v6322 = vunpack.c.h.b16 %v6126
  %v6323 = vunpack.c.l.b16 %v6127
  %v6324 = vunpack.c.h.b16 %v6127
  %v6325 = vunpack.c.l.b16 %v6128
  %v6326 = vunpack.c.h.b16 %v6128
  %v6327 = vunpack.c.l.b16 %v6129
  %v6328 = vunpack.c.h.b16 %v6129
  %v6329 = vunpack.c.l.b16 %v6130
  %v6330 = vunpack.c.h.b16 %v6130
  %v6331 = vunpack.c.l.b16 %v6131
  %v6332 = vunpack.c.h.b16 %v6131
  %v6333 = vunpack.c.l.b16 %v6132
  %v6334 = vunpack.c.h.b16 %v6132
  %v6335 = vunpack.c.l.b16 %v6133
  %v6336 = vunpack.c.h.b16 %v6133
  %v6337 = vunpack.c.l.b16 %v6134
  %v6338 = vunpack.c.h.b16 %v6134
  %v6339 = vunpack.c.l.b16 %v6135
  %v6340 = vunpack.c.h.b16 %v6135
  %v6341 = vunpack.c.l.b16 %v6136
  %v6342 = vunpack.c.h.b16 %v6136
  %v6343 = vunpack.c.l.b16 %v6137
  %v6344 = vunpack.c.h.b16 %v6137
  %v6345 = vunpack.c.l.b16 %v6138
  %v6346 = vunpack.c.h.b16 %v6138
  %v6347 = vunpack.c.l.b16 %v6139
  %v6348 = vunpack.c.h.b16 %v6139
  %v6349 = vunpack.c.l.b16 %v6140
  %v6350 = vunpack.c.h.b16 %v6140
  %v6351 = vunpack.c.l.b16 %v6141
  %v6352 = vunpack.c.h.b16 %v6141
  %v6353 = vunpack.c.l.b16 %v6142
  %v6354 = vunpack.c.h.b16 %v6142
  %v6355 = vunpack.c.l.b16 %v6143
  %v6356 = vunpack.c.h.b16 %v6143
  %v6357 = vunpack.c.l.b16 %v6144
  %v6358 = vunpack.c.h.b16 %v6144
  %v6359 = vunpack.c.l.b16 %v6145
  %v6360 = vunpack.c.h.b16 %v6145
  %v6361 = vunpack.c.l.b16 %v6146
  %v6362 = vunpack.c.h.b16 %v6146
  %v6363 = vpack.c.b16 %v6219, %v6219
  %v6364 = vpack.c.b16 %v6220, %v6220
  %v6365 = vpack.c.b16 %v6221, %v6221
  %v6366 = vpack.c.b16 %v6222, %v6222
  %v6367 = vpack.c.b16 %v6223, %v6223
  %v6368 = vpack.c.b16 %v6224, %v6224
  %v6369 = vpack.c.b16 %v6225, %v6225
  %v6370 = vpack.c.b16 %v6226, %v6226
  %v6371 = vpack.c.b16 %v6227, %v6227
  %v6372 = vpack.c.b16 %v6228, %v6228
  %v6373 = vpack.c.b16 %v6229, %v6229
  %v6374 = vpack.c.b16 %v6230, %v6230
  %v6375 = vpack.c.b16 %v6231, %v6231
  %v6376 = vpack.c.b16 %v6232, %v6232
  %v6377 = vpack.c.b16 %v6233, %v6233
  %v6378 = vpack.c.b16 %v6234, %v6234
  %v6379 = vpack.c.b16 %v6235, %v6235
  %v6380 = vpack.c.b16 %v6236, %v6236
  %v6381 = vpack.c.b16 %v6237, %v6237
  %v6382 = vpack.c.b16 %v6238, %v6238
  %v6383 = vpack.c.b16 %v6239, %v6239
  %v6384 = vpack.c.b16 %v6240, %v6240
  %v6385 = vpack.c.b16 %v6241, %v6241
  %v6386 = vpack.c.b16 %v6242, %v6242
  %v6387 = vpack.c.b16 %v6243, %v6243
  %v6388 = vpack.c.b16 %v6244, %v6244
  %v6389 = vpack.c.b16 %v6245, %v6245
  %v6390 = vpack.c.b16 %v6246, %v6246
  %v6391 = vpack.c.b16 %v6247, %v6247
  %v6392 = vpack.c.b16 %v6248, %v6248
  %v6393 = vpack.c.b16 %v6249, %v6249
  %v6394 = vpack.c.b16 %v6250, %v6250
  %v6395 = vpack.c.b16 %v6251, %v6251
  %v6396 = vpack.c.b16 %v6252, %v6252
  %v6397 = vpack.c.b16 %v6253, %v6253
  %v6398 = vpack.c.b16 %v6254, %v6254
  %v6399 = vpack.c.b16 %v6255, %v6255
  %v6400 = vpack.c.b16 %v6256, %v6256
  %v6401 = vpack.c.b16 %v6257, %v6257
  %v6402 = vpack.c.b16 %v6258, %v6258
  %v6403 = vpack.c.b16 %v6259, %v6259
  %v6404 = vpack.c.b16 %v6260, %v6260
  %v6405 = vpack.c.b16 %v6261, %v6261
  %v6406 = vpack.c.b16 %v6262, %v6262
  %v6407 = vpack.c.b16 %v6263, %v6263
  %v6408 = vpack.c.b16 %v6264, %v6264
  %v6409 = vpack.c.b16 %v6265, %v6265
  %v6410 = vpack.c.b16 %v6266, %v6266
  %v6411 = vpack.c.b16 %v6267, %v6267
  %v6412 = vpack.c.b16 %v6268, %v6268
  %v6413 = vpack.c.b16 %v6269, %v6269
  %v6414 = vpack.c.b16 %v6270, %v6270
  %v6415 = vpack.c.b16 %v6271, %v6271
  %v6416 = vpack.c.b16 %v6272, %v6272
  %v6417 = vpack.c.b16 %v6273, %v6273
  %v6418 = vpack.c.b16 %v6274, %v6274
  %v6419 = vpack.c.b16 %v6275, %v6275
  %v6420 = vpack.c.b16 %v6276, %v6276
  %v6421 = vpack.c.b16 %v6277, %v6277
  %v6422 = vpack.c.b16 %v6278, %v6278
  %v6423 = vpack.c.b16 %v6279, %v6279
  %v6424 = vpack.c.b16 %v6280, %v6280
  %v6425 = vpack.c.b16 %v6281, %v6281
  %v6426 = vpack.c.b16 %v6282, %v6282
  %v6427 = vpack.c.b16 %v6283, %v6283
  %v6428 = vpack.c.b16 %v6284, %v6284
  %v6429 = vpack.c.b16 %v6285, %v6285
  %v6430 = vpack.c.b16 %v6286, %v6286
  %v6431 = vpack.c.b16 %v6287, %v6287
  %v6432 = vpack.c.b16 %v6288, %v6288
  %v6433 = vpack.c.b16 %v6289, %v6289
  %v6434 = vpack.c.b16 %v6290, %v6290
  %v6435 = vpack.c.b16 %v6291, %v6291
  %v6436 = vpack.c.b16 %v6292, %v6292
  %v6437 = vpack.c.b16 %v6293, %v6293
  %v6438 = vpack.c.b16 %v6294, %v6294
  %v6439 = vpack.c.b16 %v6295, %v6295
  %v6440 = vpack.c.b16 %v6296, %v6296
  %v6441 = vpack.c.b16 %v6297, %v6297
  %v6442 = vpack.c.b16 %v6298, %v6298
  %v6443 = vpack.c.b16 %v6299, %v6299
  %v6444 = vpack.c.b16 %v6300, %v6300
  %v6445 = vpack.c.b16 %v6301, %v6301
  %v6446 = vpack.c.b16 %v6302, %v6302
  %v6447 = vpack.c.b16 %v6303, %v6303
  %v6448 = vpack.c.b16 %v6304, %v6304
  %v6449 = vpack.c.b16 %v6305, %v6305
  %v6450 = vpack.c.b16 %v6306, %v6306
  %v6451 = vpack.c.b16 %v6307, %v6307
  %v6452 = vpack.c.b16 %v6308, %v6308
  %v6453 = vpack.c.b16 %v6309, %v6309
  %v6454 = vpack.c.b16 %v6310, %v6310
  %v6455 = vpack.c.b16 %v6311, %v6311
  %v6456 = vpack.c.b16 %v6312, %v6312
  %v6457 = vpack.c.b16 %v6313, %v6313
  %v6458 = vpack.c.b16 %v6314, %v6314
  %v6459 = vpack.c.b16 %v6315, %v6315
  %v6460 = vpack.c.b16 %v6316, %v6316
  %v6461 = vpack.c.b16 %v6317, %v6317
  %v6462 = vpack.c.b16 %v6318, %v6318
  %v6463 = vpack.c.b16 %v6319, %v6319
  %v6464 = vpack.c.b16 %v6320, %v6320
  %v6465 = vpack.c.b16 %v6321, %v6321
  %v6466 = vpack.c.b16 %v6322, %v6322
  %v6467 = vpack.c.b16 %v6323, %v6323
  %v6468 = vpack.c.b16 %v6324, %v6324
  %v6469 = vpack.c.b16 %v6325, %v6325
  %v6470 = vpack.c.b16 %v6326, %v6326
  %v6471 = vpack.c.b16 %v6327, %v6327
  %v6472 = vpack.c.b16 %v6328, %v6328
  %v6473 = vpack.c.b16 %v6329, %v6329
  %v6474 = vpack.c.b16 %v6330, %v6330
  %v6475 = vpack.c.b16 %v6331, %v6331
  %v6476 = vpack.c.b16 %v6332, %v6332
  %v6477 = vpack.c.b16 %v6333, %v6333
  %v6478 = vpack.c.b16 %v6334, %v6334
  %v6479 = vpack.c.b16 %v6335, %v6335
  %v6480 = vpack.c.b16 %v6336, %v6336
  %v6481 = vpack.c.b16 %v6337, %v6337
  %v6482 = vpack.c.b16 %v6338, %v6338
  %v6483 = vpack.c.b16 %v6339, %v6339
  %v6484 = vpack.c.b16 %v6340, %v6340
  %v6485 = vpack.c.b16 %v6341, %v6341
  %v6486 = vpack.c.b16 %v6342, %v6342
  %v6487 = vpack.c.b16 %v6343, %v6343
  %v6488 = vpack.c.b16 %v6344, %v6344
  %v6489 = vpack.c.b16 %v6345, %v6345
  %v6490 = vpack.c.b16 %v6346, %v6346
  %v6491 = vpack.c.b16 %v6347, %v6347
  %v6492 = vpack.c.b16 %v6348, %v6348
  %v6493 = vpack.c.b16 %v6349, %v6349
  %v6494 = vpack.c.b16 %v6350, %v6350
  %v6495 = vpack.c.b16 %v6351, %v6351
  %v6496 = vpack.c.b16 %v6352, %v6352
  %v6497 = vpack.c.b16 %v6353, %v6353
  %v6498 = vpack.c.b16 %v6354, %v6354
  %v6499 = vpack.c.b16 %v6355, %v6355
  %v6500 = vpack.c.b16 %v6356, %v6356
  %v6501 = vpack.c.b16 %v6357, %v6357
  %v6502 = vpack.c.b16 %v6358, %v6358
  %v6503 = vpack.c.b16 %v6359, %v6359
  %v6504 = vpack.c.b16 %v6360, %v6360
  %v6505 = vpack.c.b16 %v6361, %v6361
  %v6506 = vpack.c.b16 %v6362, %v6362
  %vm6651 = vcmask 125952
  %6652 = vst.msk [vmem:[%s3] sm:$0xf] %vm6651, %v6363
  %6653 = vst.msk [vmem:[%s3 + $0x4] sm:$0xf] %vm6651, %v6364
  %6654 = vst.msk [vmem:[%s3 + $0x8] sm:$0xf] %vm6651, %v6365
  %6655 = vst.msk [vmem:[%s3 + $0xc] sm:$0xf] %vm6651, %v6366
  %6656 = vst.msk [vmem:[%s3 + $0x10] sm:$0xf] %vm6651, %v6367
  %6657 = vst.msk [vmem:[%s3 + $0x14] sm:$0xf] %vm6651, %v6368
  %6658 = vst.msk [vmem:[%s3 + $0x18] sm:$0xf] %vm6651, %v6369
  %6659 = vst.msk [vmem:[%s3 + $0x1c] sm:$0xf] %vm6651, %v6370
  %6660 = vst.msk [vmem:[%s3 + $0x20] sm:$0xf] %vm6651, %v6371
  %6661 = vst.msk [vmem:[%s3 + $0x24] sm:$0xf] %vm6651, %v6372
  %6662 = vst.msk [vmem:[%s3 + $0x28] sm:$0xf] %vm6651, %v6373
  %6663 = vst.msk [vmem:[%s3 + $0x2c] sm:$0xf] %vm6651, %v6374
  %6664 = vst.msk [vmem:[%s3 + $0x30] sm:$0xf] %vm6651, %v6375
  %6665 = vst.msk [vmem:[%s3 + $0x34] sm:$0xf] %vm6651, %v6376
  %6666 = vst.msk [vmem:[%s3 + $0x38] sm:$0xf] %vm6651, %v6377
  %6667 = vst.msk [vmem:[%s3 + $0x3c] sm:$0xf] %vm6651, %v6378
  %6668 = vst.msk [vmem:[%s3 + $0x40] sm:$0xf] %vm6651, %v6379
  %6669 = vst.msk [vmem:[%s3 + $0x44] sm:$0xf] %vm6651, %v6380
  %6670 = vst.msk [vmem:[%s3 + $0x48] sm:$0xf] %vm6651, %v6381
  %6671 = vst.msk [vmem:[%s3 + $0x4c] sm:$0xf] %vm6651, %v6382
  %6672 = vst.msk [vmem:[%s3 + $0x50] sm:$0xf] %vm6651, %v6383
  %6673 = vst.msk [vmem:[%s3 + $0x54] sm:$0xf] %vm6651, %v6384
  %6674 = vst.msk [vmem:[%s3 + $0x58] sm:$0xf] %vm6651, %v6385
  %6675 = vst.msk [vmem:[%s3 + $0x5c] sm:$0xf] %vm6651, %v6386
  %6676 = vst.msk [vmem:[%s3 + $0x60] sm:$0xf] %vm6651, %v6387
  %6677 = vst.msk [vmem:[%s3 + $0x64] sm:$0xf] %vm6651, %v6388
  %6678 = vst.msk [vmem:[%s3 + $0x68] sm:$0xf] %vm6651, %v6389
  %6679 = vst.msk [vmem:[%s3 + $0x6c] sm:$0xf] %vm6651, %v6390
  %6680 = vst.msk [vmem:[%s3 + $0x70] sm:$0xf] %vm6651, %v6391
  %6681 = vst.msk [vmem:[%s3 + $0x74] sm:$0xf] %vm6651, %v6392
  %6682 = vst.msk [vmem:[%s3 + $0x78] sm:$0xf] %vm6651, %v6393
  %6683 = vst.msk [vmem:[%s3 + $0x7c] sm:$0xf] %vm6651, %v6394
  %6684 = vst.msk [vmem:[%s3 + $0x80] sm:$0xf] %vm6651, %v6395
  %6685 = vst.msk [vmem:[%s3 + $0x84] sm:$0xf] %vm6651, %v6396
  %6686 = vst.msk [vmem:[%s3 + $0x88] sm:$0xf] %vm6651, %v6397
  %6687 = vst.msk [vmem:[%s3 + $0x8c] sm:$0xf] %vm6651, %v6398
  %6688 = vst.msk [vmem:[%s3 + $0x90] sm:$0xf] %vm6651, %v6399
  %6689 = vst.msk [vmem:[%s3 + $0x94] sm:$0xf] %vm6651, %v6400
  %6690 = vst.msk [vmem:[%s3 + $0x98] sm:$0xf] %vm6651, %v6401
  %6691 = vst.msk [vmem:[%s3 + $0x9c] sm:$0xf] %vm6651, %v6402
  %6692 = vst.msk [vmem:[%s3 + $0xa0] sm:$0xf] %vm6651, %v6403
  %6693 = vst.msk [vmem:[%s3 + $0xa4] sm:$0xf] %vm6651, %v6404
  %6694 = vst.msk [vmem:[%s3 + $0xa8] sm:$0xf] %vm6651, %v6405
  %6695 = vst.msk [vmem:[%s3 + $0xac] sm:$0xf] %vm6651, %v6406
  %6696 = vst.msk [vmem:[%s3 + $0xb0] sm:$0xf] %vm6651, %v6407
  %6697 = vst.msk [vmem:[%s3 + $0xb4] sm:$0xf] %vm6651, %v6408
  %6698 = vst.msk [vmem:[%s3 + $0xb8] sm:$0xf] %vm6651, %v6409
  %6699 = vst.msk [vmem:[%s3 + $0xbc] sm:$0xf] %vm6651, %v6410
  %6700 = vst.msk [vmem:[%s3 + $0xc0] sm:$0xf] %vm6651, %v6411
  %6701 = vst.msk [vmem:[%s3 + $0xc4] sm:$0xf] %vm6651, %v6412
  %6702 = vst.msk [vmem:[%s3 + $0xc8] sm:$0xf] %vm6651, %v6413
  %6703 = vst.msk [vmem:[%s3 + $0xcc] sm:$0xf] %vm6651, %v6414
  %6704 = vst.msk [vmem:[%s3 + $0xd0] sm:$0xf] %vm6651, %v6415
  %6705 = vst.msk [vmem:[%s3 + $0xd4] sm:$0xf] %vm6651, %v6416
  %6706 = vst.msk [vmem:[%s3 + $0xd8] sm:$0xf] %vm6651, %v6417
  %6707 = vst.msk [vmem:[%s3 + $0xdc] sm:$0xf] %vm6651, %v6418
  %6708 = vst.msk [vmem:[%s3 + $0xe0] sm:$0xf] %vm6651, %v6419
  %6709 = vst.msk [vmem:[%s3 + $0xe4] sm:$0xf] %vm6651, %v6420
  %6710 = vst.msk [vmem:[%s3 + $0xe8] sm:$0xf] %vm6651, %v6421
  %6711 = vst.msk [vmem:[%s3 + $0xec] sm:$0xf] %vm6651, %v6422
  %6712 = vst.msk [vmem:[%s3 + $0xf0] sm:$0xf] %vm6651, %v6423
  %6713 = vst.msk [vmem:[%s3 + $0xf4] sm:$0xf] %vm6651, %v6424
  %6714 = vst.msk [vmem:[%s3 + $0xf8] sm:$0xf] %vm6651, %v6425
  %6715 = vst.msk [vmem:[%s3 + $0xfc] sm:$0xf] %vm6651, %v6426
  %6716 = vst.msk [vmem:[%s3 + $0x100] sm:$0xf] %vm6651, %v6427
  %6717 = vst.msk [vmem:[%s3 + $0x104] sm:$0xf] %vm6651, %v6428
  %6718 = vst.msk [vmem:[%s3 + $0x108] sm:$0xf] %vm6651, %v6429
  %6719 = vst.msk [vmem:[%s3 + $0x10c] sm:$0xf] %vm6651, %v6430
  %6720 = vst.msk [vmem:[%s3 + $0x110] sm:$0xf] %vm6651, %v6431
  %6721 = vst.msk [vmem:[%s3 + $0x114] sm:$0xf] %vm6651, %v6432
  %6722 = vst.msk [vmem:[%s3 + $0x118] sm:$0xf] %vm6651, %v6433
  %6723 = vst.msk [vmem:[%s3 + $0x11c] sm:$0xf] %vm6651, %v6434
  %6724 = vst.msk [vmem:[%s3 + $0x120] sm:$0xf] %vm6651, %v6435
  %6725 = vst.msk [vmem:[%s3 + $0x124] sm:$0xf] %vm6651, %v6436
  %6726 = vst.msk [vmem:[%s3 + $0x128] sm:$0xf] %vm6651, %v6437
  %6727 = vst.msk [vmem:[%s3 + $0x12c] sm:$0xf] %vm6651, %v6438
  %6728 = vst.msk [vmem:[%s3 + $0x130] sm:$0xf] %vm6651, %v6439
  %6729 = vst.msk [vmem:[%s3 + $0x134] sm:$0xf] %vm6651, %v6440
  %6730 = vst.msk [vmem:[%s3 + $0x138] sm:$0xf] %vm6651, %v6441
  %6731 = vst.msk [vmem:[%s3 + $0x13c] sm:$0xf] %vm6651, %v6442
  %6732 = vst.msk [vmem:[%s3 + $0x140] sm:$0xf] %vm6651, %v6443
  %6733 = vst.msk [vmem:[%s3 + $0x144] sm:$0xf] %vm6651, %v6444
  %6734 = vst.msk [vmem:[%s3 + $0x148] sm:$0xf] %vm6651, %v6445
  %6735 = vst.msk [vmem:[%s3 + $0x14c] sm:$0xf] %vm6651, %v6446
  %6736 = vst.msk [vmem:[%s3 + $0x150] sm:$0xf] %vm6651, %v6447
  %6737 = vst.msk [vmem:[%s3 + $0x154] sm:$0xf] %vm6651, %v6448
  %6738 = vst.msk [vmem:[%s3 + $0x158] sm:$0xf] %vm6651, %v6449
  %6739 = vst.msk [vmem:[%s3 + $0x15c] sm:$0xf] %vm6651, %v6450
  %6740 = vst.msk [vmem:[%s3 + $0x160] sm:$0xf] %vm6651, %v6451
  %6741 = vst.msk [vmem:[%s3 + $0x164] sm:$0xf] %vm6651, %v6452
  %6742 = vst.msk [vmem:[%s3 + $0x168] sm:$0xf] %vm6651, %v6453
  %6743 = vst.msk [vmem:[%s3 + $0x16c] sm:$0xf] %vm6651, %v6454
  %6744 = vst.msk [vmem:[%s3 + $0x170] sm:$0xf] %vm6651, %v6455
  %6745 = vst.msk [vmem:[%s3 + $0x174] sm:$0xf] %vm6651, %v6456
  %6746 = vst.msk [vmem:[%s3 + $0x178] sm:$0xf] %vm6651, %v6457
  %6747 = vst.msk [vmem:[%s3 + $0x17c] sm:$0xf] %vm6651, %v6458
  %6748 = vst.msk [vmem:[%s3 + $0x180] sm:$0xf] %vm6651, %v6459
  %6749 = vst.msk [vmem:[%s3 + $0x184] sm:$0xf] %vm6651, %v6460
  %6750 = vst.msk [vmem:[%s3 + $0x188] sm:$0xf] %vm6651, %v6461
  %6751 = vst.msk [vmem:[%s3 + $0x18c] sm:$0xf] %vm6651, %v6462
  %6752 = vst.msk [vmem:[%s3 + $0x190] sm:$0xf] %vm6651, %v6463
  %6753 = vst.msk [vmem:[%s3 + $0x194] sm:$0xf] %vm6651, %v6464
  %6754 = vst.msk [vmem:[%s3 + $0x198] sm:$0xf] %vm6651, %v6465
  %6755 = vst.msk [vmem:[%s3 + $0x19c] sm:$0xf] %vm6651, %v6466
  %6756 = vst.msk [vmem:[%s3 + $0x1a0] sm:$0xf] %vm6651, %v6467
  %6757 = vst.msk [vmem:[%s3 + $0x1a4] sm:$0xf] %vm6651, %v6468
  %6758 = vst.msk [vmem:[%s3 + $0x1a8] sm:$0xf] %vm6651, %v6469
  %6759 = vst.msk [vmem:[%s3 + $0x1ac] sm:$0xf] %vm6651, %v6470
  %6760 = vst.msk [vmem:[%s3 + $0x1b0] sm:$0xf] %vm6651, %v6471
  %6761 = vst.msk [vmem:[%s3 + $0x1b4] sm:$0xf] %vm6651, %v6472
  %6762 = vst.msk [vmem:[%s3 + $0x1b8] sm:$0xf] %vm6651, %v6473
  %6763 = vst.msk [vmem:[%s3 + $0x1bc] sm:$0xf] %vm6651, %v6474
  %6764 = vst.msk [vmem:[%s3 + $0x1c0] sm:$0xf] %vm6651, %v6475
  %6765 = vst.msk [vmem:[%s3 + $0x1c4] sm:$0xf] %vm6651, %v6476
  %6766 = vst.msk [vmem:[%s3 + $0x1c8] sm:$0xf] %vm6651, %v6477
  %6767 = vst.msk [vmem:[%s3 + $0x1cc] sm:$0xf] %vm6651, %v6478
  %6768 = vst.msk [vmem:[%s3 + $0x1d0] sm:$0xf] %vm6651, %v6479
  %6769 = vst.msk [vmem:[%s3 + $0x1d4] sm:$0xf] %vm6651, %v6480
  %6770 = vst.msk [vmem:[%s3 + $0x1d8] sm:$0xf] %vm6651, %v6481
  %6771 = vst.msk [vmem:[%s3 + $0x1dc] sm:$0xf] %vm6651, %v6482
  %6772 = vst.msk [vmem:[%s3 + $0x1e0] sm:$0xf] %vm6651, %v6483
  %6773 = vst.msk [vmem:[%s3 + $0x1e4] sm:$0xf] %vm6651, %v6484
  %6774 = vst.msk [vmem:[%s3 + $0x1e8] sm:$0xf] %vm6651, %v6485
  %6775 = vst.msk [vmem:[%s3 + $0x1ec] sm:$0xf] %vm6651, %v6486
  %6776 = vst.msk [vmem:[%s3 + $0x1f0] sm:$0xf] %vm6651, %v6487
  %6777 = vst.msk [vmem:[%s3 + $0x1f4] sm:$0xf] %vm6651, %v6488
  %6778 = vst.msk [vmem:[%s3 + $0x1f8] sm:$0xf] %vm6651, %v6489
  %6779 = vst.msk [vmem:[%s3 + $0x1fc] sm:$0xf] %vm6651, %v6490
  %6780 = vst.msk [vmem:[%s3 + $0x200] sm:$0xf] %vm6651, %v6491
  %6781 = vst.msk [vmem:[%s3 + $0x204] sm:$0xf] %vm6651, %v6492
  %6782 = vst.msk [vmem:[%s3 + $0x208] sm:$0xf] %vm6651, %v6493
  %6783 = vst.msk [vmem:[%s3 + $0x20c] sm:$0xf] %vm6651, %v6494
  %6784 = vst.msk [vmem:[%s3 + $0x210] sm:$0xf] %vm6651, %v6495
  %6785 = vst.msk [vmem:[%s3 + $0x214] sm:$0xf] %vm6651, %v6496
  %6786 = vst.msk [vmem:[%s3 + $0x218] sm:$0xf] %vm6651, %v6497
  %6787 = vst.msk [vmem:[%s3 + $0x21c] sm:$0xf] %vm6651, %v6498
  %6788 = vst.msk [vmem:[%s3 + $0x220] sm:$0xf] %vm6651, %v6499
  %6789 = vst.msk [vmem:[%s3 + $0x224] sm:$0xf] %vm6651, %v6500
  %6790 = vst.msk [vmem:[%s3 + $0x228] sm:$0xf] %vm6651, %v6501
  %6791 = vst.msk [vmem:[%s3 + $0x22c] sm:$0xf] %vm6651, %v6502
  %6792 = vst.msk [vmem:[%s3 + $0x230] sm:$0xf] %vm6651, %v6503
  %6793 = vst.msk [vmem:[%s3 + $0x234] sm:$0xf] %vm6651, %v6504
  %6794 = vst.msk [vmem:[%s3 + $0x238] sm:$0xf] %vm6651, %v6505
  %6795 = vst.msk [vmem:[%s3 + $0x23c] sm:$0xf] %vm6651, %v6506
  // Predicated region
  $region14: #{net_forward.2} parent=0 // pred_check
    _
  $region15: #{net_forward.2} parent=0 // pred_check_branch
    %6797 = sbr.rel (0) target = $region17
  $region16: #{net_forward.2} parent=0 // pred_region
    _
  $region17: #{net_forward.2} parent=0 // pred_fallthru
    _
  // Predicated region
  $region18: #{net_forward.2} parent=0 // pred_check
    _
  $region19: #{net_forward.2} parent=0 // pred_check_branch
    %6799 = sbr.rel (0) target = $region21
  $region20: #{net_forward.2} parent=0 // pred_region
    _
  $region21: #{net_forward.2} parent=0 // pred_fallthru
    _

// kernel: net_forward.3
$region0: #{net_forward.3}
  #allocation0 [shape = 'u32[]', space=smem, size = 0x4, offset = 0x4, fixed_abs, tag = 'smem constant byte address 0x4 - core index']
  #allocation1 [shape = 'u32[144,128]{1,0:T(1,128)}', space=vmem, size = 0x12000, scoped, tag = 'internal scratch']
  %s0 = inlined_call_operand.vmem [shape: bf16[8,64,256], index: 0, kind: input, shape index: {}]
  %s1 = inlined_call_operand.vmem [shape: bf16[256,32], index: 1, kind: input, shape index: {}]
  %s2 = inlined_call_operand.vmem [shape: f32[1,32], index: 2, kind: input, shape index: {}]
  %s3 = inlined_call_operand.vmem [shape: bf16[16,32,128], index: 3, kind: input, shape index: {}]
  %s4 = inlined_call_operand.vmem [shape: f32[1,128], index: 4, kind: input, shape index: {}]
  %s5 = inlined_call_operand.vmem [shape: f32[8,128], index: 5, kind: output, shape index: {}]
  %s6 = sld [smem:[#allocation0]]
  $region30: #{net_forward.3} parent=0
    _
  %s8 = ssub.s32 1, %s6
  %s9 = scalar_select 0, %s8, %s6
  // Predicated region
  $region2: #{net_forward.3} parent=0 // pred_check
    _
  $region3: #{net_forward.3} parent=0 // pred_check_branch
    %11 = sbr.rel (0) target = $region5
  $region4: #{net_forward.3} parent=0 // pred_region
    _
  $region5: #{net_forward.3} parent=0 // pred_fallthru
    _
  // Predicated region
  $region6: #{net_forward.3} parent=0 // pred_check
    _
  $region7: #{net_forward.3} parent=0 // pred_check_branch
    %13 = sbr.rel (0) target = $region9
  $region8: #{net_forward.3} parent=0 // pred_region
    _
  $region9: #{net_forward.3} parent=0 // pred_fallthru
    _
  // Predicated region
  $region10: #{net_forward.3} parent=0 // pred_check
    _
  $region11: #{net_forward.3} parent=0 // pred_check_branch
    %15 = sbr.rel (0) target = $region13
  $region12: #{net_forward.3} parent=0 // pred_region
    _
  $region13: #{net_forward.3} parent=0 // pred_fallthru
    _
  // Predicated region
  $region14: #{net_forward.3} parent=0 // pred_check
    _
  $region15: #{net_forward.3} parent=0 // pred_check_branch
    %17 = sbr.rel (0) target = $region17
  $region16: #{net_forward.3} parent=0 // pred_region
    _
  $region17: #{net_forward.3} parent=0 // pred_fallthru
    _
  // Predicated region
  $region18: #{net_forward.3} parent=0 // pred_check
    _
  $region19: #{net_forward.3} parent=0 // pred_check_branch
    %19 = sbr.rel (0) target = $region21
  $region20: #{net_forward.3} parent=0 // pred_region
    _
  $region21: #{net_forward.3} parent=0 // pred_fallthru
    _
  %v21 = vld [vmem:[%s0] sm:$0xff]
  %v22 = vld [vmem:[%s0 + $0x8] sm:$0xff]
  %v23 = vld [vmem:[%s0 + $0x10] sm:$0xff]
  %v24 = vld [vmem:[%s0 + $0x18] sm:$0xff]
  %v25 = vld [vmem:[%s0 + $0x20] sm:$0xff]
  %v26 = vld [vmem:[%s0 + $0x28] sm:$0xff]
  %v27 = vld [vmem:[%s0 + $0x30] sm:$0xff]
  %v28 = vld [vmem:[%s0 + $0x38] sm:$0xff]
  %v29 = vld [vmem:[%s0 + $0x40] sm:$0xff]
  %v30 = vld [vmem:[%s0 + $0x48] sm:$0xff]
  %v31 = vld [vmem:[%s0 + $0x50] sm:$0xff]
  %v32 = vld [vmem:[%s0 + $0x58] sm:$0xff]
  %v33 = vld [vmem:[%s0 + $0x60] sm:$0xff]
  %v34 = vld [vmem:[%s0 + $0x68] sm:$0xff]
  %v35 = vld [vmem:[%s0 + $0x70] sm:$0xff]
  %v36 = vld [vmem:[%s0 + $0x78] sm:$0xff]
  %v37 = vld [vmem:[%s0 + $0x80] sm:$0xff]
  %v38 = vld [vmem:[%s0 + $0x88] sm:$0xff]
  %v39 = vld [vmem:[%s0 + $0x90] sm:$0xff]
  %v40 = vld [vmem:[%s0 + $0x98] sm:$0xff]
  %v41 = vld [vmem:[%s0 + $0xa0] sm:$0xff]
  %v42 = vld [vmem:[%s0 + $0xa8] sm:$0xff]
  %v43 = vld [vmem:[%s0 + $0xb0] sm:$0xff]
  %v44 = vld [vmem:[%s0 + $0xb8] sm:$0xff]
  %v45 = vld [vmem:[%s0 + $0xc0] sm:$0xff]
  %v46 = vld [vmem:[%s0 + $0xc8] sm:$0xff]
  %v47 = vld [vmem:[%s0 + $0xd0] sm:$0xff]
  %v48 = vld [vmem:[%s0 + $0xd8] sm:$0xff]
  %v49 = vld [vmem:[%s0 + $0xe0] sm:$0xff]
  %v50 = vld [vmem:[%s0 + $0xe8] sm:$0xff]
  %v51 = vld [vmem:[%s0 + $0xf0] sm:$0xff]
  %v52 = vld [vmem:[%s0 + $0xf8] sm:$0xff]
  %v53 = vld [vmem:[%s0 + $0x100] sm:$0xff]
  %v54 = vld [vmem:[%s0 + $0x108] sm:$0xff]
  %v55 = vld [vmem:[%s0 + $0x110] sm:$0xff]
  %v56 = vld [vmem:[%s0 + $0x118] sm:$0xff]
  %v57 = vld [vmem:[%s0 + $0x120] sm:$0xff]
  %v58 = vld [vmem:[%s0 + $0x128] sm:$0xff]
  %v59 = vld [vmem:[%s0 + $0x130] sm:$0xff]
  %v60 = vld [vmem:[%s0 + $0x138] sm:$0xff]
  %v61 = vld [vmem:[%s0 + $0x140] sm:$0xff]
  %v62 = vld [vmem:[%s0 + $0x148] sm:$0xff]
  %v63 = vld [vmem:[%s0 + $0x150] sm:$0xff]
  %v64 = vld [vmem:[%s0 + $0x158] sm:$0xff]
  %v65 = vld [vmem:[%s0 + $0x160] sm:$0xff]
  %v66 = vld [vmem:[%s0 + $0x168] sm:$0xff]
  %v67 = vld [vmem:[%s0 + $0x170] sm:$0xff]
  %v68 = vld [vmem:[%s0 + $0x178] sm:$0xff]
  %v69 = vld [vmem:[%s0 + $0x180] sm:$0xff]
  %v70 = vld [vmem:[%s0 + $0x188] sm:$0xff]
  %v71 = vld [vmem:[%s0 + $0x190] sm:$0xff]
  %v72 = vld [vmem:[%s0 + $0x198] sm:$0xff]
  %v73 = vld [vmem:[%s0 + $0x1a0] sm:$0xff]
  %v74 = vld [vmem:[%s0 + $0x1a8] sm:$0xff]
  %v75 = vld [vmem:[%s0 + $0x1b0] sm:$0xff]
  %v76 = vld [vmem:[%s0 + $0x1b8] sm:$0xff]
  %v77 = vld [vmem:[%s0 + $0x1c0] sm:$0xff]
  %v78 = vld [vmem:[%s0 + $0x1c8] sm:$0xff]
  %v79 = vld [vmem:[%s0 + $0x1d0] sm:$0xff]
  %v80 = vld [vmem:[%s0 + $0x1d8] sm:$0xff]
  %v81 = vld [vmem:[%s0 + $0x1e0] sm:$0xff]
  %v82 = vld [vmem:[%s0 + $0x1e8] sm:$0xff]
  %v83 = vld [vmem:[%s0 + $0x1f0] sm:$0xff]
  %v84 = vld [vmem:[%s0 + $0x1f8] sm:$0xff]
  %v85 = vld [vmem:[%s1] sm:$0xf]
  %v86 = vld [vmem:[%s1 + $0x4] sm:$0xf]
  %v87 = vld [vmem:[%s1 + $0x8] sm:$0xf]
  %v88 = vld [vmem:[%s1 + $0xc] sm:$0xf]
  %v89 = vld [vmem:[%s1 + $0x10] sm:$0xf]
  %v90 = vld [vmem:[%s1 + $0x14] sm:$0xf]
  %v91 = vld [vmem:[%s1 + $0x18] sm:$0xf]
  %v92 = vld [vmem:[%s1 + $0x1c] sm:$0xf]
  %v93 = vld [vmem:[%s1 + $0x20] sm:$0xf]
  %v94 = vld [vmem:[%s1 + $0x24] sm:$0xf]
  %v95 = vld [vmem:[%s1 + $0x28] sm:$0xf]
  %v96 = vld [vmem:[%s1 + $0x2c] sm:$0xf]
  %v97 = vld [vmem:[%s1 + $0x30] sm:$0xf]
  %v98 = vld [vmem:[%s1 + $0x34] sm:$0xf]
  %v99 = vld [vmem:[%s1 + $0x38] sm:$0xf]
  %v100 = vld [vmem:[%s1 + $0x3c] sm:$0xf]
  %v101 = vld [vmem:[%s1 + $0x40] sm:$0xf]
  %v102 = vld [vmem:[%s1 + $0x44] sm:$0xf]
  %v103 = vld [vmem:[%s1 + $0x48] sm:$0xf]
  %v104 = vld [vmem:[%s1 + $0x4c] sm:$0xf]
  %v105 = vld [vmem:[%s1 + $0x50] sm:$0xf]
  %v106 = vld [vmem:[%s1 + $0x54] sm:$0xf]
  %v107 = vld [vmem:[%s1 + $0x58] sm:$0xf]
  %v108 = vld [vmem:[%s1 + $0x5c] sm:$0xf]
  %v109 = vld [vmem:[%s1 + $0x60] sm:$0xf]
  %v110 = vld [vmem:[%s1 + $0x64] sm:$0xf]
  %v111 = vld [vmem:[%s1 + $0x68] sm:$0xf]
  %v112 = vld [vmem:[%s1 + $0x6c] sm:$0xf]
  %v113 = vld [vmem:[%s1 + $0x70] sm:$0xf]
  %v114 = vld [vmem:[%s1 + $0x74] sm:$0xf]
  %v115 = vld [vmem:[%s1 + $0x78] sm:$0xf]
  %v116 = vld [vmem:[%s1 + $0x7c] sm:$0xf]
  %v181 = vunpack.c.l.b16 %v21
  %v182 = vunpack.c.h.b16 %v21
  %v183 = vunpack.c.l.b16 %v22
  %v184 = vunpack.c.h.b16 %v22
  %v185 = vunpack.c.l.b16 %v23
  %v186 = vunpack.c.h.b16 %v23
  %v187 = vunpack.c.l.b16 %v24
  %v188 = vunpack.c.h.b16 %v24
  %v189 = vunpack.c.l.b16 %v25
  %v190 = vunpack.c.h.b16 %v25
  %v191 = vunpack.c.l.b16 %v26
  %v192 = vunpack.c.h.b16 %v26
  %v193 = vunpack.c.l.b16 %v27
  %v194 = vunpack.c.h.b16 %v27
  %v195 = vunpack.c.l.b16 %v28
  %v196 = vunpack.c.h.b16 %v28
  %v197 = vunpack.c.l.b16 %v29
  %v198 = vunpack.c.h.b16 %v29
  %v199 = vunpack.c.l.b16 %v30
  %v200 = vunpack.c.h.b16 %v30
  %v201 = vunpack.c.l.b16 %v31
  %v202 = vunpack.c.h.b16 %v31
  %v203 = vunpack.c.l.b16 %v32
  %v204 = vunpack.c.h.b16 %v32
  %v205 = vunpack.c.l.b16 %v33
  %v206 = vunpack.c.h.b16 %v33
  %v207 = vunpack.c.l.b16 %v34
  %v208 = vunpack.c.h.b16 %v34
  %v209 = vunpack.c.l.b16 %v35
  %v210 = vunpack.c.h.b16 %v35
  %v211 = vunpack.c.l.b16 %v36
  %v212 = vunpack.c.h.b16 %v36
  %v213 = vunpack.c.l.b16 %v37
  %v214 = vunpack.c.h.b16 %v37
  %v215 = vunpack.c.l.b16 %v38
  %v216 = vunpack.c.h.b16 %v38
  %v217 = vunpack.c.l.b16 %v39
  %v218 = vunpack.c.h.b16 %v39
  %v219 = vunpack.c.l.b16 %v40
  %v220 = vunpack.c.h.b16 %v40
  %v221 = vunpack.c.l.b16 %v41
  %v222 = vunpack.c.h.b16 %v41
  %v223 = vunpack.c.l.b16 %v42
  %v224 = vunpack.c.h.b16 %v42
  %v225 = vunpack.c.l.b16 %v43
  %v226 = vunpack.c.h.b16 %v43
  %v227 = vunpack.c.l.b16 %v44
  %v228 = vunpack.c.h.b16 %v44
  %v229 = vunpack.c.l.b16 %v45
  %v230 = vunpack.c.h.b16 %v45
  %v231 = vunpack.c.l.b16 %v46
  %v232 = vunpack.c.h.b16 %v46
  %v233 = vunpack.c.l.b16 %v47
  %v234 = vunpack.c.h.b16 %v47
  %v235 = vunpack.c.l.b16 %v48
  %v236 = vunpack.c.h.b16 %v48
  %v237 = vunpack.c.l.b16 %v49
  %v238 = vunpack.c.h.b16 %v49
  %v239 = vunpack.c.l.b16 %v50
  %v240 = vunpack.c.h.b16 %v50
  %v241 = vunpack.c.l.b16 %v51
  %v242 = vunpack.c.h.b16 %v51
  %v243 = vunpack.c.l.b16 %v52
  %v244 = vunpack.c.h.b16 %v52
  %v245 = vunpack.c.l.b16 %v53
  %v246 = vunpack.c.h.b16 %v53
  %v247 = vunpack.c.l.b16 %v54
  %v248 = vunpack.c.h.b16 %v54
  %v249 = vunpack.c.l.b16 %v55
  %v250 = vunpack.c.h.b16 %v55
  %v251 = vunpack.c.l.b16 %v56
  %v252 = vunpack.c.h.b16 %v56
  %v253 = vunpack.c.l.b16 %v57
  %v254 = vunpack.c.h.b16 %v57
  %v255 = vunpack.c.l.b16 %v58
  %v256 = vunpack.c.h.b16 %v58
  %v257 = vunpack.c.l.b16 %v59
  %v258 = vunpack.c.h.b16 %v59
  %v259 = vunpack.c.l.b16 %v60
  %v260 = vunpack.c.h.b16 %v60
  %v261 = vunpack.c.l.b16 %v61
  %v262 = vunpack.c.h.b16 %v61
  %v263 = vunpack.c.l.b16 %v62
  %v264 = vunpack.c.h.b16 %v62
  %v265 = vunpack.c.l.b16 %v63
  %v266 = vunpack.c.h.b16 %v63
  %v267 = vunpack.c.l.b16 %v64
  %v268 = vunpack.c.h.b16 %v64
  %v269 = vunpack.c.l.b16 %v65
  %v270 = vunpack.c.h.b16 %v65
  %v271 = vunpack.c.l.b16 %v66
  %v272 = vunpack.c.h.b16 %v66
  %v273 = vunpack.c.l.b16 %v67
  %v274 = vunpack.c.h.b16 %v67
  %v275 = vunpack.c.l.b16 %v68
  %v276 = vunpack.c.h.b16 %v68
  %v277 = vunpack.c.l.b16 %v69
  %v278 = vunpack.c.h.b16 %v69
  %v279 = vunpack.c.l.b16 %v70
  %v280 = vunpack.c.h.b16 %v70
  %v281 = vunpack.c.l.b16 %v71
  %v282 = vunpack.c.h.b16 %v71
  %v283 = vunpack.c.l.b16 %v72
  %v284 = vunpack.c.h.b16 %v72
  %v285 = vunpack.c.l.b16 %v73
  %v286 = vunpack.c.h.b16 %v73
  %v287 = vunpack.c.l.b16 %v74
  %v288 = vunpack.c.h.b16 %v74
  %v289 = vunpack.c.l.b16 %v75
  %v290 = vunpack.c.h.b16 %v75
  %v291 = vunpack.c.l.b16 %v76
  %v292 = vunpack.c.h.b16 %v76
  %v293 = vunpack.c.l.b16 %v77
  %v294 = vunpack.c.h.b16 %v77
  %v295 = vunpack.c.l.b16 %v78
  %v296 = vunpack.c.h.b16 %v78
  %v297 = vunpack.c.l.b16 %v79
  %v298 = vunpack.c.h.b16 %v79
  %v299 = vunpack.c.l.b16 %v80
  %v300 = vunpack.c.h.b16 %v80
  %v301 = vunpack.c.l.b16 %v81
  %v302 = vunpack.c.h.b16 %v81
  %v303 = vunpack.c.l.b16 %v82
  %v304 = vunpack.c.h.b16 %v82
  %v305 = vunpack.c.l.b16 %v83
  %v306 = vunpack.c.h.b16 %v83
  %v307 = vunpack.c.l.b16 %v84
  %v308 = vunpack.c.h.b16 %v84
  %v309 = vpack.c.b16 %v183, %v181
  %v310 = vpack.c.b16 %v184, %v182
  %v311 = vpack.c.b16 %v187, %v185
  %v312 = vpack.c.b16 %v188, %v186
  %v313 = vpack.c.b16 %v191, %v189
  %v314 = vpack.c.b16 %v192, %v190
  %v315 = vpack.c.b16 %v195, %v193
  %v316 = vpack.c.b16 %v196, %v194
  %v317 = vpack.c.b16 %v199, %v197
  %v318 = vpack.c.b16 %v200, %v198
  %v319 = vpack.c.b16 %v203, %v201
  %v320 = vpack.c.b16 %v204, %v202
  %v321 = vpack.c.b16 %v207, %v205
  %v322 = vpack.c.b16 %v208, %v206
  %v323 = vpack.c.b16 %v211, %v209
  %v324 = vpack.c.b16 %v212, %v210
  %v325 = vpack.c.b16 %v215, %v213
  %v326 = vpack.c.b16 %v216, %v214
  %v327 = vpack.c.b16 %v219, %v217
  %v328 = vpack.c.b16 %v220, %v218
  %v329 = vpack.c.b16 %v223, %v221
  %v330 = vpack.c.b16 %v224, %v222
  %v331 = vpack.c.b16 %v227, %v225
  %v332 = vpack.c.b16 %v228, %v226
  %v333 = vpack.c.b16 %v231, %v229
  %v334 = vpack.c.b16 %v232, %v230
  %v335 = vpack.c.b16 %v235, %v233
  %v336 = vpack.c.b16 %v236, %v234
  %v337 = vpack.c.b16 %v239, %v237
  %v338 = vpack.c.b16 %v240, %v238
  %v339 = vpack.c.b16 %v243, %v241
  %v340 = vpack.c.b16 %v244, %v242
  %v341 = vpack.c.b16 %v247, %v245
  %v342 = vpack.c.b16 %v248, %v246
  %v343 = vpack.c.b16 %v251, %v249
  %v344 = vpack.c.b16 %v252, %v250
  %v345 = vpack.c.b16 %v255, %v253
  %v346 = vpack.c.b16 %v256, %v254
  %v347 = vpack.c.b16 %v259, %v257
  %v348 = vpack.c.b16 %v260, %v258
  %v349 = vpack.c.b16 %v263, %v261
  %v350 = vpack.c.b16 %v264, %v262
  %v351 = vpack.c.b16 %v267, %v265
  %v352 = vpack.c.b16 %v268, %v266
  %v353 = vpack.c.b16 %v271, %v269
  %v354 = vpack.c.b16 %v272, %v270
  %v355 = vpack.c.b16 %v275, %v273
  %v356 = vpack.c.b16 %v276, %v274
  %v357 = vpack.c.b16 %v279, %v277
  %v358 = vpack.c.b16 %v280, %v278
  %v359 = vpack.c.b16 %v283, %v281
  %v360 = vpack.c.b16 %v284, %v282
  %v361 = vpack.c.b16 %v287, %v285
  %v362 = vpack.c.b16 %v288, %v286
  %v363 = vpack.c.b16 %v291, %v289
  %v364 = vpack.c.b16 %v292, %v290
  %v365 = vpack.c.b16 %v295, %v293
  %v366 = vpack.c.b16 %v296, %v294
  %v367 = vpack.c.b16 %v299, %v297
  %v368 = vpack.c.b16 %v300, %v298
  %v369 = vpack.c.b16 %v303, %v301
  %v370 = vpack.c.b16 %v304, %v302
  %v371 = vpack.c.b16 %v307, %v305
  %v372 = vpack.c.b16 %v308, %v306
  %v469 = vunpack.c.l.b16 %v85
  %v470 = vunpack.c.l.b16 %v86
  %v471 = vunpack.c.l.b16 %v87
  %v472 = vunpack.c.l.b16 %v88
  %v473 = vunpack.c.l.b16 %v89
  %v474 = vunpack.c.l.b16 %v90
  %v475 = vunpack.c.l.b16 %v91
  %v476 = vunpack.c.l.b16 %v92
  %v477 = vunpack.c.l.b16 %v93
  %v478 = vunpack.c.l.b16 %v94
  %v479 = vunpack.c.l.b16 %v95
  %v480 = vunpack.c.l.b16 %v96
  %v481 = vunpack.c.l.b16 %v97
  %v482 = vunpack.c.l.b16 %v98
  %v483 = vunpack.c.l.b16 %v99
  %v484 = vunpack.c.l.b16 %v100
  %v485 = vunpack.c.l.b16 %v101
  %v486 = vunpack.c.l.b16 %v102
  %v487 = vunpack.c.l.b16 %v103
  %v488 = vunpack.c.l.b16 %v104
  %v489 = vunpack.c.l.b16 %v105
  %v490 = vunpack.c.l.b16 %v106
  %v491 = vunpack.c.l.b16 %v107
  %v492 = vunpack.c.l.b16 %v108
  %v493 = vunpack.c.l.b16 %v109
  %v494 = vunpack.c.l.b16 %v110
  %v495 = vunpack.c.l.b16 %v111
  %v496 = vunpack.c.l.b16 %v112
  %v497 = vunpack.c.l.b16 %v113
  %v498 = vunpack.c.l.b16 %v114
  %v499 = vunpack.c.l.b16 %v115
  %v500 = vunpack.c.l.b16 %v116
  %v501 = vpack.c.b16 %v470, %v469
  %v502 = vpack.c.b16 %v472, %v471
  %v503 = vpack.c.b16 %v474, %v473
  %v504 = vpack.c.b16 %v476, %v475
  %v505 = vpack.c.b16 %v478, %v477
  %v506 = vpack.c.b16 %v480, %v479
  %v507 = vpack.c.b16 %v482, %v481
  %v508 = vpack.c.b16 %v484, %v483
  %v509 = vpack.c.b16 %v486, %v485
  %v510 = vpack.c.b16 %v488, %v487
  %v511 = vpack.c.b16 %v490, %v489
  %v512 = vpack.c.b16 %v492, %v491
  %v513 = vpack.c.b16 %v494, %v493
  %v514 = vpack.c.b16 %v496, %v495
  %v515 = vpack.c.b16 %v498, %v497
  %v516 = vpack.c.b16 %v500, %v499
  %533 = vmatprep.subr.bf16.mxu0 0
  %534 = vmatpush1.bf16.msra.mxu0 %v508
  %535 = vmatprep.subr.bf16.mxu0 0
  %536 = vmatpush1.bf16.msra.mxu0 %v507
  %537 = vmatprep.subr.bf16.mxu0 0
  %538 = vmatpush1.bf16.msra.mxu0 %v506
  %539 = vmatprep.subr.bf16.mxu0 0
  %540 = vmatpush1.bf16.msra.mxu0 %v505
  %541 = vmatprep.subr.bf16.mxu0 0
  %542 = vmatpush1.bf16.msra.mxu0 %v504
  %543 = vmatprep.subr.bf16.mxu0 0
  %544 = vmatpush1.bf16.msra.mxu0 %v503
  %545 = vmatprep.subr.bf16.mxu0 0
  %546 = vmatpush1.bf16.msra.mxu0 %v502
  %547 = vmatprep.subr.bf16.mxu0 0
  %548 = vmatpush1.bf16.msra.mxu0 %v501
  %549 = vmatprep.subr.bf16.mxu0 0
  %550 = vmatpush2.bf16.msra.mxu0 %v516
  %551 = vmatprep.subr.bf16.mxu0 0
  %552 = vmatpush2.bf16.msra.mxu0 %v515
  %553 = vmatprep.subr.bf16.mxu0 0
  %554 = vmatpush2.bf16.msra.mxu0 %v514
  %555 = vmatprep.subr.bf16.mxu0 0
  %556 = vmatpush2.bf16.msra.mxu0 %v513
  %557 = vmatprep.subr.bf16.mxu0 0
  %558 = vmatpush2.bf16.msra.mxu0 %v512
  %559 = vmatprep.subr.bf16.mxu0 0
  %560 = vmatpush2.bf16.msra.mxu0 %v511
  %561 = vmatprep.subr.bf16.mxu0 0
  %562 = vmatpush2.bf16.msra.mxu0 %v510
  %563 = vmatprep.subr.bf16.mxu0 0
  %564 = vmatpush2.bf16.msra.mxu0 %v509
  %565 = vmatprep.mubr.bf16.mxu0 %v310
  %566 = vmatmul.mubr.bf16.gmra.mxu0 %v309
  %v567 = vpop.f32.mrf.mxu0
  %v568 = vadd.f32 0.0, %v567
  %v569 = vpop.f32.mrf.mxu0
  %v570 = vpop.f32.mrf.mxu0
  %v571 = vadd.f32 0.0, %v570
  %v572 = vpop.f32.mrf.mxu0
  %573 = vmatprep.mubr.bf16.mxu0 %v312
  %574 = vmatmul.mubr.bf16.gmra.mxu0 %v311
  %v575 = vpop.f32.mrf.mxu0
  %v576 = vadd.f32 0.0, %v575
  %v577 = vpop.f32.mrf.mxu0
  %v578 = vpop.f32.mrf.mxu0
  %v579 = vadd.f32 0.0, %v578
  %v580 = vpop.f32.mrf.mxu0
  %581 = vmatprep.mubr.bf16.mxu0 %v314
  %582 = vmatmul.mubr.bf16.gmra.mxu0 %v313
  %v583 = vpop.f32.mrf.mxu0
  %v584 = vadd.f32 0.0, %v583
  %v585 = vpop.f32.mrf.mxu0
  %v586 = vpop.f32.mrf.mxu0
  %v587 = vadd.f32 0.0, %v586
  %v588 = vpop.f32.mrf.mxu0
  %589 = vmatprep.mubr.bf16.mxu0 %v316
  %590 = vmatmul.mubr.bf16.gmra.mxu0 %v315
  %v591 = vpop.f32.mrf.mxu0
  %v592 = vadd.f32 0.0, %v591
  %v593 = vpop.f32.mrf.mxu0
  %v594 = vpop.f32.mrf.mxu0
  %v595 = vadd.f32 0.0, %v594
  %v596 = vpop.f32.mrf.mxu0
  %597 = vmatprep.mubr.bf16.mxu0 %v318
  %598 = vmatmul.mubr.bf16.gmra.mxu0 %v317
  %v599 = vpop.f32.mrf.mxu0
  %v600 = vadd.f32 0.0, %v599
  %v601 = vpop.f32.mrf.mxu0
  %v602 = vpop.f32.mrf.mxu0
  %v603 = vadd.f32 0.0, %v602
  %v604 = vpop.f32.mrf.mxu0
  %605 = vmatprep.mubr.bf16.mxu0 %v320
  %606 = vmatmul.mubr.bf16.gmra.mxu0 %v319
  %v607 = vpop.f32.mrf.mxu0
  %v608 = vadd.f32 0.0, %v607
  %v609 = vpop.f32.mrf.mxu0
  %v610 = vpop.f32.mrf.mxu0
  %v611 = vadd.f32 0.0, %v610
  %v612 = vpop.f32.mrf.mxu0
  %613 = vmatprep.mubr.bf16.mxu0 %v322
  %614 = vmatmul.mubr.bf16.gmra.mxu0 %v321
  %v615 = vpop.f32.mrf.mxu0
  %v616 = vadd.f32 0.0, %v615
  %v617 = vpop.f32.mrf.mxu0
  %v618 = vpop.f32.mrf.mxu0
  %v619 = vadd.f32 0.0, %v618
  %v620 = vpop.f32.mrf.mxu0
  %621 = vmatprep.mubr.bf16.mxu0 %v324
  %622 = vmatmul.mubr.bf16.gmra.mxu0 %v323
  %v623 = vpop.f32.mrf.mxu0
  %v624 = vadd.f32 0.0, %v623
  %v625 = vpop.f32.mrf.mxu0
  %v626 = vpop.f32.mrf.mxu0
  %v627 = vadd.f32 0.0, %v626
  %v628 = vpop.f32.mrf.mxu0
  %629 = vmatprep.mubr.bf16.mxu0 %v326
  %630 = vmatmul.mubr.bf16.gmra.mxu0 %v325
  %v631 = vpop.f32.mrf.mxu0
  %v632 = vadd.f32 0.0, %v631
  %v633 = vpop.f32.mrf.mxu0
  %v634 = vpop.f32.mrf.mxu0
  %v635 = vadd.f32 0.0, %v634
  %v636 = vpop.f32.mrf.mxu0
  %637 = vmatprep.mubr.bf16.mxu0 %v328
  %638 = vmatmul.mubr.bf16.gmra.mxu0 %v327
  %v639 = vpop.f32.mrf.mxu0
  %v640 = vadd.f32 0.0, %v639
  %v641 = vpop.f32.mrf.mxu0
  %v642 = vpop.f32.mrf.mxu0
  %v643 = vadd.f32 0.0, %v642
  %v644 = vpop.f32.mrf.mxu0
  %645 = vmatprep.mubr.bf16.mxu0 %v330
  %646 = vmatmul.mubr.bf16.gmra.mxu0 %v329
  %v647 = vpop.f32.mrf.mxu0
  %v648 = vadd.f32 0.0, %v647
  %v649 = vpop.f32.mrf.mxu0
  %v650 = vpop.f32.mrf.mxu0
  %v651 = vadd.f32 0.0, %v650
  %v652 = vpop.f32.mrf.mxu0
  %653 = vmatprep.mubr.bf16.mxu0 %v332
  %654 = vmatmul.mubr.bf16.gmra.mxu0 %v331
  %v655 = vpop.f32.mrf.mxu0
  %v656 = vadd.f32 0.0, %v655
  %v657 = vpop.f32.mrf.mxu0
  %v658 = vpop.f32.mrf.mxu0
  %v659 = vadd.f32 0.0, %v658
  %v660 = vpop.f32.mrf.mxu0
  %661 = vmatprep.mubr.bf16.mxu0 %v334
  %662 = vmatmul.mubr.bf16.gmra.mxu0 %v333
  %v663 = vpop.f32.mrf.mxu0
  %v664 = vadd.f32 0.0, %v663
  %v665 = vpop.f32.mrf.mxu0
  %v666 = vpop.f32.mrf.mxu0
  %v667 = vadd.f32 0.0, %v666
  %v668 = vpop.f32.mrf.mxu0
  %669 = vmatprep.mubr.bf16.mxu0 %v336
  %670 = vmatmul.mubr.bf16.gmra.mxu0 %v335
  %v671 = vpop.f32.mrf.mxu0
  %v672 = vadd.f32 0.0, %v671
  %v673 = vpop.f32.mrf.mxu0
  %v674 = vpop.f32.mrf.mxu0
  %v675 = vadd.f32 0.0, %v674
  %v676 = vpop.f32.mrf.mxu0
  %677 = vmatprep.mubr.bf16.mxu0 %v338
  %678 = vmatmul.mubr.bf16.gmra.mxu0 %v337
  %v679 = vpop.f32.mrf.mxu0
  %v680 = vadd.f32 0.0, %v679
  %v681 = vpop.f32.mrf.mxu0
  %v682 = vpop.f32.mrf.mxu0
  %v683 = vadd.f32 0.0, %v682
  %v684 = vpop.f32.mrf.mxu0
  %685 = vmatprep.mubr.bf16.mxu0 %v340
  %686 = vmatmul.mubr.bf16.gmra.mxu0 %v339
  %v687 = vpop.f32.mrf.mxu0
  %v688 = vadd.f32 0.0, %v687
  %v689 = vpop.f32.mrf.mxu0
  %v690 = vpop.f32.mrf.mxu0
  %v691 = vadd.f32 0.0, %v690
  %v692 = vpop.f32.mrf.mxu0
  %693 = vmatprep.mubr.bf16.mxu0 %v342
  %694 = vmatmul.mubr.bf16.gmra.mxu0 %v341
  %v695 = vpop.f32.mrf.mxu0
  %v696 = vadd.f32 0.0, %v695
  %v697 = vpop.f32.mrf.mxu0
  %v698 = vpop.f32.mrf.mxu0
  %v699 = vadd.f32 0.0, %v698
  %v700 = vpop.f32.mrf.mxu0
  %701 = vmatprep.mubr.bf16.mxu0 %v344
  %702 = vmatmul.mubr.bf16.gmra.mxu0 %v343
  %v703 = vpop.f32.mrf.mxu0
  %v704 = vadd.f32 0.0, %v703
  %v705 = vpop.f32.mrf.mxu0
  %v706 = vpop.f32.mrf.mxu0
  %v707 = vadd.f32 0.0, %v706
  %v708 = vpop.f32.mrf.mxu0
  %709 = vmatprep.mubr.bf16.mxu0 %v346
  %710 = vmatmul.mubr.bf16.gmra.mxu0 %v345
  %v711 = vpop.f32.mrf.mxu0
  %v712 = vadd.f32 0.0, %v711
  %v713 = vpop.f32.mrf.mxu0
  %v714 = vpop.f32.mrf.mxu0
  %v715 = vadd.f32 0.0, %v714
  %v716 = vpop.f32.mrf.mxu0
  %717 = vmatprep.mubr.bf16.mxu0 %v348
  %718 = vmatmul.mubr.bf16.gmra.mxu0 %v347
  %v719 = vpop.f32.mrf.mxu0
  %v720 = vadd.f32 0.0, %v719
  %v721 = vpop.f32.mrf.mxu0
  %v722 = vpop.f32.mrf.mxu0
  %v723 = vadd.f32 0.0, %v722
  %v724 = vpop.f32.mrf.mxu0
  %725 = vmatprep.mubr.bf16.mxu0 %v350
  %726 = vmatmul.mubr.bf16.gmra.mxu0 %v349
  %v727 = vpop.f32.mrf.mxu0
  %v728 = vadd.f32 0.0, %v727
  %v729 = vpop.f32.mrf.mxu0
  %v730 = vpop.f32.mrf.mxu0
  %v731 = vadd.f32 0.0, %v730
  %v732 = vpop.f32.mrf.mxu0
  %733 = vmatprep.mubr.bf16.mxu0 %v352
  %734 = vmatmul.mubr.bf16.gmra.mxu0 %v351
  %v735 = vpop.f32.mrf.mxu0
  %v736 = vadd.f32 0.0, %v735
  %v737 = vpop.f32.mrf.mxu0
  %v738 = vpop.f32.mrf.mxu0
  %v739 = vadd.f32 0.0, %v738
  %v740 = vpop.f32.mrf.mxu0
  %741 = vmatprep.mubr.bf16.mxu0 %v354
  %742 = vmatmul.mubr.bf16.gmra.mxu0 %v353
  %v743 = vpop.f32.mrf.mxu0
  %v744 = vadd.f32 0.0, %v743
  %v745 = vpop.f32.mrf.mxu0
  %v746 = vpop.f32.mrf.mxu0
  %v747 = vadd.f32 0.0, %v746
  %v748 = vpop.f32.mrf.mxu0
  %749 = vmatprep.mubr.bf16.mxu0 %v356
  %750 = vmatmul.mubr.bf16.gmra.mxu0 %v355
  %v751 = vpop.f32.mrf.mxu0
  %v752 = vadd.f32 0.0, %v751
  %v753 = vpop.f32.mrf.mxu0
  %v754 = vpop.f32.mrf.mxu0
  %v755 = vadd.f32 0.0, %v754
  %v756 = vpop.f32.mrf.mxu0
  %757 = vmatprep.mubr.bf16.mxu0 %v358
  %758 = vmatmul.mubr.bf16.gmra.mxu0 %v357
  %v759 = vpop.f32.mrf.mxu0
  %v760 = vadd.f32 0.0, %v759
  %v761 = vpop.f32.mrf.mxu0
  %v762 = vpop.f32.mrf.mxu0
  %v763 = vadd.f32 0.0, %v762
  %v764 = vpop.f32.mrf.mxu0
  %765 = vmatprep.mubr.bf16.mxu0 %v360
  %766 = vmatmul.mubr.bf16.gmra.mxu0 %v359
  %v767 = vpop.f32.mrf.mxu0
  %v768 = vadd.f32 0.0, %v767
  %v769 = vpop.f32.mrf.mxu0
  %v770 = vpop.f32.mrf.mxu0
  %v771 = vadd.f32 0.0, %v770
  %v772 = vpop.f32.mrf.mxu0
  %773 = vmatprep.mubr.bf16.mxu0 %v362
  %774 = vmatmul.mubr.bf16.gmra.mxu0 %v361
  %v775 = vpop.f32.mrf.mxu0
  %v776 = vadd.f32 0.0, %v775
  %v777 = vpop.f32.mrf.mxu0
  %v778 = vpop.f32.mrf.mxu0
  %v779 = vadd.f32 0.0, %v778
  %v780 = vpop.f32.mrf.mxu0
  %781 = vmatprep.mubr.bf16.mxu0 %v364
  %782 = vmatmul.mubr.bf16.gmra.mxu0 %v363
  %v783 = vpop.f32.mrf.mxu0
  %v784 = vadd.f32 0.0, %v783
  %v785 = vpop.f32.mrf.mxu0
  %v786 = vpop.f32.mrf.mxu0
  %v787 = vadd.f32 0.0, %v786
  %v788 = vpop.f32.mrf.mxu0
  %789 = vmatprep.mubr.bf16.mxu0 %v366
  %790 = vmatmul.mubr.bf16.gmra.mxu0 %v365
  %v791 = vpop.f32.mrf.mxu0
  %v792 = vadd.f32 0.0, %v791
  %v793 = vpop.f32.mrf.mxu0
  %v794 = vpop.f32.mrf.mxu0
  %v795 = vadd.f32 0.0, %v794
  %v796 = vpop.f32.mrf.mxu0
  %797 = vmatprep.mubr.bf16.mxu0 %v368
  %798 = vmatmul.mubr.bf16.gmra.mxu0 %v367
  %v799 = vpop.f32.mrf.mxu0
  %v800 = vadd.f32 0.0, %v799
  %v801 = vpop.f32.mrf.mxu0
  %v802 = vpop.f32.mrf.mxu0
  %v803 = vadd.f32 0.0, %v802
  %v804 = vpop.f32.mrf.mxu0
  %805 = vmatprep.mubr.bf16.mxu0 %v370
  %806 = vmatmul.mubr.bf16.gmra.mxu0 %v369
  %v807 = vpop.f32.mrf.mxu0
  %v808 = vadd.f32 0.0, %v807
  %v809 = vpop.f32.mrf.mxu0
  %v810 = vpop.f32.mrf.mxu0
  %v811 = vadd.f32 0.0, %v810
  %v812 = vpop.f32.mrf.mxu0
  %813 = vmatprep.mubr.bf16.mxu0 %v372
  %814 = vmatmul.mubr.bf16.gmra.mxu0 %v371
  %v815 = vpop.f32.mrf.mxu0
  %v816 = vadd.f32 0.0, %v815
  %v817 = vpop.f32.mrf.mxu0
  %v818 = vpop.f32.mrf.mxu0
  %v819 = vadd.f32 0.0, %v818
  %v820 = vpop.f32.mrf.mxu0
  %821 = vdwg.mxu0
  %v822 = vmax.f32 %v568, %v576
  %v823 = vmax.f32 %v571, %v579
  %v824 = vmax.f32 %v600, %v608
  %v825 = vmax.f32 %v603, %v611
  %v826 = vmax.f32 %v632, %v640
  %v827 = vmax.f32 %v635, %v643
  %v828 = vmax.f32 %v664, %v672
  %v829 = vmax.f32 %v667, %v675
  %v830 = vmax.f32 %v696, %v704
  %v831 = vmax.f32 %v699, %v707
  %v832 = vmax.f32 %v728, %v736
  %v833 = vmax.f32 %v731, %v739
  %v834 = vmax.f32 %v760, %v768
  %v835 = vmax.f32 %v763, %v771
  %v836 = vmax.f32 %v792, %v800
  %v837 = vmax.f32 %v795, %v803
  %v838 = vmax.f32 %v584, %v592
  %v839 = vmax.f32 %v587, %v595
  %v840 = vmax.f32 %v616, %v624
  %v841 = vmax.f32 %v619, %v627
  %v842 = vmax.f32 %v648, %v656
  %v843 = vmax.f32 %v651, %v659
  %v844 = vmax.f32 %v680, %v688
  %v845 = vmax.f32 %v683, %v691
  %v846 = vmax.f32 %v712, %v720
  %v847 = vmax.f32 %v715, %v723
  %v848 = vmax.f32 %v744, %v752
  %v849 = vmax.f32 %v747, %v755
  %v850 = vmax.f32 %v776, %v784
  %v851 = vmax.f32 %v779, %v787
  %v852 = vmax.f32 %v808, %v816
  %v853 = vmax.f32 %v811, %v819
  %v854 = vmax.f32 %v822, %v838
  %v855 = vmax.f32 %v823, %v839
  %v856 = vmax.f32 %v824, %v840
  %v857 = vmax.f32 %v825, %v841
  %v858 = vmax.f32 %v826, %v842
  %v859 = vmax.f32 %v827, %v843
  %v860 = vmax.f32 %v828, %v844
  %v861 = vmax.f32 %v829, %v845
  %v862 = vmax.f32 %v830, %v846
  %v863 = vmax.f32 %v831, %v847
  %v864 = vmax.f32 %v832, %v848
  %v865 = vmax.f32 %v833, %v849
  %v866 = vmax.f32 %v834, %v850
  %v867 = vmax.f32 %v835, %v851
  %v868 = vmax.f32 %v836, %v852
  %v869 = vmax.f32 %v837, %v853
  %v870 = vld [vmem:[%s2] sm:$0x1]
  %v872 = vlaneseq
  %v873 = vshrl.u32 %v872, 7
  %v874 = vsub.s32 0, %v873
  %v875 = vrot.slane %v870, %v874
  %v877 = vadd.f32 %v854, %v875
  %v878 = vadd.f32 %v855, %v875
  %v879 = vadd.f32 %v856, %v875
  %v880 = vadd.f32 %v857, %v875
  %v881 = vadd.f32 %v858, %v875
  %v882 = vadd.f32 %v859, %v875
  %v883 = vadd.f32 %v860, %v875
  %v884 = vadd.f32 %v861, %v875
  %v885 = vadd.f32 %v862, %v875
  %v886 = vadd.f32 %v863, %v875
  %v887 = vadd.f32 %v864, %v875
  %v888 = vadd.f32 %v865, %v875
  %v889 = vadd.f32 %v866, %v875
  %v890 = vadd.f32 %v867, %v875
  %v891 = vadd.f32 %v868, %v875
  %v892 = vadd.f32 %v869, %v875
  %v893 = vmax.f32 %v877, 0.0
  %v894 = vmax.f32 %v878, 0.0
  %v895 = vmax.f32 %v879, 0.0
  %v896 = vmax.f32 %v880, 0.0
  %v897 = vmax.f32 %v881, 0.0
  %v898 = vmax.f32 %v882, 0.0
  %v899 = vmax.f32 %v883, 0.0
  %v900 = vmax.f32 %v884, 0.0
  %v901 = vmax.f32 %v885, 0.0
  %v902 = vmax.f32 %v886, 0.0
  %v903 = vmax.f32 %v887, 0.0
  %v904 = vmax.f32 %v888, 0.0
  %v905 = vmax.f32 %v889, 0.0
  %v906 = vmax.f32 %v890, 0.0
  %v907 = vmax.f32 %v891, 0.0
  %v908 = vmax.f32 %v892, 0.0
  %v909 = vpack.c.bf16 %v894, %v893
  %v910 = vpack.c.bf16 %v896, %v895
  %v911 = vpack.c.bf16 %v898, %v897
  %v912 = vpack.c.bf16 %v900, %v899
  %v913 = vpack.c.bf16 %v902, %v901
  %v914 = vpack.c.bf16 %v904, %v903
  %v915 = vpack.c.bf16 %v906, %v905
  %v916 = vpack.c.bf16 %v908, %v907
  %v917 = vld [vmem:[%s3] sm:$0xf]
  %v918 = vld [vmem:[%s3 + $0x4] sm:$0xf]
  %v919 = vld [vmem:[%s3 + $0x8] sm:$0xf]
  %v920 = vld [vmem:[%s3 + $0xc] sm:$0xf]
  %s921 = scalar_lea.vmem %s3, 16
  %v922 = vld [vmem:[%s921] sm:$0xf]
  %v923 = vld [vmem:[%s921 + $0x4] sm:$0xf]
  %v924 = vld [vmem:[%s921 + $0x8] sm:$0xf]
  %v925 = vld [vmem:[%s921 + $0xc] sm:$0xf]
  %v934 = vunpack.c.l.b16 %v909
  %v935 = vunpack.c.l.b16 %v910
  %v936 = vunpack.c.l.b16 %v911
  %v937 = vunpack.c.l.b16 %v912
  %v938 = vunpack.c.l.b16 %v913
  %v939 = vunpack.c.l.b16 %v914
  %v940 = vunpack.c.l.b16 %v915
  %v941 = vunpack.c.l.b16 %v916
  %v942 = vrot.slane %v934, 1
  %vm943 = vcmask 1041409
  %v944 = vsel %vm943, %v935, %v942
  %v945 = vrot.slane %v936, 7
  %vm946 = vcmask 1042434
  %v947 = vsel %vm946, %v945, %v944
  %v948 = vrot.slane %v937, 6
  %vm949 = vcmask 1043459
  %v950 = vsel %vm949, %v948, %v947
  %v951 = vrot.slane %v938, 5
  %vm952 = vcmask 1044484
  %v953 = vsel %vm952, %v951, %v950
  %v954 = vrot.slane %v939, 4
  %vm955 = vcmask 1045509
  %v956 = vsel %vm955, %v954, %v953
  %v957 = vrot.slane %v940, 3
  %vm958 = vcmask 1046534
  %v959 = vsel %vm958, %v957, %v956
  %v960 = vrot.slane %v941, 2
  %vm961 = vcmask 1047559
  %v962 = vsel %vm961, %v960, %v959
  %v963 = vpack.c.b16 %v962, %v962
  %v968 = vunpack.c.l.b16 %v922
  %v969 = vunpack.c.l.b16 %v923
  %v970 = vunpack.c.l.b16 %v924
  %v971 = vunpack.c.l.b16 %v925
  %v972 = vpack.c.b16 %v969, %v968
  %v973 = vpack.c.b16 %v971, %v970
  %vm976 = vcmask 261120
  %v978 = vsel %vm976, %v963, 0
  %980 = vmatprep.subr.bf16.mxu0 0
  %981 = vmatpush1.bf16.msra.mxu0 0
  %982 = vmatprep.subr.bf16.mxu0 0
  %983 = vmatpush1.bf16.msra.mxu0 0
  %984 = vmatprep.subr.bf16.mxu0 0
  %985 = vmatpush1.bf16.msra.mxu0 0
  %986 = vmatprep.subr.bf16.mxu0 0
  %987 = vmatpush1.bf16.msra.mxu0 0
  %988 = vmatprep.subr.bf16.mxu0 0
  %989 = vmatpush1.bf16.msra.mxu0 0
  %990 = vmatprep.subr.bf16.mxu0 0
  %991 = vmatpush1.bf16.msra.mxu0 0
  %992 = vmatprep.subr.bf16.mxu0 0
  %993 = vmatpush1.bf16.msra.mxu0 %v973
  %994 = vmatprep.subr.bf16.mxu0 0
  %995 = vmatpush1.bf16.msra.mxu0 %v972
  %996 = vmatprep.subr.bf16.mxu0 0
  %997 = vmatpush2.bf16.msra.mxu0 0
  %998 = vmatprep.subr.bf16.mxu0 0
  %999 = vmatpush2.bf16.msra.mxu0 0
  %1000 = vmatprep.subr.bf16.mxu0 0
  %1001 = vmatpush2.bf16.msra.mxu0 0
  %1002 = vmatprep.subr.bf16.mxu0 0
  %1003 = vmatpush2.bf16.msra.mxu0 0
  %1004 = vmatprep.subr.bf16.mxu0 0
  %1005 = vmatpush2.bf16.msra.mxu0 0
  %1006 = vmatprep.subr.bf16.mxu0 0
  %1007 = vmatpush2.bf16.msra.mxu0 0
  %1008 = vmatprep.subr.bf16.mxu0 0
  %1009 = vmatpush2.bf16.msra.mxu0 0
  %1010 = vmatprep.subr.bf16.mxu0 0
  %1011 = vmatpush2.bf16.msra.mxu0 0
  %1012 = vmatprep.mubr.bf16.mxu0 0
  %1013 = vmatmul.mubr.bf16.gmra.mxu0 %v978
  %v1014 = vpop.f32.mrf.mxu0
  %v1015 = vadd.f32 0.0, %v1014
  %v1016 = vpop.f32.mrf.mxu0
  %v1017 = vpop.f32.mrf.mxu0
  %v1018 = vpop.f32.mrf.mxu0
  %1019 = vdwg.mxu0
  %v1020 = vrot.slane %v935, 7
  %v1021 = vsel %vm943, %v1020, %v934
  %v1022 = vrot.slane %v936, 6
  %v1023 = vsel %vm946, %v1022, %v1021
  %v1024 = vrot.slane %v937, 5
  %v1025 = vsel %vm949, %v1024, %v1023
  %v1026 = vrot.slane %v938, 4
  %v1027 = vsel %vm952, %v1026, %v1025
  %v1028 = vrot.slane %v939, 3
  %v1029 = vsel %vm955, %v1028, %v1027
  %v1030 = vrot.slane %v940, 2
  %v1031 = vsel %vm958, %v1030, %v1029
  %v1032 = vrot.slane %v941, 1
  %v1033 = vsel %vm961, %v1032, %v1031
  %v1034 = vpack.c.b16 %v1033, %v1033
  %v1039 = vunpack.c.l.b16 %v917
  %v1040 = vunpack.c.l.b16 %v918
  %v1041 = vunpack.c.l.b16 %v919
  %v1042 = vunpack.c.l.b16 %v920
  %v1043 = vpack.c.b16 %v1040, %v1039
  %v1044 = vpack.c.b16 %v1042, %v1041
  %v1048 = vsel %vm976, %v1034, 0
  %1050 = vmatprep.subr.bf16.mxu0 0
  %1051 = vmatpush1.bf16.msra.mxu0 0
  %1052 = vmatprep.subr.bf16.mxu0 0
  %1053 = vmatpush1.bf16.msra.mxu0 0
  %1054 = vmatprep.subr.bf16.mxu0 0
  %1055 = vmatpush1.bf16.msra.mxu0 0
  %1056 = vmatprep.subr.bf16.mxu0 0
  %1057 = vmatpush1.bf16.msra.mxu0 0
  %1058 = vmatprep.subr.bf16.mxu0 0
  %1059 = vmatpush1.bf16.msra.mxu0 0
  %1060 = vmatprep.subr.bf16.mxu0 0
  %1061 = vmatpush1.bf16.msra.mxu0 0
  %1062 = vmatprep.subr.bf16.mxu0 0
  %1063 = vmatpush1.bf16.msra.mxu0 %v1044
  %1064 = vmatprep.subr.bf16.mxu0 0
  %1065 = vmatpush1.bf16.msra.mxu0 %v1043
  %1066 = vmatprep.subr.bf16.mxu0 0
  %1067 = vmatpush2.bf16.msra.mxu0 0
  %1068 = vmatprep.subr.bf16.mxu0 0
  %1069 = vmatpush2.bf16.msra.mxu0 0
  %1070 = vmatprep.subr.bf16.mxu0 0
  %1071 = vmatpush2.bf16.msra.mxu0 0
  %1072 = vmatprep.subr.bf16.mxu0 0
  %1073 = vmatpush2.bf16.msra.mxu0 0
  %1074 = vmatprep.subr.bf16.mxu0 0
  %1075 = vmatpush2.bf16.msra.mxu0 0
  %1076 = vmatprep.subr.bf16.mxu0 0
  %1077 = vmatpush2.bf16.msra.mxu0 0
  %1078 = vmatprep.subr.bf16.mxu0 0
  %1079 = vmatpush2.bf16.msra.mxu0 0
  %1080 = vmatprep.subr.bf16.mxu0 0
  %1081 = vmatpush2.bf16.msra.mxu0 0
  %1082 = vmatprep.mubr.bf16.mxu0 0
  %1083 = vmatmul.mubr.bf16.gmra.mxu0 %v1048
  %v1084 = vpop.f32.mrf.mxu0
  %v1085 = vadd.f32 %v1015, %v1084
  %v1086 = vpop.f32.mrf.mxu0
  %v1087 = vpop.f32.mrf.mxu0
  %v1088 = vpop.f32.mrf.mxu0
  %1089 = vdwg.mxu0
  %s1090 = scalar_lea.vmem %s3, 32
  %v1091 = vld [vmem:[%s1090] sm:$0xf]
  %v1092 = vld [vmem:[%s1090 + $0x4] sm:$0xf]
  %v1093 = vld [vmem:[%s1090 + $0x8] sm:$0xf]
  %v1094 = vld [vmem:[%s1090 + $0xc] sm:$0xf]
  %v1095 = vrot.slane %v934, 2
  %v1096 = vrot.slane %v935, 1
  %v1097 = vsel %vm943, %v1096, %v1095
  %v1098 = vsel %vm946, %v936, %v1097
  %v1099 = vrot.slane %v937, 7
  %v1100 = vsel %vm949, %v1099, %v1098
  %v1101 = vrot.slane %v938, 6
  %v1102 = vsel %vm952, %v1101, %v1100
  %v1103 = vrot.slane %v939, 5
  %v1104 = vsel %vm955, %v1103, %v1102
  %v1105 = vrot.slane %v940, 4
  %v1106 = vsel %vm958, %v1105, %v1104
  %v1107 = vrot.slane %v941, 3
  %v1108 = vsel %vm961, %v1107, %v1106
  %v1109 = vpack.c.b16 %v1108, %v1108
  %v1114 = vunpack.c.l.b16 %v1091
  %v1115 = vunpack.c.l.b16 %v1092
  %v1116 = vunpack.c.l.b16 %v1093
  %v1117 = vunpack.c.l.b16 %v1094
  %v1118 = vpack.c.b16 %v1115, %v1114
  %v1119 = vpack.c.b16 %v1117, %v1116
  %v1123 = vsel %vm976, %v1109, 0
  %1125 = vmatprep.subr.bf16.mxu0 0
  %1126 = vmatpush1.bf16.msra.mxu0 0
  %1127 = vmatprep.subr.bf16.mxu0 0
  %1128 = vmatpush1.bf16.msra.mxu0 0
  %1129 = vmatprep.subr.bf16.mxu0 0
  %1130 = vmatpush1.bf16.msra.mxu0 0
  %1131 = vmatprep.subr.bf16.mxu0 0
  %1132 = vmatpush1.bf16.msra.mxu0 0
  %1133 = vmatprep.subr.bf16.mxu0 0
  %1134 = vmatpush1.bf16.msra.mxu0 0
  %1135 = vmatprep.subr.bf16.mxu0 0
  %1136 = vmatpush1.bf16.msra.mxu0 0
  %1137 = vmatprep.subr.bf16.mxu0 0
  %1138 = vmatpush1.bf16.msra.mxu0 %v1119
  %1139 = vmatprep.subr.bf16.mxu0 0
  %1140 = vmatpush1.bf16.msra.mxu0 %v1118
  %1141 = vmatprep.subr.bf16.mxu0 0
  %1142 = vmatpush2.bf16.msra.mxu0 0
  %1143 = vmatprep.subr.bf16.mxu0 0
  %1144 = vmatpush2.bf16.msra.mxu0 0
  %1145 = vmatprep.subr.bf16.mxu0 0
  %1146 = vmatpush2.bf16.msra.mxu0 0
  %1147 = vmatprep.subr.bf16.mxu0 0
  %1148 = vmatpush2.bf16.msra.mxu0 0
  %1149 = vmatprep.subr.bf16.mxu0 0
  %1150 = vmatpush2.bf16.msra.mxu0 0
  %1151 = vmatprep.subr.bf16.mxu0 0
  %1152 = vmatpush2.bf16.msra.mxu0 0
  %1153 = vmatprep.subr.bf16.mxu0 0
  %1154 = vmatpush2.bf16.msra.mxu0 0
  %1155 = vmatprep.subr.bf16.mxu0 0
  %1156 = vmatpush2.bf16.msra.mxu0 0
  %1157 = vmatprep.mubr.bf16.mxu0 0
  %1158 = vmatmul.mubr.bf16.gmra.mxu0 %v1123
  %v1159 = vpop.f32.mrf.mxu0
  %v1160 = vadd.f32 0.0, %v1159
  %v1161 = vpop.f32.mrf.mxu0
  %v1162 = vpop.f32.mrf.mxu0
  %v1163 = vpop.f32.mrf.mxu0
  %1164 = vdwg.mxu0
  %v1165 = vadd.f32 %v1085, %v1160
  %s1166 = scalar_lea.vmem %s3, 48
  %v1167 = vld [vmem:[%s1166] sm:$0xf]
  %v1168 = vld [vmem:[%s1166 + $0x4] sm:$0xf]
  %v1169 = vld [vmem:[%s1166 + $0x8] sm:$0xf]
  %v1170 = vld [vmem:[%s1166 + $0xc] sm:$0xf]
  %v1171 = vrot.slane %v934, 3
  %v1172 = vrot.slane %v935, 2
  %v1173 = vsel %vm943, %v1172, %v1171
  %v1174 = vrot.slane %v936, 1
  %v1175 = vsel %vm946, %v1174, %v1173
  %v1176 = vsel %vm949, %v937, %v1175
  %v1177 = vrot.slane %v938, 7
  %v1178 = vsel %vm952, %v1177, %v1176
  %v1179 = vrot.slane %v939, 6
  %v1180 = vsel %vm955, %v1179, %v1178
  %v1181 = vrot.slane %v940, 5
  %v1182 = vsel %vm958, %v1181, %v1180
  %v1183 = vrot.slane %v941, 4
  %v1184 = vsel %vm961, %v1183, %v1182
  %v1185 = vpack.c.b16 %v1184, %v1184
  %v1190 = vunpack.c.l.b16 %v1167
  %v1191 = vunpack.c.l.b16 %v1168
  %v1192 = vunpack.c.l.b16 %v1169
  %v1193 = vunpack.c.l.b16 %v1170
  %v1194 = vpack.c.b16 %v1191, %v1190
  %v1195 = vpack.c.b16 %v1193, %v1192
  %v1199 = vsel %vm976, %v1185, 0
  %1201 = vmatprep.subr.bf16.mxu0 0
  %1202 = vmatpush1.bf16.msra.mxu0 0
  %1203 = vmatprep.subr.bf16.mxu0 0
  %1204 = vmatpush1.bf16.msra.mxu0 0
  %1205 = vmatprep.subr.bf16.mxu0 0
  %1206 = vmatpush1.bf16.msra.mxu0 0
  %1207 = vmatprep.subr.bf16.mxu0 0
  %1208 = vmatpush1.bf16.msra.mxu0 0
  %1209 = vmatprep.subr.bf16.mxu0 0
  %1210 = vmatpush1.bf16.msra.mxu0 0
  %1211 = vmatprep.subr.bf16.mxu0 0
  %1212 = vmatpush1.bf16.msra.mxu0 0
  %1213 = vmatprep.subr.bf16.mxu0 0
  %1214 = vmatpush1.bf16.msra.mxu0 %v1195
  %1215 = vmatprep.subr.bf16.mxu0 0
  %1216 = vmatpush1.bf16.msra.mxu0 %v1194
  %1217 = vmatprep.subr.bf16.mxu0 0
  %1218 = vmatpush2.bf16.msra.mxu0 0
  %1219 = vmatprep.subr.bf16.mxu0 0
  %1220 = vmatpush2.bf16.msra.mxu0 0
  %1221 = vmatprep.subr.bf16.mxu0 0
  %1222 = vmatpush2.bf16.msra.mxu0 0
  %1223 = vmatprep.subr.bf16.mxu0 0
  %1224 = vmatpush2.bf16.msra.mxu0 0
  %1225 = vmatprep.subr.bf16.mxu0 0
  %1226 = vmatpush2.bf16.msra.mxu0 0
  %1227 = vmatprep.subr.bf16.mxu0 0
  %1228 = vmatpush2.bf16.msra.mxu0 0
  %1229 = vmatprep.subr.bf16.mxu0 0
  %1230 = vmatpush2.bf16.msra.mxu0 0
  %1231 = vmatprep.subr.bf16.mxu0 0
  %1232 = vmatpush2.bf16.msra.mxu0 0
  %1233 = vmatprep.mubr.bf16.mxu0 0
  %1234 = vmatmul.mubr.bf16.gmra.mxu0 %v1199
  %v1235 = vpop.f32.mrf.mxu0
  %v1236 = vadd.f32 0.0, %v1235
  %v1237 = vpop.f32.mrf.mxu0
  %v1238 = vpop.f32.mrf.mxu0
  %v1239 = vpop.f32.mrf.mxu0
  %1240 = vdwg.mxu0
  %v1241 = vadd.f32 %v1165, %v1236
  %s1242 = scalar_lea.vmem %s3, 64
  %v1243 = vld [vmem:[%s1242] sm:$0xf]
  %v1244 = vld [vmem:[%s1242 + $0x4] sm:$0xf]
  %v1245 = vld [vmem:[%s1242 + $0x8] sm:$0xf]
  %v1246 = vld [vmem:[%s1242 + $0xc] sm:$0xf]
  %v1247 = vrot.slane %v934, 4
  %v1248 = vrot.slane %v935, 3
  %v1249 = vsel %vm943, %v1248, %v1247
  %v1250 = vrot.slane %v936, 2
  %v1251 = vsel %vm946, %v1250, %v1249
  %v1252 = vrot.slane %v937, 1
  %v1253 = vsel %vm949, %v1252, %v1251
  %v1254 = vsel %vm952, %v938, %v1253
  %v1255 = vrot.slane %v939, 7
  %v1256 = vsel %vm955, %v1255, %v1254
  %v1257 = vrot.slane %v940, 6
  %v1258 = vsel %vm958, %v1257, %v1256
  %v1259 = vrot.slane %v941, 5
  %v1260 = vsel %vm961, %v1259, %v1258
  %v1261 = vpack.c.b16 %v1260, %v1260
  %v1266 = vunpack.c.l.b16 %v1243
  %v1267 = vunpack.c.l.b16 %v1244
  %v1268 = vunpack.c.l.b16 %v1245
  %v1269 = vunpack.c.l.b16 %v1246
  %v1270 = vpack.c.b16 %v1267, %v1266
  %v1271 = vpack.c.b16 %v1269, %v1268
  %v1275 = vsel %vm976, %v1261, 0
  %1277 = vmatprep.subr.bf16.mxu0 0
  %1278 = vmatpush1.bf16.msra.mxu0 0
  %1279 = vmatprep.subr.bf16.mxu0 0
  %1280 = vmatpush1.bf16.msra.mxu0 0
  %1281 = vmatprep.subr.bf16.mxu0 0
  %1282 = vmatpush1.bf16.msra.mxu0 0
  %1283 = vmatprep.subr.bf16.mxu0 0
  %1284 = vmatpush1.bf16.msra.mxu0 0
  %1285 = vmatprep.subr.bf16.mxu0 0
  %1286 = vmatpush1.bf16.msra.mxu0 0
  %1287 = vmatprep.subr.bf16.mxu0 0
  %1288 = vmatpush1.bf16.msra.mxu0 0
  %1289 = vmatprep.subr.bf16.mxu0 0
  %1290 = vmatpush1.bf16.msra.mxu0 %v1271
  %1291 = vmatprep.subr.bf16.mxu0 0
  %1292 = vmatpush1.bf16.msra.mxu0 %v1270
  %1293 = vmatprep.subr.bf16.mxu0 0
  %1294 = vmatpush2.bf16.msra.mxu0 0
  %1295 = vmatprep.subr.bf16.mxu0 0
  %1296 = vmatpush2.bf16.msra.mxu0 0
  %1297 = vmatprep.subr.bf16.mxu0 0
  %1298 = vmatpush2.bf16.msra.mxu0 0
  %1299 = vmatprep.subr.bf16.mxu0 0
  %1300 = vmatpush2.bf16.msra.mxu0 0
  %1301 = vmatprep.subr.bf16.mxu0 0
  %1302 = vmatpush2.bf16.msra.mxu0 0
  %1303 = vmatprep.subr.bf16.mxu0 0
  %1304 = vmatpush2.bf16.msra.mxu0 0
  %1305 = vmatprep.subr.bf16.mxu0 0
  %1306 = vmatpush2.bf16.msra.mxu0 0
  %1307 = vmatprep.subr.bf16.mxu0 0
  %1308 = vmatpush2.bf16.msra.mxu0 0
  %1309 = vmatprep.mubr.bf16.mxu0 0
  %1310 = vmatmul.mubr.bf16.gmra.mxu0 %v1275
  %v1311 = vpop.f32.mrf.mxu0
  %v1312 = vadd.f32 0.0, %v1311
  %v1313 = vpop.f32.mrf.mxu0
  %v1314 = vpop.f32.mrf.mxu0
  %v1315 = vpop.f32.mrf.mxu0
  %1316 = vdwg.mxu0
  %v1317 = vadd.f32 %v1241, %v1312
  %s1318 = scalar_lea.vmem %s3, 80
  %v1319 = vld [vmem:[%s1318] sm:$0xf]
  %v1320 = vld [vmem:[%s1318 + $0x4] sm:$0xf]
  %v1321 = vld [vmem:[%s1318 + $0x8] sm:$0xf]
  %v1322 = vld [vmem:[%s1318 + $0xc] sm:$0xf]
  %v1323 = vrot.slane %v934, 5
  %v1324 = vrot.slane %v935, 4
  %v1325 = vsel %vm943, %v1324, %v1323
  %v1326 = vrot.slane %v936, 3
  %v1327 = vsel %vm946, %v1326, %v1325
  %v1328 = vrot.slane %v937, 2
  %v1329 = vsel %vm949, %v1328, %v1327
  %v1330 = vrot.slane %v938, 1
  %v1331 = vsel %vm952, %v1330, %v1329
  %v1332 = vsel %vm955, %v939, %v1331
  %v1333 = vrot.slane %v940, 7
  %v1334 = vsel %vm958, %v1333, %v1332
  %v1335 = vrot.slane %v941, 6
  %v1336 = vsel %vm961, %v1335, %v1334
  %v1337 = vpack.c.b16 %v1336, %v1336
  %v1342 = vunpack.c.l.b16 %v1319
  %v1343 = vunpack.c.l.b16 %v1320
  %v1344 = vunpack.c.l.b16 %v1321
  %v1345 = vunpack.c.l.b16 %v1322
  %v1346 = vpack.c.b16 %v1343, %v1342
  %v1347 = vpack.c.b16 %v1345, %v1344
  %v1351 = vsel %vm976, %v1337, 0
  %1353 = vmatprep.subr.bf16.mxu0 0
  %1354 = vmatpush1.bf16.msra.mxu0 0
  %1355 = vmatprep.subr.bf16.mxu0 0
  %1356 = vmatpush1.bf16.msra.mxu0 0
  %1357 = vmatprep.subr.bf16.mxu0 0
  %1358 = vmatpush1.bf16.msra.mxu0 0
  %1359 = vmatprep.subr.bf16.mxu0 0
  %1360 = vmatpush1.bf16.msra.mxu0 0
  %1361 = vmatprep.subr.bf16.mxu0 0
  %1362 = vmatpush1.bf16.msra.mxu0 0
  %1363 = vmatprep.subr.bf16.mxu0 0
  %1364 = vmatpush1.bf16.msra.mxu0 0
  %1365 = vmatprep.subr.bf16.mxu0 0
  %1366 = vmatpush1.bf16.msra.mxu0 %v1347
  %1367 = vmatprep.subr.bf16.mxu0 0
  %1368 = vmatpush1.bf16.msra.mxu0 %v1346
  %1369 = vmatprep.subr.bf16.mxu0 0
  %1370 = vmatpush2.bf16.msra.mxu0 0
  %1371 = vmatprep.subr.bf16.mxu0 0
  %1372 = vmatpush2.bf16.msra.mxu0 0
  %1373 = vmatprep.subr.bf16.mxu0 0
  %1374 = vmatpush2.bf16.msra.mxu0 0
  %1375 = vmatprep.subr.bf16.mxu0 0
  %1376 = vmatpush2.bf16.msra.mxu0 0
  %1377 = vmatprep.subr.bf16.mxu0 0
  %1378 = vmatpush2.bf16.msra.mxu0 0
  %1379 = vmatprep.subr.bf16.mxu0 0
  %1380 = vmatpush2.bf16.msra.mxu0 0
  %1381 = vmatprep.subr.bf16.mxu0 0
  %1382 = vmatpush2.bf16.msra.mxu0 0
  %1383 = vmatprep.subr.bf16.mxu0 0
  %1384 = vmatpush2.bf16.msra.mxu0 0
  %1385 = vmatprep.mubr.bf16.mxu0 0
  %1386 = vmatmul.mubr.bf16.gmra.mxu0 %v1351
  %v1387 = vpop.f32.mrf.mxu0
  %v1388 = vadd.f32 0.0, %v1387
  %v1389 = vpop.f32.mrf.mxu0
  %v1390 = vpop.f32.mrf.mxu0
  %v1391 = vpop.f32.mrf.mxu0
  %1392 = vdwg.mxu0
  %v1393 = vadd.f32 %v1317, %v1388
  %s1394 = scalar_lea.vmem %s3, 96
  %v1395 = vld [vmem:[%s1394] sm:$0xf]
  %v1396 = vld [vmem:[%s1394 + $0x4] sm:$0xf]
  %v1397 = vld [vmem:[%s1394 + $0x8] sm:$0xf]
  %v1398 = vld [vmem:[%s1394 + $0xc] sm:$0xf]
  %v1399 = vrot.slane %v934, 6
  %v1400 = vrot.slane %v935, 5
  %v1401 = vsel %vm943, %v1400, %v1399
  %v1402 = vrot.slane %v936, 4
  %v1403 = vsel %vm946, %v1402, %v1401
  %v1404 = vrot.slane %v937, 3
  %v1405 = vsel %vm949, %v1404, %v1403
  %v1406 = vrot.slane %v938, 2
  %v1407 = vsel %vm952, %v1406, %v1405
  %v1408 = vrot.slane %v939, 1
  %v1409 = vsel %vm955, %v1408, %v1407
  %v1410 = vsel %vm958, %v940, %v1409
  %v1411 = vrot.slane %v941, 7
  %v1412 = vsel %vm961, %v1411, %v1410
  %v1413 = vpack.c.b16 %v1412, %v1412
  %v1418 = vunpack.c.l.b16 %v1395
  %v1419 = vunpack.c.l.b16 %v1396
  %v1420 = vunpack.c.l.b16 %v1397
  %v1421 = vunpack.c.l.b16 %v1398
  %v1422 = vpack.c.b16 %v1419, %v1418
  %v1423 = vpack.c.b16 %v1421, %v1420
  %v1427 = vsel %vm976, %v1413, 0
  %1429 = vmatprep.subr.bf16.mxu0 0
  %1430 = vmatpush1.bf16.msra.mxu0 0
  %1431 = vmatprep.subr.bf16.mxu0 0
  %1432 = vmatpush1.bf16.msra.mxu0 0
  %1433 = vmatprep.subr.bf16.mxu0 0
  %1434 = vmatpush1.bf16.msra.mxu0 0
  %1435 = vmatprep.subr.bf16.mxu0 0
  %1436 = vmatpush1.bf16.msra.mxu0 0
  %1437 = vmatprep.subr.bf16.mxu0 0
  %1438 = vmatpush1.bf16.msra.mxu0 0
  %1439 = vmatprep.subr.bf16.mxu0 0
  %1440 = vmatpush1.bf16.msra.mxu0 0
  %1441 = vmatprep.subr.bf16.mxu0 0
  %1442 = vmatpush1.bf16.msra.mxu0 %v1423
  %1443 = vmatprep.subr.bf16.mxu0 0
  %1444 = vmatpush1.bf16.msra.mxu0 %v1422
  %1445 = vmatprep.subr.bf16.mxu0 0
  %1446 = vmatpush2.bf16.msra.mxu0 0
  %1447 = vmatprep.subr.bf16.mxu0 0
  %1448 = vmatpush2.bf16.msra.mxu0 0
  %1449 = vmatprep.subr.bf16.mxu0 0
  %1450 = vmatpush2.bf16.msra.mxu0 0
  %1451 = vmatprep.subr.bf16.mxu0 0
  %1452 = vmatpush2.bf16.msra.mxu0 0
  %1453 = vmatprep.subr.bf16.mxu0 0
  %1454 = vmatpush2.bf16.msra.mxu0 0
  %1455 = vmatprep.subr.bf16.mxu0 0
  %1456 = vmatpush2.bf16.msra.mxu0 0
  %1457 = vmatprep.subr.bf16.mxu0 0
  %1458 = vmatpush2.bf16.msra.mxu0 0
  %1459 = vmatprep.subr.bf16.mxu0 0
  %1460 = vmatpush2.bf16.msra.mxu0 0
  %1461 = vmatprep.mubr.bf16.mxu0 0
  %1462 = vmatmul.mubr.bf16.gmra.mxu0 %v1427
  %v1463 = vpop.f32.mrf.mxu0
  %v1464 = vadd.f32 0.0, %v1463
  %v1465 = vpop.f32.mrf.mxu0
  %v1466 = vpop.f32.mrf.mxu0
  %v1467 = vpop.f32.mrf.mxu0
  %1468 = vdwg.mxu0
  %v1469 = vadd.f32 %v1393, %v1464
  %s1470 = scalar_lea.vmem %s3, 112
  %v1471 = vld [vmem:[%s1470] sm:$0xf]
  %v1472 = vld [vmem:[%s1470 + $0x4] sm:$0xf]
  %v1473 = vld [vmem:[%s1470 + $0x8] sm:$0xf]
  %v1474 = vld [vmem:[%s1470 + $0xc] sm:$0xf]
  %v1475 = vrot.slane %v934, 7
  %v1476 = vrot.slane %v935, 6
  %v1477 = vsel %vm943, %v1476, %v1475
  %v1478 = vrot.slane %v936, 5
  %v1479 = vsel %vm946, %v1478, %v1477
  %v1480 = vrot.slane %v937, 4
  %v1481 = vsel %vm949, %v1480, %v1479
  %v1482 = vrot.slane %v938, 3
  %v1483 = vsel %vm952, %v1482, %v1481
  %v1484 = vrot.slane %v939, 2
  %v1485 = vsel %vm955, %v1484, %v1483
  %v1486 = vrot.slane %v940, 1
  %v1487 = vsel %vm958, %v1486, %v1485
  %v1488 = vsel %vm961, %v941, %v1487
  %v1489 = vpack.c.b16 %v1488, %v1488
  %v1494 = vunpack.c.l.b16 %v1471
  %v1495 = vunpack.c.l.b16 %v1472
  %v1496 = vunpack.c.l.b16 %v1473
  %v1497 = vunpack.c.l.b16 %v1474
  %v1498 = vpack.c.b16 %v1495, %v1494
  %v1499 = vpack.c.b16 %v1497, %v1496
  %v1503 = vsel %vm976, %v1489, 0
  %1505 = vmatprep.subr.bf16.mxu0 0
  %1506 = vmatpush1.bf16.msra.mxu0 0
  %1507 = vmatprep.subr.bf16.mxu0 0
  %1508 = vmatpush1.bf16.msra.mxu0 0
  %1509 = vmatprep.subr.bf16.mxu0 0
  %1510 = vmatpush1.bf16.msra.mxu0 0
  %1511 = vmatprep.subr.bf16.mxu0 0
  %1512 = vmatpush1.bf16.msra.mxu0 0
  %1513 = vmatprep.subr.bf16.mxu0 0
  %1514 = vmatpush1.bf16.msra.mxu0 0
  %1515 = vmatprep.subr.bf16.mxu0 0
  %1516 = vmatpush1.bf16.msra.mxu0 0
  %1517 = vmatprep.subr.bf16.mxu0 0
  %1518 = vmatpush1.bf16.msra.mxu0 %v1499
  %1519 = vmatprep.subr.bf16.mxu0 0
  %1520 = vmatpush1.bf16.msra.mxu0 %v1498
  %1521 = vmatprep.subr.bf16.mxu0 0
  %1522 = vmatpush2.bf16.msra.mxu0 0
  %1523 = vmatprep.subr.bf16.mxu0 0
  %1524 = vmatpush2.bf16.msra.mxu0 0
  %1525 = vmatprep.subr.bf16.mxu0 0
  %1526 = vmatpush2.bf16.msra.mxu0 0
  %1527 = vmatprep.subr.bf16.mxu0 0
  %1528 = vmatpush2.bf16.msra.mxu0 0
  %1529 = vmatprep.subr.bf16.mxu0 0
  %1530 = vmatpush2.bf16.msra.mxu0 0
  %1531 = vmatprep.subr.bf16.mxu0 0
  %1532 = vmatpush2.bf16.msra.mxu0 0
  %1533 = vmatprep.subr.bf16.mxu0 0
  %1534 = vmatpush2.bf16.msra.mxu0 0
  %1535 = vmatprep.subr.bf16.mxu0 0
  %1536 = vmatpush2.bf16.msra.mxu0 0
  %1537 = vmatprep.mubr.bf16.mxu0 0
  %1538 = vmatmul.mubr.bf16.gmra.mxu0 %v1503
  %v1539 = vpop.f32.mrf.mxu0
  %v1540 = vadd.f32 0.0, %v1539
  %v1541 = vpop.f32.mrf.mxu0
  %v1542 = vpop.f32.mrf.mxu0
  %v1543 = vpop.f32.mrf.mxu0
  %1544 = vdwg.mxu0
  %v1545 = vadd.f32 %v1469, %v1540
  %s1546 = scalar_lea.vmem %s3, 128
  %v1547 = vld [vmem:[%s1546] sm:$0xf]
  %v1548 = vld [vmem:[%s1546 + $0x4] sm:$0xf]
  %v1549 = vld [vmem:[%s1546 + $0x8] sm:$0xf]
  %v1550 = vld [vmem:[%s1546 + $0xc] sm:$0xf]
  %v1551 = vunpack.c.h.b16 %v909
  %v1552 = vunpack.c.h.b16 %v910
  %v1553 = vunpack.c.h.b16 %v911
  %v1554 = vunpack.c.h.b16 %v912
  %v1555 = vunpack.c.h.b16 %v913
  %v1556 = vunpack.c.h.b16 %v914
  %v1557 = vunpack.c.h.b16 %v915
  %v1558 = vunpack.c.h.b16 %v916
  %v1559 = vrot.slane %v1552, 7
  %v1560 = vsel %vm943, %v1559, %v1551
  %v1561 = vrot.slane %v1553, 6
  %v1562 = vsel %vm946, %v1561, %v1560
  %v1563 = vrot.slane %v1554, 5
  %v1564 = vsel %vm949, %v1563, %v1562
  %v1565 = vrot.slane %v1555, 4
  %v1566 = vsel %vm952, %v1565, %v1564
  %v1567 = vrot.slane %v1556, 3
  %v1568 = vsel %vm955, %v1567, %v1566
  %v1569 = vrot.slane %v1557, 2
  %v1570 = vsel %vm958, %v1569, %v1568
  %v1571 = vrot.slane %v1558, 1
  %v1572 = vsel %vm961, %v1571, %v1570
  %v1573 = vpack.c.b16 %v1572, %v1572
  %v1578 = vunpack.c.l.b16 %v1547
  %v1579 = vunpack.c.l.b16 %v1548
  %v1580 = vunpack.c.l.b16 %v1549
  %v1581 = vunpack.c.l.b16 %v1550
  %v1582 = vpack.c.b16 %v1579, %v1578
  %v1583 = vpack.c.b16 %v1581, %v1580
  %v1587 = vsel %vm976, %v1573, 0
  %1589 = vmatprep.subr.bf16.mxu0 0
  %1590 = vmatpush1.bf16.msra.mxu0 0
  %1591 = vmatprep.subr.bf16.mxu0 0
  %1592 = vmatpush1.bf16.msra.mxu0 0
  %1593 = vmatprep.subr.bf16.mxu0 0
  %1594 = vmatpush1.bf16.msra.mxu0 0
  %1595 = vmatprep.subr.bf16.mxu0 0
  %1596 = vmatpush1.bf16.msra.mxu0 0
  %1597 = vmatprep.subr.bf16.mxu0 0
  %1598 = vmatpush1.bf16.msra.mxu0 0
  %1599 = vmatprep.subr.bf16.mxu0 0
  %1600 = vmatpush1.bf16.msra.mxu0 0
  %1601 = vmatprep.subr.bf16.mxu0 0
  %1602 = vmatpush1.bf16.msra.mxu0 %v1583
  %1603 = vmatprep.subr.bf16.mxu0 0
  %1604 = vmatpush1.bf16.msra.mxu0 %v1582
  %1605 = vmatprep.subr.bf16.mxu0 0
  %1606 = vmatpush2.bf16.msra.mxu0 0
  %1607 = vmatprep.subr.bf16.mxu0 0
  %1608 = vmatpush2.bf16.msra.mxu0 0
  %1609 = vmatprep.subr.bf16.mxu0 0
  %1610 = vmatpush2.bf16.msra.mxu0 0
  %1611 = vmatprep.subr.bf16.mxu0 0
  %1612 = vmatpush2.bf16.msra.mxu0 0
  %1613 = vmatprep.subr.bf16.mxu0 0
  %1614 = vmatpush2.bf16.msra.mxu0 0
  %1615 = vmatprep.subr.bf16.mxu0 0
  %1616 = vmatpush2.bf16.msra.mxu0 0
  %1617 = vmatprep.subr.bf16.mxu0 0
  %1618 = vmatpush2.bf16.msra.mxu0 0
  %1619 = vmatprep.subr.bf16.mxu0 0
  %1620 = vmatpush2.bf16.msra.mxu0 0
  %1621 = vmatprep.mubr.bf16.mxu0 0
  %1622 = vmatmul.mubr.bf16.gmra.mxu0 %v1587
  %v1623 = vpop.f32.mrf.mxu0
  %v1624 = vadd.f32 0.0, %v1623
  %v1625 = vpop.f32.mrf.mxu0
  %v1626 = vpop.f32.mrf.mxu0
  %v1627 = vpop.f32.mrf.mxu0
  %1628 = vdwg.mxu0
  %v1629 = vadd.f32 %v1545, %v1624
  %s1630 = scalar_lea.vmem %s3, 144
  %v1631 = vld [vmem:[%s1630] sm:$0xf]
  %v1632 = vld [vmem:[%s1630 + $0x4] sm:$0xf]
  %v1633 = vld [vmem:[%s1630 + $0x8] sm:$0xf]
  %v1634 = vld [vmem:[%s1630 + $0xc] sm:$0xf]
  %v1635 = vrot.slane %v1551, 1
  %v1636 = vsel %vm943, %v1552, %v1635
  %v1637 = vrot.slane %v1553, 7
  %v1638 = vsel %vm946, %v1637, %v1636
  %v1639 = vrot.slane %v1554, 6
  %v1640 = vsel %vm949, %v1639, %v1638
  %v1641 = vrot.slane %v1555, 5
  %v1642 = vsel %vm952, %v1641, %v1640
  %v1643 = vrot.slane %v1556, 4
  %v1644 = vsel %vm955, %v1643, %v1642
  %v1645 = vrot.slane %v1557, 3
  %v1646 = vsel %vm958, %v1645, %v1644
  %v1647 = vrot.slane %v1558, 2
  %v1648 = vsel %vm961, %v1647, %v1646
  %v1649 = vpack.c.b16 %v1648, %v1648
  %v1654 = vunpack.c.l.b16 %v1631
  %v1655 = vunpack.c.l.b16 %v1632
  %v1656 = vunpack.c.l.b16 %v1633
  %v1657 = vunpack.c.l.b16 %v1634
  %v1658 = vpack.c.b16 %v1655, %v1654
  %v1659 = vpack.c.b16 %v1657, %v1656
  %v1663 = vsel %vm976, %v1649, 0
  %1665 = vmatprep.subr.bf16.mxu0 0
  %1666 = vmatpush1.bf16.msra.mxu0 0
  %1667 = vmatprep.subr.bf16.mxu0 0
  %1668 = vmatpush1.bf16.msra.mxu0 0
  %1669 = vmatprep.subr.bf16.mxu0 0
  %1670 = vmatpush1.bf16.msra.mxu0 0
  %1671 = vmatprep.subr.bf16.mxu0 0
  %1672 = vmatpush1.bf16.msra.mxu0 0
  %1673 = vmatprep.subr.bf16.mxu0 0
  %1674 = vmatpush1.bf16.msra.mxu0 0
  %1675 = vmatprep.subr.bf16.mxu0 0
  %1676 = vmatpush1.bf16.msra.mxu0 0
  %1677 = vmatprep.subr.bf16.mxu0 0
  %1678 = vmatpush1.bf16.msra.mxu0 %v1659
  %1679 = vmatprep.subr.bf16.mxu0 0
  %1680 = vmatpush1.bf16.msra.mxu0 %v1658
  %1681 = vmatprep.subr.bf16.mxu0 0
  %1682 = vmatpush2.bf16.msra.mxu0 0
  %1683 = vmatprep.subr.bf16.mxu0 0
  %1684 = vmatpush2.bf16.msra.mxu0 0
  %1685 = vmatprep.subr.bf16.mxu0 0
  %1686 = vmatpush2.bf16.msra.mxu0 0
  %1687 = vmatprep.subr.bf16.mxu0 0
  %1688 = vmatpush2.bf16.msra.mxu0 0
  %1689 = vmatprep.subr.bf16.mxu0 0
  %1690 = vmatpush2.bf16.msra.mxu0 0
  %1691 = vmatprep.subr.bf16.mxu0 0
  %1692 = vmatpush2.bf16.msra.mxu0 0
  %1693 = vmatprep.subr.bf16.mxu0 0
  %1694 = vmatpush2.bf16.msra.mxu0 0
  %1695 = vmatprep.subr.bf16.mxu0 0
  %1696 = vmatpush2.bf16.msra.mxu0 0
  %1697 = vmatprep.mubr.bf16.mxu0 0
  %1698 = vmatmul.mubr.bf16.gmra.mxu0 %v1663
  %v1699 = vpop.f32.mrf.mxu0
  %v1700 = vadd.f32 0.0, %v1699
  %v1701 = vpop.f32.mrf.mxu0
  %v1702 = vpop.f32.mrf.mxu0
  %v1703 = vpop.f32.mrf.mxu0
  %1704 = vdwg.mxu0
  %v1705 = vadd.f32 %v1629, %v1700
  %s1706 = scalar_lea.vmem %s3, 160
  %v1707 = vld [vmem:[%s1706] sm:$0xf]
  %v1708 = vld [vmem:[%s1706 + $0x4] sm:$0xf]
  %v1709 = vld [vmem:[%s1706 + $0x8] sm:$0xf]
  %v1710 = vld [vmem:[%s1706 + $0xc] sm:$0xf]
  %v1711 = vrot.slane %v1551, 2
  %v1712 = vrot.slane %v1552, 1
  %v1713 = vsel %vm943, %v1712, %v1711
  %v1714 = vsel %vm946, %v1553, %v1713
  %v1715 = vrot.slane %v1554, 7
  %v1716 = vsel %vm949, %v1715, %v1714
  %v1717 = vrot.slane %v1555, 6
  %v1718 = vsel %vm952, %v1717, %v1716
  %v1719 = vrot.slane %v1556, 5
  %v1720 = vsel %vm955, %v1719, %v1718
  %v1721 = vrot.slane %v1557, 4
  %v1722 = vsel %vm958, %v1721, %v1720
  %v1723 = vrot.slane %v1558, 3
  %v1724 = vsel %vm961, %v1723, %v1722
  %v1725 = vpack.c.b16 %v1724, %v1724
  %v1730 = vunpack.c.l.b16 %v1707
  %v1731 = vunpack.c.l.b16 %v1708
  %v1732 = vunpack.c.l.b16 %v1709
  %v1733 = vunpack.c.l.b16 %v1710
  %v1734 = vpack.c.b16 %v1731, %v1730
  %v1735 = vpack.c.b16 %v1733, %v1732
  %v1739 = vsel %vm976, %v1725, 0
  %1741 = vmatprep.subr.bf16.mxu0 0
  %1742 = vmatpush1.bf16.msra.mxu0 0
  %1743 = vmatprep.subr.bf16.mxu0 0
  %1744 = vmatpush1.bf16.msra.mxu0 0
  %1745 = vmatprep.subr.bf16.mxu0 0
  %1746 = vmatpush1.bf16.msra.mxu0 0
  %1747 = vmatprep.subr.bf16.mxu0 0
  %1748 = vmatpush1.bf16.msra.mxu0 0
  %1749 = vmatprep.subr.bf16.mxu0 0
  %1750 = vmatpush1.bf16.msra.mxu0 0
  %1751 = vmatprep.subr.bf16.mxu0 0
  %1752 = vmatpush1.bf16.msra.mxu0 0
  %1753 = vmatprep.subr.bf16.mxu0 0
  %1754 = vmatpush1.bf16.msra.mxu0 %v1735
  %1755 = vmatprep.subr.bf16.mxu0 0
  %1756 = vmatpush1.bf16.msra.mxu0 %v1734
  %1757 = vmatprep.subr.bf16.mxu0 0
  %1758 = vmatpush2.bf16.msra.mxu0 0
  %1759 = vmatprep.subr.bf16.mxu0 0
  %1760 = vmatpush2.bf16.msra.mxu0 0
  %1761 = vmatprep.subr.bf16.mxu0 0
  %1762 = vmatpush2.bf16.msra.mxu0 0
  %1763 = vmatprep.subr.bf16.mxu0 0
  %1764 = vmatpush2.bf16.msra.mxu0 0
  %1765 = vmatprep.subr.bf16.mxu0 0
  %1766 = vmatpush2.bf16.msra.mxu0 0
  %1767 = vmatprep.subr.bf16.mxu0 0
  %1768 = vmatpush2.bf16.msra.mxu0 0
  %1769 = vmatprep.subr.bf16.mxu0 0
  %1770 = vmatpush2.bf16.msra.mxu0 0
  %1771 = vmatprep.subr.bf16.mxu0 0
  %1772 = vmatpush2.bf16.msra.mxu0 0
  %1773 = vmatprep.mubr.bf16.mxu0 0
  %1774 = vmatmul.mubr.bf16.gmra.mxu0 %v1739
  %v1775 = vpop.f32.mrf.mxu0
  %v1776 = vadd.f32 0.0, %v1775
  %v1777 = vpop.f32.mrf.mxu0
  %v1778 = vpop.f32.mrf.mxu0
  %v1779 = vpop.f32.mrf.mxu0
  %1780 = vdwg.mxu0
  %v1781 = vadd.f32 %v1705, %v1776
  %s1782 = scalar_lea.vmem %s3, 176
  %v1783 = vld [vmem:[%s1782] sm:$0xf]
  %v1784 = vld [vmem:[%s1782 + $0x4] sm:$0xf]
  %v1785 = vld [vmem:[%s1782 + $0x8] sm:$0xf]
  %v1786 = vld [vmem:[%s1782 + $0xc] sm:$0xf]
  %v1787 = vrot.slane %v1551, 3
  %v1788 = vrot.slane %v1552, 2
  %v1789 = vsel %vm943, %v1788, %v1787
  %v1790 = vrot.slane %v1553, 1
  %v1791 = vsel %vm946, %v1790, %v1789
  %v1792 = vsel %vm949, %v1554, %v1791
  %v1793 = vrot.slane %v1555, 7
  %v1794 = vsel %vm952, %v1793, %v1792
  %v1795 = vrot.slane %v1556, 6
  %v1796 = vsel %vm955, %v1795, %v1794
  %v1797 = vrot.slane %v1557, 5
  %v1798 = vsel %vm958, %v1797, %v1796
  %v1799 = vrot.slane %v1558, 4
  %v1800 = vsel %vm961, %v1799, %v1798
  %v1801 = vpack.c.b16 %v1800, %v1800
  %v1806 = vunpack.c.l.b16 %v1783
  %v1807 = vunpack.c.l.b16 %v1784
  %v1808 = vunpack.c.l.b16 %v1785
  %v1809 = vunpack.c.l.b16 %v1786
  %v1810 = vpack.c.b16 %v1807, %v1806
  %v1811 = vpack.c.b16 %v1809, %v1808
  %v1815 = vsel %vm976, %v1801, 0
  %1817 = vmatprep.subr.bf16.mxu0 0
  %1818 = vmatpush1.bf16.msra.mxu0 0
  %1819 = vmatprep.subr.bf16.mxu0 0
  %1820 = vmatpush1.bf16.msra.mxu0 0
  %1821 = vmatprep.subr.bf16.mxu0 0
  %1822 = vmatpush1.bf16.msra.mxu0 0
  %1823 = vmatprep.subr.bf16.mxu0 0
  %1824 = vmatpush1.bf16.msra.mxu0 0
  %1825 = vmatprep.subr.bf16.mxu0 0
  %1826 = vmatpush1.bf16.msra.mxu0 0
  %1827 = vmatprep.subr.bf16.mxu0 0
  %1828 = vmatpush1.bf16.msra.mxu0 0
  %1829 = vmatprep.subr.bf16.mxu0 0
  %1830 = vmatpush1.bf16.msra.mxu0 %v1811
  %1831 = vmatprep.subr.bf16.mxu0 0
  %1832 = vmatpush1.bf16.msra.mxu0 %v1810
  %1833 = vmatprep.subr.bf16.mxu0 0
  %1834 = vmatpush2.bf16.msra.mxu0 0
  %1835 = vmatprep.subr.bf16.mxu0 0
  %1836 = vmatpush2.bf16.msra.mxu0 0
  %1837 = vmatprep.subr.bf16.mxu0 0
  %1838 = vmatpush2.bf16.msra.mxu0 0
  %1839 = vmatprep.subr.bf16.mxu0 0
  %1840 = vmatpush2.bf16.msra.mxu0 0
  %1841 = vmatprep.subr.bf16.mxu0 0
  %1842 = vmatpush2.bf16.msra.mxu0 0
  %1843 = vmatprep.subr.bf16.mxu0 0
  %1844 = vmatpush2.bf16.msra.mxu0 0
  %1845 = vmatprep.subr.bf16.mxu0 0
  %1846 = vmatpush2.bf16.msra.mxu0 0
  %1847 = vmatprep.subr.bf16.mxu0 0
  %1848 = vmatpush2.bf16.msra.mxu0 0
  %1849 = vmatprep.mubr.bf16.mxu0 0
  %1850 = vmatmul.mubr.bf16.gmra.mxu0 %v1815
  %v1851 = vpop.f32.mrf.mxu0
  %v1852 = vadd.f32 0.0, %v1851
  %v1853 = vpop.f32.mrf.mxu0
  %v1854 = vpop.f32.mrf.mxu0
  %v1855 = vpop.f32.mrf.mxu0
  %1856 = vdwg.mxu0
  %v1857 = vadd.f32 %v1781, %v1852
  %s1858 = scalar_lea.vmem %s3, 192
  %v1859 = vld [vmem:[%s1858] sm:$0xf]
  %v1860 = vld [vmem:[%s1858 + $0x4] sm:$0xf]
  %v1861 = vld [vmem:[%s1858 + $0x8] sm:$0xf]
  %v1862 = vld [vmem:[%s1858 + $0xc] sm:$0xf]
  %v1863 = vrot.slane %v1551, 4
  %v1864 = vrot.slane %v1552, 3
  %v1865 = vsel %vm943, %v1864, %v1863
  %v1866 = vrot.slane %v1553, 2
  %v1867 = vsel %vm946, %v1866, %v1865
  %v1868 = vrot.slane %v1554, 1
  %v1869 = vsel %vm949, %v1868, %v1867
  %v1870 = vsel %vm952, %v1555, %v1869
  %v1871 = vrot.slane %v1556, 7
  %v1872 = vsel %vm955, %v1871, %v1870
  %v1873 = vrot.slane %v1557, 6
  %v1874 = vsel %vm958, %v1873, %v1872
  %v1875 = vrot.slane %v1558, 5
  %v1876 = vsel %vm961, %v1875, %v1874
  %v1877 = vpack.c.b16 %v1876, %v1876
  %v1882 = vunpack.c.l.b16 %v1859
  %v1883 = vunpack.c.l.b16 %v1860
  %v1884 = vunpack.c.l.b16 %v1861
  %v1885 = vunpack.c.l.b16 %v1862
  %v1886 = vpack.c.b16 %v1883, %v1882
  %v1887 = vpack.c.b16 %v1885, %v1884
  %v1891 = vsel %vm976, %v1877, 0
  %1893 = vmatprep.subr.bf16.mxu0 0
  %1894 = vmatpush1.bf16.msra.mxu0 0
  %1895 = vmatprep.subr.bf16.mxu0 0
  %1896 = vmatpush1.bf16.msra.mxu0 0
  %1897 = vmatprep.subr.bf16.mxu0 0
  %1898 = vmatpush1.bf16.msra.mxu0 0
  %1899 = vmatprep.subr.bf16.mxu0 0
  %1900 = vmatpush1.bf16.msra.mxu0 0
  %1901 = vmatprep.subr.bf16.mxu0 0
  %1902 = vmatpush1.bf16.msra.mxu0 0
  %1903 = vmatprep.subr.bf16.mxu0 0
  %1904 = vmatpush1.bf16.msra.mxu0 0
  %1905 = vmatprep.subr.bf16.mxu0 0
  %1906 = vmatpush1.bf16.msra.mxu0 %v1887
  %1907 = vmatprep.subr.bf16.mxu0 0
  %1908 = vmatpush1.bf16.msra.mxu0 %v1886
  %1909 = vmatprep.subr.bf16.mxu0 0
  %1910 = vmatpush2.bf16.msra.mxu0 0
  %1911 = vmatprep.subr.bf16.mxu0 0
  %1912 = vmatpush2.bf16.msra.mxu0 0
  %1913 = vmatprep.subr.bf16.mxu0 0
  %1914 = vmatpush2.bf16.msra.mxu0 0
  %1915 = vmatprep.subr.bf16.mxu0 0
  %1916 = vmatpush2.bf16.msra.mxu0 0
  %1917 = vmatprep.subr.bf16.mxu0 0
  %1918 = vmatpush2.bf16.msra.mxu0 0
  %1919 = vmatprep.subr.bf16.mxu0 0
  %1920 = vmatpush2.bf16.msra.mxu0 0
  %1921 = vmatprep.subr.bf16.mxu0 0
  %1922 = vmatpush2.bf16.msra.mxu0 0
  %1923 = vmatprep.subr.bf16.mxu0 0
  %1924 = vmatpush2.bf16.msra.mxu0 0
  %1925 = vmatprep.mubr.bf16.mxu0 0
  %1926 = vmatmul.mubr.bf16.gmra.mxu0 %v1891
  %v1927 = vpop.f32.mrf.mxu0
  %v1928 = vadd.f32 0.0, %v1927
  %v1929 = vpop.f32.mrf.mxu0
  %v1930 = vpop.f32.mrf.mxu0
  %v1931 = vpop.f32.mrf.mxu0
  %1932 = vdwg.mxu0
  %v1933 = vadd.f32 %v1857, %v1928
  %s1934 = scalar_lea.vmem %s3, 208
  %v1935 = vld [vmem:[%s1934] sm:$0xf]
  %v1936 = vld [vmem:[%s1934 + $0x4] sm:$0xf]
  %v1937 = vld [vmem:[%s1934 + $0x8] sm:$0xf]
  %v1938 = vld [vmem:[%s1934 + $0xc] sm:$0xf]
  %v1939 = vrot.slane %v1551, 5
  %v1940 = vrot.slane %v1552, 4
  %v1941 = vsel %vm943, %v1940, %v1939
  %v1942 = vrot.slane %v1553, 3
  %v1943 = vsel %vm946, %v1942, %v1941
  %v1944 = vrot.slane %v1554, 2
  %v1945 = vsel %vm949, %v1944, %v1943
  %v1946 = vrot.slane %v1555, 1
  %v1947 = vsel %vm952, %v1946, %v1945
  %v1948 = vsel %vm955, %v1556, %v1947
  %v1949 = vrot.slane %v1557, 7
  %v1950 = vsel %vm958, %v1949, %v1948
  %v1951 = vrot.slane %v1558, 6
  %v1952 = vsel %vm961, %v1951, %v1950
  %v1953 = vpack.c.b16 %v1952, %v1952
  %v1958 = vunpack.c.l.b16 %v1935
  %v1959 = vunpack.c.l.b16 %v1936
  %v1960 = vunpack.c.l.b16 %v1937
  %v1961 = vunpack.c.l.b16 %v1938
  %v1962 = vpack.c.b16 %v1959, %v1958
  %v1963 = vpack.c.b16 %v1961, %v1960
  %v1967 = vsel %vm976, %v1953, 0
  %1969 = vmatprep.subr.bf16.mxu0 0
  %1970 = vmatpush1.bf16.msra.mxu0 0
  %1971 = vmatprep.subr.bf16.mxu0 0
  %1972 = vmatpush1.bf16.msra.mxu0 0
  %1973 = vmatprep.subr.bf16.mxu0 0
  %1974 = vmatpush1.bf16.msra.mxu0 0
  %1975 = vmatprep.subr.bf16.mxu0 0
  %1976 = vmatpush1.bf16.msra.mxu0 0
  %1977 = vmatprep.subr.bf16.mxu0 0
  %1978 = vmatpush1.bf16.msra.mxu0 0
  %1979 = vmatprep.subr.bf16.mxu0 0
  %1980 = vmatpush1.bf16.msra.mxu0 0
  %1981 = vmatprep.subr.bf16.mxu0 0
  %1982 = vmatpush1.bf16.msra.mxu0 %v1963
  %1983 = vmatprep.subr.bf16.mxu0 0
  %1984 = vmatpush1.bf16.msra.mxu0 %v1962
  %1985 = vmatprep.subr.bf16.mxu0 0
  %1986 = vmatpush2.bf16.msra.mxu0 0
  %1987 = vmatprep.subr.bf16.mxu0 0
  %1988 = vmatpush2.bf16.msra.mxu0 0
  %1989 = vmatprep.subr.bf16.mxu0 0
  %1990 = vmatpush2.bf16.msra.mxu0 0
  %1991 = vmatprep.subr.bf16.mxu0 0
  %1992 = vmatpush2.bf16.msra.mxu0 0
  %1993 = vmatprep.subr.bf16.mxu0 0
  %1994 = vmatpush2.bf16.msra.mxu0 0
  %1995 = vmatprep.subr.bf16.mxu0 0
  %1996 = vmatpush2.bf16.msra.mxu0 0
  %1997 = vmatprep.subr.bf16.mxu0 0
  %1998 = vmatpush2.bf16.msra.mxu0 0
  %1999 = vmatprep.subr.bf16.mxu0 0
  %2000 = vmatpush2.bf16.msra.mxu0 0
  %2001 = vmatprep.mubr.bf16.mxu0 0
  %2002 = vmatmul.mubr.bf16.gmra.mxu0 %v1967
  %v2003 = vpop.f32.mrf.mxu0
  %v2004 = vadd.f32 0.0, %v2003
  %v2005 = vpop.f32.mrf.mxu0
  %v2006 = vpop.f32.mrf.mxu0
  %v2007 = vpop.f32.mrf.mxu0
  %2008 = vdwg.mxu0
  %v2009 = vadd.f32 %v1933, %v2004
  %s2010 = scalar_lea.vmem %s3, 224
  %v2011 = vld [vmem:[%s2010] sm:$0xf]
  %v2012 = vld [vmem:[%s2010 + $0x4] sm:$0xf]
  %v2013 = vld [vmem:[%s2010 + $0x8] sm:$0xf]
  %v2014 = vld [vmem:[%s2010 + $0xc] sm:$0xf]
  %v2015 = vrot.slane %v1551, 6
  %v2016 = vrot.slane %v1552, 5
  %v2017 = vsel %vm943, %v2016, %v2015
  %v2018 = vrot.slane %v1553, 4
  %v2019 = vsel %vm946, %v2018, %v2017
  %v2020 = vrot.slane %v1554, 3
  %v2021 = vsel %vm949, %v2020, %v2019
  %v2022 = vrot.slane %v1555, 2
  %v2023 = vsel %vm952, %v2022, %v2021
  %v2024 = vrot.slane %v1556, 1
  %v2025 = vsel %vm955, %v2024, %v2023
  %v2026 = vsel %vm958, %v1557, %v2025
  %v2027 = vrot.slane %v1558, 7
  %v2028 = vsel %vm961, %v2027, %v2026
  %v2029 = vpack.c.b16 %v2028, %v2028
  %v2034 = vunpack.c.l.b16 %v2011
  %v2035 = vunpack.c.l.b16 %v2012
  %v2036 = vunpack.c.l.b16 %v2013
  %v2037 = vunpack.c.l.b16 %v2014
  %v2038 = vpack.c.b16 %v2035, %v2034
  %v2039 = vpack.c.b16 %v2037, %v2036
  %v2043 = vsel %vm976, %v2029, 0
  %2045 = vmatprep.subr.bf16.mxu0 0
  %2046 = vmatpush1.bf16.msra.mxu0 0
  %2047 = vmatprep.subr.bf16.mxu0 0
  %2048 = vmatpush1.bf16.msra.mxu0 0
  %2049 = vmatprep.subr.bf16.mxu0 0
  %2050 = vmatpush1.bf16.msra.mxu0 0
  %2051 = vmatprep.subr.bf16.mxu0 0
  %2052 = vmatpush1.bf16.msra.mxu0 0
  %2053 = vmatprep.subr.bf16.mxu0 0
  %2054 = vmatpush1.bf16.msra.mxu0 0
  %2055 = vmatprep.subr.bf16.mxu0 0
  %2056 = vmatpush1.bf16.msra.mxu0 0
  %2057 = vmatprep.subr.bf16.mxu0 0
  %2058 = vmatpush1.bf16.msra.mxu0 %v2039
  %2059 = vmatprep.subr.bf16.mxu0 0
  %2060 = vmatpush1.bf16.msra.mxu0 %v2038
  %2061 = vmatprep.subr.bf16.mxu0 0
  %2062 = vmatpush2.bf16.msra.mxu0 0
  %2063 = vmatprep.subr.bf16.mxu0 0
  %2064 = vmatpush2.bf16.msra.mxu0 0
  %2065 = vmatprep.subr.bf16.mxu0 0
  %2066 = vmatpush2.bf16.msra.mxu0 0
  %2067 = vmatprep.subr.bf16.mxu0 0
  %2068 = vmatpush2.bf16.msra.mxu0 0
  %2069 = vmatprep.subr.bf16.mxu0 0
  %2070 = vmatpush2.bf16.msra.mxu0 0
  %2071 = vmatprep.subr.bf16.mxu0 0
  %2072 = vmatpush2.bf16.msra.mxu0 0
  %2073 = vmatprep.subr.bf16.mxu0 0
  %2074 = vmatpush2.bf16.msra.mxu0 0
  %2075 = vmatprep.subr.bf16.mxu0 0
  %2076 = vmatpush2.bf16.msra.mxu0 0
  %2077 = vmatprep.mubr.bf16.mxu0 0
  %2078 = vmatmul.mubr.bf16.gmra.mxu0 %v2043
  %v2079 = vpop.f32.mrf.mxu0
  %v2080 = vadd.f32 0.0, %v2079
  %v2081 = vpop.f32.mrf.mxu0
  %v2082 = vpop.f32.mrf.mxu0
  %v2083 = vpop.f32.mrf.mxu0
  %2084 = vdwg.mxu0
  %v2085 = vadd.f32 %v2009, %v2080
  %s2086 = scalar_lea.vmem %s3, 240
  %v2087 = vld [vmem:[%s2086] sm:$0xf]
  %v2088 = vld [vmem:[%s2086 + $0x4] sm:$0xf]
  %v2089 = vld [vmem:[%s2086 + $0x8] sm:$0xf]
  %v2090 = vld [vmem:[%s2086 + $0xc] sm:$0xf]
  %v2091 = vrot.slane %v1551, 7
  %v2092 = vrot.slane %v1552, 6
  %v2093 = vsel %vm943, %v2092, %v2091
  %v2094 = vrot.slane %v1553, 5
  %v2095 = vsel %vm946, %v2094, %v2093
  %v2096 = vrot.slane %v1554, 4
  %v2097 = vsel %vm949, %v2096, %v2095
  %v2098 = vrot.slane %v1555, 3
  %v2099 = vsel %vm952, %v2098, %v2097
  %v2100 = vrot.slane %v1556, 2
  %v2101 = vsel %vm955, %v2100, %v2099
  %v2102 = vrot.slane %v1557, 1
  %v2103 = vsel %vm958, %v2102, %v2101
  %v2104 = vsel %vm961, %v1558, %v2103
  %v2105 = vpack.c.b16 %v2104, %v2104
  %v2110 = vunpack.c.l.b16 %v2087
  %v2111 = vunpack.c.l.b16 %v2088
  %v2112 = vunpack.c.l.b16 %v2089
  %v2113 = vunpack.c.l.b16 %v2090
  %v2114 = vpack.c.b16 %v2111, %v2110
  %v2115 = vpack.c.b16 %v2113, %v2112
  %v2119 = vsel %vm976, %v2105, 0
  %2121 = vmatprep.subr.bf16.mxu0 0
  %2122 = vmatpush1.bf16.msra.mxu0 0
  %2123 = vmatprep.subr.bf16.mxu0 0
  %2124 = vmatpush1.bf16.msra.mxu0 0
  %2125 = vmatprep.subr.bf16.mxu0 0
  %2126 = vmatpush1.bf16.msra.mxu0 0
  %2127 = vmatprep.subr.bf16.mxu0 0
  %2128 = vmatpush1.bf16.msra.mxu0 0
  %2129 = vmatprep.subr.bf16.mxu0 0
  %2130 = vmatpush1.bf16.msra.mxu0 0
  %2131 = vmatprep.subr.bf16.mxu0 0
  %2132 = vmatpush1.bf16.msra.mxu0 0
  %2133 = vmatprep.subr.bf16.mxu0 0
  %2134 = vmatpush1.bf16.msra.mxu0 %v2115
  %2135 = vmatprep.subr.bf16.mxu0 0
  %2136 = vmatpush1.bf16.msra.mxu0 %v2114
  %2137 = vmatprep.subr.bf16.mxu0 0
  %2138 = vmatpush2.bf16.msra.mxu0 0
  %2139 = vmatprep.subr.bf16.mxu0 0
  %2140 = vmatpush2.bf16.msra.mxu0 0
  %2141 = vmatprep.subr.bf16.mxu0 0
  %2142 = vmatpush2.bf16.msra.mxu0 0
  %2143 = vmatprep.subr.bf16.mxu0 0
  %2144 = vmatpush2.bf16.msra.mxu0 0
  %2145 = vmatprep.subr.bf16.mxu0 0
  %2146 = vmatpush2.bf16.msra.mxu0 0
  %2147 = vmatprep.subr.bf16.mxu0 0
  %2148 = vmatpush2.bf16.msra.mxu0 0
  %2149 = vmatprep.subr.bf16.mxu0 0
  %2150 = vmatpush2.bf16.msra.mxu0 0
  %2151 = vmatprep.subr.bf16.mxu0 0
  %2152 = vmatpush2.bf16.msra.mxu0 0
  %2153 = vmatprep.mubr.bf16.mxu0 0
  %2154 = vmatmul.mubr.bf16.gmra.mxu0 %v2119
  %v2155 = vpop.f32.mrf.mxu0
  %v2156 = vadd.f32 0.0, %v2155
  %v2157 = vpop.f32.mrf.mxu0
  %v2158 = vpop.f32.mrf.mxu0
  %v2159 = vpop.f32.mrf.mxu0
  %2160 = vdwg.mxu0
  %v2161 = vadd.f32 %v2085, %v2156
  %v2162 = vld [vmem:[%s4] sm:$0x1]
  %v2164 = vlaneseq
  %v2165 = vshrl.u32 %v2164, 7
  %v2166 = vsub.s32 0, %v2165
  %v2167 = vrot.slane %v2162, %v2166
  %v2169 = vadd.f32 %v2161, %v2167
  %v2170 = vmax.f32 %v2169, 0.0
  %2171 = vst [vmem:[%s5] sm:$0xff] %v2170
  // Predicated region
  $region22: #{net_forward.3} parent=0 // pred_check
    _
  $region23: #{net_forward.3} parent=0 // pred_check_branch
    %2173 = sbr.rel (0) target = $region25
  $region24: #{net_forward.3} parent=0 // pred_region
    _
  $region25: #{net_forward.3} parent=0 // pred_fallthru
    _
  // Predicated region
  $region26: #{net_forward.3} parent=0 // pred_check
    _
  $region27: #{net_forward.3} parent=0 // pred_check_branch
    %2175 = sbr.rel (0) target = $region29
  $region28: #{net_forward.3} parent=0 // pred_region
    _
  $region29: #{net_forward.3} parent=0 // pred_fallthru
    _

</llo_original>
